<compile_context>
chip_gen: v7x
topology: tpu7x:2x2x1
jax: 0.10.0
libtpu: 0.0.40
codegen_flags: <defaults>
</compile_context>

<pallas_src>
import functools

import jax
import jax.numpy as jnp
from jax.experimental import pallas as pl
from jax.experimental.pallas import tpu as pltpu


# ----------------------------- configuration (args.*) -----------------------
WITH_DIST_CORR_COMPATIBILITY = True   # not args.wo_dist_corr_compatibility
DIST_SIGMA = 1.2                      # args.dist_sigma
INITIAL_INLIER_MASK_THRESH = 0.5      # args.initial_inlier_mask_thresh

_LANE = 128
_VMEM_BUDGET = 40 * 1024 * 1024       # tile-picking budget (v7x has 64 MiB VMEM)
_VMEM_LIMIT = 48 * 1024 * 1024        # scoped limit; <= physical on v5e/v6e/v7x


def _pad_to(n, m):
    return ((n + m - 1) // m) * m


def _pick_row_tile(npad, requested=None):
    if requested and npad % requested == 0 and requested % 8 == 0:
        return requested
    for tm in (512, 256, 128):
        if npad % tm:
            continue
        # pass-2 footprint: f32 in + f32 out + bf16 out slabs, double-buffered
        if 2 * tm * npad * (4 + 4 + 2) <= _VMEM_BUDGET:
            return tm
    return _LANE


def _pick_pass3_tile(m):
    for t in (512, 256, 128):
        if m % t:
            continue
        # bf16 row panel + bf16 col panel (double-buffered) + f32 out tile
        if 2 * (2 * t * m * 2) + 2 * t * t * 4 <= _VMEM_BUDGET:
            return t
    return _LANE


# ===================== pass 1: un-normalized compatibility ==================
def _compat_unnorm_kernel(corr_row_ref, corr_t_ref, colmask_ref,
                          cc_ref, rowmax_ref, *,
                          dist_sigma, with_dist_cc, apply_colmask):
    i = pl.program_id(1)
    ct = corr_row_ref[0]                      # [TM, 6]  this tile's rows
    cT = corr_t_ref[0]                        # [6, Np]  all points, coord-major
    tm = ct.shape[0]
    npad = cT.shape[1]

    def sq_dist(base):
        # ||p_r - p_c||^2 via three VPU broadcast-diff accumulations
        acc = None
        for k in range(3):
            col = ct[:, base + k:base + k + 1]       # [TM, 1]
            row = cT[base + k:base + k + 1, :]       # [1, Np]
            d = col - row
            acc = d * d if acc is None else acc + d * d
        return acc                                    # [TM, Np]

    d2s = sq_dist(0)                                  # src squared distances
    d2t = sq_dist(3)                                  # tgt squared distances

    row_g = jax.lax.broadcasted_iota(jnp.int32, (tm, npad), 0) + i * tm
    col_g = jax.lax.broadcasted_iota(jnp.int32, (tm, npad), 1)
    eye = (row_g == col_g).astype(jnp.float32)

    # torch: ratio = min(ds/(dt+eps), dt/(ds+eps)) + eye ; cc = (ratio/0.9)^2
    # off-diagonal: ratio^2 == min(d2)/(max(d2)+eps) -> one EUP reciprocal,
    # no sqrt needed; on the diagonal ratio2 is exactly 0, so add the eye.
    d2min = jnp.minimum(d2s, d2t)
    d2max = jnp.maximum(d2s, d2t)
    ratio2 = d2min * pl.reciprocal(d2max + 1e-12, approx=True)
    cc = (ratio2 + eye) * (1.0 / (0.9 * 0.9))

    if with_dist_cc:
        # ((ds+dt)/2)^2 = (d2s + d2t + 2*sqrt(d2s*d2t)) / 4  -> single sqrt
        davg2 = (d2s + d2t + 2.0 * jnp.sqrt(d2s * d2t)) * 0.25
        dcc = jnp.maximum(1.0 - davg2 * (1.0 / (dist_sigma * dist_sigma)), 0.0)
        cc = cc * dcc

    if apply_colmask:
        # zero padded columns with one multiply (precomputed [1, Np] 0/1 mask);
        # padded rows are excluded from the global max on the host side.
        cc = cc * colmask_ref[...]

    cc_ref[0] = cc
    rowmax_ref[0] = jnp.max(cc, axis=-1, keepdims=True)


# ======== pass 2: global-max normalize + inlier mask + bf16 copy + norms =====
def _normalize_mask_kernel(inv_ref, cc_ref, ccn_ref, ccbf_ref, mask_ref,
                           sa_ref, *, inlier_thresh, n_real):
    b = pl.program_id(0)
    i = pl.program_id(1)
    s = inv_ref[b]                                    # f32 scalar from SMEM
    cc = cc_ref[0] * s                                # [TM, Np] normalized
    tm, npad = cc.shape
    ccn_ref[0] = cc

    # inlier_mask = (triu(cc, diagonal=1) > thresh).sum(-1) >= 1
    row_g = jax.lax.broadcasted_iota(jnp.int32, (tm, npad), 0) + i * tm
    col_g = jax.lax.broadcasted_iota(jnp.int32, (tm, npad), 1)
    above = jnp.logical_and(cc > inlier_thresh, col_g > row_g)
    cnt = jnp.sum(above.astype(jnp.float32), axis=-1, keepdims=True)  # [TM,1]
    mask_ref[0] = (cnt >= 1.0).astype(jnp.int32)

    if n_real < npad:
        # zero padded rows in the matmul operand so the bf16 matrix is exactly
        # symmetric (padded cols were already zeroed in pass 1) — required for
        # the transpose-free column-panel contraction in pass 3.
        cc = jnp.where(row_g < n_real, cc, 0.0)

    ccb = cc.astype(jnp.bfloat16)
    ccbf_ref[0] = ccb
    ccb32 = ccb.astype(jnp.float32)
    # row squared norms from the SAME bf16-rounded values the MXU will see
    sa_ref[0] = jnp.sum(ccb32 * ccb32, axis=-1, keepdims=True)


# ================== pass 3: batched all-pair Tanimoto (full K) ==============
def _tanimoto_kernel(a_row_ref, a_col_ref, sa_i_ref, sa_j_ref, t_ref):
    i = pl.program_id(1)
    j = pl.program_id(2)
    a = a_row_ref[0]                                  # [TI, K]  bf16 rows
    bc = a_col_ref[0]                                 # [K, TJ]  bf16 columns
    inner = jax.lax.dot_general(                      # plain A@B on the MXU
        a, bc, (((1,), (0,)), ((), ())),
        preferred_element_type=jnp.float32)           # [TI, TJ] f32
    sa_i = sa_i_ref[0]                                # [TI, 1]
    sa_j = sa_j_ref[0]                                # [1, TJ]
    denom = sa_i + sa_j - inner + 1e-12
    t = 1.0 - inner * pl.reciprocal(denom, approx=True)
    ti, tj = inner.shape
    rg = jax.lax.broadcasted_iota(jnp.int32, (ti, tj), 0) + i * ti
    cg = jax.lax.broadcasted_iota(jnp.int32, (ti, tj), 1) + j * tj
    t_ref[0] = t + (rg == cg).astype(jnp.float32)     # += eye (cluster init)


# ----------------------------- wrappers --------------------------------------
def _compat_padded(corr_pos, *, dist_sigma, inlier_thresh, with_dist_cc,
                   row_tile=None):
    """Padded [B, Np, ...] intermediates:
       (cc_norm f32, cc_bf16, mask_counts i32, row_sq f32, Np)."""
    b, n, c = corr_pos.shape
    assert c == 6
    npad = max(_pad_to(n, _LANE), _LANE)
    tm = _pick_row_tile(npad, row_tile)
    nt = npad // tm

    corr = jnp.asarray(corr_pos, jnp.float32)
    if npad != n:
        corr = jnp.pad(corr, ((0, 0), (0, npad - n), (0, 0)))
    corr_t = jnp.transpose(corr, (0, 2, 1))           # [B, 6, Np] (tiny)
    colmask = (jnp.arange(npad) < n).astype(jnp.float32).reshape(1, npad)

    k1 = functools.partial(_compat_unnorm_kernel, dist_sigma=float(dist_sigma),
                           with_dist_cc=with_dist_cc,
                           apply_colmask=(npad != n))
    cc_u, rowmax = pl.pallas_call(
        k1,
        out_shape=(jax.ShapeDtypeStruct((b, npad, npad), jnp.float32),
                   jax.ShapeDtypeStruct((b, npad, 1), jnp.float32)),
        grid_spec=pltpu.PrefetchScalarGridSpec(
            num_scalar_prefetch=0,
            grid=(b, nt),
            in_specs=[pl.BlockSpec((1, tm, 6), lambda bi, i: (bi, i, 0)),
                      pl.BlockSpec((1, 6, npad), lambda bi, i: (bi, 0, 0)),
                      pl.BlockSpec((1, npad), lambda bi, i: (0, 0))],
            out_specs=[pl.BlockSpec((1, tm, npad), lambda bi, i: (bi, i, 0)),
                       pl.BlockSpec((1, tm, 1), lambda bi, i: (bi, i, 0))],
        ),
        compiler_params=pltpu.CompilerParams(
            dimension_semantics=("parallel", "parallel"),
            vmem_limit_bytes=_VMEM_LIMIT),
    )(corr, corr_t, colmask)

    # per-batch global max over the REAL rows only (padded rows never masked)
    gmax = jnp.max(rowmax[:, :n, 0], axis=-1)         # [B]
    if with_dist_cc:
        # guard the degenerate all-zero matrix (torch would emit NaNs here —
        # deliberate semantic difference)
        inv_scale = jnp.where(gmax > 0.0, 1.0 / gmax, 1.0).astype(jnp.float32)
    else:
        inv_scale = jnp.ones((b,), jnp.float32)       # torch does not normalize

    k2 = functools.partial(_normalize_mask_kernel,
                           inlier_thresh=float(inlier_thresh), n_real=n)
    cc_n, cc_bf, mask, sa = pl.pallas_call(
        k2,
        out_shape=(jax.ShapeDtypeStruct((b, npad, npad), jnp.float32),
                   jax.ShapeDtypeStruct((b, npad, npad), jnp.bfloat16),
                   jax.ShapeDtypeStruct((b, npad, 1), jnp.int32),
                   jax.ShapeDtypeStruct((b, npad, 1), jnp.float32)),
        grid_spec=pltpu.PrefetchScalarGridSpec(
            num_scalar_prefetch=0,
            grid=(b, nt),
            in_specs=[pl.BlockSpec(memory_space=pltpu.MemorySpace.SMEM),
                      pl.BlockSpec((1, tm, npad), lambda bi, i: (bi, i, 0))],
            out_specs=[pl.BlockSpec((1, tm, npad), lambda bi, i: (bi, i, 0)),
                       pl.BlockSpec((1, tm, npad), lambda bi, i: (bi, i, 0)),
                       pl.BlockSpec((1, tm, 1), lambda bi, i: (bi, i, 0)),
                       pl.BlockSpec((1, tm, 1), lambda bi, i: (bi, i, 0))],
        ),
        compiler_params=pltpu.CompilerParams(
            dimension_semantics=("parallel", "parallel"),
            vmem_limit_bytes=_VMEM_LIMIT),
    )(inv_scale, cc_u)
    return cc_n, cc_bf, mask, sa, npad


def get_compatibility_and_mask(corr_pos, *, dist_sigma=DIST_SIGMA,
                               inlier_thresh=INITIAL_INLIER_MASK_THRESH,
                               with_dist_cc=WITH_DIST_CORR_COMPATIBILITY,
                               row_tile=None):
    """corr_pos: [B, N, 6] -> (compat [B,N,N] f32, inlier_mask [B,N] bool)."""
    b, n, _ = corr_pos.shape
    cc_n, _, mask, _, _ = _compat_padded(
        corr_pos, dist_sigma=dist_sigma, inlier_thresh=inlier_thresh,
        with_dist_cc=with_dist_cc, row_tile=row_tile)
    cc = cc_n[:, :n, :n]
    if inlier_thresh >= 0:
        inlier_mask = mask[:, :n, 0] > 0
    else:
        inlier_mask = jnp.ones((b, n), dtype=jnp.bool_)
    return cc, inlier_mask


def tanimoto_all_pair_dist_symmetric(a_bf, row_sq=None, *, tile=None):
    """a_bf: [B, M, M] bf16 rows of a *symmetric* matrix (the compatibility
       matrix of this module).  Returns [B, M, M] f32:
         T[b,i,j] = 1 - <a_i,a_j>/(|a_i|^2+|a_j|^2-<a_i,a_j>+1e-12) + I,
       i.e. computeAllPairTanimotoDist(A, A) + eye per batch (Tanimoto is
       invariant to the global scale, so normalized / unnormalized inputs give
       identical results up to the 1e-12 eps).
       NOTE: the column-panel load relies on symmetry of a_bf."""
    b, m, k = a_bf.shape
    assert m == k and m % _LANE == 0, "expects a square, 128-padded matrix"
    a_bf = jnp.asarray(a_bf, jnp.bfloat16)
    if row_sq is None:
        a32 = a_bf.astype(jnp.float32)
        row_sq = jnp.sum(a32 * a32, axis=-1, keepdims=True)         # [B, M, 1]
    row_sq = jnp.asarray(row_sq, jnp.float32).reshape(b, m, 1)
    row_sq_t = jnp.reshape(row_sq, (b, 1, m))                       # [B, 1, M]

    t = tile if (tile and m % tile == 0 and tile % _LANE == 0) \
        else _pick_pass3_tile(m)
    nt = m // t

    flops = int(2 * b * m * m * m)
    transcendentals = int(b * m * m)
    bytes_accessed = int(b * (m * m * 2 + nt * m * m * 2 + m * m * 4 + 2 * m * 4))

    return pl.pallas_call(
        _tanimoto_kernel,
        out_shape=jax.ShapeDtypeStruct((b, m, m), jnp.float32),
        grid_spec=pltpu.PrefetchScalarGridSpec(
            num_scalar_prefetch=0,
            grid=(b, nt, nt),
            in_specs=[
                # row panel: block index constant across innermost j -> one DMA
                pl.BlockSpec((1, t, m), lambda bi, i, j: (bi, i, 0)),
                # column panel (== rows transposed, by symmetry): plain A@B
                pl.BlockSpec((1, m, t), lambda bi, i, j: (bi, 0, j)),
                pl.BlockSpec((1, t, 1), lambda bi, i, j: (bi, i, 0)),
                pl.BlockSpec((1, 1, t), lambda bi, i, j: (bi, 0, j)),
            ],
            out_specs=pl.BlockSpec((1, t, t), lambda bi, i, j: (bi, i, j)),
        ),
        compiler_params=pltpu.CompilerParams(
            dimension_semantics=("parallel", "parallel", "arbitrary"),
            vmem_limit_bytes=_VMEM_LIMIT),
        cost_estimate=pl.CostEstimate(flops=flops,
                                      transcendentals=transcendentals,
                                      bytes_accessed=bytes_accessed),
    )(a_bf, a_bf, row_sq, row_sq_t)


def tanimoto_forward_hot_path(corr_pos, *, dist_sigma=DIST_SIGMA,
                              inlier_thresh=INITIAL_INLIER_MASK_THRESH,
                              with_dist_cc=WITH_DIST_CORR_COMPATIBILITY,
                              row_tile=None, tanimoto_tile=None):
    """Kernelized dense portion of Tanimoto.forward: compatibility matrix +
       initial inlier mask + initial all-pair Tanimoto distance matrix (the
       input of the greedy cluster-merge loop)."""
    b, n, _ = corr_pos.shape
    cc_n, cc_bf, mask, sa, _ = _compat_padded(
        corr_pos, dist_sigma=dist_sigma, inlier_thresh=inlier_thresh,
        with_dist_cc=with_dist_cc, row_tile=row_tile)

    # tanimoto_cluster consumes adjm = compatibility.T and contracts over
    # adjm's leading axis == rows of the compatibility matrix; the bf16 copy
    # and the (bf16-consistent) row squared norms come straight from pass 2.
    tanimoto = tanimoto_all_pair_dist_symmetric(cc_bf, sa, tile=tanimoto_tile)

    cc = cc_n[:, :n, :n]
    if inlier_thresh >= 0:
        inlier_mask = mask[:, :n, 0] > 0
    else:
        inlier_mask = jnp.ones((b, n), dtype=jnp.bool_)
    # TODO(synk): greedy Tanimoto cluster-merge while-loop, SVD rigid fit,
    #             refine_labels / upsample_labels are data-dependent host logic.
    return cc, inlier_mask, tanimoto[:, :n, :n]


# ----------------------------- pure-JAX references ---------------------------
def _ref_get_compatibility(corr_pos, with_dist_cc, dist_sigma):
    src = corr_pos[:, :, 0:3]
    tgt = corr_pos[:, :, 3:6]
    sd = jnp.sqrt(jnp.sum((src[:, :, None, :] - src[:, None, :, :]) ** 2, -1))
    td = jnp.sqrt(jnp.sum((tgt[:, :, None, :] - tgt[:, None, :, :]) ** 2, -1))
    eye = jnp.eye(sd.shape[-1], dtype=sd.dtype)[None]
    ratio = jnp.minimum(sd / (td + 1e-12), td / (sd + 1e-12)) + eye
    cc = jnp.maximum((ratio / 0.9) ** 2, 0.0)
    if with_dist_cc:
        d = (sd + td) * 0.5
        dcc = jnp.maximum(1.0 - d * d / (dist_sigma ** 2), 0.0)
        cc = cc * dcc
        cc = cc / jnp.max(cc, axis=(-2, -1), keepdims=True)
    return cc


def _ref_tanimoto_rows(a):
    inner = jnp.einsum("bik,bjk->bij", a, a)
    sa = jnp.sum(a * a, axis=-1)
    t = 1.0 - inner / (sa[:, :, None] + sa[:, None, :] - inner + 1e-12)
    return t + jnp.eye(a.shape[1], dtype=a.dtype)[None]


if __name__ == "__main__":
    key = jax.random.PRNGKey(0)
    B, N = 2, 200     # N deliberately not a multiple of 128 (exercises padding)
    corr_pos = jax.random.uniform(key, (B, N, 6), dtype=jnp.float32)

    cc, inlier_mask, tdist = jax.jit(tanimoto_forward_hot_path)(corr_pos)
    jax.block_until_ready((cc, inlier_mask, tdist))

    assert cc.shape == (B, N, N) and cc.dtype == jnp.float32
    assert inlier_mask.shape == (B, N) and inlier_mask.dtype == jnp.bool_
    assert tdist.shape == (B, N, N) and tdist.dtype == jnp.float32

    # compatibility vs pure-JAX reference of the PyTorch math
    cc_ref = _ref_get_compatibility(corr_pos, WITH_DIST_CORR_COMPATIBILITY,
                                    DIST_SIGMA)
    assert float(jnp.max(jnp.abs(cc - cc_ref))) < 3e-2

    # inlier mask must agree exactly with the returned compatibility
    col = jnp.arange(N)[None, None, :]
    row = jnp.arange(N)[None, :, None]
    mask_ref = jnp.any(
        jnp.logical_and(cc > INITIAL_INLIER_MASK_THRESH, col > row), axis=-1)
    assert bool(jnp.all(inlier_mask == mask_ref))

    # Tanimoto distances (bf16 MXU operands -> loose tolerance vs f32 reference)
    t_ref = _ref_tanimoto_rows(cc)
    assert float(jnp.max(jnp.abs(tdist - t_ref))) < 5e-2

    print("KERNEL_OK")
</pallas_src>

<mosaic_0001>
module attributes {stable_mosaic.version = 11 : i64} {
  func.func @_normalize_mask_kernel(%arg0: i32, %arg1: i32, %arg2: memref<2xf32, #tpu.memory_space<smem>>, %arg3: memref<1x256x256xf32, #tpu.memory_space<vmem>>, %arg4: memref<1x256x256xf32, #tpu.memory_space<vmem>>, %arg5: memref<1x256x256xbf16, #tpu.memory_space<vmem>>, %arg6: memref<1x256x1xi32, #tpu.memory_space<vmem>>, %arg7: memref<1x256x1xf32, #tpu.memory_space<vmem>>) attributes {dimension_semantics = [#tpu.dimension_semantics<parallel>, #tpu.dimension_semantics<parallel>], iteration_bounds = array<i64: 2, 1>, scalar_prefetch = 0 : i64, scratch_operands = 0 : i64, tpu.core_type = #tpu.core_type<tc>, window_params = [{transform_indices = @transform_0, window_bounds = array<i64: 2>}, {transform_indices = @transform_1, window_bounds = array<i64: 1, 256, 256>}, {transform_indices = @transform_2, window_bounds = array<i64: 1, 256, 256>}, {transform_indices = @transform_3, window_bounds = array<i64: 1, 256, 256>}, {transform_indices = @transform_4, window_bounds = array<i64: 1, 256, 1>}, {transform_indices = @transform_5, window_bounds = array<i64: 1, 256, 1>}]} {
    %0 = arith.index_cast %arg0 : i32 to index
    %1 = memref.load %arg2[%0] : memref<2xf32, #tpu.memory_space<smem>>
    %c0 = arith.constant 0 : index
    %c0_0 = arith.constant 0 : index
    %c0_1 = arith.constant 0 : index
    %2 = vector.load %arg3[%c0, %c0_0, %c0_1] : memref<1x256x256xf32, #tpu.memory_space<vmem>>, vector<1x256x256xf32>
    %3 = vector.shape_cast %2 : vector<1x256x256xf32> to vector<256x256xf32>
    %4 = vector.broadcast %1 : f32 to vector<256x256xf32>
    %5 = arith.mulf %3, %4 : vector<256x256xf32>
    %c0_2 = arith.constant 0 : index
    %c0_3 = arith.constant 0 : index
    %c0_4 = arith.constant 0 : index
    %6 = vector.load %arg4[%c0_2, %c0_3, %c0_4] : memref<1x256x256xf32, #tpu.memory_space<vmem>>, vector<1x256x256xf32>
    %7 = vector.shape_cast %6 : vector<1x256x256xf32> to vector<256x256xf32>
    %8 = vector.shape_cast %5 : vector<256x256xf32> to vector<1x256x256xf32>
    tpu.vector_store %arg4[%c0_2, %c0_3, %c0_4], %8 {strides = array<i32>} : memref<1x256x256xf32, #tpu.memory_space<vmem>>, vector<1x256x256xf32>,
    %9 = tpu.iota {dimensions = array<i32: 0>} : vector<256x256xi32>
    %c256_i32 = arith.constant 256 : i32
    %10 = arith.muli %arg1, %c256_i32 : i32
    %11 = vector.broadcast %10 : i32 to vector<256x256xi32>
    %12 = arith.addi %9, %11 : vector<256x256xi32>
    %13 = tpu.iota {dimensions = array<i32: 1>} : vector<256x256xi32>
    %cst = arith.constant 5.000000e-01 : f32
    %14 = vector.broadcast %cst : f32 to vector<256x256xf32>
    %15 = arith.cmpf ogt, %5, %14 : vector<256x256xf32>
    %16 = arith.cmpi sgt, %13, %12 : vector<256x256xi32>
    %17 = arith.andi %15, %16 : vector<256x256xi1>
    %18 = arith.extui %17 : vector<256x256xi1> to vector<256x256xi32>
    %19 = arith.sitofp %18 : vector<256x256xi32> to vector<256x256xf32>
    %cst_5 = arith.constant dense<0.000000e+00> : vector<256xf32>
    %20 = vector.multi_reduction <add>, %19, %cst_5 [1] : vector<256x256xf32> to vector<256xf32>
    %21 = vector.shape_cast %20 : vector<256xf32> to vector<256x1xf32>
    %cst_6 = arith.constant 1.000000e+00 : f32
    %22 = vector.broadcast %cst_6 : f32 to vector<256x1xf32>
    %23 = arith.cmpf oge, %21, %22 : vector<256x1xf32>
    %24 = arith.extui %23 : vector<256x1xi1> to vector<256x1xi32>
    %c0_7 = arith.constant 0 : index
    %c0_8 = arith.constant 0 : index
    %c0_9 = arith.constant 0 : index
    %25 = vector.load %arg6[%c0_7, %c0_8, %c0_9] : memref<1x256x1xi32, #tpu.memory_space<vmem>>, vector<1x256x1xi32>
    %26 = vector.shape_cast %25 : vector<1x256x1xi32> to vector<256x1xi32>
    %27 = vector.shape_cast %24 : vector<256x1xi32> to vector<1x256x1xi32>
    tpu.vector_store %arg6[%c0_7, %c0_8, %c0_9], %27 {strides = array<i32>} : memref<1x256x1xi32, #tpu.memory_space<vmem>>, vector<1x256x1xi32>,
    %c200_i32 = arith.constant 200 : i32
    %28 = vector.broadcast %c200_i32 : i32 to vector<256x256xi32>
    %29 = arith.cmpi slt, %12, %28 : vector<256x256xi32>
    %cst_10 = arith.constant 0.000000e+00 : f32
    %30 = vector.broadcast %cst_10 : f32 to vector<256x256xf32>
    %31 = arith.select %29, %5, %30 : vector<256x256xi1>, vector<256x256xf32>
    %32 = arith.truncf %31 : vector<256x256xf32> to vector<256x256xbf16>
    %c0_11 = arith.constant 0 : index
    %c0_12 = arith.constant 0 : index
    %c0_13 = arith.constant 0 : index
    %33 = vector.load %arg5[%c0_11, %c0_12, %c0_13] : memref<1x256x256xbf16, #tpu.memory_space<vmem>>, vector<1x256x256xbf16>
    %34 = vector.shape_cast %33 : vector<1x256x256xbf16> to vector<256x256xbf16>
    %35 = vector.shape_cast %32 : vector<256x256xbf16> to vector<1x256x256xbf16>
    tpu.vector_store %arg5[%c0_11, %c0_12, %c0_13], %35 {strides = array<i32>} : memref<1x256x256xbf16, #tpu.memory_space<vmem>>, vector<1x256x256xbf16>,
    %36 = arith.extf %32 : vector<256x256xbf16> to vector<256x256xf32>
    %37 = arith.mulf %36, %36 : vector<256x256xf32>
    %cst_14 = arith.constant dense<0.000000e+00> : vector<256xf32>
    %38 = vector.multi_reduction <add>, %37, %cst_14 [1] : vector<256x256xf32> to vector<256xf32>
    %39 = vector.shape_cast %38 : vector<256xf32> to vector<256x1xf32>
    %c0_15 = arith.constant 0 : index
    %c0_16 = arith.constant 0 : index
    %c0_17 = arith.constant 0 : index
    %40 = vector.load %arg7[%c0_15, %c0_16, %c0_17] : memref<1x256x1xf32, #tpu.memory_space<vmem>>, vector<1x256x1xf32>
    %41 = vector.shape_cast %40 : vector<1x256x1xf32> to vector<256x1xf32>
    %42 = vector.shape_cast %39 : vector<256x1xf32> to vector<1x256x1xf32>
    tpu.vector_store %arg7[%c0_15, %c0_16, %c0_17], %42 {strides = array<i32>} : memref<1x256x1xf32, #tpu.memory_space<vmem>>, vector<1x256x1xf32>,
    return
  }
  func.func @transform_0(%arg0: i32, %arg1: i32) -> i32 {
    %c0_i32 = arith.constant 0 : i32
    %c0_i32_0 = arith.constant 0 : i32
    return %c0_i32 : i32
  }
  func.func @transform_1(%arg0: i32, %arg1: i32) -> (i32, i32, i32) {
    %c0_i32 = arith.constant 0 : i32
    %c0_i32_0 = arith.constant 0 : i32
    return %arg0, %arg1, %c0_i32 : i32, i32, i32
  }
  func.func @transform_2(%arg0: i32, %arg1: i32) -> (i32, i32, i32) {
    %c0_i32 = arith.constant 0 : i32
    %c0_i32_0 = arith.constant 0 : i32
    return %arg0, %arg1, %c0_i32 : i32, i32, i32
  }
  func.func @transform_3(%arg0: i32, %arg1: i32) -> (i32, i32, i32) {
    %c0_i32 = arith.constant 0 : i32
    %c0_i32_0 = arith.constant 0 : i32
    return %arg0, %arg1, %c0_i32 : i32, i32, i32
  }
  func.func @transform_4(%arg0: i32, %arg1: i32) -> (i32, i32, i32) {
    %c0_i32 = arith.constant 0 : i32
    %c0_i32_0 = arith.constant 0 : i32
    return %arg0, %arg1, %c0_i32 : i32, i32, i32
  }
  func.func @transform_5(%arg0: i32, %arg1: i32) -> (i32, i32, i32) {
    %c0_i32 = arith.constant 0 : i32
    %c0_i32_0 = arith.constant 0 : i32
    return %arg0, %arg1, %c0_i32 : i32, i32, i32
  }
}

module attributes {stable_mosaic.version = 11 : i64} {
  func.func @_compat_unnorm_kernel(%arg0: i32, %arg1: i32, %arg2: memref<1x256x6xf32, #tpu.memory_space<vmem>>, %arg3: memref<1x6x256xf32, #tpu.memory_space<vmem>>, %arg4: memref<1x256xf32, #tpu.memory_space<vmem>>, %arg5: memref<1x256x256xf32, #tpu.memory_space<vmem>>, %arg6: memref<1x256x1xf32, #tpu.memory_space<vmem>>) attributes {dimension_semantics = [#tpu.dimension_semantics<parallel>, #tpu.dimension_semantics<parallel>], iteration_bounds = array<i64: 2, 1>, scalar_prefetch = 0 : i64, scratch_operands = 0 : i64, tpu.core_type = #tpu.core_type<tc>, window_params = [{transform_indices = @transform_0, window_bounds = array<i64: 1, 256, 6>}, {transform_indices = @transform_1, window_bounds = array<i64: 1, 6, 256>}, {pipeline_mode = #tpu.pipeline_mode<synchronous>, transform_indices = @transform_2, window_bounds = array<i64: 1, 256>}, {transform_indices = @transform_3, window_bounds = array<i64: 1, 256, 256>}, {transform_indices = @transform_4, window_bounds = array<i64: 1, 256, 1>}]} {
    %c0 = arith.constant 0 : index
    %c0_0 = arith.constant 0 : index
    %c0_1 = arith.constant 0 : index
    %0 = vector.load %arg2[%c0, %c0_0, %c0_1] : memref<1x256x6xf32, #tpu.memory_space<vmem>>, vector<1x256x6xf32>
    %1 = vector.shape_cast %0 : vector<1x256x6xf32> to vector<256x6xf32>
    %c0_2 = arith.constant 0 : index
    %c0_3 = arith.constant 0 : index
    %c0_4 = arith.constant 0 : index
    %2 = vector.load %arg3[%c0_2, %c0_3, %c0_4] : memref<1x6x256xf32, #tpu.memory_space<vmem>>, vector<1x6x256xf32>
    %3 = vector.shape_cast %2 : vector<1x6x256xf32> to vector<6x256xf32>
    %4 = vector.extract_strided_slice %1 {offsets = [0, 0], sizes = [256, 1], strides = [1, 1]} : vector<256x6xf32> to vector<256x1xf32>
    %5 = vector.extract_strided_slice %3 {offsets = [0, 0], sizes = [1, 256], strides = [1, 1]} : vector<6x256xf32> to vector<1x256xf32>
    %6 = vector.broadcast %4 : vector<256x1xf32> to vector<256x256xf32>
    %7 = vector.broadcast %5 : vector<1x256xf32> to vector<256x256xf32>
    %8 = arith.subf %6, %7 : vector<256x256xf32>
    %9 = arith.mulf %8, %8 : vector<256x256xf32>
    %10 = vector.extract_strided_slice %1 {offsets = [0, 1], sizes = [256, 1], strides = [1, 1]} : vector<256x6xf32> to vector<256x1xf32>
    %11 = vector.extract_strided_slice %3 {offsets = [1, 0], sizes = [1, 256], strides = [1, 1]} : vector<6x256xf32> to vector<1x256xf32>
    %12 = vector.broadcast %10 : vector<256x1xf32> to vector<256x256xf32>
    %13 = vector.broadcast %11 : vector<1x256xf32> to vector<256x256xf32>
    %14 = arith.subf %12, %13 : vector<256x256xf32>
    %15 = arith.mulf %14, %14 : vector<256x256xf32>
    %16 = arith.addf %9, %15 : vector<256x256xf32>
    %17 = vector.extract_strided_slice %1 {offsets = [0, 2], sizes = [256, 1], strides = [1, 1]} : vector<256x6xf32> to vector<256x1xf32>
    %18 = vector.extract_strided_slice %3 {offsets = [2, 0], sizes = [1, 256], strides = [1, 1]} : vector<6x256xf32> to vector<1x256xf32>
    %19 = vector.broadcast %17 : vector<256x1xf32> to vector<256x256xf32>
    %20 = vector.broadcast %18 : vector<1x256xf32> to vector<256x256xf32>
    %21 = arith.subf %19, %20 : vector<256x256xf32>
    %22 = arith.mulf %21, %21 : vector<256x256xf32>
    %23 = arith.addf %16, %22 : vector<256x256xf32>
    %24 = vector.extract_strided_slice %1 {offsets = [0, 3], sizes = [256, 1], strides = [1, 1]} : vector<256x6xf32> to vector<256x1xf32>
    %25 = vector.extract_strided_slice %3 {offsets = [3, 0], sizes = [1, 256], strides = [1, 1]} : vector<6x256xf32> to vector<1x256xf32>
    %26 = vector.broadcast %24 : vector<256x1xf32> to vector<256x256xf32>
    %27 = vector.broadcast %25 : vector<1x256xf32> to vector<256x256xf32>
    %28 = arith.subf %26, %27 : vector<256x256xf32>
    %29 = arith.mulf %28, %28 : vector<256x256xf32>
    %30 = vector.extract_strided_slice %1 {offsets = [0, 4], sizes = [256, 1], strides = [1, 1]} : vector<256x6xf32> to vector<256x1xf32>
    %31 = vector.extract_strided_slice %3 {offsets = [4, 0], sizes = [1, 256], strides = [1, 1]} : vector<6x256xf32> to vector<1x256xf32>
    %32 = vector.broadcast %30 : vector<256x1xf32> to vector<256x256xf32>
    %33 = vector.broadcast %31 : vector<1x256xf32> to vector<256x256xf32>
    %34 = arith.subf %32, %33 : vector<256x256xf32>
    %35 = arith.mulf %34, %34 : vector<256x256xf32>
    %36 = arith.addf %29, %35 : vector<256x256xf32>
    %37 = vector.extract_strided_slice %1 {offsets = [0, 5], sizes = [256, 1], strides = [1, 1]} : vector<256x6xf32> to vector<256x1xf32>
    %38 = vector.extract_strided_slice %3 {offsets = [5, 0], sizes = [1, 256], strides = [1, 1]} : vector<6x256xf32> to vector<1x256xf32>
    %39 = vector.broadcast %37 : vector<256x1xf32> to vector<256x256xf32>
    %40 = vector.broadcast %38 : vector<1x256xf32> to vector<256x256xf32>
    %41 = arith.subf %39, %40 : vector<256x256xf32>
    %42 = arith.mulf %41, %41 : vector<256x256xf32>
    %43 = arith.addf %36, %42 : vector<256x256xf32>
    %44 = tpu.iota {dimensions = array<i32: 0>} : vector<256x256xi32>
    %c256_i32 = arith.constant 256 : i32
    %45 = arith.muli %arg1, %c256_i32 : i32
    %46 = vector.broadcast %45 : i32 to vector<256x256xi32>
    %47 = arith.addi %44, %46 : vector<256x256xi32>
    %48 = tpu.iota {dimensions = array<i32: 1>} : vector<256x256xi32>
    %49 = arith.cmpi eq, %47, %48 : vector<256x256xi32>
    %50 = arith.extui %49 : vector<256x256xi1> to vector<256x256xi32>
    %51 = arith.sitofp %50 : vector<256x256xi32> to vector<256x256xf32>
    %52 = arith.minimumf %23, %43 : vector<256x256xf32>
    %53 = arith.maximumf %23, %43 : vector<256x256xf32>
    %cst = arith.constant 9.99999996E-13 : f32
    %54 = vector.broadcast %cst : f32 to vector<256x256xf32>
    %55 = arith.addf %53, %54 : vector<256x256xf32>
    %56 = tpu.reciprocal %55 {approx = true} : vector<256x256xf32> -> vector<256x256xf32>
    %57 = arith.mulf %52, %56 : vector<256x256xf32>
    %58 = arith.addf %57, %51 : vector<256x256xf32>
    %cst_5 = arith.constant 1.23456788 : f32
    %59 = vector.broadcast %cst_5 : f32 to vector<256x256xf32>
    %60 = arith.mulf %58, %59 : vector<256x256xf32>
    %61 = arith.addf %23, %43 : vector<256x256xf32>
    %62 = arith.mulf %23, %43 : vector<256x256xf32>
    %63 = math.sqrt %62 : vector<256x256xf32>
    %cst_6 = arith.constant 2.000000e+00 : f32
    %64 = vector.broadcast %cst_6 : f32 to vector<256x256xf32>
    %65 = arith.mulf %64, %63 : vector<256x256xf32>
    %66 = arith.addf %61, %65 : vector<256x256xf32>
    %cst_7 = arith.constant 2.500000e-01 : f32
    %67 = vector.broadcast %cst_7 : f32 to vector<256x256xf32>
    %68 = arith.mulf %66, %67 : vector<256x256xf32>
    %cst_8 = arith.constant 0.694444418 : f32
    %69 = vector.broadcast %cst_8 : f32 to vector<256x256xf32>
    %70 = arith.mulf %68, %69 : vector<256x256xf32>
    %cst_9 = arith.constant 1.000000e+00 : f32
    %71 = vector.broadcast %cst_9 : f32 to vector<256x256xf32>
    %72 = arith.subf %71, %70 : vector<256x256xf32>
    %cst_10 = arith.constant 0.000000e+00 : f32
    %73 = vector.broadcast %cst_10 : f32 to vector<256x256xf32>
    %74 = arith.maximumf %72, %73 : vector<256x256xf32>
    %75 = arith.mulf %60, %74 : vector<256x256xf32>
    %c0_11 = arith.constant 0 : index
    %c0_12 = arith.constant 0 : index
    %76 = vector.load %arg4[%c0_11, %c0_12] : memref<1x256xf32, #tpu.memory_space<vmem>>, vector<1x256xf32>
    %77 = vector.broadcast %76 : vector<1x256xf32> to vector<256x256xf32>
    %78 = arith.mulf %75, %77 : vector<256x256xf32>
    %c0_13 = arith.constant 0 : index
    %c0_14 = arith.constant 0 : index
    %c0_15 = arith.constant 0 : index
    %79 = vector.load %arg5[%c0_13, %c0_14, %c0_15] : memref<1x256x256xf32, #tpu.memory_space<vmem>>, vector<1x256x256xf32>
    %80 = vector.shape_cast %79 : vector<1x256x256xf32> to vector<256x256xf32>
    %81 = vector.shape_cast %78 : vector<256x256xf32> to vector<1x256x256xf32>
    tpu.vector_store %arg5[%c0_13, %c0_14, %c0_15], %81 {strides = array<i32>} : memref<1x256x256xf32, #tpu.memory_space<vmem>>, vector<1x256x256xf32>,
    %cst_16 = arith.constant dense<0xFF800000> : vector<256xf32>
    %82 = vector.multi_reduction <maximumf>, %78, %cst_16 [1] : vector<256x256xf32> to vector<256xf32>
    %83 = vector.shape_cast %82 : vector<256xf32> to vector<256x1xf32>
    %c0_17 = arith.constant 0 : index
    %c0_18 = arith.constant 0 : index
    %c0_19 = arith.constant 0 : index
    %84 = vector.load %arg6[%c0_17, %c0_18, %c0_19] : memref<1x256x1xf32, #tpu.memory_space<vmem>>, vector<1x256x1xf32>
    %85 = vector.shape_cast %84 : vector<1x256x1xf32> to vector<256x1xf32>
    %86 = vector.shape_cast %83 : vector<256x1xf32> to vector<1x256x1xf32>
    tpu.vector_store %arg6[%c0_17, %c0_18, %c0_19], %86 {strides = array<i32>} : memref<1x256x1xf32, #tpu.memory_space<vmem>>, vector<1x256x1xf32>,
    return
  }
  func.func @transform_0(%arg0: i32, %arg1: i32) -> (i32, i32, i32) {
    %c0_i32 = arith.constant 0 : i32
    %c0_i32_0 = arith.constant 0 : i32
    return %arg0, %arg1, %c0_i32 : i32, i32, i32
  }
  func.func @transform_1(%arg0: i32, %arg1: i32) -> (i32, i32, i32) {
    %c0_i32 = arith.constant 0 : i32
    %c0_i32_0 = arith.constant 0 : i32
    %c0_i32_1 = arith.constant 0 : i32
    return %arg0, %c0_i32, %c0_i32_0 : i32, i32, i32
  }
  func.func @transform_2(%arg0: i32, %arg1: i32) -> (i32, i32) {
    %c0_i32 = arith.constant 0 : i32
    %c0_i32_0 = arith.constant 0 : i32
    %c0_i32_1 = arith.constant 0 : i32
    return %c0_i32, %c0_i32_0 : i32, i32
  }
  func.func @transform_3(%arg0: i32, %arg1: i32) -> (i32, i32, i32) {
    %c0_i32 = arith.constant 0 : i32
    %c0_i32_0 = arith.constant 0 : i32
    return %arg0, %arg1, %c0_i32 : i32, i32, i32
  }
  func.func @transform_4(%arg0: i32, %arg1: i32) -> (i32, i32, i32) {
    %c0_i32 = arith.constant 0 : i32
    %c0_i32_0 = arith.constant 0 : i32
    return %arg0, %arg1, %c0_i32 : i32, i32, i32
  }
}

module attributes {stable_mosaic.version = 11 : i64} {
  func.func @_tanimoto_kernel(%arg0: i32, %arg1: i32, %arg2: i32, %arg3: memref<1x256x256xbf16, #tpu.memory_space<vmem>>, %arg4: memref<1x256x256xbf16, #tpu.memory_space<vmem>>, %arg5: memref<1x256x1xf32, #tpu.memory_space<vmem>>, %arg6: memref<1x1x256xf32, #tpu.memory_space<vmem>>, %arg7: memref<1x256x256xf32, #tpu.memory_space<vmem>>) attributes {dimension_semantics = [#tpu.dimension_semantics<parallel>, #tpu.dimension_semantics<parallel>, #tpu.dimension_semantics<arbitrary>], iteration_bounds = array<i64: 2, 1, 1>, scalar_prefetch = 0 : i64, scratch_operands = 0 : i64, tpu.core_type = #tpu.core_type<tc>, window_params = [{transform_indices = @transform_0, window_bounds = array<i64: 1, 256, 256>}, {transform_indices = @transform_1, window_bounds = array<i64: 1, 256, 256>}, {transform_indices = @transform_2, window_bounds = array<i64: 1, 256, 1>}, {transform_indices = @transform_3, window_bounds = array<i64: 1, 1, 256>}, {transform_indices = @transform_4, window_bounds = array<i64: 1, 256, 256>}]} {
    %c0 = arith.constant 0 : index
    %c0_0 = arith.constant 0 : index
    %c0_1 = arith.constant 0 : index
    %0 = vector.load %arg3[%c0, %c0_0, %c0_1] : memref<1x256x256xbf16, #tpu.memory_space<vmem>>, vector<1x256x256xbf16>
    %1 = vector.shape_cast %0 : vector<1x256x256xbf16> to vector<256x256xbf16>
    %c0_2 = arith.constant 0 : index
    %c0_3 = arith.constant 0 : index
    %c0_4 = arith.constant 0 : index
    %2 = vector.load %arg4[%c0_2, %c0_3, %c0_4] : memref<1x256x256xbf16, #tpu.memory_space<vmem>>, vector<1x256x256xbf16>
    %3 = vector.shape_cast %2 : vector<1x256x256xbf16> to vector<256x256xbf16>
    %cst = arith.constant dense<0.000000e+00> : vector<256x256xf32>
    %4 = tpu.matmul %1, %3, %cst {dimension_numbers = #tpu.dot_dimension_numbers<[1], [0], [0], [1], [0, 0, 1, 1], [], []>} : vector<256x256xbf16>, vector<256x256xbf16>, vector<256x256xf32> -> vector<256x256xf32>
    %c0_5 = arith.constant 0 : index
    %c0_6 = arith.constant 0 : index
    %c0_7 = arith.constant 0 : index
    %5 = vector.load %arg5[%c0_5, %c0_6, %c0_7] : memref<1x256x1xf32, #tpu.memory_space<vmem>>, vector<1x256x1xf32>
    %6 = vector.shape_cast %5 : vector<1x256x1xf32> to vector<256x1xf32>
    %c0_8 = arith.constant 0 : index
    %c0_9 = arith.constant 0 : index
    %c0_10 = arith.constant 0 : index
    %7 = vector.load %arg6[%c0_8, %c0_9, %c0_10] : memref<1x1x256xf32, #tpu.memory_space<vmem>>, vector<1x1x256xf32>
    %8 = vector.shape_cast %7 : vector<1x1x256xf32> to vector<1x256xf32>
    %9 = vector.broadcast %6 : vector<256x1xf32> to vector<256x256xf32>
    %10 = vector.broadcast %8 : vector<1x256xf32> to vector<256x256xf32>
    %11 = arith.addf %9, %10 : vector<256x256xf32>
    %12 = arith.subf %11, %4 : vector<256x256xf32>
    %cst_11 = arith.constant 9.99999996E-13 : f32
    %13 = vector.broadcast %cst_11 : f32 to vector<256x256xf32>
    %14 = arith.addf %12, %13 : vector<256x256xf32>
    %15 = tpu.reciprocal %14 {approx = true} : vector<256x256xf32> -> vector<256x256xf32>
    %16 = arith.mulf %4, %15 : vector<256x256xf32>
    %cst_12 = arith.constant 1.000000e+00 : f32
    %17 = vector.broadcast %cst_12 : f32 to vector<256x256xf32>
    %18 = arith.subf %17, %16 : vector<256x256xf32>
    %19 = tpu.iota {dimensions = array<i32: 0>} : vector<256x256xi32>
    %c256_i32 = arith.constant 256 : i32
    %20 = arith.muli %arg1, %c256_i32 : i32
    %21 = vector.broadcast %20 : i32 to vector<256x256xi32>
    %22 = arith.addi %19, %21 : vector<256x256xi32>
    %23 = tpu.iota {dimensions = array<i32: 1>} : vector<256x256xi32>
    %c256_i32_13 = arith.constant 256 : i32
    %24 = arith.muli %arg2, %c256_i32_13 : i32
    %25 = vector.broadcast %24 : i32 to vector<256x256xi32>
    %26 = arith.addi %23, %25 : vector<256x256xi32>
    %27 = arith.cmpi eq, %22, %26 : vector<256x256xi32>
    %28 = arith.extui %27 : vector<256x256xi1> to vector<256x256xi32>
    %29 = arith.sitofp %28 : vector<256x256xi32> to vector<256x256xf32>
    %30 = arith.addf %18, %29 : vector<256x256xf32>
    %c0_14 = arith.constant 0 : index
    %c0_15 = arith.constant 0 : index
    %c0_16 = arith.constant 0 : index
    %31 = vector.load %arg7[%c0_14, %c0_15, %c0_16] : memref<1x256x256xf32, #tpu.memory_space<vmem>>, vector<1x256x256xf32>
    %32 = vector.shape_cast %31 : vector<1x256x256xf32> to vector<256x256xf32>
    %33 = vector.shape_cast %30 : vector<256x256xf32> to vector<1x256x256xf32>
    tpu.vector_store %arg7[%c0_14, %c0_15, %c0_16], %33 {strides = array<i32>} : memref<1x256x256xf32, #tpu.memory_space<vmem>>, vector<1x256x256xf32>,
    return
  }
  func.func @transform_0(%arg0: i32, %arg1: i32, %arg2: i32) -> (i32, i32, i32) {
    %c0_i32 = arith.constant 0 : i32
    %c0_i32_0 = arith.constant 0 : i32
    return %arg0, %arg1, %c0_i32 : i32, i32, i32
  }
  func.func @transform_1(%arg0: i32, %arg1: i32, %arg2: i32) -> (i32, i32, i32) {
    %c0_i32 = arith.constant 0 : i32
    %c0_i32_0 = arith.constant 0 : i32
    return %arg0, %c0_i32, %arg2 : i32, i32, i32
  }
  func.func @transform_2(%arg0: i32, %arg1: i32, %arg2: i32) -> (i32, i32, i32) {
    %c0_i32 = arith.constant 0 : i32
    %c0_i32_0 = arith.constant 0 : i32
    return %arg0, %arg1, %c0_i32 : i32, i32, i32
  }
  func.func @transform_3(%arg0: i32, %arg1: i32, %arg2: i32) -> (i32, i32, i32) {
    %c0_i32 = arith.constant 0 : i32
    %c0_i32_0 = arith.constant 0 : i32
    return %arg0, %c0_i32, %arg2 : i32, i32, i32
  }
  func.func @transform_4(%arg0: i32, %arg1: i32, %arg2: i32) -> (i32, i32, i32) {
    %c0_i32 = arith.constant 0 : i32
    return %arg0, %arg1, %arg2 : i32, i32, i32
  }
}

</mosaic_0001>

<llo_original>
// kernel: tanimoto_forward_hot_path.5
$region0: #{tanimoto_forward_hot_path.5}
  #allocation0 [shape = 'u32[]', space=smem, size = 0x4, offset = 0x4, fixed_abs, tag = 'smem constant byte address 0x4 - core index']
  #allocation1 [shape = 'u32[144,128]{1,0:T(1,128)}', space=vmem, size = 0x12000, scoped, tag = 'internal scratch']
  %s0 = inlined_call_operand.vmem [shape: bf16[2,256,256], index: 0, kind: input, shape index: {}, may-alias: {0,1}]
  %s1 = inlined_call_operand.vmem [shape: bf16[2,256,256], index: 1, kind: input, shape index: {}, may-alias: {0,1}]
  %s2 = inlined_call_operand.vmem [shape: f32[2,256,1], index: 2, kind: input, shape index: {}]
  %s3 = inlined_call_operand.vmem [shape: f32[2,1,256], index: 3, kind: input, shape index: {}]
  %s4 = inlined_call_operand.vmem [shape: f32[2,256,256], index: 4, kind: output, shape index: {}]
  %s5 = sld [smem:[#allocation0]]
  $region49: #{tanimoto_forward_hot_path.5} parent=0
    _
  %s7 = ssub.s32 1, %s5
  %s8 = scalar_select 0, %s7, %s5
  loop: start=0, step=1, limit=4
  $region2: #{tanimoto_forward_hot_path.5} parent=0 // loop_pre_header
    _
  $region3: #{tanimoto_forward_hot_path.5} parent=0 // loop_header
    %s10 = sphi 0, %s14
    %p11 = scmp.ge.s32.totalorder %s10, 4
    %s17 = sphi 0, %s36
    %s18 = sphi 0, %s32
    %s19 = sphi 0, %s28
    %s20 = sphi 0, %s17
    %s21 = sphi 0, %s18
    %s22 = sphi 0, %s19
    %s23 = sphi 0, %s20
    %s24 = sphi 0, %s21
    %s25 = sphi 0, %s22
    %s41 = sphi 0, %s43
    %s44 = sphi 0, %s41
    %s45 = sphi 0, %s44
    %s61 = sphi 0, %s45
    %s69 = sphi 0, %s71
    %s72 = sphi 0, %s69
    %s73 = sphi 0, %s72
    %s89 = sphi 0, %s73
    %s97 = sphi 0, %s99
    %s100 = sphi 0, %s97
    %s101 = sphi 0, %s100
    %s117 = sphi 0, %s101
    %s125 = sphi 0, %s127
    %s128 = sphi 0, %s125
    %s129 = sphi 0, %s128
    %s145 = sphi 0, %s129
    %s155 = sphi 0, %s157
    %s158 = sphi 0, %s155
    %s159 = sphi 0, %s158
    %s175 = sphi 0, %s159
  $region4: #{tanimoto_forward_hot_path.5} parent=0 // loop_header_branch
    %13 = sbr.rel (%p11) target = $region8
  $region5: #{tanimoto_forward_hot_path.5} parent=0 // loop_body
    %s15 = ssub.s32 %s10, 1
    %s16 = ssub.s32 %s10, 2
    %s26 = sadd.s32 1, %s19
    %p27 = scmp.ge.s32.totalorder %s26, 1
    %s28 = scalar_select %p27, 0, %s26
    %s29 = sadd.s32 1, %s18
    %s30 = scalar_select %p27, %s29, %s18
    %p31 = scmp.ge.s32.totalorder %s30, 1
    %s32 = scalar_select %p31, 0, %s30
    %s33 = sadd.s32 1, %s17
    %s34 = scalar_select %p31, %s33, %s17
    %p35 = scmp.ge.s32.totalorder %s34, 2
    %s36 = scalar_select %p35, 0, %s34
    %s37 = ssub.s32 %s17, %s36
    %s38 = ssub.s32 %s18, %s32
    %s39 = sor.u32 %s37, %s38
    %p40 = scmp.eq.s32.totalorder %s39, 0
    %s42 = sadd.s32 %s41, 1
    %s43 = scalar_select %p40, %s41, %s42
    %p46 = pneg %p40
    %p47 = scmp.eq.s32.totalorder %s10, 1
    %p48 = por %p46, %p47
    %p49 = scmp.ne.s32.totalorder %s41, %s44
    %p50 = scmp.eq.s32.totalorder %s10, 0
    %p51 = por %p49, %p50
    %p52 = scmp.ne.s32.totalorder %s41, %s44
    %p53 = scmp.eq.s32.totalorder %s15, 1
    %p54 = por %p52, %p53
    %p55 = scmp.ne.s32.totalorder %s44, %s45
    %p56 = scmp.eq.s32.totalorder %s15, 0
    %p57 = por %p55, %p56
    %p58 = scmp.ne.s32.totalorder %s44, %s45
    %p59 = scmp.eq.s32.totalorder %s16, 1
    %p60 = por %p58, %p59
    %p62 = scmp.ne.s32.totalorder %s45, %s61
    %p63 = scmp.eq.s32.totalorder %s16, 0
    %p64 = por %p62, %p63
    %s65 = ssub.s32 %s17, %s36
    %s66 = ssub.s32 %s19, %s28
    %s67 = sor.u32 %s65, %s66
    %p68 = scmp.eq.s32.totalorder %s67, 0
    %s70 = sadd.s32 %s69, 1
    %s71 = scalar_select %p68, %s69, %s70
    %p74 = pneg %p68
    %p75 = scmp.eq.s32.totalorder %s10, 1
    %p76 = por %p74, %p75
    %p77 = scmp.ne.s32.totalorder %s69, %s72
    %p78 = scmp.eq.s32.totalorder %s10, 0
    %p79 = por %p77, %p78
    %p80 = scmp.ne.s32.totalorder %s69, %s72
    %p81 = scmp.eq.s32.totalorder %s15, 1
    %p82 = por %p80, %p81
    %p83 = scmp.ne.s32.totalorder %s72, %s73
    %p84 = scmp.eq.s32.totalorder %s15, 0
    %p85 = por %p83, %p84
    %p86 = scmp.ne.s32.totalorder %s72, %s73
    %p87 = scmp.eq.s32.totalorder %s16, 1
    %p88 = por %p86, %p87
    %p90 = scmp.ne.s32.totalorder %s73, %s89
    %p91 = scmp.eq.s32.totalorder %s16, 0
    %p92 = por %p90, %p91
    %s93 = ssub.s32 %s17, %s36
    %s94 = ssub.s32 %s18, %s32
    %s95 = sor.u32 %s93, %s94
    %p96 = scmp.eq.s32.totalorder %s95, 0
    %s98 = sadd.s32 %s97, 1
    %s99 = scalar_select %p96, %s97, %s98
    %p102 = pneg %p96
    %p103 = scmp.eq.s32.totalorder %s10, 1
    %p104 = por %p102, %p103
    %p105 = scmp.ne.s32.totalorder %s97, %s100
    %p106 = scmp.eq.s32.totalorder %s10, 0
    %p107 = por %p105, %p106
    %p108 = scmp.ne.s32.totalorder %s97, %s100
    %p109 = scmp.eq.s32.totalorder %s15, 1
    %p110 = por %p108, %p109
    %p111 = scmp.ne.s32.totalorder %s100, %s101
    %p112 = scmp.eq.s32.totalorder %s15, 0
    %p113 = por %p111, %p112
    %p114 = scmp.ne.s32.totalorder %s100, %s101
    %p115 = scmp.eq.s32.totalorder %s16, 1
    %p116 = por %p114, %p115
    %p118 = scmp.ne.s32.totalorder %s101, %s117
    %p119 = scmp.eq.s32.totalorder %s16, 0
    %p120 = por %p118, %p119
    %s121 = ssub.s32 %s17, %s36
    %s122 = ssub.s32 %s19, %s28
    %s123 = sor.u32 %s121, %s122
    %p124 = scmp.eq.s32.totalorder %s123, 0
    %s126 = sadd.s32 %s125, 1
    %s127 = scalar_select %p124, %s125, %s126
    %p130 = pneg %p124
    %p131 = scmp.eq.s32.totalorder %s10, 1
    %p132 = por %p130, %p131
    %p133 = scmp.ne.s32.totalorder %s125, %s128
    %p134 = scmp.eq.s32.totalorder %s10, 0
    %p135 = por %p133, %p134
    %p136 = scmp.ne.s32.totalorder %s125, %s128
    %p137 = scmp.eq.s32.totalorder %s15, 1
    %p138 = por %p136, %p137
    %p139 = scmp.ne.s32.totalorder %s128, %s129
    %p140 = scmp.eq.s32.totalorder %s15, 0
    %p141 = por %p139, %p140
    %p142 = scmp.ne.s32.totalorder %s128, %s129
    %p143 = scmp.eq.s32.totalorder %s16, 1
    %p144 = por %p142, %p143
    %p146 = scmp.ne.s32.totalorder %s129, %s145
    %p147 = scmp.eq.s32.totalorder %s16, 0
    %p148 = por %p146, %p147
    %s149 = ssub.s32 %s17, %s36
    %s150 = ssub.s32 %s18, %s32
    %s151 = sor.u32 %s149, %s150
    %s152 = ssub.s32 %s19, %s28
    %s153 = sor.u32 %s151, %s152
    %p154 = scmp.eq.s32.totalorder %s153, 0
    %s156 = sadd.s32 %s155, 1
    %s157 = scalar_select %p154, %s155, %s156
    %p160 = pneg %p154
    %p161 = scmp.eq.s32.totalorder %s10, 1
    %p162 = por %p160, %p161
    %p163 = scmp.ne.s32.totalorder %s155, %s158
    %p164 = scmp.eq.s32.totalorder %s10, 0
    %p165 = por %p163, %p164
    %p166 = scmp.ne.s32.totalorder %s155, %s158
    %p167 = scmp.eq.s32.totalorder %s15, 1
    %p168 = por %p166, %p167
    %p169 = scmp.ne.s32.totalorder %s158, %s159
    %p170 = scmp.eq.s32.totalorder %s15, 0
    %p171 = por %p169, %p170
    %p172 = scmp.ne.s32.totalorder %s158, %s159
    %p173 = scmp.eq.s32.totalorder %s16, 1
    %p174 = por %p172, %p173
    %p176 = scmp.ne.s32.totalorder %s159, %s175
    %p177 = scmp.eq.s32.totalorder %s16, 0
    %p178 = por %p176, %p177
    %p179 = scmp.le.s32.totalorder 1, %s10
    %p180 = scmp.lt.s32.totalorder %s10, 3
    %p181 = pnand %p179, %p180
    %p182 = pneg %p181
    // Predicated region
    $region9: #{tanimoto_forward_hot_path.5} parent=5 // pred_check
      _
    $region10: #{tanimoto_forward_hot_path.5} parent=5 // pred_check_branch
      %184 = sbr.rel (%p181) target = $region12
    $region11: #{tanimoto_forward_hot_path.5} parent=5 // pred_region
      %s185 = ssub.s32 %s10, 1
    $region12: #{tanimoto_forward_hot_path.5} parent=5 // pred_fallthru
      _
    %p186 = scmp.lt.s32.totalorder %s10, 2
    // Predicated region
    $region13: #{tanimoto_forward_hot_path.5} parent=5 // pred_check
      %p187 = pneg %p186
    $region14: #{tanimoto_forward_hot_path.5} parent=5 // pred_check_branch
      %189 = sbr.rel (%p187) target = $region16
    $region15: #{tanimoto_forward_hot_path.5} parent=5 // pred_region
      // Predicated region
      $region17: #{tanimoto_forward_hot_path.5} parent=15 // pred_check
        %p190 = pneg %p51
      $region18: #{tanimoto_forward_hot_path.5} parent=15 // pred_check_branch
        %192 = sbr.rel (%p190) target = $region20
      $region19: #{tanimoto_forward_hot_path.5} parent=15 // pred_region
        %s193 = smul.u32 32, %s18
        %p194 = scmp.lt.s32.totalorder %s17, 1
        %s195 = scalar_select %p194, %s17, 1
        %p196 = scmp.lt.s32.totalorder %s193, 31
        %s197 = scalar_select %p196, %s193, 31
        %s198 = smul.addr %s197, 2
        %s199 = smul.addr %s195, 64
        %s200 = sadd.s32 %s198, %s199
        %s201 = smul.addr %s200, 4
        %s202 = scalar_lea.vmem %s0, %s201
        %s203 = smul.u32 32, %s18
      $region20: #{tanimoto_forward_hot_path.5} parent=15 // pred_fallthru
        _
      // Predicated region
      $region21: #{tanimoto_forward_hot_path.5} parent=15 // pred_check
        %p204 = pneg %p79
      $region22: #{tanimoto_forward_hot_path.5} parent=15 // pred_check_branch
        %206 = sbr.rel (%p204) target = $region24
      $region23: #{tanimoto_forward_hot_path.5} parent=15 // pred_region
        %s207 = smul.u32 2, %s19
        %p208 = scmp.lt.s32.totalorder %s17, 1
        %s209 = scalar_select %p208, %s17, 1
        %p210 = scmp.lt.s32.totalorder %s207, 1
        %s211 = scalar_select %p210, %s207, 1
        %s212 = smul.addr %s209, 64
        %s213 = sadd.s32 %s211, %s212
        %s214 = smul.addr %s213, 4
        %s215 = scalar_lea.vmem %s1, %s214
        %s216 = smul.u32 2, %s19
      $region24: #{tanimoto_forward_hot_path.5} parent=15 // pred_fallthru
        _
      // Predicated region
      $region25: #{tanimoto_forward_hot_path.5} parent=15 // pred_check
        %p217 = pneg %p107
      $region26: #{tanimoto_forward_hot_path.5} parent=15 // pred_check_branch
        %219 = sbr.rel (%p217) target = $region28
      $region27: #{tanimoto_forward_hot_path.5} parent=15 // pred_region
        %s220 = smul.u32 32, %s18
        %p221 = scmp.lt.s32.totalorder %s17, 1
        %s222 = scalar_select %p221, %s17, 1
        %p223 = scmp.lt.s32.totalorder %s220, 31
        %s224 = scalar_select %p223, %s220, 31
        %s225 = smul.addr %s222, 32
        %s226 = sadd.s32 %s224, %s225
        %s227 = smul.addr %s226, 8
        %s228 = scalar_lea.vmem %s2, %s227
        %s229 = smul.u32 32, %s18
      $region28: #{tanimoto_forward_hot_path.5} parent=15 // pred_fallthru
        _
      // Predicated region
      $region29: #{tanimoto_forward_hot_path.5} parent=15 // pred_check
        %p230 = pneg %p135
      $region30: #{tanimoto_forward_hot_path.5} parent=15 // pred_check_branch
        %232 = sbr.rel (%p230) target = $region32
      $region31: #{tanimoto_forward_hot_path.5} parent=15 // pred_region
        %s233 = smul.u32 2, %s19
        %p234 = scmp.lt.s32.totalorder %s17, 1
        %s235 = scalar_select %p234, %s17, 1
        %p236 = scmp.lt.s32.totalorder %s233, 1
        %s237 = scalar_select %p236, %s233, 1
        %s238 = smul.addr %s235, 2
        %s239 = sadd.s32 %s237, %s238
        %s240 = scalar_lea.vmem %s3, %s239
        %s241 = smul.u32 2, %s19
      $region32: #{tanimoto_forward_hot_path.5} parent=15 // pred_fallthru
        _
    $region16: #{tanimoto_forward_hot_path.5} parent=5 // pred_fallthru
      _
    %p242 = scmp.le.s32.totalorder 1, %s10
    %p243 = scmp.lt.s32.totalorder %s10, 3
    %p244 = pnand %p242, %p243
    %p245 = pneg %p244
    // Predicated region
    $region33: #{tanimoto_forward_hot_path.5} parent=5 // pred_check
      _
    $region34: #{tanimoto_forward_hot_path.5} parent=5 // pred_check_branch
      %247 = sbr.rel (%p244) target = $region36
    $region35: #{tanimoto_forward_hot_path.5} parent=5 // pred_region
      %s248 = ssub.s32 %s10, 1
      %s249 = smul.u32 32, %s21
      %p250 = scmp.lt.s32.totalorder %s20, 1
      %s251 = scalar_select %p250, %s20, 1
      %p252 = scmp.lt.s32.totalorder %s249, 31
      %s253 = scalar_select %p252, %s249, 31
      %s254 = smul.addr %s253, 2
      %s255 = smul.addr %s251, 64
      %s256 = sadd.s32 %s254, %s255
      %s257 = smul.addr %s256, 4
      %s258 = scalar_lea.vmem %s0, %s257
      %p259 = pneg %p57
      %p260 = pneg %p54
      %s261 = smul.u32 2, %s22
      %p262 = scmp.lt.s32.totalorder %s20, 1
      %s263 = scalar_select %p262, %s20, 1
      %p264 = scmp.lt.s32.totalorder %s261, 1
      %s265 = scalar_select %p264, %s261, 1
      %s266 = smul.addr %s263, 64
      %s267 = sadd.s32 %s265, %s266
      %s268 = smul.addr %s267, 4
      %s269 = scalar_lea.vmem %s1, %s268
      %p270 = pneg %p85
      %p271 = pneg %p82
      %s272 = smul.u32 32, %s21
      %p273 = scmp.lt.s32.totalorder %s20, 1
      %s274 = scalar_select %p273, %s20, 1
      %p275 = scmp.lt.s32.totalorder %s272, 31
      %s276 = scalar_select %p275, %s272, 31
      %s277 = smul.addr %s274, 32
      %s278 = sadd.s32 %s276, %s277
      %s279 = smul.addr %s278, 8
      %s280 = scalar_lea.vmem %s2, %s279
      %p281 = pneg %p113
      %p282 = pneg %p110
      %s283 = smul.u32 2, %s22
      %p284 = scmp.lt.s32.totalorder %s20, 1
      %s285 = scalar_select %p284, %s20, 1
      %p286 = scmp.lt.s32.totalorder %s283, 1
      %s287 = scalar_select %p286, %s283, 1
      %s288 = smul.addr %s285, 2
      %s289 = sadd.s32 %s287, %s288
      %s290 = scalar_lea.vmem %s3, %s289
      %p291 = pneg %p141
      %p292 = pneg %p138
      %p293 = pneg %p171
      %p294 = pneg %p168
      %s295 = smul.u32 32, %s21
      %s296 = smul.u32 2, %s22
      %p297 = scmp.lt.s32.totalorder %s20, 1
      %s298 = scalar_select %p297, %s20, 1
      %p299 = scmp.lt.s32.totalorder %s295, 31
      %s300 = scalar_select %p299, %s295, 31
      %p301 = scmp.lt.s32.totalorder %s296, 1
      %s302 = scalar_select %p301, %s296, 1
      %s303 = smul.addr %s300, 2
      %s304 = sadd.s32 %s302, %s303
      %s305 = smul.addr %s298, 64
      %s306 = sadd.s32 %s304, %s305
      %s307 = smul.addr %s306, 8
      %s308 = scalar_lea.vmem %s4, %s307
      %s309 = smul.u32 32, %s21
      %p310 = scmp.lt.s32.totalorder %s20, 1
      %s311 = scalar_select %p310, %s20, 1
      %p312 = scmp.lt.s32.totalorder %s309, 31
      %s313 = scalar_select %p312, %s309, 31
      %s314 = smul.addr %s313, 2
      %s315 = smul.addr %s311, 64
      %s316 = sadd.s32 %s314, %s315
      %s317 = smul.addr %s316, 4
      %s318 = scalar_lea.vmem %s0, %s317
      %s319 = smul.u32 32, %s21
      %s320 = smul.u32 2, %s22
      %p321 = scmp.lt.s32.totalorder %s20, 1
      %s322 = scalar_select %p321, %s20, 1
      %p323 = scmp.lt.s32.totalorder %s320, 1
      %s324 = scalar_select %p323, %s320, 1
      %s325 = smul.addr %s322, 64
      %s326 = sadd.s32 %s324, %s325
      %s327 = smul.addr %s326, 4
      %s328 = scalar_lea.vmem %s1, %s327
      %s329 = smul.u32 2, %s22
      %s330 = smul.u32 32, %s21
      %p331 = scmp.lt.s32.totalorder %s20, 1
      %s332 = scalar_select %p331, %s20, 1
      %p333 = scmp.lt.s32.totalorder %s330, 31
      %s334 = scalar_select %p333, %s330, 31
      %s335 = smul.addr %s332, 32
      %s336 = sadd.s32 %s334, %s335
      %s337 = smul.addr %s336, 8
      %s338 = scalar_lea.vmem %s2, %s337
      %s339 = smul.u32 32, %s21
      %s340 = smul.u32 2, %s22
      %p341 = scmp.lt.s32.totalorder %s20, 1
      %s342 = scalar_select %p341, %s20, 1
      %p343 = scmp.lt.s32.totalorder %s340, 1
      %s344 = scalar_select %p343, %s340, 1
      %s345 = smul.addr %s342, 2
      %s346 = sadd.s32 %s344, %s345
      %s347 = scalar_lea.vmem %s3, %s346
      %s348 = smul.u32 2, %s22
      %s349 = smul.u32 32, %s21
      %s350 = smul.u32 2, %s22
      %p351 = scmp.lt.s32.totalorder %s20, 1
      %s352 = scalar_select %p351, %s20, 1
      %p353 = scmp.lt.s32.totalorder %s349, 31
      %s354 = scalar_select %p353, %s349, 31
      %p355 = scmp.lt.s32.totalorder %s350, 1
      %s356 = scalar_select %p355, %s350, 1
      %s357 = smul.addr %s354, 2
      %s358 = sadd.s32 %s356, %s357
      %s359 = smul.addr %s352, 64
      %s360 = sadd.s32 %s358, %s359
      %s361 = smul.addr %s360, 8
      %s362 = scalar_lea.vmem %s4, %s361
      %s363 = smul.u32 32, %s21
      %s364 = smul.u32 2, %s22
      %v365 = vld [vmem:[%s318] sm:$0xff]
      %v366 = vld [vmem:[%s318 + $0x8] sm:$0xff]
      %v367 = vld [vmem:[%s318 + $0x10] sm:$0xff]
      %v368 = vld [vmem:[%s318 + $0x18] sm:$0xff]
      %v369 = vld [vmem:[%s318 + $0x20] sm:$0xff]
      %v370 = vld [vmem:[%s318 + $0x28] sm:$0xff]
      %v371 = vld [vmem:[%s318 + $0x30] sm:$0xff]
      %v372 = vld [vmem:[%s318 + $0x38] sm:$0xff]
      %v373 = vld [vmem:[%s318 + $0x40] sm:$0xff]
      %v374 = vld [vmem:[%s318 + $0x48] sm:$0xff]
      %v375 = vld [vmem:[%s318 + $0x50] sm:$0xff]
      %v376 = vld [vmem:[%s318 + $0x58] sm:$0xff]
      %v377 = vld [vmem:[%s318 + $0x60] sm:$0xff]
      %v378 = vld [vmem:[%s318 + $0x68] sm:$0xff]
      %v379 = vld [vmem:[%s318 + $0x70] sm:$0xff]
      %v380 = vld [vmem:[%s318 + $0x78] sm:$0xff]
      %v381 = vld [vmem:[%s318 + $0x80] sm:$0xff]
      %v382 = vld [vmem:[%s318 + $0x88] sm:$0xff]
      %v383 = vld [vmem:[%s318 + $0x90] sm:$0xff]
      %v384 = vld [vmem:[%s318 + $0x98] sm:$0xff]
      %v385 = vld [vmem:[%s318 + $0xa0] sm:$0xff]
      %v386 = vld [vmem:[%s318 + $0xa8] sm:$0xff]
      %v387 = vld [vmem:[%s318 + $0xb0] sm:$0xff]
      %v388 = vld [vmem:[%s318 + $0xb8] sm:$0xff]
      %v389 = vld [vmem:[%s318 + $0xc0] sm:$0xff]
      %v390 = vld [vmem:[%s318 + $0xc8] sm:$0xff]
      %v391 = vld [vmem:[%s318 + $0xd0] sm:$0xff]
      %v392 = vld [vmem:[%s318 + $0xd8] sm:$0xff]
      %v393 = vld [vmem:[%s318 + $0xe0] sm:$0xff]
      %v394 = vld [vmem:[%s318 + $0xe8] sm:$0xff]
      %v395 = vld [vmem:[%s318 + $0xf0] sm:$0xff]
      %v396 = vld [vmem:[%s318 + $0xf8] sm:$0xff]
      %v397 = vld [vmem:[%s328] sm:$0xff]
      %v398 = vld [vmem:[%s328 + $0x8] sm:$0xff]
      %v399 = vld [vmem:[%s328 + $0x10] sm:$0xff]
      %v400 = vld [vmem:[%s328 + $0x18] sm:$0xff]
      %v401 = vld [vmem:[%s328 + $0x20] sm:$0xff]
      %v402 = vld [vmem:[%s328 + $0x28] sm:$0xff]
      %v403 = vld [vmem:[%s328 + $0x30] sm:$0xff]
      %v404 = vld [vmem:[%s328 + $0x38] sm:$0xff]
      %v405 = vld [vmem:[%s328 + $0x40] sm:$0xff]
      %v406 = vld [vmem:[%s328 + $0x48] sm:$0xff]
      %v407 = vld [vmem:[%s328 + $0x50] sm:$0xff]
      %v408 = vld [vmem:[%s328 + $0x58] sm:$0xff]
      %v409 = vld [vmem:[%s328 + $0x60] sm:$0xff]
      %v410 = vld [vmem:[%s328 + $0x68] sm:$0xff]
      %v411 = vld [vmem:[%s328 + $0x70] sm:$0xff]
      %v412 = vld [vmem:[%s328 + $0x78] sm:$0xff]
      %v413 = vld [vmem:[%s328 + $0x80] sm:$0xff]
      %v414 = vld [vmem:[%s328 + $0x88] sm:$0xff]
      %v415 = vld [vmem:[%s328 + $0x90] sm:$0xff]
      %v416 = vld [vmem:[%s328 + $0x98] sm:$0xff]
      %v417 = vld [vmem:[%s328 + $0xa0] sm:$0xff]
      %v418 = vld [vmem:[%s328 + $0xa8] sm:$0xff]
      %v419 = vld [vmem:[%s328 + $0xb0] sm:$0xff]
      %v420 = vld [vmem:[%s328 + $0xb8] sm:$0xff]
      %v421 = vld [vmem:[%s328 + $0xc0] sm:$0xff]
      %v422 = vld [vmem:[%s328 + $0xc8] sm:$0xff]
      %v423 = vld [vmem:[%s328 + $0xd0] sm:$0xff]
      %v424 = vld [vmem:[%s328 + $0xd8] sm:$0xff]
      %v425 = vld [vmem:[%s328 + $0xe0] sm:$0xff]
      %v426 = vld [vmem:[%s328 + $0xe8] sm:$0xff]
      %v427 = vld [vmem:[%s328 + $0xf0] sm:$0xff]
      %v428 = vld [vmem:[%s328 + $0xf8] sm:$0xff]
      %v461 = vunpack.c.l.b16 %v365
      %v462 = vunpack.c.h.b16 %v365
      %v463 = vunpack.c.l.b16 %v366
      %v464 = vunpack.c.h.b16 %v366
      %v465 = vunpack.c.l.b16 %v367
      %v466 = vunpack.c.h.b16 %v367
      %v467 = vunpack.c.l.b16 %v368
      %v468 = vunpack.c.h.b16 %v368
      %v469 = vunpack.c.l.b16 %v369
      %v470 = vunpack.c.h.b16 %v369
      %v471 = vunpack.c.l.b16 %v370
      %v472 = vunpack.c.h.b16 %v370
      %v473 = vunpack.c.l.b16 %v371
      %v474 = vunpack.c.h.b16 %v371
      %v475 = vunpack.c.l.b16 %v372
      %v476 = vunpack.c.h.b16 %v372
      %v477 = vunpack.c.l.b16 %v373
      %v478 = vunpack.c.h.b16 %v373
      %v479 = vunpack.c.l.b16 %v374
      %v480 = vunpack.c.h.b16 %v374
      %v481 = vunpack.c.l.b16 %v375
      %v482 = vunpack.c.h.b16 %v375
      %v483 = vunpack.c.l.b16 %v376
      %v484 = vunpack.c.h.b16 %v376
      %v485 = vunpack.c.l.b16 %v377
      %v486 = vunpack.c.h.b16 %v377
      %v487 = vunpack.c.l.b16 %v378
      %v488 = vunpack.c.h.b16 %v378
      %v489 = vunpack.c.l.b16 %v379
      %v490 = vunpack.c.h.b16 %v379
      %v491 = vunpack.c.l.b16 %v380
      %v492 = vunpack.c.h.b16 %v380
      %v493 = vunpack.c.l.b16 %v381
      %v494 = vunpack.c.h.b16 %v381
      %v495 = vunpack.c.l.b16 %v382
      %v496 = vunpack.c.h.b16 %v382
      %v497 = vunpack.c.l.b16 %v383
      %v498 = vunpack.c.h.b16 %v383
      %v499 = vunpack.c.l.b16 %v384
      %v500 = vunpack.c.h.b16 %v384
      %v501 = vunpack.c.l.b16 %v385
      %v502 = vunpack.c.h.b16 %v385
      %v503 = vunpack.c.l.b16 %v386
      %v504 = vunpack.c.h.b16 %v386
      %v505 = vunpack.c.l.b16 %v387
      %v506 = vunpack.c.h.b16 %v387
      %v507 = vunpack.c.l.b16 %v388
      %v508 = vunpack.c.h.b16 %v388
      %v509 = vunpack.c.l.b16 %v389
      %v510 = vunpack.c.h.b16 %v389
      %v511 = vunpack.c.l.b16 %v390
      %v512 = vunpack.c.h.b16 %v390
      %v513 = vunpack.c.l.b16 %v391
      %v514 = vunpack.c.h.b16 %v391
      %v515 = vunpack.c.l.b16 %v392
      %v516 = vunpack.c.h.b16 %v392
      %v517 = vunpack.c.l.b16 %v393
      %v518 = vunpack.c.h.b16 %v393
      %v519 = vunpack.c.l.b16 %v394
      %v520 = vunpack.c.h.b16 %v394
      %v521 = vunpack.c.l.b16 %v395
      %v522 = vunpack.c.h.b16 %v395
      %v523 = vunpack.c.l.b16 %v396
      %v524 = vunpack.c.h.b16 %v396
      %v525 = vpack.c.b16 %v463, %v461
      %v526 = vpack.c.b16 %v464, %v462
      %v527 = vpack.c.b16 %v467, %v465
      %v528 = vpack.c.b16 %v468, %v466
      %v529 = vpack.c.b16 %v471, %v469
      %v530 = vpack.c.b16 %v472, %v470
      %v531 = vpack.c.b16 %v475, %v473
      %v532 = vpack.c.b16 %v476, %v474
      %v533 = vpack.c.b16 %v479, %v477
      %v534 = vpack.c.b16 %v480, %v478
      %v535 = vpack.c.b16 %v483, %v481
      %v536 = vpack.c.b16 %v484, %v482
      %v537 = vpack.c.b16 %v487, %v485
      %v538 = vpack.c.b16 %v488, %v486
      %v539 = vpack.c.b16 %v491, %v489
      %v540 = vpack.c.b16 %v492, %v490
      %v541 = vpack.c.b16 %v495, %v493
      %v542 = vpack.c.b16 %v496, %v494
      %v543 = vpack.c.b16 %v499, %v497
      %v544 = vpack.c.b16 %v500, %v498
      %v545 = vpack.c.b16 %v503, %v501
      %v546 = vpack.c.b16 %v504, %v502
      %v547 = vpack.c.b16 %v507, %v505
      %v548 = vpack.c.b16 %v508, %v506
      %v549 = vpack.c.b16 %v511, %v509
      %v550 = vpack.c.b16 %v512, %v510
      %v551 = vpack.c.b16 %v515, %v513
      %v552 = vpack.c.b16 %v516, %v514
      %v553 = vpack.c.b16 %v519, %v517
      %v554 = vpack.c.b16 %v520, %v518
      %v555 = vpack.c.b16 %v523, %v521
      %v556 = vpack.c.b16 %v524, %v522
      %v621 = vunpack.c.l.b16 %v397
      %v622 = vunpack.c.h.b16 %v397
      %v623 = vunpack.c.l.b16 %v398
      %v624 = vunpack.c.h.b16 %v398
      %v625 = vunpack.c.l.b16 %v399
      %v626 = vunpack.c.h.b16 %v399
      %v627 = vunpack.c.l.b16 %v400
      %v628 = vunpack.c.h.b16 %v400
      %v629 = vunpack.c.l.b16 %v401
      %v630 = vunpack.c.h.b16 %v401
      %v631 = vunpack.c.l.b16 %v402
      %v632 = vunpack.c.h.b16 %v402
      %v633 = vunpack.c.l.b16 %v403
      %v634 = vunpack.c.h.b16 %v403
      %v635 = vunpack.c.l.b16 %v404
      %v636 = vunpack.c.h.b16 %v404
      %v637 = vunpack.c.l.b16 %v405
      %v638 = vunpack.c.h.b16 %v405
      %v639 = vunpack.c.l.b16 %v406
      %v640 = vunpack.c.h.b16 %v406
      %v641 = vunpack.c.l.b16 %v407
      %v642 = vunpack.c.h.b16 %v407
      %v643 = vunpack.c.l.b16 %v408
      %v644 = vunpack.c.h.b16 %v408
      %v645 = vunpack.c.l.b16 %v409
      %v646 = vunpack.c.h.b16 %v409
      %v647 = vunpack.c.l.b16 %v410
      %v648 = vunpack.c.h.b16 %v410
      %v649 = vunpack.c.l.b16 %v411
      %v650 = vunpack.c.h.b16 %v411
      %v651 = vunpack.c.l.b16 %v412
      %v652 = vunpack.c.h.b16 %v412
      %v653 = vunpack.c.l.b16 %v413
      %v654 = vunpack.c.h.b16 %v413
      %v655 = vunpack.c.l.b16 %v414
      %v656 = vunpack.c.h.b16 %v414
      %v657 = vunpack.c.l.b16 %v415
      %v658 = vunpack.c.h.b16 %v415
      %v659 = vunpack.c.l.b16 %v416
      %v660 = vunpack.c.h.b16 %v416
      %v661 = vunpack.c.l.b16 %v417
      %v662 = vunpack.c.h.b16 %v417
      %v663 = vunpack.c.l.b16 %v418
      %v664 = vunpack.c.h.b16 %v418
      %v665 = vunpack.c.l.b16 %v419
      %v666 = vunpack.c.h.b16 %v419
      %v667 = vunpack.c.l.b16 %v420
      %v668 = vunpack.c.h.b16 %v420
      %v669 = vunpack.c.l.b16 %v421
      %v670 = vunpack.c.h.b16 %v421
      %v671 = vunpack.c.l.b16 %v422
      %v672 = vunpack.c.h.b16 %v422
      %v673 = vunpack.c.l.b16 %v423
      %v674 = vunpack.c.h.b16 %v423
      %v675 = vunpack.c.l.b16 %v424
      %v676 = vunpack.c.h.b16 %v424
      %v677 = vunpack.c.l.b16 %v425
      %v678 = vunpack.c.h.b16 %v425
      %v679 = vunpack.c.l.b16 %v426
      %v680 = vunpack.c.h.b16 %v426
      %v681 = vunpack.c.l.b16 %v427
      %v682 = vunpack.c.h.b16 %v427
      %v683 = vunpack.c.l.b16 %v428
      %v684 = vunpack.c.h.b16 %v428
      %v685 = vpack.c.b16 %v623, %v621
      %v686 = vpack.c.b16 %v624, %v622
      %v687 = vpack.c.b16 %v627, %v625
      %v688 = vpack.c.b16 %v628, %v626
      %v689 = vpack.c.b16 %v631, %v629
      %v690 = vpack.c.b16 %v632, %v630
      %v691 = vpack.c.b16 %v635, %v633
      %v692 = vpack.c.b16 %v636, %v634
      %v693 = vpack.c.b16 %v639, %v637
      %v694 = vpack.c.b16 %v640, %v638
      %v695 = vpack.c.b16 %v643, %v641
      %v696 = vpack.c.b16 %v644, %v642
      %v697 = vpack.c.b16 %v647, %v645
      %v698 = vpack.c.b16 %v648, %v646
      %v699 = vpack.c.b16 %v651, %v649
      %v700 = vpack.c.b16 %v652, %v650
      %v701 = vpack.c.b16 %v655, %v653
      %v702 = vpack.c.b16 %v656, %v654
      %v703 = vpack.c.b16 %v659, %v657
      %v704 = vpack.c.b16 %v660, %v658
      %v705 = vpack.c.b16 %v663, %v661
      %v706 = vpack.c.b16 %v664, %v662
      %v707 = vpack.c.b16 %v667, %v665
      %v708 = vpack.c.b16 %v668, %v666
      %v709 = vpack.c.b16 %v671, %v669
      %v710 = vpack.c.b16 %v672, %v670
      %v711 = vpack.c.b16 %v675, %v673
      %v712 = vpack.c.b16 %v676, %v674
      %v713 = vpack.c.b16 %v679, %v677
      %v714 = vpack.c.b16 %v680, %v678
      %v715 = vpack.c.b16 %v683, %v681
      %v716 = vpack.c.b16 %v684, %v682
      %749 = vmatprep.subr.bf16.mxu0 %v686
      %750 = vmatpush1.bf16.msra.mxu0 %v685
      %751 = vmatprep.subr.bf16.mxu0 %v688
      %752 = vmatpush1.bf16.msra.mxu0 %v687
      %753 = vmatprep.subr.bf16.mxu0 %v690
      %754 = vmatpush1.bf16.msra.mxu0 %v689
      %755 = vmatprep.subr.bf16.mxu0 %v692
      %756 = vmatpush1.bf16.msra.mxu0 %v691
      %757 = vmatprep.subr.bf16.mxu0 %v694
      %758 = vmatpush1.bf16.msra.mxu0 %v693
      %759 = vmatprep.subr.bf16.mxu0 %v696
      %760 = vmatpush1.bf16.msra.mxu0 %v695
      %761 = vmatprep.subr.bf16.mxu0 %v698
      %762 = vmatpush1.bf16.msra.mxu0 %v697
      %763 = vmatprep.subr.bf16.mxu0 %v700
      %764 = vmatpush1.bf16.msra.mxu0 %v699
      %765 = vmatprep.subr.bf16.mxu0 %v702
      %766 = vmatpush1.bf16.msra.mxu0 %v701
      %767 = vmatprep.subr.bf16.mxu0 %v704
      %768 = vmatpush1.bf16.msra.mxu0 %v703
      %769 = vmatprep.subr.bf16.mxu0 %v706
      %770 = vmatpush1.bf16.msra.mxu0 %v705
      %771 = vmatprep.subr.bf16.mxu0 %v708
      %772 = vmatpush1.bf16.msra.mxu0 %v707
      %773 = vmatprep.subr.bf16.mxu0 %v710
      %774 = vmatpush1.bf16.msra.mxu0 %v709
      %775 = vmatprep.subr.bf16.mxu0 %v712
      %776 = vmatpush1.bf16.msra.mxu0 %v711
      %777 = vmatprep.subr.bf16.mxu0 %v714
      %778 = vmatpush1.bf16.msra.mxu0 %v713
      %779 = vmatprep.subr.bf16.mxu0 %v716
      %780 = vmatpush1.bf16.msra.mxu0 %v715
      %781 = vmatprep.mubr.bf16.mxu0 %v526
      %782 = vmatmul.mubr.bf16.gmra.mrb[0].mxu0 %v525
      %v783 = vpop.f32.mrb[0].mxu0
      %v784 = vadd.f32 0.0, %v783
      %v785 = vpop.f32.mrb[0].mxu0
      %v786 = vadd.f32 0.0, %v785
      %v787 = vpop.f32.mrb[0].mxu0
      %v788 = vadd.f32 0.0, %v787
      %v789 = vpop.f32.mrb[0].mxu0
      %v790 = vadd.f32 0.0, %v789
      %791 = vmatprep.mubr.bf16.mxu0 %v528
      %792 = vmatmul.mubr.bf16.gmra.mrb[0].mxu0 %v527
      %v793 = vpop.f32.mrb[0].mxu0
      %v794 = vadd.f32 0.0, %v793
      %v795 = vpop.f32.mrb[0].mxu0
      %v796 = vadd.f32 0.0, %v795
      %v797 = vpop.f32.mrb[0].mxu0
      %v798 = vadd.f32 0.0, %v797
      %v799 = vpop.f32.mrb[0].mxu0
      %v800 = vadd.f32 0.0, %v799
      %801 = vmatprep.mubr.bf16.mxu0 %v530
      %802 = vmatmul.mubr.bf16.gmra.mrb[0].mxu0 %v529
      %v803 = vpop.f32.mrb[0].mxu0
      %v804 = vadd.f32 0.0, %v803
      %v805 = vpop.f32.mrb[0].mxu0
      %v806 = vadd.f32 0.0, %v805
      %v807 = vpop.f32.mrb[0].mxu0
      %v808 = vadd.f32 0.0, %v807
      %v809 = vpop.f32.mrb[0].mxu0
      %v810 = vadd.f32 0.0, %v809
      %811 = vmatprep.mubr.bf16.mxu0 %v532
      %812 = vmatmul.mubr.bf16.gmra.mrb[0].mxu0 %v531
      %v813 = vpop.f32.mrb[0].mxu0
      %v814 = vadd.f32 0.0, %v813
      %v815 = vpop.f32.mrb[0].mxu0
      %v816 = vadd.f32 0.0, %v815
      %v817 = vpop.f32.mrb[0].mxu0
      %v818 = vadd.f32 0.0, %v817
      %v819 = vpop.f32.mrb[0].mxu0
      %v820 = vadd.f32 0.0, %v819
      %821 = vmatprep.mubr.bf16.mxu0 %v534
      %822 = vmatmul.mubr.bf16.gmra.mrb[0].mxu0 %v533
      %v823 = vpop.f32.mrb[0].mxu0
      %v824 = vadd.f32 0.0, %v823
      %v825 = vpop.f32.mrb[0].mxu0
      %v826 = vadd.f32 0.0, %v825
      %v827 = vpop.f32.mrb[0].mxu0
      %v828 = vadd.f32 0.0, %v827
      %v829 = vpop.f32.mrb[0].mxu0
      %v830 = vadd.f32 0.0, %v829
      %831 = vmatprep.mubr.bf16.mxu0 %v536
      %832 = vmatmul.mubr.bf16.gmra.mrb[0].mxu0 %v535
      %v833 = vpop.f32.mrb[0].mxu0
      %v834 = vadd.f32 0.0, %v833
      %v835 = vpop.f32.mrb[0].mxu0
      %v836 = vadd.f32 0.0, %v835
      %v837 = vpop.f32.mrb[0].mxu0
      %v838 = vadd.f32 0.0, %v837
      %v839 = vpop.f32.mrb[0].mxu0
      %v840 = vadd.f32 0.0, %v839
      %841 = vmatprep.mubr.bf16.mxu0 %v538
      %842 = vmatmul.mubr.bf16.gmra.mrb[0].mxu0 %v537
      %v843 = vpop.f32.mrb[0].mxu0
      %v844 = vadd.f32 0.0, %v843
      %v845 = vpop.f32.mrb[0].mxu0
      %v846 = vadd.f32 0.0, %v845
      %v847 = vpop.f32.mrb[0].mxu0
      %v848 = vadd.f32 0.0, %v847
      %v849 = vpop.f32.mrb[0].mxu0
      %v850 = vadd.f32 0.0, %v849
      %851 = vmatprep.mubr.bf16.mxu0 %v540
      %852 = vmatmul.mubr.bf16.gmra.mrb[0].mxu0 %v539
      %v853 = vpop.f32.mrb[0].mxu0
      %v854 = vadd.f32 0.0, %v853
      %v855 = vpop.f32.mrb[0].mxu0
      %v856 = vadd.f32 0.0, %v855
      %v857 = vpop.f32.mrb[0].mxu0
      %v858 = vadd.f32 0.0, %v857
      %v859 = vpop.f32.mrb[0].mxu0
      %v860 = vadd.f32 0.0, %v859
      %861 = vmatprep.mubr.bf16.mxu0 %v542
      %862 = vmatmul.mubr.bf16.gmra.mrb[0].mxu0 %v541
      %v863 = vpop.f32.mrb[0].mxu0
      %v864 = vadd.f32 0.0, %v863
      %v865 = vpop.f32.mrb[0].mxu0
      %v866 = vadd.f32 0.0, %v865
      %v867 = vpop.f32.mrb[0].mxu0
      %v868 = vadd.f32 0.0, %v867
      %v869 = vpop.f32.mrb[0].mxu0
      %v870 = vadd.f32 0.0, %v869
      %871 = vmatprep.mubr.bf16.mxu0 %v544
      %872 = vmatmul.mubr.bf16.gmra.mrb[0].mxu0 %v543
      %v873 = vpop.f32.mrb[0].mxu0
      %v874 = vadd.f32 0.0, %v873
      %v875 = vpop.f32.mrb[0].mxu0
      %v876 = vadd.f32 0.0, %v875
      %v877 = vpop.f32.mrb[0].mxu0
      %v878 = vadd.f32 0.0, %v877
      %v879 = vpop.f32.mrb[0].mxu0
      %v880 = vadd.f32 0.0, %v879
      %881 = vmatprep.mubr.bf16.mxu0 %v546
      %882 = vmatmul.mubr.bf16.gmra.mrb[0].mxu0 %v545
      %v883 = vpop.f32.mrb[0].mxu0
      %v884 = vadd.f32 0.0, %v883
      %v885 = vpop.f32.mrb[0].mxu0
      %v886 = vadd.f32 0.0, %v885
      %v887 = vpop.f32.mrb[0].mxu0
      %v888 = vadd.f32 0.0, %v887
      %v889 = vpop.f32.mrb[0].mxu0
      %v890 = vadd.f32 0.0, %v889
      %891 = vmatprep.mubr.bf16.mxu0 %v548
      %892 = vmatmul.mubr.bf16.gmra.mrb[0].mxu0 %v547
      %v893 = vpop.f32.mrb[0].mxu0
      %v894 = vadd.f32 0.0, %v893
      %v895 = vpop.f32.mrb[0].mxu0
      %v896 = vadd.f32 0.0, %v895
      %v897 = vpop.f32.mrb[0].mxu0
      %v898 = vadd.f32 0.0, %v897
      %v899 = vpop.f32.mrb[0].mxu0
      %v900 = vadd.f32 0.0, %v899
      %901 = vmatprep.mubr.bf16.mxu0 %v550
      %902 = vmatmul.mubr.bf16.gmra.mrb[0].mxu0 %v549
      %v903 = vpop.f32.mrb[0].mxu0
      %v904 = vadd.f32 0.0, %v903
      %v905 = vpop.f32.mrb[0].mxu0
      %v906 = vadd.f32 0.0, %v905
      %v907 = vpop.f32.mrb[0].mxu0
      %v908 = vadd.f32 0.0, %v907
      %v909 = vpop.f32.mrb[0].mxu0
      %v910 = vadd.f32 0.0, %v909
      %911 = vmatprep.mubr.bf16.mxu0 %v552
      %912 = vmatmul.mubr.bf16.gmra.mrb[0].mxu0 %v551
      %v913 = vpop.f32.mrb[0].mxu0
      %v914 = vadd.f32 0.0, %v913
      %v915 = vpop.f32.mrb[0].mxu0
      %v916 = vadd.f32 0.0, %v915
      %v917 = vpop.f32.mrb[0].mxu0
      %v918 = vadd.f32 0.0, %v917
      %v919 = vpop.f32.mrb[0].mxu0
      %v920 = vadd.f32 0.0, %v919
      %921 = vmatprep.mubr.bf16.mxu0 %v554
      %922 = vmatmul.mubr.bf16.gmra.mrb[0].mxu0 %v553
      %v923 = vpop.f32.mrb[0].mxu0
      %v924 = vadd.f32 0.0, %v923
      %v925 = vpop.f32.mrb[0].mxu0
      %v926 = vadd.f32 0.0, %v925
      %v927 = vpop.f32.mrb[0].mxu0
      %v928 = vadd.f32 0.0, %v927
      %v929 = vpop.f32.mrb[0].mxu0
      %v930 = vadd.f32 0.0, %v929
      %931 = vmatprep.mubr.bf16.mxu0 %v556
      %932 = vmatmul.mubr.bf16.gmra.mrb[0].mxu0 %v555
      %v933 = vpop.f32.mrb[0].mxu0
      %v934 = vadd.f32 0.0, %v933
      %v935 = vpop.f32.mrb[0].mxu0
      %v936 = vadd.f32 0.0, %v935
      %v937 = vpop.f32.mrb[0].mxu0
      %v938 = vadd.f32 0.0, %v937
      %v939 = vpop.f32.mrb[0].mxu0
      %v940 = vadd.f32 0.0, %v939
      %941 = vdwg.mxu0
      %v942 = vld [vmem:[%s338] sm:$0xff]
      %v943 = vld [vmem:[%s338 + $0x8] sm:$0xff]
      %v944 = vld [vmem:[%s338 + $0x10] sm:$0xff]
      %v945 = vld [vmem:[%s338 + $0x18] sm:$0xff]
      %v946 = vld [vmem:[%s338 + $0x20] sm:$0xff]
      %v947 = vld [vmem:[%s338 + $0x28] sm:$0xff]
      %v948 = vld [vmem:[%s338 + $0x30] sm:$0xff]
      %v949 = vld [vmem:[%s338 + $0x38] sm:$0xff]
      %v950 = vld [vmem:[%s338 + $0x40] sm:$0xff]
      %v951 = vld [vmem:[%s338 + $0x48] sm:$0xff]
      %v952 = vld [vmem:[%s338 + $0x50] sm:$0xff]
      %v953 = vld [vmem:[%s338 + $0x58] sm:$0xff]
      %v954 = vld [vmem:[%s338 + $0x60] sm:$0xff]
      %v955 = vld [vmem:[%s338 + $0x68] sm:$0xff]
      %v956 = vld [vmem:[%s338 + $0x70] sm:$0xff]
      %v957 = vld [vmem:[%s338 + $0x78] sm:$0xff]
      %v958 = vld [vmem:[%s338 + $0x80] sm:$0xff]
      %v959 = vld [vmem:[%s338 + $0x88] sm:$0xff]
      %v960 = vld [vmem:[%s338 + $0x90] sm:$0xff]
      %v961 = vld [vmem:[%s338 + $0x98] sm:$0xff]
      %v962 = vld [vmem:[%s338 + $0xa0] sm:$0xff]
      %v963 = vld [vmem:[%s338 + $0xa8] sm:$0xff]
      %v964 = vld [vmem:[%s338 + $0xb0] sm:$0xff]
      %v965 = vld [vmem:[%s338 + $0xb8] sm:$0xff]
      %v966 = vld [vmem:[%s338 + $0xc0] sm:$0xff]
      %v967 = vld [vmem:[%s338 + $0xc8] sm:$0xff]
      %v968 = vld [vmem:[%s338 + $0xd0] sm:$0xff]
      %v969 = vld [vmem:[%s338 + $0xd8] sm:$0xff]
      %v970 = vld [vmem:[%s338 + $0xe0] sm:$0xff]
      %v971 = vld [vmem:[%s338 + $0xe8] sm:$0xff]
      %v972 = vld [vmem:[%s338 + $0xf0] sm:$0xff]
      %v973 = vld [vmem:[%s338 + $0xf8] sm:$0xff]
      %v974 = vld [vmem:[%s347] sm:$0x3]
      %976 = vset.pattern.permute.xlu0 0
      %977 = vperm.xlu0 %976, %v942
      %v978 = vpop.permute.xlu0 %977
      %981 = vset.pattern.permute.xlu0 0
      %982 = vperm.xlu0 %981, %v943
      %v983 = vpop.permute.xlu0 %982
      %986 = vset.pattern.permute.xlu0 0
      %987 = vperm.xlu0 %986, %v944
      %v988 = vpop.permute.xlu0 %987
      %991 = vset.pattern.permute.xlu0 0
      %992 = vperm.xlu0 %991, %v945
      %v993 = vpop.permute.xlu0 %992
      %996 = vset.pattern.permute.xlu0 0
      %997 = vperm.xlu0 %996, %v946
      %v998 = vpop.permute.xlu0 %997
      %1001 = vset.pattern.permute.xlu0 0
      %1002 = vperm.xlu0 %1001, %v947
      %v1003 = vpop.permute.xlu0 %1002
      %1006 = vset.pattern.permute.xlu0 0
      %1007 = vperm.xlu0 %1006, %v948
      %v1008 = vpop.permute.xlu0 %1007
      %1011 = vset.pattern.permute.xlu0 0
      %1012 = vperm.xlu0 %1011, %v949
      %v1013 = vpop.permute.xlu0 %1012
      %1016 = vset.pattern.permute.xlu0 0
      %1017 = vperm.xlu0 %1016, %v950
      %v1018 = vpop.permute.xlu0 %1017
      %1021 = vset.pattern.permute.xlu0 0
      %1022 = vperm.xlu0 %1021, %v951
      %v1023 = vpop.permute.xlu0 %1022
      %1026 = vset.pattern.permute.xlu0 0
      %1027 = vperm.xlu0 %1026, %v952
      %v1028 = vpop.permute.xlu0 %1027
      %1031 = vset.pattern.permute.xlu0 0
      %1032 = vperm.xlu0 %1031, %v953
      %v1033 = vpop.permute.xlu0 %1032
      %1036 = vset.pattern.permute.xlu0 0
      %1037 = vperm.xlu0 %1036, %v954
      %v1038 = vpop.permute.xlu0 %1037
      %1041 = vset.pattern.permute.xlu0 0
      %1042 = vperm.xlu0 %1041, %v955
      %v1043 = vpop.permute.xlu0 %1042
      %1046 = vset.pattern.permute.xlu0 0
      %1047 = vperm.xlu0 %1046, %v956
      %v1048 = vpop.permute.xlu0 %1047
      %1051 = vset.pattern.permute.xlu0 0
      %1052 = vperm.xlu0 %1051, %v957
      %v1053 = vpop.permute.xlu0 %1052
      %1056 = vset.pattern.permute.xlu0 0
      %1057 = vperm.xlu0 %1056, %v958
      %v1058 = vpop.permute.xlu0 %1057
      %1061 = vset.pattern.permute.xlu0 0
      %1062 = vperm.xlu0 %1061, %v959
      %v1063 = vpop.permute.xlu0 %1062
      %1066 = vset.pattern.permute.xlu0 0
      %1067 = vperm.xlu0 %1066, %v960
      %v1068 = vpop.permute.xlu0 %1067
      %1071 = vset.pattern.permute.xlu0 0
      %1072 = vperm.xlu0 %1071, %v961
      %v1073 = vpop.permute.xlu0 %1072
      %1076 = vset.pattern.permute.xlu0 0
      %1077 = vperm.xlu0 %1076, %v962
      %v1078 = vpop.permute.xlu0 %1077
      %1081 = vset.pattern.permute.xlu0 0
      %1082 = vperm.xlu0 %1081, %v963
      %v1083 = vpop.permute.xlu0 %1082
      %1086 = vset.pattern.permute.xlu0 0
      %1087 = vperm.xlu0 %1086, %v964
      %v1088 = vpop.permute.xlu0 %1087
      %1091 = vset.pattern.permute.xlu0 0
      %1092 = vperm.xlu0 %1091, %v965
      %v1093 = vpop.permute.xlu0 %1092
      %1096 = vset.pattern.permute.xlu0 0
      %1097 = vperm.xlu0 %1096, %v966
      %v1098 = vpop.permute.xlu0 %1097
      %1101 = vset.pattern.permute.xlu0 0
      %1102 = vperm.xlu0 %1101, %v967
      %v1103 = vpop.permute.xlu0 %1102
      %1106 = vset.pattern.permute.xlu0 0
      %1107 = vperm.xlu0 %1106, %v968
      %v1108 = vpop.permute.xlu0 %1107
      %1111 = vset.pattern.permute.xlu0 0
      %1112 = vperm.xlu0 %1111, %v969
      %v1113 = vpop.permute.xlu0 %1112
      %1116 = vset.pattern.permute.xlu0 0
      %1117 = vperm.xlu0 %1116, %v970
      %v1118 = vpop.permute.xlu0 %1117
      %1121 = vset.pattern.permute.xlu0 0
      %1122 = vperm.xlu0 %1121, %v971
      %v1123 = vpop.permute.xlu0 %1122
      %1126 = vset.pattern.permute.xlu0 0
      %1127 = vperm.xlu0 %1126, %v972
      %v1128 = vpop.permute.xlu0 %1127
      %1131 = vset.pattern.permute.xlu0 0
      %1132 = vperm.xlu0 %1131, %v973
      %v1133 = vpop.permute.xlu0 %1132
      %v1136 = vlaneseq
      %v1137 = vshrl.u32 %v1136, 7
      %v1138 = vsub.s32 0, %v1137
      %v1139 = vrot.slane %v974, %v1138
      %v1140 = vlaneseq
      %v1141 = vshrl.u32 %v1140, 7
      %v1142 = vsub.s32 1, %v1141
      %v1143 = vrot.slane %v974, %v1142
      %v1146 = vadd.f32 %v978, %v1139
      %v1147 = vadd.f32 %v978, %v1143
      %v1148 = vadd.f32 %v983, %v1139
      %v1149 = vadd.f32 %v983, %v1143
      %v1150 = vadd.f32 %v988, %v1139
      %v1151 = vadd.f32 %v988, %v1143
      %v1152 = vadd.f32 %v993, %v1139
      %v1153 = vadd.f32 %v993, %v1143
      %v1154 = vadd.f32 %v998, %v1139
      %v1155 = vadd.f32 %v998, %v1143
      %v1156 = vadd.f32 %v1003, %v1139
      %v1157 = vadd.f32 %v1003, %v1143
      %v1158 = vadd.f32 %v1008, %v1139
      %v1159 = vadd.f32 %v1008, %v1143
      %v1160 = vadd.f32 %v1013, %v1139
      %v1161 = vadd.f32 %v1013, %v1143
      %v1162 = vadd.f32 %v1018, %v1139
      %v1163 = vadd.f32 %v1018, %v1143
      %v1164 = vadd.f32 %v1023, %v1139
      %v1165 = vadd.f32 %v1023, %v1143
      %v1166 = vadd.f32 %v1028, %v1139
      %v1167 = vadd.f32 %v1028, %v1143
      %v1168 = vadd.f32 %v1033, %v1139
      %v1169 = vadd.f32 %v1033, %v1143
      %v1170 = vadd.f32 %v1038, %v1139
      %v1171 = vadd.f32 %v1038, %v1143
      %v1172 = vadd.f32 %v1043, %v1139
      %v1173 = vadd.f32 %v1043, %v1143
      %v1174 = vadd.f32 %v1048, %v1139
      %v1175 = vadd.f32 %v1048, %v1143
      %v1176 = vadd.f32 %v1053, %v1139
      %v1177 = vadd.f32 %v1053, %v1143
      %v1178 = vadd.f32 %v1058, %v1139
      %v1179 = vadd.f32 %v1058, %v1143
      %v1180 = vadd.f32 %v1063, %v1139
      %v1181 = vadd.f32 %v1063, %v1143
      %v1182 = vadd.f32 %v1068, %v1139
      %v1183 = vadd.f32 %v1068, %v1143
      %v1184 = vadd.f32 %v1073, %v1139
      %v1185 = vadd.f32 %v1073, %v1143
      %v1186 = vadd.f32 %v1078, %v1139
      %v1187 = vadd.f32 %v1078, %v1143
      %v1188 = vadd.f32 %v1083, %v1139
      %v1189 = vadd.f32 %v1083, %v1143
      %v1190 = vadd.f32 %v1088, %v1139
      %v1191 = vadd.f32 %v1088, %v1143
      %v1192 = vadd.f32 %v1093, %v1139
      %v1193 = vadd.f32 %v1093, %v1143
      %v1194 = vadd.f32 %v1098, %v1139
      %v1195 = vadd.f32 %v1098, %v1143
      %v1196 = vadd.f32 %v1103, %v1139
      %v1197 = vadd.f32 %v1103, %v1143
      %v1198 = vadd.f32 %v1108, %v1139
      %v1199 = vadd.f32 %v1108, %v1143
      %v1200 = vadd.f32 %v1113, %v1139
      %v1201 = vadd.f32 %v1113, %v1143
      %v1202 = vadd.f32 %v1118, %v1139
      %v1203 = vadd.f32 %v1118, %v1143
      %v1204 = vadd.f32 %v1123, %v1139
      %v1205 = vadd.f32 %v1123, %v1143
      %v1206 = vadd.f32 %v1128, %v1139
      %v1207 = vadd.f32 %v1128, %v1143
      %v1208 = vadd.f32 %v1133, %v1139
      %v1209 = vadd.f32 %v1133, %v1143
      %v1210 = vsub.f32 %v1146, %v784
      %v1211 = vsub.f32 %v1147, %v786
      %v1212 = vsub.f32 %v1148, %v788
      %v1213 = vsub.f32 %v1149, %v790
      %v1214 = vsub.f32 %v1150, %v794
      %v1215 = vsub.f32 %v1151, %v796
      %v1216 = vsub.f32 %v1152, %v798
      %v1217 = vsub.f32 %v1153, %v800
      %v1218 = vsub.f32 %v1154, %v804
      %v1219 = vsub.f32 %v1155, %v806
      %v1220 = vsub.f32 %v1156, %v808
      %v1221 = vsub.f32 %v1157, %v810
      %v1222 = vsub.f32 %v1158, %v814
      %v1223 = vsub.f32 %v1159, %v816
      %v1224 = vsub.f32 %v1160, %v818
      %v1225 = vsub.f32 %v1161, %v820
      %v1226 = vsub.f32 %v1162, %v824
      %v1227 = vsub.f32 %v1163, %v826
      %v1228 = vsub.f32 %v1164, %v828
      %v1229 = vsub.f32 %v1165, %v830
      %v1230 = vsub.f32 %v1166, %v834
      %v1231 = vsub.f32 %v1167, %v836
      %v1232 = vsub.f32 %v1168, %v838
      %v1233 = vsub.f32 %v1169, %v840
      %v1234 = vsub.f32 %v1170, %v844
      %v1235 = vsub.f32 %v1171, %v846
      %v1236 = vsub.f32 %v1172, %v848
      %v1237 = vsub.f32 %v1173, %v850
      %v1238 = vsub.f32 %v1174, %v854
      %v1239 = vsub.f32 %v1175, %v856
      %v1240 = vsub.f32 %v1176, %v858
      %v1241 = vsub.f32 %v1177, %v860
      %v1242 = vsub.f32 %v1178, %v864
      %v1243 = vsub.f32 %v1179, %v866
      %v1244 = vsub.f32 %v1180, %v868
      %v1245 = vsub.f32 %v1181, %v870
      %v1246 = vsub.f32 %v1182, %v874
      %v1247 = vsub.f32 %v1183, %v876
      %v1248 = vsub.f32 %v1184, %v878
      %v1249 = vsub.f32 %v1185, %v880
      %v1250 = vsub.f32 %v1186, %v884
      %v1251 = vsub.f32 %v1187, %v886
      %v1252 = vsub.f32 %v1188, %v888
      %v1253 = vsub.f32 %v1189, %v890
      %v1254 = vsub.f32 %v1190, %v894
      %v1255 = vsub.f32 %v1191, %v896
      %v1256 = vsub.f32 %v1192, %v898
      %v1257 = vsub.f32 %v1193, %v900
      %v1258 = vsub.f32 %v1194, %v904
      %v1259 = vsub.f32 %v1195, %v906
      %v1260 = vsub.f32 %v1196, %v908
      %v1261 = vsub.f32 %v1197, %v910
      %v1262 = vsub.f32 %v1198, %v914
      %v1263 = vsub.f32 %v1199, %v916
      %v1264 = vsub.f32 %v1200, %v918
      %v1265 = vsub.f32 %v1201, %v920
      %v1266 = vsub.f32 %v1202, %v924
      %v1267 = vsub.f32 %v1203, %v926
      %v1268 = vsub.f32 %v1204, %v928
      %v1269 = vsub.f32 %v1205, %v930
      %v1270 = vsub.f32 %v1206, %v934
      %v1271 = vsub.f32 %v1207, %v936
      %v1272 = vsub.f32 %v1208, %v938
      %v1273 = vsub.f32 %v1209, %v940
      %v1274 = vadd.f32 %v1210, 1e-12
      %v1275 = vadd.f32 %v1211, 1e-12
      %v1276 = vadd.f32 %v1212, 1e-12
      %v1277 = vadd.f32 %v1213, 1e-12
      %v1278 = vadd.f32 %v1214, 1e-12
      %v1279 = vadd.f32 %v1215, 1e-12
      %v1280 = vadd.f32 %v1216, 1e-12
      %v1281 = vadd.f32 %v1217, 1e-12
      %v1282 = vadd.f32 %v1218, 1e-12
      %v1283 = vadd.f32 %v1219, 1e-12
      %v1284 = vadd.f32 %v1220, 1e-12
      %v1285 = vadd.f32 %v1221, 1e-12
      %v1286 = vadd.f32 %v1222, 1e-12
      %v1287 = vadd.f32 %v1223, 1e-12
      %v1288 = vadd.f32 %v1224, 1e-12
      %v1289 = vadd.f32 %v1225, 1e-12
      %v1290 = vadd.f32 %v1226, 1e-12
      %v1291 = vadd.f32 %v1227, 1e-12
      %v1292 = vadd.f32 %v1228, 1e-12
      %v1293 = vadd.f32 %v1229, 1e-12
      %v1294 = vadd.f32 %v1230, 1e-12
      %v1295 = vadd.f32 %v1231, 1e-12
      %v1296 = vadd.f32 %v1232, 1e-12
      %v1297 = vadd.f32 %v1233, 1e-12
      %v1298 = vadd.f32 %v1234, 1e-12
      %v1299 = vadd.f32 %v1235, 1e-12
      %v1300 = vadd.f32 %v1236, 1e-12
      %v1301 = vadd.f32 %v1237, 1e-12
      %v1302 = vadd.f32 %v1238, 1e-12
      %v1303 = vadd.f32 %v1239, 1e-12
      %v1304 = vadd.f32 %v1240, 1e-12
      %v1305 = vadd.f32 %v1241, 1e-12
      %v1306 = vadd.f32 %v1242, 1e-12
      %v1307 = vadd.f32 %v1243, 1e-12
      %v1308 = vadd.f32 %v1244, 1e-12
      %v1309 = vadd.f32 %v1245, 1e-12
      %v1310 = vadd.f32 %v1246, 1e-12
      %v1311 = vadd.f32 %v1247, 1e-12
      %v1312 = vadd.f32 %v1248, 1e-12
      %v1313 = vadd.f32 %v1249, 1e-12
      %v1314 = vadd.f32 %v1250, 1e-12
      %v1315 = vadd.f32 %v1251, 1e-12
      %v1316 = vadd.f32 %v1252, 1e-12
      %v1317 = vadd.f32 %v1253, 1e-12
      %v1318 = vadd.f32 %v1254, 1e-12
      %v1319 = vadd.f32 %v1255, 1e-12
      %v1320 = vadd.f32 %v1256, 1e-12
      %v1321 = vadd.f32 %v1257, 1e-12
      %v1322 = vadd.f32 %v1258, 1e-12
      %v1323 = vadd.f32 %v1259, 1e-12
      %v1324 = vadd.f32 %v1260, 1e-12
      %v1325 = vadd.f32 %v1261, 1e-12
      %v1326 = vadd.f32 %v1262, 1e-12
      %v1327 = vadd.f32 %v1263, 1e-12
      %v1328 = vadd.f32 %v1264, 1e-12
      %v1329 = vadd.f32 %v1265, 1e-12
      %v1330 = vadd.f32 %v1266, 1e-12
      %v1331 = vadd.f32 %v1267, 1e-12
      %v1332 = vadd.f32 %v1268, 1e-12
      %v1333 = vadd.f32 %v1269, 1e-12
      %v1334 = vadd.f32 %v1270, 1e-12
      %v1335 = vadd.f32 %v1271, 1e-12
      %v1336 = vadd.f32 %v1272, 1e-12
      %v1337 = vadd.f32 %v1273, 1e-12
      %v1338 = vrcp.pop %v1274
      %v1339 = vrcp.pop %v1275
      %v1340 = vrcp.pop %v1276
      %v1341 = vrcp.pop %v1277
      %v1342 = vrcp.pop %v1278
      %v1343 = vrcp.pop %v1279
      %v1344 = vrcp.pop %v1280
      %v1345 = vrcp.pop %v1281
      %v1346 = vrcp.pop %v1282
      %v1347 = vrcp.pop %v1283
      %v1348 = vrcp.pop %v1284
      %v1349 = vrcp.pop %v1285
      %v1350 = vrcp.pop %v1286
      %v1351 = vrcp.pop %v1287
      %v1352 = vrcp.pop %v1288
      %v1353 = vrcp.pop %v1289
      %v1354 = vrcp.pop %v1290
      %v1355 = vrcp.pop %v1291
      %v1356 = vrcp.pop %v1292
      %v1357 = vrcp.pop %v1293
      %v1358 = vrcp.pop %v1294
      %v1359 = vrcp.pop %v1295
      %v1360 = vrcp.pop %v1296
      %v1361 = vrcp.pop %v1297
      %v1362 = vrcp.pop %v1298
      %v1363 = vrcp.pop %v1299
      %v1364 = vrcp.pop %v1300
      %v1365 = vrcp.pop %v1301
      %v1366 = vrcp.pop %v1302
      %v1367 = vrcp.pop %v1303
      %v1368 = vrcp.pop %v1304
      %v1369 = vrcp.pop %v1305
      %v1370 = vrcp.pop %v1306
      %v1371 = vrcp.pop %v1307
      %v1372 = vrcp.pop %v1308
      %v1373 = vrcp.pop %v1309
      %v1374 = vrcp.pop %v1310
      %v1375 = vrcp.pop %v1311
      %v1376 = vrcp.pop %v1312
      %v1377 = vrcp.pop %v1313
      %v1378 = vrcp.pop %v1314
      %v1379 = vrcp.pop %v1315
      %v1380 = vrcp.pop %v1316
      %v1381 = vrcp.pop %v1317
      %v1382 = vrcp.pop %v1318
      %v1383 = vrcp.pop %v1319
      %v1384 = vrcp.pop %v1320
      %v1385 = vrcp.pop %v1321
      %v1386 = vrcp.pop %v1322
      %v1387 = vrcp.pop %v1323
      %v1388 = vrcp.pop %v1324
      %v1389 = vrcp.pop %v1325
      %v1390 = vrcp.pop %v1326
      %v1391 = vrcp.pop %v1327
      %v1392 = vrcp.pop %v1328
      %v1393 = vrcp.pop %v1329
      %v1394 = vrcp.pop %v1330
      %v1395 = vrcp.pop %v1331
      %v1396 = vrcp.pop %v1332
      %v1397 = vrcp.pop %v1333
      %v1398 = vrcp.pop %v1334
      %v1399 = vrcp.pop %v1335
      %v1400 = vrcp.pop %v1336
      %v1401 = vrcp.pop %v1337
      %v1402 = vmul.f32 %v784, %v1338
      %v1403 = vmul.f32 %v786, %v1339
      %v1404 = vmul.f32 %v788, %v1340
      %v1405 = vmul.f32 %v790, %v1341
      %v1406 = vmul.f32 %v794, %v1342
      %v1407 = vmul.f32 %v796, %v1343
      %v1408 = vmul.f32 %v798, %v1344
      %v1409 = vmul.f32 %v800, %v1345
      %v1410 = vmul.f32 %v804, %v1346
      %v1411 = vmul.f32 %v806, %v1347
      %v1412 = vmul.f32 %v808, %v1348
      %v1413 = vmul.f32 %v810, %v1349
      %v1414 = vmul.f32 %v814, %v1350
      %v1415 = vmul.f32 %v816, %v1351
      %v1416 = vmul.f32 %v818, %v1352
      %v1417 = vmul.f32 %v820, %v1353
      %v1418 = vmul.f32 %v824, %v1354
      %v1419 = vmul.f32 %v826, %v1355
      %v1420 = vmul.f32 %v828, %v1356
      %v1421 = vmul.f32 %v830, %v1357
      %v1422 = vmul.f32 %v834, %v1358
      %v1423 = vmul.f32 %v836, %v1359
      %v1424 = vmul.f32 %v838, %v1360
      %v1425 = vmul.f32 %v840, %v1361
      %v1426 = vmul.f32 %v844, %v1362
      %v1427 = vmul.f32 %v846, %v1363
      %v1428 = vmul.f32 %v848, %v1364
      %v1429 = vmul.f32 %v850, %v1365
      %v1430 = vmul.f32 %v854, %v1366
      %v1431 = vmul.f32 %v856, %v1367
      %v1432 = vmul.f32 %v858, %v1368
      %v1433 = vmul.f32 %v860, %v1369
      %v1434 = vmul.f32 %v864, %v1370
      %v1435 = vmul.f32 %v866, %v1371
      %v1436 = vmul.f32 %v868, %v1372
      %v1437 = vmul.f32 %v870, %v1373
      %v1438 = vmul.f32 %v874, %v1374
      %v1439 = vmul.f32 %v876, %v1375
      %v1440 = vmul.f32 %v878, %v1376
      %v1441 = vmul.f32 %v880, %v1377
      %v1442 = vmul.f32 %v884, %v1378
      %v1443 = vmul.f32 %v886, %v1379
      %v1444 = vmul.f32 %v888, %v1380
      %v1445 = vmul.f32 %v890, %v1381
      %v1446 = vmul.f32 %v894, %v1382
      %v1447 = vmul.f32 %v896, %v1383
      %v1448 = vmul.f32 %v898, %v1384
      %v1449 = vmul.f32 %v900, %v1385
      %v1450 = vmul.f32 %v904, %v1386
      %v1451 = vmul.f32 %v906, %v1387
      %v1452 = vmul.f32 %v908, %v1388
      %v1453 = vmul.f32 %v910, %v1389
      %v1454 = vmul.f32 %v914, %v1390
      %v1455 = vmul.f32 %v916, %v1391
      %v1456 = vmul.f32 %v918, %v1392
      %v1457 = vmul.f32 %v920, %v1393
      %v1458 = vmul.f32 %v924, %v1394
      %v1459 = vmul.f32 %v926, %v1395
      %v1460 = vmul.f32 %v928, %v1396
      %v1461 = vmul.f32 %v930, %v1397
      %v1462 = vmul.f32 %v934, %v1398
      %v1463 = vmul.f32 %v936, %v1399
      %v1464 = vmul.f32 %v938, %v1400
      %v1465 = vmul.f32 %v940, %v1401
      %v1466 = vsub.f32 1.0, %v1402
      %v1467 = vsub.f32 1.0, %v1403
      %v1468 = vsub.f32 1.0, %v1404
      %v1469 = vsub.f32 1.0, %v1405
      %v1470 = vsub.f32 1.0, %v1406
      %v1471 = vsub.f32 1.0, %v1407
      %v1472 = vsub.f32 1.0, %v1408
      %v1473 = vsub.f32 1.0, %v1409
      %v1474 = vsub.f32 1.0, %v1410
      %v1475 = vsub.f32 1.0, %v1411
      %v1476 = vsub.f32 1.0, %v1412
      %v1477 = vsub.f32 1.0, %v1413
      %v1478 = vsub.f32 1.0, %v1414
      %v1479 = vsub.f32 1.0, %v1415
      %v1480 = vsub.f32 1.0, %v1416
      %v1481 = vsub.f32 1.0, %v1417
      %v1482 = vsub.f32 1.0, %v1418
      %v1483 = vsub.f32 1.0, %v1419
      %v1484 = vsub.f32 1.0, %v1420
      %v1485 = vsub.f32 1.0, %v1421
      %v1486 = vsub.f32 1.0, %v1422
      %v1487 = vsub.f32 1.0, %v1423
      %v1488 = vsub.f32 1.0, %v1424
      %v1489 = vsub.f32 1.0, %v1425
      %v1490 = vsub.f32 1.0, %v1426
      %v1491 = vsub.f32 1.0, %v1427
      %v1492 = vsub.f32 1.0, %v1428
      %v1493 = vsub.f32 1.0, %v1429
      %v1494 = vsub.f32 1.0, %v1430
      %v1495 = vsub.f32 1.0, %v1431
      %v1496 = vsub.f32 1.0, %v1432
      %v1497 = vsub.f32 1.0, %v1433
      %v1498 = vsub.f32 1.0, %v1434
      %v1499 = vsub.f32 1.0, %v1435
      %v1500 = vsub.f32 1.0, %v1436
      %v1501 = vsub.f32 1.0, %v1437
      %v1502 = vsub.f32 1.0, %v1438
      %v1503 = vsub.f32 1.0, %v1439
      %v1504 = vsub.f32 1.0, %v1440
      %v1505 = vsub.f32 1.0, %v1441
      %v1506 = vsub.f32 1.0, %v1442
      %v1507 = vsub.f32 1.0, %v1443
      %v1508 = vsub.f32 1.0, %v1444
      %v1509 = vsub.f32 1.0, %v1445
      %v1510 = vsub.f32 1.0, %v1446
      %v1511 = vsub.f32 1.0, %v1447
      %v1512 = vsub.f32 1.0, %v1448
      %v1513 = vsub.f32 1.0, %v1449
      %v1514 = vsub.f32 1.0, %v1450
      %v1515 = vsub.f32 1.0, %v1451
      %v1516 = vsub.f32 1.0, %v1452
      %v1517 = vsub.f32 1.0, %v1453
      %v1518 = vsub.f32 1.0, %v1454
      %v1519 = vsub.f32 1.0, %v1455
      %v1520 = vsub.f32 1.0, %v1456
      %v1521 = vsub.f32 1.0, %v1457
      %v1522 = vsub.f32 1.0, %v1458
      %v1523 = vsub.f32 1.0, %v1459
      %v1524 = vsub.f32 1.0, %v1460
      %v1525 = vsub.f32 1.0, %v1461
      %v1526 = vsub.f32 1.0, %v1462
      %v1527 = vsub.f32 1.0, %v1463
      %v1528 = vsub.f32 1.0, %v1464
      %v1529 = vsub.f32 1.0, %v1465
      %v1530 = vlaneseq
      %v1531 = vshrl.u32 %v1530, 7
      %v1532 = vadd.s32 %v1531, 8
      %v1533 = vadd.s32 %v1531, 16
      %v1534 = vadd.s32 %v1531, 24
      %v1535 = vadd.s32 %v1531, 32
      %v1536 = vadd.s32 %v1531, 40
      %v1537 = vadd.s32 %v1531, 48
      %v1538 = vadd.s32 %v1531, 56
      %v1539 = vadd.s32 %v1531, 64
      %v1540 = vadd.s32 %v1531, 72
      %v1541 = vadd.s32 %v1531, 80
      %v1542 = vadd.s32 %v1531, 88
      %v1543 = vadd.s32 %v1531, 96
      %v1544 = vadd.s32 %v1531, 104
      %v1545 = vadd.s32 %v1531, 112
      %v1546 = vadd.s32 %v1531, 120
      %v1547 = vadd.s32 %v1531, 128
      %v1548 = vadd.s32 %v1531, 136
      %v1549 = vadd.s32 %v1531, 144
      %v1550 = vadd.s32 %v1531, 152
      %v1551 = vadd.s32 %v1531, 160
      %v1552 = vadd.s32 %v1531, 168
      %v1553 = vadd.s32 %v1531, 176
      %v1554 = vadd.s32 %v1531, 184
      %v1555 = vadd.s32 %v1531, 192
      %v1556 = vadd.s32 %v1531, 200
      %v1557 = vadd.s32 %v1531, 208
      %v1558 = vadd.s32 %v1531, 216
      %v1559 = vadd.s32 %v1531, 224
      %v1560 = vadd.s32 %v1531, 232
      %v1561 = vadd.s32 %v1531, 240
      %v1562 = vadd.s32 %v1531, 248
      %s1563 = smul.u32 %s21, 256
      %v1564 = vstv %s1563
      %v1565 = vadd.s32 %v1531, %v1564
      %v1566 = vadd.s32 %v1532, %v1564
      %v1567 = vadd.s32 %v1533, %v1564
      %v1568 = vadd.s32 %v1534, %v1564
      %v1569 = vadd.s32 %v1535, %v1564
      %v1570 = vadd.s32 %v1536, %v1564
      %v1571 = vadd.s32 %v1537, %v1564
      %v1572 = vadd.s32 %v1538, %v1564
      %v1573 = vadd.s32 %v1539, %v1564
      %v1574 = vadd.s32 %v1540, %v1564
      %v1575 = vadd.s32 %v1541, %v1564
      %v1576 = vadd.s32 %v1542, %v1564
      %v1577 = vadd.s32 %v1543, %v1564
      %v1578 = vadd.s32 %v1544, %v1564
      %v1579 = vadd.s32 %v1545, %v1564
      %v1580 = vadd.s32 %v1546, %v1564
      %v1581 = vadd.s32 %v1547, %v1564
      %v1582 = vadd.s32 %v1548, %v1564
      %v1583 = vadd.s32 %v1549, %v1564
      %v1584 = vadd.s32 %v1550, %v1564
      %v1585 = vadd.s32 %v1551, %v1564
      %v1586 = vadd.s32 %v1552, %v1564
      %v1587 = vadd.s32 %v1553, %v1564
      %v1588 = vadd.s32 %v1554, %v1564
      %v1589 = vadd.s32 %v1555, %v1564
      %v1590 = vadd.s32 %v1556, %v1564
      %v1591 = vadd.s32 %v1557, %v1564
      %v1592 = vadd.s32 %v1558, %v1564
      %v1593 = vadd.s32 %v1559, %v1564
      %v1594 = vadd.s32 %v1560, %v1564
      %v1595 = vadd.s32 %v1561, %v1564
      %v1596 = vadd.s32 %v1562, %v1564
      %v1597 = vlaneseq
      %v1598 = vand.u32 %v1597, 127
      %v1599 = vadd.s32 %v1598, 128
      %s1600 = smul.u32 %s22, 256
      %v1601 = vstv %s1600
      %v1602 = vadd.s32 %v1598, %v1601
      %v1603 = vadd.s32 %v1599, %v1601
      %vm1604 = vcmp.eq.s32.totalorder %v1565, %v1602
      %vm1605 = vcmp.eq.s32.totalorder %v1565, %v1603
      %vm1606 = vcmp.eq.s32.totalorder %v1566, %v1602
      %vm1607 = vcmp.eq.s32.totalorder %v1566, %v1603
      %vm1608 = vcmp.eq.s32.totalorder %v1567, %v1602
      %vm1609 = vcmp.eq.s32.totalorder %v1567, %v1603
      %vm1610 = vcmp.eq.s32.totalorder %v1568, %v1602
      %vm1611 = vcmp.eq.s32.totalorder %v1568, %v1603
      %vm1612 = vcmp.eq.s32.totalorder %v1569, %v1602
      %vm1613 = vcmp.eq.s32.totalorder %v1569, %v1603
      %vm1614 = vcmp.eq.s32.totalorder %v1570, %v1602
      %vm1615 = vcmp.eq.s32.totalorder %v1570, %v1603
      %vm1616 = vcmp.eq.s32.totalorder %v1571, %v1602
      %vm1617 = vcmp.eq.s32.totalorder %v1571, %v1603
      %vm1618 = vcmp.eq.s32.totalorder %v1572, %v1602
      %vm1619 = vcmp.eq.s32.totalorder %v1572, %v1603
      %vm1620 = vcmp.eq.s32.totalorder %v1573, %v1602
      %vm1621 = vcmp.eq.s32.totalorder %v1573, %v1603
      %vm1622 = vcmp.eq.s32.totalorder %v1574, %v1602
      %vm1623 = vcmp.eq.s32.totalorder %v1574, %v1603
      %vm1624 = vcmp.eq.s32.totalorder %v1575, %v1602
      %vm1625 = vcmp.eq.s32.totalorder %v1575, %v1603
      %vm1626 = vcmp.eq.s32.totalorder %v1576, %v1602
      %vm1627 = vcmp.eq.s32.totalorder %v1576, %v1603
      %vm1628 = vcmp.eq.s32.totalorder %v1577, %v1602
      %vm1629 = vcmp.eq.s32.totalorder %v1577, %v1603
      %vm1630 = vcmp.eq.s32.totalorder %v1578, %v1602
      %vm1631 = vcmp.eq.s32.totalorder %v1578, %v1603
      %vm1632 = vcmp.eq.s32.totalorder %v1579, %v1602
      %vm1633 = vcmp.eq.s32.totalorder %v1579, %v1603
      %vm1634 = vcmp.eq.s32.totalorder %v1580, %v1602
      %vm1635 = vcmp.eq.s32.totalorder %v1580, %v1603
      %vm1636 = vcmp.eq.s32.totalorder %v1581, %v1602
      %vm1637 = vcmp.eq.s32.totalorder %v1581, %v1603
      %vm1638 = vcmp.eq.s32.totalorder %v1582, %v1602
      %vm1639 = vcmp.eq.s32.totalorder %v1582, %v1603
      %vm1640 = vcmp.eq.s32.totalorder %v1583, %v1602
      %vm1641 = vcmp.eq.s32.totalorder %v1583, %v1603
      %vm1642 = vcmp.eq.s32.totalorder %v1584, %v1602
      %vm1643 = vcmp.eq.s32.totalorder %v1584, %v1603
      %vm1644 = vcmp.eq.s32.totalorder %v1585, %v1602
      %vm1645 = vcmp.eq.s32.totalorder %v1585, %v1603
      %vm1646 = vcmp.eq.s32.totalorder %v1586, %v1602
      %vm1647 = vcmp.eq.s32.totalorder %v1586, %v1603
      %vm1648 = vcmp.eq.s32.totalorder %v1587, %v1602
      %vm1649 = vcmp.eq.s32.totalorder %v1587, %v1603
      %vm1650 = vcmp.eq.s32.totalorder %v1588, %v1602
      %vm1651 = vcmp.eq.s32.totalorder %v1588, %v1603
      %vm1652 = vcmp.eq.s32.totalorder %v1589, %v1602
      %vm1653 = vcmp.eq.s32.totalorder %v1589, %v1603
      %vm1654 = vcmp.eq.s32.totalorder %v1590, %v1602
      %vm1655 = vcmp.eq.s32.totalorder %v1590, %v1603
      %vm1656 = vcmp.eq.s32.totalorder %v1591, %v1602
      %vm1657 = vcmp.eq.s32.totalorder %v1591, %v1603
      %vm1658 = vcmp.eq.s32.totalorder %v1592, %v1602
      %vm1659 = vcmp.eq.s32.totalorder %v1592, %v1603
      %vm1660 = vcmp.eq.s32.totalorder %v1593, %v1602
      %vm1661 = vcmp.eq.s32.totalorder %v1593, %v1603
      %vm1662 = vcmp.eq.s32.totalorder %v1594, %v1602
      %vm1663 = vcmp.eq.s32.totalorder %v1594, %v1603
      %vm1664 = vcmp.eq.s32.totalorder %v1595, %v1602
      %vm1665 = vcmp.eq.s32.totalorder %v1595, %v1603
      %vm1666 = vcmp.eq.s32.totalorder %v1596, %v1602
      %vm1667 = vcmp.eq.s32.totalorder %v1596, %v1603
      %v1668 = vsel %vm1604, 1, 0
      %v1669 = vsel %vm1605, 1, 0
      %v1670 = vsel %vm1606, 1, 0
      %v1671 = vsel %vm1607, 1, 0
      %v1672 = vsel %vm1608, 1, 0
      %v1673 = vsel %vm1609, 1, 0
      %v1674 = vsel %vm1610, 1, 0
      %v1675 = vsel %vm1611, 1, 0
      %v1676 = vsel %vm1612, 1, 0
      %v1677 = vsel %vm1613, 1, 0
      %v1678 = vsel %vm1614, 1, 0
      %v1679 = vsel %vm1615, 1, 0
      %v1680 = vsel %vm1616, 1, 0
      %v1681 = vsel %vm1617, 1, 0
      %v1682 = vsel %vm1618, 1, 0
      %v1683 = vsel %vm1619, 1, 0
      %v1684 = vsel %vm1620, 1, 0
      %v1685 = vsel %vm1621, 1, 0
      %v1686 = vsel %vm1622, 1, 0
      %v1687 = vsel %vm1623, 1, 0
      %v1688 = vsel %vm1624, 1, 0
      %v1689 = vsel %vm1625, 1, 0
      %v1690 = vsel %vm1626, 1, 0
      %v1691 = vsel %vm1627, 1, 0
      %v1692 = vsel %vm1628, 1, 0
      %v1693 = vsel %vm1629, 1, 0
      %v1694 = vsel %vm1630, 1, 0
      %v1695 = vsel %vm1631, 1, 0
      %v1696 = vsel %vm1632, 1, 0
      %v1697 = vsel %vm1633, 1, 0
      %v1698 = vsel %vm1634, 1, 0
      %v1699 = vsel %vm1635, 1, 0
      %v1700 = vsel %vm1636, 1, 0
      %v1701 = vsel %vm1637, 1, 0
      %v1702 = vsel %vm1638, 1, 0
      %v1703 = vsel %vm1639, 1, 0
      %v1704 = vsel %vm1640, 1, 0
      %v1705 = vsel %vm1641, 1, 0
      %v1706 = vsel %vm1642, 1, 0
      %v1707 = vsel %vm1643, 1, 0
      %v1708 = vsel %vm1644, 1, 0
      %v1709 = vsel %vm1645, 1, 0
      %v1710 = vsel %vm1646, 1, 0
      %v1711 = vsel %vm1647, 1, 0
      %v1712 = vsel %vm1648, 1, 0
      %v1713 = vsel %vm1649, 1, 0
      %v1714 = vsel %vm1650, 1, 0
      %v1715 = vsel %vm1651, 1, 0
      %v1716 = vsel %vm1652, 1, 0
      %v1717 = vsel %vm1653, 1, 0
      %v1718 = vsel %vm1654, 1, 0
      %v1719 = vsel %vm1655, 1, 0
      %v1720 = vsel %vm1656, 1, 0
      %v1721 = vsel %vm1657, 1, 0
      %v1722 = vsel %vm1658, 1, 0
      %v1723 = vsel %vm1659, 1, 0
      %v1724 = vsel %vm1660, 1, 0
      %v1725 = vsel %vm1661, 1, 0
      %v1726 = vsel %vm1662, 1, 0
      %v1727 = vsel %vm1663, 1, 0
      %v1728 = vsel %vm1664, 1, 0
      %v1729 = vsel %vm1665, 1, 0
      %v1730 = vsel %vm1666, 1, 0
      %v1731 = vsel %vm1667, 1, 0
      %v1732 = vcvt.s32.f32 %v1668
      %v1733 = vcvt.s32.f32 %v1669
      %v1734 = vcvt.s32.f32 %v1670
      %v1735 = vcvt.s32.f32 %v1671
      %v1736 = vcvt.s32.f32 %v1672
      %v1737 = vcvt.s32.f32 %v1673
      %v1738 = vcvt.s32.f32 %v1674
      %v1739 = vcvt.s32.f32 %v1675
      %v1740 = vcvt.s32.f32 %v1676
      %v1741 = vcvt.s32.f32 %v1677
      %v1742 = vcvt.s32.f32 %v1678
      %v1743 = vcvt.s32.f32 %v1679
      %v1744 = vcvt.s32.f32 %v1680
      %v1745 = vcvt.s32.f32 %v1681
      %v1746 = vcvt.s32.f32 %v1682
      %v1747 = vcvt.s32.f32 %v1683
      %v1748 = vcvt.s32.f32 %v1684
      %v1749 = vcvt.s32.f32 %v1685
      %v1750 = vcvt.s32.f32 %v1686
      %v1751 = vcvt.s32.f32 %v1687
      %v1752 = vcvt.s32.f32 %v1688
      %v1753 = vcvt.s32.f32 %v1689
      %v1754 = vcvt.s32.f32 %v1690
      %v1755 = vcvt.s32.f32 %v1691
      %v1756 = vcvt.s32.f32 %v1692
      %v1757 = vcvt.s32.f32 %v1693
      %v1758 = vcvt.s32.f32 %v1694
      %v1759 = vcvt.s32.f32 %v1695
      %v1760 = vcvt.s32.f32 %v1696
      %v1761 = vcvt.s32.f32 %v1697
      %v1762 = vcvt.s32.f32 %v1698
      %v1763 = vcvt.s32.f32 %v1699
      %v1764 = vcvt.s32.f32 %v1700
      %v1765 = vcvt.s32.f32 %v1701
      %v1766 = vcvt.s32.f32 %v1702
      %v1767 = vcvt.s32.f32 %v1703
      %v1768 = vcvt.s32.f32 %v1704
      %v1769 = vcvt.s32.f32 %v1705
      %v1770 = vcvt.s32.f32 %v1706
      %v1771 = vcvt.s32.f32 %v1707
      %v1772 = vcvt.s32.f32 %v1708
      %v1773 = vcvt.s32.f32 %v1709
      %v1774 = vcvt.s32.f32 %v1710
      %v1775 = vcvt.s32.f32 %v1711
      %v1776 = vcvt.s32.f32 %v1712
      %v1777 = vcvt.s32.f32 %v1713
      %v1778 = vcvt.s32.f32 %v1714
      %v1779 = vcvt.s32.f32 %v1715
      %v1780 = vcvt.s32.f32 %v1716
      %v1781 = vcvt.s32.f32 %v1717
      %v1782 = vcvt.s32.f32 %v1718
      %v1783 = vcvt.s32.f32 %v1719
      %v1784 = vcvt.s32.f32 %v1720
      %v1785 = vcvt.s32.f32 %v1721
      %v1786 = vcvt.s32.f32 %v1722
      %v1787 = vcvt.s32.f32 %v1723
      %v1788 = vcvt.s32.f32 %v1724
      %v1789 = vcvt.s32.f32 %v1725
      %v1790 = vcvt.s32.f32 %v1726
      %v1791 = vcvt.s32.f32 %v1727
      %v1792 = vcvt.s32.f32 %v1728
      %v1793 = vcvt.s32.f32 %v1729
      %v1794 = vcvt.s32.f32 %v1730
      %v1795 = vcvt.s32.f32 %v1731
      %v1796 = vadd.f32 %v1466, %v1732
      %v1797 = vadd.f32 %v1467, %v1733
      %v1798 = vadd.f32 %v1468, %v1734
      %v1799 = vadd.f32 %v1469, %v1735
      %v1800 = vadd.f32 %v1470, %v1736
      %v1801 = vadd.f32 %v1471, %v1737
      %v1802 = vadd.f32 %v1472, %v1738
      %v1803 = vadd.f32 %v1473, %v1739
      %v1804 = vadd.f32 %v1474, %v1740
      %v1805 = vadd.f32 %v1475, %v1741
      %v1806 = vadd.f32 %v1476, %v1742
      %v1807 = vadd.f32 %v1477, %v1743
      %v1808 = vadd.f32 %v1478, %v1744
      %v1809 = vadd.f32 %v1479, %v1745
      %v1810 = vadd.f32 %v1480, %v1746
      %v1811 = vadd.f32 %v1481, %v1747
      %v1812 = vadd.f32 %v1482, %v1748
      %v1813 = vadd.f32 %v1483, %v1749
      %v1814 = vadd.f32 %v1484, %v1750
      %v1815 = vadd.f32 %v1485, %v1751
      %v1816 = vadd.f32 %v1486, %v1752
      %v1817 = vadd.f32 %v1487, %v1753
      %v1818 = vadd.f32 %v1488, %v1754
      %v1819 = vadd.f32 %v1489, %v1755
      %v1820 = vadd.f32 %v1490, %v1756
      %v1821 = vadd.f32 %v1491, %v1757
      %v1822 = vadd.f32 %v1492, %v1758
      %v1823 = vadd.f32 %v1493, %v1759
      %v1824 = vadd.f32 %v1494, %v1760
      %v1825 = vadd.f32 %v1495, %v1761
      %v1826 = vadd.f32 %v1496, %v1762
      %v1827 = vadd.f32 %v1497, %v1763
      %v1828 = vadd.f32 %v1498, %v1764
      %v1829 = vadd.f32 %v1499, %v1765
      %v1830 = vadd.f32 %v1500, %v1766
      %v1831 = vadd.f32 %v1501, %v1767
      %v1832 = vadd.f32 %v1502, %v1768
      %v1833 = vadd.f32 %v1503, %v1769
      %v1834 = vadd.f32 %v1504, %v1770
      %v1835 = vadd.f32 %v1505, %v1771
      %v1836 = vadd.f32 %v1506, %v1772
      %v1837 = vadd.f32 %v1507, %v1773
      %v1838 = vadd.f32 %v1508, %v1774
      %v1839 = vadd.f32 %v1509, %v1775
      %v1840 = vadd.f32 %v1510, %v1776
      %v1841 = vadd.f32 %v1511, %v1777
      %v1842 = vadd.f32 %v1512, %v1778
      %v1843 = vadd.f32 %v1513, %v1779
      %v1844 = vadd.f32 %v1514, %v1780
      %v1845 = vadd.f32 %v1515, %v1781
      %v1846 = vadd.f32 %v1516, %v1782
      %v1847 = vadd.f32 %v1517, %v1783
      %v1848 = vadd.f32 %v1518, %v1784
      %v1849 = vadd.f32 %v1519, %v1785
      %v1850 = vadd.f32 %v1520, %v1786
      %v1851 = vadd.f32 %v1521, %v1787
      %v1852 = vadd.f32 %v1522, %v1788
      %v1853 = vadd.f32 %v1523, %v1789
      %v1854 = vadd.f32 %v1524, %v1790
      %v1855 = vadd.f32 %v1525, %v1791
      %v1856 = vadd.f32 %v1526, %v1792
      %v1857 = vadd.f32 %v1527, %v1793
      %v1858 = vadd.f32 %v1528, %v1794
      %v1859 = vadd.f32 %v1529, %v1795
      %1860 = vst [vmem:[%s362] sm:$0xff] %v1796
      %1861 = vst [vmem:[%s362 + $0x8] sm:$0xff] %v1797
      %1862 = vst [vmem:[%s362 + $0x10] sm:$0xff] %v1798
      %1863 = vst [vmem:[%s362 + $0x18] sm:$0xff] %v1799
      %1864 = vst [vmem:[%s362 + $0x20] sm:$0xff] %v1800
      %1865 = vst [vmem:[%s362 + $0x28] sm:$0xff] %v1801
      %1866 = vst [vmem:[%s362 + $0x30] sm:$0xff] %v1802
      %1867 = vst [vmem:[%s362 + $0x38] sm:$0xff] %v1803
      %1868 = vst [vmem:[%s362 + $0x40] sm:$0xff] %v1804
      %1869 = vst [vmem:[%s362 + $0x48] sm:$0xff] %v1805
      %1870 = vst [vmem:[%s362 + $0x50] sm:$0xff] %v1806
      %1871 = vst [vmem:[%s362 + $0x58] sm:$0xff] %v1807
      %1872 = vst [vmem:[%s362 + $0x60] sm:$0xff] %v1808
      %1873 = vst [vmem:[%s362 + $0x68] sm:$0xff] %v1809
      %1874 = vst [vmem:[%s362 + $0x70] sm:$0xff] %v1810
      %1875 = vst [vmem:[%s362 + $0x78] sm:$0xff] %v1811
      %1876 = vst [vmem:[%s362 + $0x80] sm:$0xff] %v1812
      %1877 = vst [vmem:[%s362 + $0x88] sm:$0xff] %v1813
      %1878 = vst [vmem:[%s362 + $0x90] sm:$0xff] %v1814
      %1879 = vst [vmem:[%s362 + $0x98] sm:$0xff] %v1815
      %1880 = vst [vmem:[%s362 + $0xa0] sm:$0xff] %v1816
      %1881 = vst [vmem:[%s362 + $0xa8] sm:$0xff] %v1817
      %1882 = vst [vmem:[%s362 + $0xb0] sm:$0xff] %v1818
      %1883 = vst [vmem:[%s362 + $0xb8] sm:$0xff] %v1819
      %1884 = vst [vmem:[%s362 + $0xc0] sm:$0xff] %v1820
      %1885 = vst [vmem:[%s362 + $0xc8] sm:$0xff] %v1821
      %1886 = vst [vmem:[%s362 + $0xd0] sm:$0xff] %v1822
      %1887 = vst [vmem:[%s362 + $0xd8] sm:$0xff] %v1823
      %1888 = vst [vmem:[%s362 + $0xe0] sm:$0xff] %v1824
      %1889 = vst [vmem:[%s362 + $0xe8] sm:$0xff] %v1825
      %1890 = vst [vmem:[%s362 + $0xf0] sm:$0xff] %v1826
      %1891 = vst [vmem:[%s362 + $0xf8] sm:$0xff] %v1827
      %1892 = vst [vmem:[%s362 + $0x100] sm:$0xff] %v1828
      %1893 = vst [vmem:[%s362 + $0x108] sm:$0xff] %v1829
      %1894 = vst [vmem:[%s362 + $0x110] sm:$0xff] %v1830
      %1895 = vst [vmem:[%s362 + $0x118] sm:$0xff] %v1831
      %1896 = vst [vmem:[%s362 + $0x120] sm:$0xff] %v1832
      %1897 = vst [vmem:[%s362 + $0x128] sm:$0xff] %v1833
      %1898 = vst [vmem:[%s362 + $0x130] sm:$0xff] %v1834
      %1899 = vst [vmem:[%s362 + $0x138] sm:$0xff] %v1835
      %1900 = vst [vmem:[%s362 + $0x140] sm:$0xff] %v1836
      %1901 = vst [vmem:[%s362 + $0x148] sm:$0xff] %v1837
      %1902 = vst [vmem:[%s362 + $0x150] sm:$0xff] %v1838
      %1903 = vst [vmem:[%s362 + $0x158] sm:$0xff] %v1839
      %1904 = vst [vmem:[%s362 + $0x160] sm:$0xff] %v1840
      %1905 = vst [vmem:[%s362 + $0x168] sm:$0xff] %v1841
      %1906 = vst [vmem:[%s362 + $0x170] sm:$0xff] %v1842
      %1907 = vst [vmem:[%s362 + $0x178] sm:$0xff] %v1843
      %1908 = vst [vmem:[%s362 + $0x180] sm:$0xff] %v1844
      %1909 = vst [vmem:[%s362 + $0x188] sm:$0xff] %v1845
      %1910 = vst [vmem:[%s362 + $0x190] sm:$0xff] %v1846
      %1911 = vst [vmem:[%s362 + $0x198] sm:$0xff] %v1847
      %1912 = vst [vmem:[%s362 + $0x1a0] sm:$0xff] %v1848
      %1913 = vst [vmem:[%s362 + $0x1a8] sm:$0xff] %v1849
      %1914 = vst [vmem:[%s362 + $0x1b0] sm:$0xff] %v1850
      %1915 = vst [vmem:[%s362 + $0x1b8] sm:$0xff] %v1851
      %1916 = vst [vmem:[%s362 + $0x1c0] sm:$0xff] %v1852
      %1917 = vst [vmem:[%s362 + $0x1c8] sm:$0xff] %v1853
      %1918 = vst [vmem:[%s362 + $0x1d0] sm:$0xff] %v1854
      %1919 = vst [vmem:[%s362 + $0x1d8] sm:$0xff] %v1855
      %1920 = vst [vmem:[%s362 + $0x1e0] sm:$0xff] %v1856
      %1921 = vst [vmem:[%s362 + $0x1e8] sm:$0xff] %v1857
      %1922 = vst [vmem:[%s362 + $0x1f0] sm:$0xff] %v1858
      %1923 = vst [vmem:[%s362 + $0x1f8] sm:$0xff] %v1859
      %s1924 = smul.u32 32, %s21
      %s1925 = smul.u32 2, %s22
      %p1926 = scmp.lt.s32.totalorder %s20, 1
      %s1927 = scalar_select %p1926, %s20, 1
      %p1928 = scmp.lt.s32.totalorder %s1924, 31
      %s1929 = scalar_select %p1928, %s1924, 31
      %p1930 = scmp.lt.s32.totalorder %s1925, 1
      %s1931 = scalar_select %p1930, %s1925, 1
      %s1932 = smul.addr %s1929, 2
      %s1933 = sadd.s32 %s1931, %s1932
      %s1934 = smul.addr %s1927, 64
      %s1935 = sadd.s32 %s1933, %s1934
      %s1936 = smul.addr %s1935, 8
      %s1937 = scalar_lea.vmem %s4, %s1936
      // Predicated region
      $region37: #{tanimoto_forward_hot_path.5} parent=35 // pred_check
        %p1938 = pneg %p168
      $region38: #{tanimoto_forward_hot_path.5} parent=35 // pred_check_branch
        %1940 = sbr.rel (%p1938) target = $region40
      $region39: #{tanimoto_forward_hot_path.5} parent=35 // pred_region
        %s1941 = smul.u32 32, %s21
        %s1942 = smul.u32 2, %s22
      $region40: #{tanimoto_forward_hot_path.5} parent=35 // pred_fallthru
        _
    $region36: #{tanimoto_forward_hot_path.5} parent=5 // pred_fallthru
      _
    %p1943 = scmp.le.s32.totalorder 2, %s10
    // Predicated region
    $region41: #{tanimoto_forward_hot_path.5} parent=5 // pred_check
      %p1944 = pneg %p1943
    $region42: #{tanimoto_forward_hot_path.5} parent=5 // pred_check_branch
      %1946 = sbr.rel (%p1944) target = $region44
    $region43: #{tanimoto_forward_hot_path.5} parent=5 // pred_region
      %s1947 = ssub.s32 %s10, 2
      // Predicated region
      $region45: #{tanimoto_forward_hot_path.5} parent=43 // pred_check
        %p1948 = pneg %p174
      $region46: #{tanimoto_forward_hot_path.5} parent=43 // pred_check_branch
        %1950 = sbr.rel (%p1948) target = $region48
      $region47: #{tanimoto_forward_hot_path.5} parent=43 // pred_region
        %s1951 = smul.u32 32, %s24
        %s1952 = smul.u32 2, %s25
        %p1953 = scmp.lt.s32.totalorder %s23, 1
        %s1954 = scalar_select %p1953, %s23, 1
        %p1955 = scmp.lt.s32.totalorder %s1951, 31
        %s1956 = scalar_select %p1955, %s1951, 31
        %p1957 = scmp.lt.s32.totalorder %s1952, 1
        %s1958 = scalar_select %p1957, %s1952, 1
        %s1959 = smul.addr %s1956, 2
        %s1960 = sadd.s32 %s1958, %s1959
        %s1961 = smul.addr %s1954, 64
        %s1962 = sadd.s32 %s1960, %s1961
        %s1963 = smul.addr %s1962, 8
        %s1964 = scalar_lea.vmem %s4, %s1963
      $region48: #{tanimoto_forward_hot_path.5} parent=43 // pred_fallthru
        _
    $region44: #{tanimoto_forward_hot_path.5} parent=5 // pred_fallthru
      _
  $region6: #{tanimoto_forward_hot_path.5} parent=0 // loop_footer
    %s14 = sadd.s32 1, %s10
  $region7: #{tanimoto_forward_hot_path.5} parent=0 // loop_footer_branch
    %9 = sbr.rel target = $region3
  $region8: #{tanimoto_forward_hot_path.5} parent=0 // loop_exit
    _

// kernel: tanimoto_forward_hot_path.4
$region0: #{tanimoto_forward_hot_path.4}
  #allocation0 [shape = 'u32[]', space=smem, size = 0x4, offset = 0x4, fixed_abs, tag = 'smem constant byte address 0x4 - core index']
  #allocation1 [shape = 'u32[144,128]{1,0:T(1,128)}', space=vmem, size = 0x12000, scoped, tag = 'internal scratch']
  %s0 = inlined_call_operand.vmem [shape: f32[2], index: 0, kind: input, shape index: {}]
  %s1 = inlined_call_operand.vmem [shape: f32[2,256,256], index: 1, kind: input, shape index: {}]
  %s2 = inlined_call_operand.vmem [shape: f32[2,256,256], index: 2, kind: output, shape index: {0}]
  %s3 = inlined_call_operand.vmem [shape: bf16[2,256,256], index: 3, kind: output, shape index: {1}]
  %s4 = inlined_call_operand.vmem [shape: s32[2,256,1], index: 4, kind: output, shape index: {2}]
  %s5 = inlined_call_operand.vmem [shape: f32[2,256,1], index: 5, kind: output, shape index: {3}]
  %6 = xla_tuple %s2, %s3, %s4, %s5
  %s7 = sld [smem:[#allocation0]]
  $region69: #{tanimoto_forward_hot_path.4} parent=0
    _
  %s9 = ssub.s32 1, %s7
  %s10 = scalar_select 0, %s9, %s7
  $region1: #{tanimoto_forward_hot_path.4} parent=0
    #allocation2 [shape = 'u8[512]{0}', space=smem, size = 0x200, scoped, tag = 'input window, operand 0, single buffered']
    #allocation3 [shape = 's32[2]{0}', space=sflag, size = 0x8, scoped, tag = 'scoped memory for tanimoto_forward_hot_path.4']
    %11 = vsyncpa [#allocation3], 0
    loop: start=0, step=1, limit=4
    $region2: #{tanimoto_forward_hot_path.4} parent=1 // loop_pre_header
      _
    $region3: #{tanimoto_forward_hot_path.4} parent=1 // loop_header
      %s13 = sphi 0, %s17
      %p14 = scmp.ge.s32.totalorder %s13, 4
      %s20 = sphi 0, %s32
      %s21 = sphi 0, %s28
      %s22 = sphi 0, %s20
      %s23 = sphi 0, %s21
      %s24 = sphi 0, %s22
      %s25 = sphi 0, %s23
      %s33 = sphi 0, %s33
      %s35 = sphi 0, %s33
      %s36 = sphi 0, %s35
      %s50 = sphi 0, %s36
      %s58 = sphi 0, %s60
      %s61 = sphi 0, %s58
      %s62 = sphi 0, %s61
      %s78 = sphi 0, %s62
      %s86 = sphi 0, %s88
      %s89 = sphi 0, %s86
      %s90 = sphi 0, %s89
      %s106 = sphi 0, %s90
      %s114 = sphi 0, %s116
      %s117 = sphi 0, %s114
      %s118 = sphi 0, %s117
      %s134 = sphi 0, %s118
      %s142 = sphi 0, %s144
      %s145 = sphi 0, %s142
      %s146 = sphi 0, %s145
      %s162 = sphi 0, %s146
      %s170 = sphi 0, %s172
      %s173 = sphi 0, %s170
      %s174 = sphi 0, %s173
      %s190 = sphi 0, %s174
    $region4: #{tanimoto_forward_hot_path.4} parent=1 // loop_header_branch
      %16 = sbr.rel (%p14) target = $region8
    $region5: #{tanimoto_forward_hot_path.4} parent=1 // loop_body
      %s18 = ssub.s32 %s13, 1
      %s19 = ssub.s32 %s13, 2
      %s26 = sadd.s32 1, %s21
      %p27 = scmp.ge.s32.totalorder %s26, 1
      %s28 = scalar_select %p27, 0, %s26
      %s29 = sadd.s32 1, %s20
      %s30 = scalar_select %p27, %s29, %s20
      %p31 = scmp.ge.s32.totalorder %s30, 2
      %s32 = scalar_select %p31, 0, %s30
      %s34 = sadd.s32 %s33, 1
      %p37 = scmp.eq.s32.totalorder %s13, 1
      %p38 = scmp.ne.s32.totalorder %s33, %s35
      %p39 = scmp.eq.s32.totalorder %s13, 0
      %p40 = por %p38, %p39
      %p41 = scmp.ne.s32.totalorder %s33, %s35
      %p42 = scmp.eq.s32.totalorder %s18, 1
      %p43 = por %p41, %p42
      %p44 = scmp.ne.s32.totalorder %s35, %s36
      %p45 = scmp.eq.s32.totalorder %s18, 0
      %p46 = por %p44, %p45
      %p47 = scmp.ne.s32.totalorder %s35, %s36
      %p48 = scmp.eq.s32.totalorder %s19, 1
      %p49 = por %p47, %p48
      %p51 = scmp.ne.s32.totalorder %s36, %s50
      %p52 = scmp.eq.s32.totalorder %s19, 0
      %p53 = por %p51, %p52
      %s54 = ssub.s32 %s20, %s32
      %s55 = ssub.s32 %s21, %s28
      %s56 = sor.u32 %s54, %s55
      %p57 = scmp.eq.s32.totalorder %s56, 0
      %s59 = sadd.s32 %s58, 1
      %s60 = scalar_select %p57, %s58, %s59
      %p63 = pneg %p57
      %p64 = scmp.eq.s32.totalorder %s13, 1
      %p65 = por %p63, %p64
      %p66 = scmp.ne.s32.totalorder %s58, %s61
      %p67 = scmp.eq.s32.totalorder %s13, 0
      %p68 = por %p66, %p67
      %p69 = scmp.ne.s32.totalorder %s58, %s61
      %p70 = scmp.eq.s32.totalorder %s18, 1
      %p71 = por %p69, %p70
      %p72 = scmp.ne.s32.totalorder %s61, %s62
      %p73 = scmp.eq.s32.totalorder %s18, 0
      %p74 = por %p72, %p73
      %p75 = scmp.ne.s32.totalorder %s61, %s62
      %p76 = scmp.eq.s32.totalorder %s19, 1
      %p77 = por %p75, %p76
      %p79 = scmp.ne.s32.totalorder %s62, %s78
      %p80 = scmp.eq.s32.totalorder %s19, 0
      %p81 = por %p79, %p80
      %s82 = ssub.s32 %s20, %s32
      %s83 = ssub.s32 %s21, %s28
      %s84 = sor.u32 %s82, %s83
      %p85 = scmp.eq.s32.totalorder %s84, 0
      %s87 = sadd.s32 %s86, 1
      %s88 = scalar_select %p85, %s86, %s87
      %p91 = pneg %p85
      %p92 = scmp.eq.s32.totalorder %s13, 1
      %p93 = por %p91, %p92
      %p94 = scmp.ne.s32.totalorder %s86, %s89
      %p95 = scmp.eq.s32.totalorder %s13, 0
      %p96 = por %p94, %p95
      %p97 = scmp.ne.s32.totalorder %s86, %s89
      %p98 = scmp.eq.s32.totalorder %s18, 1
      %p99 = por %p97, %p98
      %p100 = scmp.ne.s32.totalorder %s89, %s90
      %p101 = scmp.eq.s32.totalorder %s18, 0
      %p102 = por %p100, %p101
      %p103 = scmp.ne.s32.totalorder %s89, %s90
      %p104 = scmp.eq.s32.totalorder %s19, 1
      %p105 = por %p103, %p104
      %p107 = scmp.ne.s32.totalorder %s90, %s106
      %p108 = scmp.eq.s32.totalorder %s19, 0
      %p109 = por %p107, %p108
      %s110 = ssub.s32 %s20, %s32
      %s111 = ssub.s32 %s21, %s28
      %s112 = sor.u32 %s110, %s111
      %p113 = scmp.eq.s32.totalorder %s112, 0
      %s115 = sadd.s32 %s114, 1
      %s116 = scalar_select %p113, %s114, %s115
      %p119 = pneg %p113
      %p120 = scmp.eq.s32.totalorder %s13, 1
      %p121 = por %p119, %p120
      %p122 = scmp.ne.s32.totalorder %s114, %s117
      %p123 = scmp.eq.s32.totalorder %s13, 0
      %p124 = por %p122, %p123
      %p125 = scmp.ne.s32.totalorder %s114, %s117
      %p126 = scmp.eq.s32.totalorder %s18, 1
      %p127 = por %p125, %p126
      %p128 = scmp.ne.s32.totalorder %s117, %s118
      %p129 = scmp.eq.s32.totalorder %s18, 0
      %p130 = por %p128, %p129
      %p131 = scmp.ne.s32.totalorder %s117, %s118
      %p132 = scmp.eq.s32.totalorder %s19, 1
      %p133 = por %p131, %p132
      %p135 = scmp.ne.s32.totalorder %s118, %s134
      %p136 = scmp.eq.s32.totalorder %s19, 0
      %p137 = por %p135, %p136
      %s138 = ssub.s32 %s20, %s32
      %s139 = ssub.s32 %s21, %s28
      %s140 = sor.u32 %s138, %s139
      %p141 = scmp.eq.s32.totalorder %s140, 0
      %s143 = sadd.s32 %s142, 1
      %s144 = scalar_select %p141, %s142, %s143
      %p147 = pneg %p141
      %p148 = scmp.eq.s32.totalorder %s13, 1
      %p149 = por %p147, %p148
      %p150 = scmp.ne.s32.totalorder %s142, %s145
      %p151 = scmp.eq.s32.totalorder %s13, 0
      %p152 = por %p150, %p151
      %p153 = scmp.ne.s32.totalorder %s142, %s145
      %p154 = scmp.eq.s32.totalorder %s18, 1
      %p155 = por %p153, %p154
      %p156 = scmp.ne.s32.totalorder %s145, %s146
      %p157 = scmp.eq.s32.totalorder %s18, 0
      %p158 = por %p156, %p157
      %p159 = scmp.ne.s32.totalorder %s145, %s146
      %p160 = scmp.eq.s32.totalorder %s19, 1
      %p161 = por %p159, %p160
      %p163 = scmp.ne.s32.totalorder %s146, %s162
      %p164 = scmp.eq.s32.totalorder %s19, 0
      %p165 = por %p163, %p164
      %s166 = ssub.s32 %s20, %s32
      %s167 = ssub.s32 %s21, %s28
      %s168 = sor.u32 %s166, %s167
      %p169 = scmp.eq.s32.totalorder %s168, 0
      %s171 = sadd.s32 %s170, 1
      %s172 = scalar_select %p169, %s170, %s171
      %p175 = pneg %p169
      %p176 = scmp.eq.s32.totalorder %s13, 1
      %p177 = por %p175, %p176
      %p178 = scmp.ne.s32.totalorder %s170, %s173
      %p179 = scmp.eq.s32.totalorder %s13, 0
      %p180 = por %p178, %p179
      %p181 = scmp.ne.s32.totalorder %s170, %s173
      %p182 = scmp.eq.s32.totalorder %s18, 1
      %p183 = por %p181, %p182
      %p184 = scmp.ne.s32.totalorder %s173, %s174
      %p185 = scmp.eq.s32.totalorder %s18, 0
      %p186 = por %p184, %p185
      %p187 = scmp.ne.s32.totalorder %s173, %s174
      %p188 = scmp.eq.s32.totalorder %s19, 1
      %p189 = por %p187, %p188
      %p191 = scmp.ne.s32.totalorder %s174, %s190
      %p192 = scmp.eq.s32.totalorder %s19, 0
      %p193 = por %p191, %p192
      %p194 = scmp.le.s32.totalorder 1, %s13
      %p195 = scmp.lt.s32.totalorder %s13, 3
      %p196 = pnand %p194, %p195
      %p197 = pneg %p196
      // Predicated region
      $region9: #{tanimoto_forward_hot_path.4} parent=5 // pred_check
        _
      $region10: #{tanimoto_forward_hot_path.4} parent=5 // pred_check_branch
        %199 = sbr.rel (%p196) target = $region12
      $region11: #{tanimoto_forward_hot_path.4} parent=5 // pred_region
        %s200 = ssub.s32 %s13, 1
        // Predicated region
        $region13: #{tanimoto_forward_hot_path.4} parent=11 // pred_check
          %p201 = pneg %p46
        $region14: #{tanimoto_forward_hot_path.4} parent=11 // pred_check_branch
          %203 = sbr.rel (%p201) target = $region16
        $region15: #{tanimoto_forward_hot_path.4} parent=11 // pred_region
          %s205 = ssub.s32 16, 16
          %206 = vsyncadd [#allocation3], %s205
          %s208 = sshll.u32 %s0, 4
          %s209 = int_to_ptr.vmem [resolvable:$true] %s208
          %211 = dma.vmem_to_smem %s209, 16, [#allocation2], [#allocation3]
        $region16: #{tanimoto_forward_hot_path.4} parent=11 // pred_fallthru
          _
      $region12: #{tanimoto_forward_hot_path.4} parent=5 // pred_fallthru
        _
      %p212 = scmp.lt.s32.totalorder %s13, 2
      // Predicated region
      $region17: #{tanimoto_forward_hot_path.4} parent=5 // pred_check
        %p213 = pneg %p212
      $region18: #{tanimoto_forward_hot_path.4} parent=5 // pred_check_branch
        %215 = sbr.rel (%p213) target = $region20
      $region19: #{tanimoto_forward_hot_path.4} parent=5 // pred_region
        // Predicated region
        $region21: #{tanimoto_forward_hot_path.4} parent=19 // pred_check
          %p216 = pneg %p68
        $region22: #{tanimoto_forward_hot_path.4} parent=19 // pred_check_branch
          %218 = sbr.rel (%p216) target = $region24
        $region23: #{tanimoto_forward_hot_path.4} parent=19 // pred_region
          %s219 = smul.u32 32, %s21
          %p220 = scmp.lt.s32.totalorder %s20, 1
          %s221 = scalar_select %p220, %s20, 1
          %p222 = scmp.lt.s32.totalorder %s219, 31
          %s223 = scalar_select %p222, %s219, 31
          %s224 = smul.addr %s223, 2
          %s225 = smul.addr %s221, 64
          %s226 = sadd.s32 %s224, %s225
          %s227 = smul.addr %s226, 8
          %s228 = scalar_lea.vmem %s1, %s227
          %s229 = smul.u32 32, %s21
        $region24: #{tanimoto_forward_hot_path.4} parent=19 // pred_fallthru
          _
      $region20: #{tanimoto_forward_hot_path.4} parent=5 // pred_fallthru
        _
      %p230 = scmp.le.s32.totalorder 1, %s13
      %p231 = scmp.lt.s32.totalorder %s13, 3
      %p232 = pnand %p230, %p231
      %p233 = pneg %p232
      // Predicated region
      $region25: #{tanimoto_forward_hot_path.4} parent=5 // pred_check
        _
      $region26: #{tanimoto_forward_hot_path.4} parent=5 // pred_check_branch
        %235 = sbr.rel (%p232) target = $region28
      $region27: #{tanimoto_forward_hot_path.4} parent=5 // pred_region
        %s236 = ssub.s32 %s13, 1
        // Predicated region
        $region29: #{tanimoto_forward_hot_path.4} parent=27 // pred_check
          %p237 = pneg %p46
        $region30: #{tanimoto_forward_hot_path.4} parent=27 // pred_check_branch
          %239 = sbr.rel (%p237) target = $region32
        $region31: #{tanimoto_forward_hot_path.4} parent=27 // pred_region
          %240 = dma.done [#allocation3], 16
        $region32: #{tanimoto_forward_hot_path.4} parent=27 // pred_fallthru
          _
        %241 = sfence
        %p242 = pneg %p46
        %p243 = pneg %p43
        %s244 = smul.u32 32, %s23
        %p245 = scmp.lt.s32.totalorder %s22, 1
        %s246 = scalar_select %p245, %s22, 1
        %p247 = scmp.lt.s32.totalorder %s244, 31
        %s248 = scalar_select %p247, %s244, 31
        %s249 = smul.addr %s248, 2
        %s250 = smul.addr %s246, 64
        %s251 = sadd.s32 %s249, %s250
        %s252 = smul.addr %s251, 8
        %s253 = scalar_lea.vmem %s1, %s252
        %p254 = pneg %p74
        %p255 = pneg %p71
        %p256 = pneg %p102
        %p257 = pneg %p99
        %s258 = smul.u32 32, %s23
        %p259 = scmp.lt.s32.totalorder %s22, 1
        %s260 = scalar_select %p259, %s22, 1
        %p261 = scmp.lt.s32.totalorder %s258, 31
        %s262 = scalar_select %p261, %s258, 31
        %s263 = smul.addr %s262, 2
        %s264 = smul.addr %s260, 64
        %s265 = sadd.s32 %s263, %s264
        %s266 = smul.addr %s265, 8
        %s267 = scalar_lea.vmem %s2, %s266
        %p268 = pneg %p130
        %p269 = pneg %p127
        %s270 = smul.u32 32, %s23
        %p271 = scmp.lt.s32.totalorder %s22, 1
        %s272 = scalar_select %p271, %s22, 1
        %p273 = scmp.lt.s32.totalorder %s270, 31
        %s274 = scalar_select %p273, %s270, 31
        %s275 = smul.addr %s274, 2
        %s276 = smul.addr %s272, 64
        %s277 = sadd.s32 %s275, %s276
        %s278 = smul.addr %s277, 4
        %s279 = scalar_lea.vmem %s3, %s278
        %p280 = pneg %p158
        %p281 = pneg %p155
        %s282 = smul.u32 32, %s23
        %p283 = scmp.lt.s32.totalorder %s22, 1
        %s284 = scalar_select %p283, %s22, 1
        %p285 = scmp.lt.s32.totalorder %s282, 31
        %s286 = scalar_select %p285, %s282, 31
        %s287 = smul.addr %s284, 32
        %s288 = sadd.s32 %s286, %s287
        %s289 = smul.addr %s288, 8
        %s290 = scalar_lea.vmem %s4, %s289
        %p291 = pneg %p186
        %p292 = pneg %p183
        %s293 = smul.u32 32, %s23
        %p294 = scmp.lt.s32.totalorder %s22, 1
        %s295 = scalar_select %p294, %s22, 1
        %p296 = scmp.lt.s32.totalorder %s293, 31
        %s297 = scalar_select %p296, %s293, 31
        %s298 = smul.addr %s295, 32
        %s299 = sadd.s32 %s297, %s298
        %s300 = smul.addr %s299, 8
        %s301 = scalar_lea.vmem %s5, %s300
        %s302 = smul.u32 32, %s23
        %p303 = scmp.lt.s32.totalorder %s22, 1
        %s304 = scalar_select %p303, %s22, 1
        %p305 = scmp.lt.s32.totalorder %s302, 31
        %s306 = scalar_select %p305, %s302, 31
        %s307 = smul.addr %s306, 2
        %s308 = smul.addr %s304, 64
        %s309 = sadd.s32 %s307, %s308
        %s310 = smul.addr %s309, 8
        %s311 = scalar_lea.vmem %s1, %s310
        %s312 = smul.u32 32, %s23
        %s313 = smul.u32 32, %s23
        %p314 = scmp.lt.s32.totalorder %s22, 1
        %s315 = scalar_select %p314, %s22, 1
        %p316 = scmp.lt.s32.totalorder %s313, 31
        %s317 = scalar_select %p316, %s313, 31
        %s318 = smul.addr %s317, 2
        %s319 = smul.addr %s315, 64
        %s320 = sadd.s32 %s318, %s319
        %s321 = smul.addr %s320, 8
        %s322 = scalar_lea.vmem %s2, %s321
        %s323 = smul.u32 32, %s23
        %s324 = smul.u32 32, %s23
        %p325 = scmp.lt.s32.totalorder %s22, 1
        %s326 = scalar_select %p325, %s22, 1
        %p327 = scmp.lt.s32.totalorder %s324, 31
        %s328 = scalar_select %p327, %s324, 31
        %s329 = smul.addr %s328, 2
        %s330 = smul.addr %s326, 64
        %s331 = sadd.s32 %s329, %s330
        %s332 = smul.addr %s331, 4
        %s333 = scalar_lea.vmem %s3, %s332
        %s334 = smul.u32 32, %s23
        %s335 = smul.u32 32, %s23
        %p336 = scmp.lt.s32.totalorder %s22, 1
        %s337 = scalar_select %p336, %s22, 1
        %p338 = scmp.lt.s32.totalorder %s335, 31
        %s339 = scalar_select %p338, %s335, 31
        %s340 = smul.addr %s337, 32
        %s341 = sadd.s32 %s339, %s340
        %s342 = smul.addr %s341, 8
        %s343 = scalar_lea.vmem %s4, %s342
        %s344 = smul.u32 32, %s23
        %s345 = smul.u32 32, %s23
        %p346 = scmp.lt.s32.totalorder %s22, 1
        %s347 = scalar_select %p346, %s22, 1
        %p348 = scmp.lt.s32.totalorder %s345, 31
        %s349 = scalar_select %p348, %s345, 31
        %s350 = smul.addr %s347, 32
        %s351 = sadd.s32 %s349, %s350
        %s352 = smul.addr %s351, 8
        %s353 = scalar_lea.vmem %s5, %s352
        %s354 = smul.u32 32, %s23
        %s355 = sld [smem:[#allocation2 + %s22]]
        %v356 = vld [vmem:[%s311] sm:$0xff]
        %v357 = vld [vmem:[%s311 + $0x8] sm:$0xff]
        %v358 = vld [vmem:[%s311 + $0x10] sm:$0xff]
        %v359 = vld [vmem:[%s311 + $0x18] sm:$0xff]
        %v360 = vld [vmem:[%s311 + $0x20] sm:$0xff]
        %v361 = vld [vmem:[%s311 + $0x28] sm:$0xff]
        %v362 = vld [vmem:[%s311 + $0x30] sm:$0xff]
        %v363 = vld [vmem:[%s311 + $0x38] sm:$0xff]
        %v364 = vld [vmem:[%s311 + $0x40] sm:$0xff]
        %v365 = vld [vmem:[%s311 + $0x48] sm:$0xff]
        %v366 = vld [vmem:[%s311 + $0x50] sm:$0xff]
        %v367 = vld [vmem:[%s311 + $0x58] sm:$0xff]
        %v368 = vld [vmem:[%s311 + $0x60] sm:$0xff]
        %v369 = vld [vmem:[%s311 + $0x68] sm:$0xff]
        %v370 = vld [vmem:[%s311 + $0x70] sm:$0xff]
        %v371 = vld [vmem:[%s311 + $0x78] sm:$0xff]
        %v372 = vld [vmem:[%s311 + $0x80] sm:$0xff]
        %v373 = vld [vmem:[%s311 + $0x88] sm:$0xff]
        %v374 = vld [vmem:[%s311 + $0x90] sm:$0xff]
        %v375 = vld [vmem:[%s311 + $0x98] sm:$0xff]
        %v376 = vld [vmem:[%s311 + $0xa0] sm:$0xff]
        %v377 = vld [vmem:[%s311 + $0xa8] sm:$0xff]
        %v378 = vld [vmem:[%s311 + $0xb0] sm:$0xff]
        %v379 = vld [vmem:[%s311 + $0xb8] sm:$0xff]
        %v380 = vld [vmem:[%s311 + $0xc0] sm:$0xff]
        %v381 = vld [vmem:[%s311 + $0xc8] sm:$0xff]
        %v382 = vld [vmem:[%s311 + $0xd0] sm:$0xff]
        %v383 = vld [vmem:[%s311 + $0xd8] sm:$0xff]
        %v384 = vld [vmem:[%s311 + $0xe0] sm:$0xff]
        %v385 = vld [vmem:[%s311 + $0xe8] sm:$0xff]
        %v386 = vld [vmem:[%s311 + $0xf0] sm:$0xff]
        %v387 = vld [vmem:[%s311 + $0xf8] sm:$0xff]
        %v388 = vld [vmem:[%s311 + $0x100] sm:$0xff]
        %v389 = vld [vmem:[%s311 + $0x108] sm:$0xff]
        %v390 = vld [vmem:[%s311 + $0x110] sm:$0xff]
        %v391 = vld [vmem:[%s311 + $0x118] sm:$0xff]
        %v392 = vld [vmem:[%s311 + $0x120] sm:$0xff]
        %v393 = vld [vmem:[%s311 + $0x128] sm:$0xff]
        %v394 = vld [vmem:[%s311 + $0x130] sm:$0xff]
        %v395 = vld [vmem:[%s311 + $0x138] sm:$0xff]
        %v396 = vld [vmem:[%s311 + $0x140] sm:$0xff]
        %v397 = vld [vmem:[%s311 + $0x148] sm:$0xff]
        %v398 = vld [vmem:[%s311 + $0x150] sm:$0xff]
        %v399 = vld [vmem:[%s311 + $0x158] sm:$0xff]
        %v400 = vld [vmem:[%s311 + $0x160] sm:$0xff]
        %v401 = vld [vmem:[%s311 + $0x168] sm:$0xff]
        %v402 = vld [vmem:[%s311 + $0x170] sm:$0xff]
        %v403 = vld [vmem:[%s311 + $0x178] sm:$0xff]
        %v404 = vld [vmem:[%s311 + $0x180] sm:$0xff]
        %v405 = vld [vmem:[%s311 + $0x188] sm:$0xff]
        %v406 = vld [vmem:[%s311 + $0x190] sm:$0xff]
        %v407 = vld [vmem:[%s311 + $0x198] sm:$0xff]
        %v408 = vld [vmem:[%s311 + $0x1a0] sm:$0xff]
        %v409 = vld [vmem:[%s311 + $0x1a8] sm:$0xff]
        %v410 = vld [vmem:[%s311 + $0x1b0] sm:$0xff]
        %v411 = vld [vmem:[%s311 + $0x1b8] sm:$0xff]
        %v412 = vld [vmem:[%s311 + $0x1c0] sm:$0xff]
        %v413 = vld [vmem:[%s311 + $0x1c8] sm:$0xff]
        %v414 = vld [vmem:[%s311 + $0x1d0] sm:$0xff]
        %v415 = vld [vmem:[%s311 + $0x1d8] sm:$0xff]
        %v416 = vld [vmem:[%s311 + $0x1e0] sm:$0xff]
        %v417 = vld [vmem:[%s311 + $0x1e8] sm:$0xff]
        %v418 = vld [vmem:[%s311 + $0x1f0] sm:$0xff]
        %v419 = vld [vmem:[%s311 + $0x1f8] sm:$0xff]
        %v420 = vstv %s355
        %v421 = vmul.f32 %v356, %v420
        %v422 = vmul.f32 %v357, %v420
        %v423 = vmul.f32 %v358, %v420
        %v424 = vmul.f32 %v359, %v420
        %v425 = vmul.f32 %v360, %v420
        %v426 = vmul.f32 %v361, %v420
        %v427 = vmul.f32 %v362, %v420
        %v428 = vmul.f32 %v363, %v420
        %v429 = vmul.f32 %v364, %v420
        %v430 = vmul.f32 %v365, %v420
        %v431 = vmul.f32 %v366, %v420
        %v432 = vmul.f32 %v367, %v420
        %v433 = vmul.f32 %v368, %v420
        %v434 = vmul.f32 %v369, %v420
        %v435 = vmul.f32 %v370, %v420
        %v436 = vmul.f32 %v371, %v420
        %v437 = vmul.f32 %v372, %v420
        %v438 = vmul.f32 %v373, %v420
        %v439 = vmul.f32 %v374, %v420
        %v440 = vmul.f32 %v375, %v420
        %v441 = vmul.f32 %v376, %v420
        %v442 = vmul.f32 %v377, %v420
        %v443 = vmul.f32 %v378, %v420
        %v444 = vmul.f32 %v379, %v420
        %v445 = vmul.f32 %v380, %v420
        %v446 = vmul.f32 %v381, %v420
        %v447 = vmul.f32 %v382, %v420
        %v448 = vmul.f32 %v383, %v420
        %v449 = vmul.f32 %v384, %v420
        %v450 = vmul.f32 %v385, %v420
        %v451 = vmul.f32 %v386, %v420
        %v452 = vmul.f32 %v387, %v420
        %v453 = vmul.f32 %v388, %v420
        %v454 = vmul.f32 %v389, %v420
        %v455 = vmul.f32 %v390, %v420
        %v456 = vmul.f32 %v391, %v420
        %v457 = vmul.f32 %v392, %v420
        %v458 = vmul.f32 %v393, %v420
        %v459 = vmul.f32 %v394, %v420
        %v460 = vmul.f32 %v395, %v420
        %v461 = vmul.f32 %v396, %v420
        %v462 = vmul.f32 %v397, %v420
        %v463 = vmul.f32 %v398, %v420
        %v464 = vmul.f32 %v399, %v420
        %v465 = vmul.f32 %v400, %v420
        %v466 = vmul.f32 %v401, %v420
        %v467 = vmul.f32 %v402, %v420
        %v468 = vmul.f32 %v403, %v420
        %v469 = vmul.f32 %v404, %v420
        %v470 = vmul.f32 %v405, %v420
        %v471 = vmul.f32 %v406, %v420
        %v472 = vmul.f32 %v407, %v420
        %v473 = vmul.f32 %v408, %v420
        %v474 = vmul.f32 %v409, %v420
        %v475 = vmul.f32 %v410, %v420
        %v476 = vmul.f32 %v411, %v420
        %v477 = vmul.f32 %v412, %v420
        %v478 = vmul.f32 %v413, %v420
        %v479 = vmul.f32 %v414, %v420
        %v480 = vmul.f32 %v415, %v420
        %v481 = vmul.f32 %v416, %v420
        %v482 = vmul.f32 %v417, %v420
        %v483 = vmul.f32 %v418, %v420
        %v484 = vmul.f32 %v419, %v420
        %485 = vst [vmem:[%s322] sm:$0xff] %v421
        %486 = vst [vmem:[%s322 + $0x8] sm:$0xff] %v422
        %487 = vst [vmem:[%s322 + $0x10] sm:$0xff] %v423
        %488 = vst [vmem:[%s322 + $0x18] sm:$0xff] %v424
        %489 = vst [vmem:[%s322 + $0x20] sm:$0xff] %v425
        %490 = vst [vmem:[%s322 + $0x28] sm:$0xff] %v426
        %491 = vst [vmem:[%s322 + $0x30] sm:$0xff] %v427
        %492 = vst [vmem:[%s322 + $0x38] sm:$0xff] %v428
        %493 = vst [vmem:[%s322 + $0x40] sm:$0xff] %v429
        %494 = vst [vmem:[%s322 + $0x48] sm:$0xff] %v430
        %495 = vst [vmem:[%s322 + $0x50] sm:$0xff] %v431
        %496 = vst [vmem:[%s322 + $0x58] sm:$0xff] %v432
        %497 = vst [vmem:[%s322 + $0x60] sm:$0xff] %v433
        %498 = vst [vmem:[%s322 + $0x68] sm:$0xff] %v434
        %499 = vst [vmem:[%s322 + $0x70] sm:$0xff] %v435
        %500 = vst [vmem:[%s322 + $0x78] sm:$0xff] %v436
        %501 = vst [vmem:[%s322 + $0x80] sm:$0xff] %v437
        %502 = vst [vmem:[%s322 + $0x88] sm:$0xff] %v438
        %503 = vst [vmem:[%s322 + $0x90] sm:$0xff] %v439
        %504 = vst [vmem:[%s322 + $0x98] sm:$0xff] %v440
        %505 = vst [vmem:[%s322 + $0xa0] sm:$0xff] %v441
        %506 = vst [vmem:[%s322 + $0xa8] sm:$0xff] %v442
        %507 = vst [vmem:[%s322 + $0xb0] sm:$0xff] %v443
        %508 = vst [vmem:[%s322 + $0xb8] sm:$0xff] %v444
        %509 = vst [vmem:[%s322 + $0xc0] sm:$0xff] %v445
        %510 = vst [vmem:[%s322 + $0xc8] sm:$0xff] %v446
        %511 = vst [vmem:[%s322 + $0xd0] sm:$0xff] %v447
        %512 = vst [vmem:[%s322 + $0xd8] sm:$0xff] %v448
        %513 = vst [vmem:[%s322 + $0xe0] sm:$0xff] %v449
        %514 = vst [vmem:[%s322 + $0xe8] sm:$0xff] %v450
        %515 = vst [vmem:[%s322 + $0xf0] sm:$0xff] %v451
        %516 = vst [vmem:[%s322 + $0xf8] sm:$0xff] %v452
        %517 = vst [vmem:[%s322 + $0x100] sm:$0xff] %v453
        %518 = vst [vmem:[%s322 + $0x108] sm:$0xff] %v454
        %519 = vst [vmem:[%s322 + $0x110] sm:$0xff] %v455
        %520 = vst [vmem:[%s322 + $0x118] sm:$0xff] %v456
        %521 = vst [vmem:[%s322 + $0x120] sm:$0xff] %v457
        %522 = vst [vmem:[%s322 + $0x128] sm:$0xff] %v458
        %523 = vst [vmem:[%s322 + $0x130] sm:$0xff] %v459
        %524 = vst [vmem:[%s322 + $0x138] sm:$0xff] %v460
        %525 = vst [vmem:[%s322 + $0x140] sm:$0xff] %v461
        %526 = vst [vmem:[%s322 + $0x148] sm:$0xff] %v462
        %527 = vst [vmem:[%s322 + $0x150] sm:$0xff] %v463
        %528 = vst [vmem:[%s322 + $0x158] sm:$0xff] %v464
        %529 = vst [vmem:[%s322 + $0x160] sm:$0xff] %v465
        %530 = vst [vmem:[%s322 + $0x168] sm:$0xff] %v466
        %531 = vst [vmem:[%s322 + $0x170] sm:$0xff] %v467
        %532 = vst [vmem:[%s322 + $0x178] sm:$0xff] %v468
        %533 = vst [vmem:[%s322 + $0x180] sm:$0xff] %v469
        %534 = vst [vmem:[%s322 + $0x188] sm:$0xff] %v470
        %535 = vst [vmem:[%s322 + $0x190] sm:$0xff] %v471
        %536 = vst [vmem:[%s322 + $0x198] sm:$0xff] %v472
        %537 = vst [vmem:[%s322 + $0x1a0] sm:$0xff] %v473
        %538 = vst [vmem:[%s322 + $0x1a8] sm:$0xff] %v474
        %539 = vst [vmem:[%s322 + $0x1b0] sm:$0xff] %v475
        %540 = vst [vmem:[%s322 + $0x1b8] sm:$0xff] %v476
        %541 = vst [vmem:[%s322 + $0x1c0] sm:$0xff] %v477
        %542 = vst [vmem:[%s322 + $0x1c8] sm:$0xff] %v478
        %543 = vst [vmem:[%s322 + $0x1d0] sm:$0xff] %v479
        %544 = vst [vmem:[%s322 + $0x1d8] sm:$0xff] %v480
        %545 = vst [vmem:[%s322 + $0x1e0] sm:$0xff] %v481
        %546 = vst [vmem:[%s322 + $0x1e8] sm:$0xff] %v482
        %547 = vst [vmem:[%s322 + $0x1f0] sm:$0xff] %v483
        %548 = vst [vmem:[%s322 + $0x1f8] sm:$0xff] %v484
        %v549 = vlaneseq
        %v550 = vshrl.u32 %v549, 7
        %v551 = vadd.s32 %v550, 8
        %v552 = vadd.s32 %v550, 16
        %v553 = vadd.s32 %v550, 24
        %v554 = vadd.s32 %v550, 32
        %v555 = vadd.s32 %v550, 40
        %v556 = vadd.s32 %v550, 48
        %v557 = vadd.s32 %v550, 56
        %v558 = vadd.s32 %v550, 64
        %v559 = vadd.s32 %v550, 72
        %v560 = vadd.s32 %v550, 80
        %v561 = vadd.s32 %v550, 88
        %v562 = vadd.s32 %v550, 96
        %v563 = vadd.s32 %v550, 104
        %v564 = vadd.s32 %v550, 112
        %v565 = vadd.s32 %v550, 120
        %v566 = vadd.s32 %v550, 128
        %v567 = vadd.s32 %v550, 136
        %v568 = vadd.s32 %v550, 144
        %v569 = vadd.s32 %v550, 152
        %v570 = vadd.s32 %v550, 160
        %v571 = vadd.s32 %v550, 168
        %v572 = vadd.s32 %v550, 176
        %v573 = vadd.s32 %v550, 184
        %v574 = vadd.s32 %v550, 192
        %v575 = vadd.s32 %v550, 200
        %v576 = vadd.s32 %v550, 208
        %v577 = vadd.s32 %v550, 216
        %v578 = vadd.s32 %v550, 224
        %v579 = vadd.s32 %v550, 232
        %v580 = vadd.s32 %v550, 240
        %v581 = vadd.s32 %v550, 248
        %s582 = smul.u32 %s23, 256
        %v583 = vstv %s582
        %v584 = vadd.s32 %v550, %v583
        %v585 = vadd.s32 %v551, %v583
        %v586 = vadd.s32 %v552, %v583
        %v587 = vadd.s32 %v553, %v583
        %v588 = vadd.s32 %v554, %v583
        %v589 = vadd.s32 %v555, %v583
        %v590 = vadd.s32 %v556, %v583
        %v591 = vadd.s32 %v557, %v583
        %v592 = vadd.s32 %v558, %v583
        %v593 = vadd.s32 %v559, %v583
        %v594 = vadd.s32 %v560, %v583
        %v595 = vadd.s32 %v561, %v583
        %v596 = vadd.s32 %v562, %v583
        %v597 = vadd.s32 %v563, %v583
        %v598 = vadd.s32 %v564, %v583
        %v599 = vadd.s32 %v565, %v583
        %v600 = vadd.s32 %v566, %v583
        %v601 = vadd.s32 %v567, %v583
        %v602 = vadd.s32 %v568, %v583
        %v603 = vadd.s32 %v569, %v583
        %v604 = vadd.s32 %v570, %v583
        %v605 = vadd.s32 %v571, %v583
        %v606 = vadd.s32 %v572, %v583
        %v607 = vadd.s32 %v573, %v583
        %v608 = vadd.s32 %v574, %v583
        %v609 = vadd.s32 %v575, %v583
        %v610 = vadd.s32 %v576, %v583
        %v611 = vadd.s32 %v577, %v583
        %v612 = vadd.s32 %v578, %v583
        %v613 = vadd.s32 %v579, %v583
        %v614 = vadd.s32 %v580, %v583
        %v615 = vadd.s32 %v581, %v583
        %v616 = vlaneseq
        %v617 = vand.u32 %v616, 127
        %v618 = vadd.s32 %v617, 128
        %vm619 = vcmp.gt.f32.partialorder %v421, 0.5
        %vm620 = vcmp.gt.f32.partialorder %v422, 0.5
        %vm621 = vcmp.gt.f32.partialorder %v423, 0.5
        %vm622 = vcmp.gt.f32.partialorder %v424, 0.5
        %vm623 = vcmp.gt.f32.partialorder %v425, 0.5
        %vm624 = vcmp.gt.f32.partialorder %v426, 0.5
        %vm625 = vcmp.gt.f32.partialorder %v427, 0.5
        %vm626 = vcmp.gt.f32.partialorder %v428, 0.5
        %vm627 = vcmp.gt.f32.partialorder %v429, 0.5
        %vm628 = vcmp.gt.f32.partialorder %v430, 0.5
        %vm629 = vcmp.gt.f32.partialorder %v431, 0.5
        %vm630 = vcmp.gt.f32.partialorder %v432, 0.5
        %vm631 = vcmp.gt.f32.partialorder %v433, 0.5
        %vm632 = vcmp.gt.f32.partialorder %v434, 0.5
        %vm633 = vcmp.gt.f32.partialorder %v435, 0.5
        %vm634 = vcmp.gt.f32.partialorder %v436, 0.5
        %vm635 = vcmp.gt.f32.partialorder %v437, 0.5
        %vm636 = vcmp.gt.f32.partialorder %v438, 0.5
        %vm637 = vcmp.gt.f32.partialorder %v439, 0.5
        %vm638 = vcmp.gt.f32.partialorder %v440, 0.5
        %vm639 = vcmp.gt.f32.partialorder %v441, 0.5
        %vm640 = vcmp.gt.f32.partialorder %v442, 0.5
        %vm641 = vcmp.gt.f32.partialorder %v443, 0.5
        %vm642 = vcmp.gt.f32.partialorder %v444, 0.5
        %vm643 = vcmp.gt.f32.partialorder %v445, 0.5
        %vm644 = vcmp.gt.f32.partialorder %v446, 0.5
        %vm645 = vcmp.gt.f32.partialorder %v447, 0.5
        %vm646 = vcmp.gt.f32.partialorder %v448, 0.5
        %vm647 = vcmp.gt.f32.partialorder %v449, 0.5
        %vm648 = vcmp.gt.f32.partialorder %v450, 0.5
        %vm649 = vcmp.gt.f32.partialorder %v451, 0.5
        %vm650 = vcmp.gt.f32.partialorder %v452, 0.5
        %vm651 = vcmp.gt.f32.partialorder %v453, 0.5
        %vm652 = vcmp.gt.f32.partialorder %v454, 0.5
        %vm653 = vcmp.gt.f32.partialorder %v455, 0.5
        %vm654 = vcmp.gt.f32.partialorder %v456, 0.5
        %vm655 = vcmp.gt.f32.partialorder %v457, 0.5
        %vm656 = vcmp.gt.f32.partialorder %v458, 0.5
        %vm657 = vcmp.gt.f32.partialorder %v459, 0.5
        %vm658 = vcmp.gt.f32.partialorder %v460, 0.5
        %vm659 = vcmp.gt.f32.partialorder %v461, 0.5
        %vm660 = vcmp.gt.f32.partialorder %v462, 0.5
        %vm661 = vcmp.gt.f32.partialorder %v463, 0.5
        %vm662 = vcmp.gt.f32.partialorder %v464, 0.5
        %vm663 = vcmp.gt.f32.partialorder %v465, 0.5
        %vm664 = vcmp.gt.f32.partialorder %v466, 0.5
        %vm665 = vcmp.gt.f32.partialorder %v467, 0.5
        %vm666 = vcmp.gt.f32.partialorder %v468, 0.5
        %vm667 = vcmp.gt.f32.partialorder %v469, 0.5
        %vm668 = vcmp.gt.f32.partialorder %v470, 0.5
        %vm669 = vcmp.gt.f32.partialorder %v471, 0.5
        %vm670 = vcmp.gt.f32.partialorder %v472, 0.5
        %vm671 = vcmp.gt.f32.partialorder %v473, 0.5
        %vm672 = vcmp.gt.f32.partialorder %v474, 0.5
        %vm673 = vcmp.gt.f32.partialorder %v475, 0.5
        %vm674 = vcmp.gt.f32.partialorder %v476, 0.5
        %vm675 = vcmp.gt.f32.partialorder %v477, 0.5
        %vm676 = vcmp.gt.f32.partialorder %v478, 0.5
        %vm677 = vcmp.gt.f32.partialorder %v479, 0.5
        %vm678 = vcmp.gt.f32.partialorder %v480, 0.5
        %vm679 = vcmp.gt.f32.partialorder %v481, 0.5
        %vm680 = vcmp.gt.f32.partialorder %v482, 0.5
        %vm681 = vcmp.gt.f32.partialorder %v483, 0.5
        %vm682 = vcmp.gt.f32.partialorder %v484, 0.5
        %vm683 = vcmp.gt.s32.totalorder %v617, %v584
        %vm684 = vcmp.gt.s32.totalorder %v618, %v584
        %vm685 = vcmp.gt.s32.totalorder %v617, %v585
        %vm686 = vcmp.gt.s32.totalorder %v618, %v585
        %vm687 = vcmp.gt.s32.totalorder %v617, %v586
        %vm688 = vcmp.gt.s32.totalorder %v618, %v586
        %vm689 = vcmp.gt.s32.totalorder %v617, %v587
        %vm690 = vcmp.gt.s32.totalorder %v618, %v587
        %vm691 = vcmp.gt.s32.totalorder %v617, %v588
        %vm692 = vcmp.gt.s32.totalorder %v618, %v588
        %vm693 = vcmp.gt.s32.totalorder %v617, %v589
        %vm694 = vcmp.gt.s32.totalorder %v618, %v589
        %vm695 = vcmp.gt.s32.totalorder %v617, %v590
        %vm696 = vcmp.gt.s32.totalorder %v618, %v590
        %vm697 = vcmp.gt.s32.totalorder %v617, %v591
        %vm698 = vcmp.gt.s32.totalorder %v618, %v591
        %vm699 = vcmp.gt.s32.totalorder %v617, %v592
        %vm700 = vcmp.gt.s32.totalorder %v618, %v592
        %vm701 = vcmp.gt.s32.totalorder %v617, %v593
        %vm702 = vcmp.gt.s32.totalorder %v618, %v593
        %vm703 = vcmp.gt.s32.totalorder %v617, %v594
        %vm704 = vcmp.gt.s32.totalorder %v618, %v594
        %vm705 = vcmp.gt.s32.totalorder %v617, %v595
        %vm706 = vcmp.gt.s32.totalorder %v618, %v595
        %vm707 = vcmp.gt.s32.totalorder %v617, %v596
        %vm708 = vcmp.gt.s32.totalorder %v618, %v596
        %vm709 = vcmp.gt.s32.totalorder %v617, %v597
        %vm710 = vcmp.gt.s32.totalorder %v618, %v597
        %vm711 = vcmp.gt.s32.totalorder %v617, %v598
        %vm712 = vcmp.gt.s32.totalorder %v618, %v598
        %vm713 = vcmp.gt.s32.totalorder %v617, %v599
        %vm714 = vcmp.gt.s32.totalorder %v618, %v599
        %vm715 = vcmp.gt.s32.totalorder %v617, %v600
        %vm716 = vcmp.gt.s32.totalorder %v618, %v600
        %vm717 = vcmp.gt.s32.totalorder %v617, %v601
        %vm718 = vcmp.gt.s32.totalorder %v618, %v601
        %vm719 = vcmp.gt.s32.totalorder %v617, %v602
        %vm720 = vcmp.gt.s32.totalorder %v618, %v602
        %vm721 = vcmp.gt.s32.totalorder %v617, %v603
        %vm722 = vcmp.gt.s32.totalorder %v618, %v603
        %vm723 = vcmp.gt.s32.totalorder %v617, %v604
        %vm724 = vcmp.gt.s32.totalorder %v618, %v604
        %vm725 = vcmp.gt.s32.totalorder %v617, %v605
        %vm726 = vcmp.gt.s32.totalorder %v618, %v605
        %vm727 = vcmp.gt.s32.totalorder %v617, %v606
        %vm728 = vcmp.gt.s32.totalorder %v618, %v606
        %vm729 = vcmp.gt.s32.totalorder %v617, %v607
        %vm730 = vcmp.gt.s32.totalorder %v618, %v607
        %vm731 = vcmp.gt.s32.totalorder %v617, %v608
        %vm732 = vcmp.gt.s32.totalorder %v618, %v608
        %vm733 = vcmp.gt.s32.totalorder %v617, %v609
        %vm734 = vcmp.gt.s32.totalorder %v618, %v609
        %vm735 = vcmp.gt.s32.totalorder %v617, %v610
        %vm736 = vcmp.gt.s32.totalorder %v618, %v610
        %vm737 = vcmp.gt.s32.totalorder %v617, %v611
        %vm738 = vcmp.gt.s32.totalorder %v618, %v611
        %vm739 = vcmp.gt.s32.totalorder %v617, %v612
        %vm740 = vcmp.gt.s32.totalorder %v618, %v612
        %vm741 = vcmp.gt.s32.totalorder %v617, %v613
        %vm742 = vcmp.gt.s32.totalorder %v618, %v613
        %vm743 = vcmp.gt.s32.totalorder %v617, %v614
        %vm744 = vcmp.gt.s32.totalorder %v618, %v614
        %vm745 = vcmp.gt.s32.totalorder %v617, %v615
        %vm746 = vcmp.gt.s32.totalorder %v618, %v615
        %vm747 = vmand %vm619, %vm683
        %vm748 = vmand %vm620, %vm684
        %vm749 = vmand %vm621, %vm685
        %vm750 = vmand %vm622, %vm686
        %vm751 = vmand %vm623, %vm687
        %vm752 = vmand %vm624, %vm688
        %vm753 = vmand %vm625, %vm689
        %vm754 = vmand %vm626, %vm690
        %vm755 = vmand %vm627, %vm691
        %vm756 = vmand %vm628, %vm692
        %vm757 = vmand %vm629, %vm693
        %vm758 = vmand %vm630, %vm694
        %vm759 = vmand %vm631, %vm695
        %vm760 = vmand %vm632, %vm696
        %vm761 = vmand %vm633, %vm697
        %vm762 = vmand %vm634, %vm698
        %vm763 = vmand %vm635, %vm699
        %vm764 = vmand %vm636, %vm700
        %vm765 = vmand %vm637, %vm701
        %vm766 = vmand %vm638, %vm702
        %vm767 = vmand %vm639, %vm703
        %vm768 = vmand %vm640, %vm704
        %vm769 = vmand %vm641, %vm705
        %vm770 = vmand %vm642, %vm706
        %vm771 = vmand %vm643, %vm707
        %vm772 = vmand %vm644, %vm708
        %vm773 = vmand %vm645, %vm709
        %vm774 = vmand %vm646, %vm710
        %vm775 = vmand %vm647, %vm711
        %vm776 = vmand %vm648, %vm712
        %vm777 = vmand %vm649, %vm713
        %vm778 = vmand %vm650, %vm714
        %vm779 = vmand %vm651, %vm715
        %vm780 = vmand %vm652, %vm716
        %vm781 = vmand %vm653, %vm717
        %vm782 = vmand %vm654, %vm718
        %vm783 = vmand %vm655, %vm719
        %vm784 = vmand %vm656, %vm720
        %vm785 = vmand %vm657, %vm721
        %vm786 = vmand %vm658, %vm722
        %vm787 = vmand %vm659, %vm723
        %vm788 = vmand %vm660, %vm724
        %vm789 = vmand %vm661, %vm725
        %vm790 = vmand %vm662, %vm726
        %vm791 = vmand %vm663, %vm727
        %vm792 = vmand %vm664, %vm728
        %vm793 = vmand %vm665, %vm729
        %vm794 = vmand %vm666, %vm730
        %vm795 = vmand %vm667, %vm731
        %vm796 = vmand %vm668, %vm732
        %vm797 = vmand %vm669, %vm733
        %vm798 = vmand %vm670, %vm734
        %vm799 = vmand %vm671, %vm735
        %vm800 = vmand %vm672, %vm736
        %vm801 = vmand %vm673, %vm737
        %vm802 = vmand %vm674, %vm738
        %vm803 = vmand %vm675, %vm739
        %vm804 = vmand %vm676, %vm740
        %vm805 = vmand %vm677, %vm741
        %vm806 = vmand %vm678, %vm742
        %vm807 = vmand %vm679, %vm743
        %vm808 = vmand %vm680, %vm744
        %vm809 = vmand %vm681, %vm745
        %vm810 = vmand %vm682, %vm746
        %v811 = vsel %vm747, 1, 0
        %v812 = vsel %vm748, 1, 0
        %v813 = vsel %vm749, 1, 0
        %v814 = vsel %vm750, 1, 0
        %v815 = vsel %vm751, 1, 0
        %v816 = vsel %vm752, 1, 0
        %v817 = vsel %vm753, 1, 0
        %v818 = vsel %vm754, 1, 0
        %v819 = vsel %vm755, 1, 0
        %v820 = vsel %vm756, 1, 0
        %v821 = vsel %vm757, 1, 0
        %v822 = vsel %vm758, 1, 0
        %v823 = vsel %vm759, 1, 0
        %v824 = vsel %vm760, 1, 0
        %v825 = vsel %vm761, 1, 0
        %v826 = vsel %vm762, 1, 0
        %v827 = vsel %vm763, 1, 0
        %v828 = vsel %vm764, 1, 0
        %v829 = vsel %vm765, 1, 0
        %v830 = vsel %vm766, 1, 0
        %v831 = vsel %vm767, 1, 0
        %v832 = vsel %vm768, 1, 0
        %v833 = vsel %vm769, 1, 0
        %v834 = vsel %vm770, 1, 0
        %v835 = vsel %vm771, 1, 0
        %v836 = vsel %vm772, 1, 0
        %v837 = vsel %vm773, 1, 0
        %v838 = vsel %vm774, 1, 0
        %v839 = vsel %vm775, 1, 0
        %v840 = vsel %vm776, 1, 0
        %v841 = vsel %vm777, 1, 0
        %v842 = vsel %vm778, 1, 0
        %v843 = vsel %vm779, 1, 0
        %v844 = vsel %vm780, 1, 0
        %v845 = vsel %vm781, 1, 0
        %v846 = vsel %vm782, 1, 0
        %v847 = vsel %vm783, 1, 0
        %v848 = vsel %vm784, 1, 0
        %v849 = vsel %vm785, 1, 0
        %v850 = vsel %vm786, 1, 0
        %v851 = vsel %vm787, 1, 0
        %v852 = vsel %vm788, 1, 0
        %v853 = vsel %vm789, 1, 0
        %v854 = vsel %vm790, 1, 0
        %v855 = vsel %vm791, 1, 0
        %v856 = vsel %vm792, 1, 0
        %v857 = vsel %vm793, 1, 0
        %v858 = vsel %vm794, 1, 0
        %v859 = vsel %vm795, 1, 0
        %v860 = vsel %vm796, 1, 0
        %v861 = vsel %vm797, 1, 0
        %v862 = vsel %vm798, 1, 0
        %v863 = vsel %vm799, 1, 0
        %v864 = vsel %vm800, 1, 0
        %v865 = vsel %vm801, 1, 0
        %v866 = vsel %vm802, 1, 0
        %v867 = vsel %vm803, 1, 0
        %v868 = vsel %vm804, 1, 0
        %v869 = vsel %vm805, 1, 0
        %v870 = vsel %vm806, 1, 0
        %v871 = vsel %vm807, 1, 0
        %v872 = vsel %vm808, 1, 0
        %v873 = vsel %vm809, 1, 0
        %v874 = vsel %vm810, 1, 0
        %v875 = vcvt.s32.f32 %v811
        %v876 = vcvt.s32.f32 %v812
        %v877 = vcvt.s32.f32 %v813
        %v878 = vcvt.s32.f32 %v814
        %v879 = vcvt.s32.f32 %v815
        %v880 = vcvt.s32.f32 %v816
        %v881 = vcvt.s32.f32 %v817
        %v882 = vcvt.s32.f32 %v818
        %v883 = vcvt.s32.f32 %v819
        %v884 = vcvt.s32.f32 %v820
        %v885 = vcvt.s32.f32 %v821
        %v886 = vcvt.s32.f32 %v822
        %v887 = vcvt.s32.f32 %v823
        %v888 = vcvt.s32.f32 %v824
        %v889 = vcvt.s32.f32 %v825
        %v890 = vcvt.s32.f32 %v826
        %v891 = vcvt.s32.f32 %v827
        %v892 = vcvt.s32.f32 %v828
        %v893 = vcvt.s32.f32 %v829
        %v894 = vcvt.s32.f32 %v830
        %v895 = vcvt.s32.f32 %v831
        %v896 = vcvt.s32.f32 %v832
        %v897 = vcvt.s32.f32 %v833
        %v898 = vcvt.s32.f32 %v834
        %v899 = vcvt.s32.f32 %v835
        %v900 = vcvt.s32.f32 %v836
        %v901 = vcvt.s32.f32 %v837
        %v902 = vcvt.s32.f32 %v838
        %v903 = vcvt.s32.f32 %v839
        %v904 = vcvt.s32.f32 %v840
        %v905 = vcvt.s32.f32 %v841
        %v906 = vcvt.s32.f32 %v842
        %v907 = vcvt.s32.f32 %v843
        %v908 = vcvt.s32.f32 %v844
        %v909 = vcvt.s32.f32 %v845
        %v910 = vcvt.s32.f32 %v846
        %v911 = vcvt.s32.f32 %v847
        %v912 = vcvt.s32.f32 %v848
        %v913 = vcvt.s32.f32 %v849
        %v914 = vcvt.s32.f32 %v850
        %v915 = vcvt.s32.f32 %v851
        %v916 = vcvt.s32.f32 %v852
        %v917 = vcvt.s32.f32 %v853
        %v918 = vcvt.s32.f32 %v854
        %v919 = vcvt.s32.f32 %v855
        %v920 = vcvt.s32.f32 %v856
        %v921 = vcvt.s32.f32 %v857
        %v922 = vcvt.s32.f32 %v858
        %v923 = vcvt.s32.f32 %v859
        %v924 = vcvt.s32.f32 %v860
        %v925 = vcvt.s32.f32 %v861
        %v926 = vcvt.s32.f32 %v862
        %v927 = vcvt.s32.f32 %v863
        %v928 = vcvt.s32.f32 %v864
        %v929 = vcvt.s32.f32 %v865
        %v930 = vcvt.s32.f32 %v866
        %v931 = vcvt.s32.f32 %v867
        %v932 = vcvt.s32.f32 %v868
        %v933 = vcvt.s32.f32 %v869
        %v934 = vcvt.s32.f32 %v870
        %v935 = vcvt.s32.f32 %v871
        %v936 = vcvt.s32.f32 %v872
        %v937 = vcvt.s32.f32 %v873
        %v938 = vcvt.s32.f32 %v874
        %v939 = vadd.f32 %v875, %v876
        %940 = vadd.xlane.f32.xlu0 %v939
        %v941 = vpop.xlane.xlu0 %940
        %v942 = vadd.f32 %v877, %v878
        %943 = vadd.xlane.f32.xlu0 %v942
        %v944 = vpop.xlane.xlu0 %943
        %v945 = vadd.f32 %v879, %v880
        %946 = vadd.xlane.f32.xlu0 %v945
        %v947 = vpop.xlane.xlu0 %946
        %v948 = vadd.f32 %v881, %v882
        %949 = vadd.xlane.f32.xlu0 %v948
        %v950 = vpop.xlane.xlu0 %949
        %v951 = vadd.f32 %v883, %v884
        %952 = vadd.xlane.f32.xlu0 %v951
        %v953 = vpop.xlane.xlu0 %952
        %v954 = vadd.f32 %v885, %v886
        %955 = vadd.xlane.f32.xlu0 %v954
        %v956 = vpop.xlane.xlu0 %955
        %v957 = vadd.f32 %v887, %v888
        %958 = vadd.xlane.f32.xlu0 %v957
        %v959 = vpop.xlane.xlu0 %958
        %v960 = vadd.f32 %v889, %v890
        %961 = vadd.xlane.f32.xlu0 %v960
        %v962 = vpop.xlane.xlu0 %961
        %v963 = vadd.f32 %v891, %v892
        %964 = vadd.xlane.f32.xlu0 %v963
        %v965 = vpop.xlane.xlu0 %964
        %v966 = vadd.f32 %v893, %v894
        %967 = vadd.xlane.f32.xlu0 %v966
        %v968 = vpop.xlane.xlu0 %967
        %v969 = vadd.f32 %v895, %v896
        %970 = vadd.xlane.f32.xlu0 %v969
        %v971 = vpop.xlane.xlu0 %970
        %v972 = vadd.f32 %v897, %v898
        %973 = vadd.xlane.f32.xlu0 %v972
        %v974 = vpop.xlane.xlu0 %973
        %v975 = vadd.f32 %v899, %v900
        %976 = vadd.xlane.f32.xlu0 %v975
        %v977 = vpop.xlane.xlu0 %976
        %v978 = vadd.f32 %v901, %v902
        %979 = vadd.xlane.f32.xlu0 %v978
        %v980 = vpop.xlane.xlu0 %979
        %v981 = vadd.f32 %v903, %v904
        %982 = vadd.xlane.f32.xlu0 %v981
        %v983 = vpop.xlane.xlu0 %982
        %v984 = vadd.f32 %v905, %v906
        %985 = vadd.xlane.f32.xlu0 %v984
        %v986 = vpop.xlane.xlu0 %985
        %v987 = vadd.f32 %v907, %v908
        %988 = vadd.xlane.f32.xlu0 %v987
        %v989 = vpop.xlane.xlu0 %988
        %v990 = vadd.f32 %v909, %v910
        %991 = vadd.xlane.f32.xlu0 %v990
        %v992 = vpop.xlane.xlu0 %991
        %v993 = vadd.f32 %v911, %v912
        %994 = vadd.xlane.f32.xlu0 %v993
        %v995 = vpop.xlane.xlu0 %994
        %v996 = vadd.f32 %v913, %v914
        %997 = vadd.xlane.f32.xlu0 %v996
        %v998 = vpop.xlane.xlu0 %997
        %v999 = vadd.f32 %v915, %v916
        %1000 = vadd.xlane.f32.xlu0 %v999
        %v1001 = vpop.xlane.xlu0 %1000
        %v1002 = vadd.f32 %v917, %v918
        %1003 = vadd.xlane.f32.xlu0 %v1002
        %v1004 = vpop.xlane.xlu0 %1003
        %v1005 = vadd.f32 %v919, %v920
        %1006 = vadd.xlane.f32.xlu0 %v1005
        %v1007 = vpop.xlane.xlu0 %1006
        %v1008 = vadd.f32 %v921, %v922
        %1009 = vadd.xlane.f32.xlu0 %v1008
        %v1010 = vpop.xlane.xlu0 %1009
        %v1011 = vadd.f32 %v923, %v924
        %1012 = vadd.xlane.f32.xlu0 %v1011
        %v1013 = vpop.xlane.xlu0 %1012
        %v1014 = vadd.f32 %v925, %v926
        %1015 = vadd.xlane.f32.xlu0 %v1014
        %v1016 = vpop.xlane.xlu0 %1015
        %v1017 = vadd.f32 %v927, %v928
        %1018 = vadd.xlane.f32.xlu0 %v1017
        %v1019 = vpop.xlane.xlu0 %1018
        %v1020 = vadd.f32 %v929, %v930
        %1021 = vadd.xlane.f32.xlu0 %v1020
        %v1022 = vpop.xlane.xlu0 %1021
        %v1023 = vadd.f32 %v931, %v932
        %1024 = vadd.xlane.f32.xlu0 %v1023
        %v1025 = vpop.xlane.xlu0 %1024
        %v1026 = vadd.f32 %v933, %v934
        %1027 = vadd.xlane.f32.xlu0 %v1026
        %v1028 = vpop.xlane.xlu0 %1027
        %v1029 = vadd.f32 %v935, %v936
        %1030 = vadd.xlane.f32.xlu0 %v1029
        %v1031 = vpop.xlane.xlu0 %1030
        %v1032 = vadd.f32 %v937, %v938
        %1033 = vadd.xlane.f32.xlu0 %v1032
        %v1034 = vpop.xlane.xlu0 %1033
        %vm1035 = vcmp.ge.f32.partialorder %v941, 1.0
        %vm1036 = vcmp.ge.f32.partialorder %v944, 1.0
        %vm1037 = vcmp.ge.f32.partialorder %v947, 1.0
        %vm1038 = vcmp.ge.f32.partialorder %v950, 1.0
        %vm1039 = vcmp.ge.f32.partialorder %v953, 1.0
        %vm1040 = vcmp.ge.f32.partialorder %v956, 1.0
        %vm1041 = vcmp.ge.f32.partialorder %v959, 1.0
        %vm1042 = vcmp.ge.f32.partialorder %v962, 1.0
        %vm1043 = vcmp.ge.f32.partialorder %v965, 1.0
        %vm1044 = vcmp.ge.f32.partialorder %v968, 1.0
        %vm1045 = vcmp.ge.f32.partialorder %v971, 1.0
        %vm1046 = vcmp.ge.f32.partialorder %v974, 1.0
        %vm1047 = vcmp.ge.f32.partialorder %v977, 1.0
        %vm1048 = vcmp.ge.f32.partialorder %v980, 1.0
        %vm1049 = vcmp.ge.f32.partialorder %v983, 1.0
        %vm1050 = vcmp.ge.f32.partialorder %v986, 1.0
        %vm1051 = vcmp.ge.f32.partialorder %v989, 1.0
        %vm1052 = vcmp.ge.f32.partialorder %v992, 1.0
        %vm1053 = vcmp.ge.f32.partialorder %v995, 1.0
        %vm1054 = vcmp.ge.f32.partialorder %v998, 1.0
        %vm1055 = vcmp.ge.f32.partialorder %v1001, 1.0
        %vm1056 = vcmp.ge.f32.partialorder %v1004, 1.0
        %vm1057 = vcmp.ge.f32.partialorder %v1007, 1.0
        %vm1058 = vcmp.ge.f32.partialorder %v1010, 1.0
        %vm1059 = vcmp.ge.f32.partialorder %v1013, 1.0
        %vm1060 = vcmp.ge.f32.partialorder %v1016, 1.0
        %vm1061 = vcmp.ge.f32.partialorder %v1019, 1.0
        %vm1062 = vcmp.ge.f32.partialorder %v1022, 1.0
        %vm1063 = vcmp.ge.f32.partialorder %v1025, 1.0
        %vm1064 = vcmp.ge.f32.partialorder %v1028, 1.0
        %vm1065 = vcmp.ge.f32.partialorder %v1031, 1.0
        %vm1066 = vcmp.ge.f32.partialorder %v1034, 1.0
        %v1067 = vsel %vm1035, 1, 0
        %v1068 = vsel %vm1036, 1, 0
        %v1069 = vsel %vm1037, 1, 0
        %v1070 = vsel %vm1038, 1, 0
        %v1071 = vsel %vm1039, 1, 0
        %v1072 = vsel %vm1040, 1, 0
        %v1073 = vsel %vm1041, 1, 0
        %v1074 = vsel %vm1042, 1, 0
        %v1075 = vsel %vm1043, 1, 0
        %v1076 = vsel %vm1044, 1, 0
        %v1077 = vsel %vm1045, 1, 0
        %v1078 = vsel %vm1046, 1, 0
        %v1079 = vsel %vm1047, 1, 0
        %v1080 = vsel %vm1048, 1, 0
        %v1081 = vsel %vm1049, 1, 0
        %v1082 = vsel %vm1050, 1, 0
        %v1083 = vsel %vm1051, 1, 0
        %v1084 = vsel %vm1052, 1, 0
        %v1085 = vsel %vm1053, 1, 0
        %v1086 = vsel %vm1054, 1, 0
        %v1087 = vsel %vm1055, 1, 0
        %v1088 = vsel %vm1056, 1, 0
        %v1089 = vsel %vm1057, 1, 0
        %v1090 = vsel %vm1058, 1, 0
        %v1091 = vsel %vm1059, 1, 0
        %v1092 = vsel %vm1060, 1, 0
        %v1093 = vsel %vm1061, 1, 0
        %v1094 = vsel %vm1062, 1, 0
        %v1095 = vsel %vm1063, 1, 0
        %v1096 = vsel %vm1064, 1, 0
        %v1097 = vsel %vm1065, 1, 0
        %v1098 = vsel %vm1066, 1, 0
        %vm1099 = vcmask 7168
        %1100 = vst.msk [vmem:[%s343] sm:$0xff] %vm1099, %v1067
        %1101 = vst.msk [vmem:[%s343 + $0x8] sm:$0xff] %vm1099, %v1068
        %1102 = vst.msk [vmem:[%s343 + $0x10] sm:$0xff] %vm1099, %v1069
        %1103 = vst.msk [vmem:[%s343 + $0x18] sm:$0xff] %vm1099, %v1070
        %1104 = vst.msk [vmem:[%s343 + $0x20] sm:$0xff] %vm1099, %v1071
        %1105 = vst.msk [vmem:[%s343 + $0x28] sm:$0xff] %vm1099, %v1072
        %1106 = vst.msk [vmem:[%s343 + $0x30] sm:$0xff] %vm1099, %v1073
        %1107 = vst.msk [vmem:[%s343 + $0x38] sm:$0xff] %vm1099, %v1074
        %1108 = vst.msk [vmem:[%s343 + $0x40] sm:$0xff] %vm1099, %v1075
        %1109 = vst.msk [vmem:[%s343 + $0x48] sm:$0xff] %vm1099, %v1076
        %1110 = vst.msk [vmem:[%s343 + $0x50] sm:$0xff] %vm1099, %v1077
        %1111 = vst.msk [vmem:[%s343 + $0x58] sm:$0xff] %vm1099, %v1078
        %1112 = vst.msk [vmem:[%s343 + $0x60] sm:$0xff] %vm1099, %v1079
        %1113 = vst.msk [vmem:[%s343 + $0x68] sm:$0xff] %vm1099, %v1080
        %1114 = vst.msk [vmem:[%s343 + $0x70] sm:$0xff] %vm1099, %v1081
        %1115 = vst.msk [vmem:[%s343 + $0x78] sm:$0xff] %vm1099, %v1082
        %1116 = vst.msk [vmem:[%s343 + $0x80] sm:$0xff] %vm1099, %v1083
        %1117 = vst.msk [vmem:[%s343 + $0x88] sm:$0xff] %vm1099, %v1084
        %1118 = vst.msk [vmem:[%s343 + $0x90] sm:$0xff] %vm1099, %v1085
        %1119 = vst.msk [vmem:[%s343 + $0x98] sm:$0xff] %vm1099, %v1086
        %1120 = vst.msk [vmem:[%s343 + $0xa0] sm:$0xff] %vm1099, %v1087
        %1121 = vst.msk [vmem:[%s343 + $0xa8] sm:$0xff] %vm1099, %v1088
        %1122 = vst.msk [vmem:[%s343 + $0xb0] sm:$0xff] %vm1099, %v1089
        %1123 = vst.msk [vmem:[%s343 + $0xb8] sm:$0xff] %vm1099, %v1090
        %1124 = vst.msk [vmem:[%s343 + $0xc0] sm:$0xff] %vm1099, %v1091
        %1125 = vst.msk [vmem:[%s343 + $0xc8] sm:$0xff] %vm1099, %v1092
        %1126 = vst.msk [vmem:[%s343 + $0xd0] sm:$0xff] %vm1099, %v1093
        %1127 = vst.msk [vmem:[%s343 + $0xd8] sm:$0xff] %vm1099, %v1094
        %1128 = vst.msk [vmem:[%s343 + $0xe0] sm:$0xff] %vm1099, %v1095
        %1129 = vst.msk [vmem:[%s343 + $0xe8] sm:$0xff] %vm1099, %v1096
        %1130 = vst.msk [vmem:[%s343 + $0xf0] sm:$0xff] %vm1099, %v1097
        %1131 = vst.msk [vmem:[%s343 + $0xf8] sm:$0xff] %vm1099, %v1098
        %vm1132 = vcmp.lt.s32.totalorder %v584, 200
        %vm1133 = vcmp.lt.s32.totalorder %v585, 200
        %vm1134 = vcmp.lt.s32.totalorder %v586, 200
        %vm1135 = vcmp.lt.s32.totalorder %v587, 200
        %vm1136 = vcmp.lt.s32.totalorder %v588, 200
        %vm1137 = vcmp.lt.s32.totalorder %v589, 200
        %vm1138 = vcmp.lt.s32.totalorder %v590, 200
        %vm1139 = vcmp.lt.s32.totalorder %v591, 200
        %vm1140 = vcmp.lt.s32.totalorder %v592, 200
        %vm1141 = vcmp.lt.s32.totalorder %v593, 200
        %vm1142 = vcmp.lt.s32.totalorder %v594, 200
        %vm1143 = vcmp.lt.s32.totalorder %v595, 200
        %vm1144 = vcmp.lt.s32.totalorder %v596, 200
        %vm1145 = vcmp.lt.s32.totalorder %v597, 200
        %vm1146 = vcmp.lt.s32.totalorder %v598, 200
        %vm1147 = vcmp.lt.s32.totalorder %v599, 200
        %vm1148 = vcmp.lt.s32.totalorder %v600, 200
        %vm1149 = vcmp.lt.s32.totalorder %v601, 200
        %vm1150 = vcmp.lt.s32.totalorder %v602, 200
        %vm1151 = vcmp.lt.s32.totalorder %v603, 200
        %vm1152 = vcmp.lt.s32.totalorder %v604, 200
        %vm1153 = vcmp.lt.s32.totalorder %v605, 200
        %vm1154 = vcmp.lt.s32.totalorder %v606, 200
        %vm1155 = vcmp.lt.s32.totalorder %v607, 200
        %vm1156 = vcmp.lt.s32.totalorder %v608, 200
        %vm1157 = vcmp.lt.s32.totalorder %v609, 200
        %vm1158 = vcmp.lt.s32.totalorder %v610, 200
        %vm1159 = vcmp.lt.s32.totalorder %v611, 200
        %vm1160 = vcmp.lt.s32.totalorder %v612, 200
        %vm1161 = vcmp.lt.s32.totalorder %v613, 200
        %vm1162 = vcmp.lt.s32.totalorder %v614, 200
        %vm1163 = vcmp.lt.s32.totalorder %v615, 200
        %v1164 = vsel %vm1132, %v421, 0.0
        %v1165 = vsel %vm1132, %v422, 0.0
        %v1166 = vsel %vm1133, %v423, 0.0
        %v1167 = vsel %vm1133, %v424, 0.0
        %v1168 = vsel %vm1134, %v425, 0.0
        %v1169 = vsel %vm1134, %v426, 0.0
        %v1170 = vsel %vm1135, %v427, 0.0
        %v1171 = vsel %vm1135, %v428, 0.0
        %v1172 = vsel %vm1136, %v429, 0.0
        %v1173 = vsel %vm1136, %v430, 0.0
        %v1174 = vsel %vm1137, %v431, 0.0
        %v1175 = vsel %vm1137, %v432, 0.0
        %v1176 = vsel %vm1138, %v433, 0.0
        %v1177 = vsel %vm1138, %v434, 0.0
        %v1178 = vsel %vm1139, %v435, 0.0
        %v1179 = vsel %vm1139, %v436, 0.0
        %v1180 = vsel %vm1140, %v437, 0.0
        %v1181 = vsel %vm1140, %v438, 0.0
        %v1182 = vsel %vm1141, %v439, 0.0
        %v1183 = vsel %vm1141, %v440, 0.0
        %v1184 = vsel %vm1142, %v441, 0.0
        %v1185 = vsel %vm1142, %v442, 0.0
        %v1186 = vsel %vm1143, %v443, 0.0
        %v1187 = vsel %vm1143, %v444, 0.0
        %v1188 = vsel %vm1144, %v445, 0.0
        %v1189 = vsel %vm1144, %v446, 0.0
        %v1190 = vsel %vm1145, %v447, 0.0
        %v1191 = vsel %vm1145, %v448, 0.0
        %v1192 = vsel %vm1146, %v449, 0.0
        %v1193 = vsel %vm1146, %v450, 0.0
        %v1194 = vsel %vm1147, %v451, 0.0
        %v1195 = vsel %vm1147, %v452, 0.0
        %v1196 = vsel %vm1148, %v453, 0.0
        %v1197 = vsel %vm1148, %v454, 0.0
        %v1198 = vsel %vm1149, %v455, 0.0
        %v1199 = vsel %vm1149, %v456, 0.0
        %v1200 = vsel %vm1150, %v457, 0.0
        %v1201 = vsel %vm1150, %v458, 0.0
        %v1202 = vsel %vm1151, %v459, 0.0
        %v1203 = vsel %vm1151, %v460, 0.0
        %v1204 = vsel %vm1152, %v461, 0.0
        %v1205 = vsel %vm1152, %v462, 0.0
        %v1206 = vsel %vm1153, %v463, 0.0
        %v1207 = vsel %vm1153, %v464, 0.0
        %v1208 = vsel %vm1154, %v465, 0.0
        %v1209 = vsel %vm1154, %v466, 0.0
        %v1210 = vsel %vm1155, %v467, 0.0
        %v1211 = vsel %vm1155, %v468, 0.0
        %v1212 = vsel %vm1156, %v469, 0.0
        %v1213 = vsel %vm1156, %v470, 0.0
        %v1214 = vsel %vm1157, %v471, 0.0
        %v1215 = vsel %vm1157, %v472, 0.0
        %v1216 = vsel %vm1158, %v473, 0.0
        %v1217 = vsel %vm1158, %v474, 0.0
        %v1218 = vsel %vm1159, %v475, 0.0
        %v1219 = vsel %vm1159, %v476, 0.0
        %v1220 = vsel %vm1160, %v477, 0.0
        %v1221 = vsel %vm1160, %v478, 0.0
        %v1222 = vsel %vm1161, %v479, 0.0
        %v1223 = vsel %vm1161, %v480, 0.0
        %v1224 = vsel %vm1162, %v481, 0.0
        %v1225 = vsel %vm1162, %v482, 0.0
        %v1226 = vsel %vm1163, %v483, 0.0
        %v1227 = vsel %vm1163, %v484, 0.0
        %v1228 = vpack.c.bf16 %v1166, %v1164
        %v1229 = vpack.c.bf16 %v1167, %v1165
        %v1230 = vpack.c.bf16 %v1170, %v1168
        %v1231 = vpack.c.bf16 %v1171, %v1169
        %v1232 = vpack.c.bf16 %v1174, %v1172
        %v1233 = vpack.c.bf16 %v1175, %v1173
        %v1234 = vpack.c.bf16 %v1178, %v1176
        %v1235 = vpack.c.bf16 %v1179, %v1177
        %v1236 = vpack.c.bf16 %v1182, %v1180
        %v1237 = vpack.c.bf16 %v1183, %v1181
        %v1238 = vpack.c.bf16 %v1186, %v1184
        %v1239 = vpack.c.bf16 %v1187, %v1185
        %v1240 = vpack.c.bf16 %v1190, %v1188
        %v1241 = vpack.c.bf16 %v1191, %v1189
        %v1242 = vpack.c.bf16 %v1194, %v1192
        %v1243 = vpack.c.bf16 %v1195, %v1193
        %v1244 = vpack.c.bf16 %v1198, %v1196
        %v1245 = vpack.c.bf16 %v1199, %v1197
        %v1246 = vpack.c.bf16 %v1202, %v1200
        %v1247 = vpack.c.bf16 %v1203, %v1201
        %v1248 = vpack.c.bf16 %v1206, %v1204
        %v1249 = vpack.c.bf16 %v1207, %v1205
        %v1250 = vpack.c.bf16 %v1210, %v1208
        %v1251 = vpack.c.bf16 %v1211, %v1209
        %v1252 = vpack.c.bf16 %v1214, %v1212
        %v1253 = vpack.c.bf16 %v1215, %v1213
        %v1254 = vpack.c.bf16 %v1218, %v1216
        %v1255 = vpack.c.bf16 %v1219, %v1217
        %v1256 = vpack.c.bf16 %v1222, %v1220
        %v1257 = vpack.c.bf16 %v1223, %v1221
        %v1258 = vpack.c.bf16 %v1226, %v1224
        %v1259 = vpack.c.bf16 %v1227, %v1225
        %v1292 = vunpack.c.l.b16 %v1228
        %v1293 = vunpack.c.l.b16 %v1229
        %v1294 = vunpack.c.h.b16 %v1228
        %v1295 = vunpack.c.h.b16 %v1229
        %v1296 = vunpack.c.l.b16 %v1230
        %v1297 = vunpack.c.l.b16 %v1231
        %v1298 = vunpack.c.h.b16 %v1230
        %v1299 = vunpack.c.h.b16 %v1231
        %v1300 = vunpack.c.l.b16 %v1232
        %v1301 = vunpack.c.l.b16 %v1233
        %v1302 = vunpack.c.h.b16 %v1232
        %v1303 = vunpack.c.h.b16 %v1233
        %v1304 = vunpack.c.l.b16 %v1234
        %v1305 = vunpack.c.l.b16 %v1235
        %v1306 = vunpack.c.h.b16 %v1234
        %v1307 = vunpack.c.h.b16 %v1235
        %v1308 = vunpack.c.l.b16 %v1236
        %v1309 = vunpack.c.l.b16 %v1237
        %v1310 = vunpack.c.h.b16 %v1236
        %v1311 = vunpack.c.h.b16 %v1237
        %v1312 = vunpack.c.l.b16 %v1238
        %v1313 = vunpack.c.l.b16 %v1239
        %v1314 = vunpack.c.h.b16 %v1238
        %v1315 = vunpack.c.h.b16 %v1239
        %v1316 = vunpack.c.l.b16 %v1240
        %v1317 = vunpack.c.l.b16 %v1241
        %v1318 = vunpack.c.h.b16 %v1240
        %v1319 = vunpack.c.h.b16 %v1241
        %v1320 = vunpack.c.l.b16 %v1242
        %v1321 = vunpack.c.l.b16 %v1243
        %v1322 = vunpack.c.h.b16 %v1242
        %v1323 = vunpack.c.h.b16 %v1243
        %v1324 = vunpack.c.l.b16 %v1244
        %v1325 = vunpack.c.l.b16 %v1245
        %v1326 = vunpack.c.h.b16 %v1244
        %v1327 = vunpack.c.h.b16 %v1245
        %v1328 = vunpack.c.l.b16 %v1246
        %v1329 = vunpack.c.l.b16 %v1247
        %v1330 = vunpack.c.h.b16 %v1246
        %v1331 = vunpack.c.h.b16 %v1247
        %v1332 = vunpack.c.l.b16 %v1248
        %v1333 = vunpack.c.l.b16 %v1249
        %v1334 = vunpack.c.h.b16 %v1248
        %v1335 = vunpack.c.h.b16 %v1249
        %v1336 = vunpack.c.l.b16 %v1250
        %v1337 = vunpack.c.l.b16 %v1251
        %v1338 = vunpack.c.h.b16 %v1250
        %v1339 = vunpack.c.h.b16 %v1251
        %v1340 = vunpack.c.l.b16 %v1252
        %v1341 = vunpack.c.l.b16 %v1253
        %v1342 = vunpack.c.h.b16 %v1252
        %v1343 = vunpack.c.h.b16 %v1253
        %v1344 = vunpack.c.l.b16 %v1254
        %v1345 = vunpack.c.l.b16 %v1255
        %v1346 = vunpack.c.h.b16 %v1254
        %v1347 = vunpack.c.h.b16 %v1255
        %v1348 = vunpack.c.l.b16 %v1256
        %v1349 = vunpack.c.l.b16 %v1257
        %v1350 = vunpack.c.h.b16 %v1256
        %v1351 = vunpack.c.h.b16 %v1257
        %v1352 = vunpack.c.l.b16 %v1258
        %v1353 = vunpack.c.l.b16 %v1259
        %v1354 = vunpack.c.h.b16 %v1258
        %v1355 = vunpack.c.h.b16 %v1259
        %v1356 = vpack.c.b16 %v1293, %v1292
        %v1357 = vpack.c.b16 %v1295, %v1294
        %v1358 = vpack.c.b16 %v1297, %v1296
        %v1359 = vpack.c.b16 %v1299, %v1298
        %v1360 = vpack.c.b16 %v1301, %v1300
        %v1361 = vpack.c.b16 %v1303, %v1302
        %v1362 = vpack.c.b16 %v1305, %v1304
        %v1363 = vpack.c.b16 %v1307, %v1306
        %v1364 = vpack.c.b16 %v1309, %v1308
        %v1365 = vpack.c.b16 %v1311, %v1310
        %v1366 = vpack.c.b16 %v1313, %v1312
        %v1367 = vpack.c.b16 %v1315, %v1314
        %v1368 = vpack.c.b16 %v1317, %v1316
        %v1369 = vpack.c.b16 %v1319, %v1318
        %v1370 = vpack.c.b16 %v1321, %v1320
        %v1371 = vpack.c.b16 %v1323, %v1322
        %v1372 = vpack.c.b16 %v1325, %v1324
        %v1373 = vpack.c.b16 %v1327, %v1326
        %v1374 = vpack.c.b16 %v1329, %v1328
        %v1375 = vpack.c.b16 %v1331, %v1330
        %v1376 = vpack.c.b16 %v1333, %v1332
        %v1377 = vpack.c.b16 %v1335, %v1334
        %v1378 = vpack.c.b16 %v1337, %v1336
        %v1379 = vpack.c.b16 %v1339, %v1338
        %v1380 = vpack.c.b16 %v1341, %v1340
        %v1381 = vpack.c.b16 %v1343, %v1342
        %v1382 = vpack.c.b16 %v1345, %v1344
        %v1383 = vpack.c.b16 %v1347, %v1346
        %v1384 = vpack.c.b16 %v1349, %v1348
        %v1385 = vpack.c.b16 %v1351, %v1350
        %v1386 = vpack.c.b16 %v1353, %v1352
        %v1387 = vpack.c.b16 %v1355, %v1354
        %1420 = vst [vmem:[%s333] sm:$0xff] %v1356
        %1421 = vst [vmem:[%s333 + $0x8] sm:$0xff] %v1357
        %1422 = vst [vmem:[%s333 + $0x10] sm:$0xff] %v1358
        %1423 = vst [vmem:[%s333 + $0x18] sm:$0xff] %v1359
        %1424 = vst [vmem:[%s333 + $0x20] sm:$0xff] %v1360
        %1425 = vst [vmem:[%s333 + $0x28] sm:$0xff] %v1361
        %1426 = vst [vmem:[%s333 + $0x30] sm:$0xff] %v1362
        %1427 = vst [vmem:[%s333 + $0x38] sm:$0xff] %v1363
        %1428 = vst [vmem:[%s333 + $0x40] sm:$0xff] %v1364
        %1429 = vst [vmem:[%s333 + $0x48] sm:$0xff] %v1365
        %1430 = vst [vmem:[%s333 + $0x50] sm:$0xff] %v1366
        %1431 = vst [vmem:[%s333 + $0x58] sm:$0xff] %v1367
        %1432 = vst [vmem:[%s333 + $0x60] sm:$0xff] %v1368
        %1433 = vst [vmem:[%s333 + $0x68] sm:$0xff] %v1369
        %1434 = vst [vmem:[%s333 + $0x70] sm:$0xff] %v1370
        %1435 = vst [vmem:[%s333 + $0x78] sm:$0xff] %v1371
        %1436 = vst [vmem:[%s333 + $0x80] sm:$0xff] %v1372
        %1437 = vst [vmem:[%s333 + $0x88] sm:$0xff] %v1373
        %1438 = vst [vmem:[%s333 + $0x90] sm:$0xff] %v1374
        %1439 = vst [vmem:[%s333 + $0x98] sm:$0xff] %v1375
        %1440 = vst [vmem:[%s333 + $0xa0] sm:$0xff] %v1376
        %1441 = vst [vmem:[%s333 + $0xa8] sm:$0xff] %v1377
        %1442 = vst [vmem:[%s333 + $0xb0] sm:$0xff] %v1378
        %1443 = vst [vmem:[%s333 + $0xb8] sm:$0xff] %v1379
        %1444 = vst [vmem:[%s333 + $0xc0] sm:$0xff] %v1380
        %1445 = vst [vmem:[%s333 + $0xc8] sm:$0xff] %v1381
        %1446 = vst [vmem:[%s333 + $0xd0] sm:$0xff] %v1382
        %1447 = vst [vmem:[%s333 + $0xd8] sm:$0xff] %v1383
        %1448 = vst [vmem:[%s333 + $0xe0] sm:$0xff] %v1384
        %1449 = vst [vmem:[%s333 + $0xe8] sm:$0xff] %v1385
        %1450 = vst [vmem:[%s333 + $0xf0] sm:$0xff] %v1386
        %1451 = vst [vmem:[%s333 + $0xf8] sm:$0xff] %v1387
        %v1452 = vunpack.c.l.bf16 %v1228
        %v1453 = vunpack.c.l.bf16 %v1229
        %v1454 = vunpack.c.h.bf16 %v1228
        %v1455 = vunpack.c.h.bf16 %v1229
        %v1456 = vunpack.c.l.bf16 %v1230
        %v1457 = vunpack.c.l.bf16 %v1231
        %v1458 = vunpack.c.h.bf16 %v1230
        %v1459 = vunpack.c.h.bf16 %v1231
        %v1460 = vunpack.c.l.bf16 %v1232
        %v1461 = vunpack.c.l.bf16 %v1233
        %v1462 = vunpack.c.h.bf16 %v1232
        %v1463 = vunpack.c.h.bf16 %v1233
        %v1464 = vunpack.c.l.bf16 %v1234
        %v1465 = vunpack.c.l.bf16 %v1235
        %v1466 = vunpack.c.h.bf16 %v1234
        %v1467 = vunpack.c.h.bf16 %v1235
        %v1468 = vunpack.c.l.bf16 %v1236
        %v1469 = vunpack.c.l.bf16 %v1237
        %v1470 = vunpack.c.h.bf16 %v1236
        %v1471 = vunpack.c.h.bf16 %v1237
        %v1472 = vunpack.c.l.bf16 %v1238
        %v1473 = vunpack.c.l.bf16 %v1239
        %v1474 = vunpack.c.h.bf16 %v1238
        %v1475 = vunpack.c.h.bf16 %v1239
        %v1476 = vunpack.c.l.bf16 %v1240
        %v1477 = vunpack.c.l.bf16 %v1241
        %v1478 = vunpack.c.h.bf16 %v1240
        %v1479 = vunpack.c.h.bf16 %v1241
        %v1480 = vunpack.c.l.bf16 %v1242
        %v1481 = vunpack.c.l.bf16 %v1243
        %v1482 = vunpack.c.h.bf16 %v1242
        %v1483 = vunpack.c.h.bf16 %v1243
        %v1484 = vunpack.c.l.bf16 %v1244
        %v1485 = vunpack.c.l.bf16 %v1245
        %v1486 = vunpack.c.h.bf16 %v1244
        %v1487 = vunpack.c.h.bf16 %v1245
        %v1488 = vunpack.c.l.bf16 %v1246
        %v1489 = vunpack.c.l.bf16 %v1247
        %v1490 = vunpack.c.h.bf16 %v1246
        %v1491 = vunpack.c.h.bf16 %v1247
        %v1492 = vunpack.c.l.bf16 %v1248
        %v1493 = vunpack.c.l.bf16 %v1249
        %v1494 = vunpack.c.h.bf16 %v1248
        %v1495 = vunpack.c.h.bf16 %v1249
        %v1496 = vunpack.c.l.bf16 %v1250
        %v1497 = vunpack.c.l.bf16 %v1251
        %v1498 = vunpack.c.h.bf16 %v1250
        %v1499 = vunpack.c.h.bf16 %v1251
        %v1500 = vunpack.c.l.bf16 %v1252
        %v1501 = vunpack.c.l.bf16 %v1253
        %v1502 = vunpack.c.h.bf16 %v1252
        %v1503 = vunpack.c.h.bf16 %v1253
        %v1504 = vunpack.c.l.bf16 %v1254
        %v1505 = vunpack.c.l.bf16 %v1255
        %v1506 = vunpack.c.h.bf16 %v1254
        %v1507 = vunpack.c.h.bf16 %v1255
        %v1508 = vunpack.c.l.bf16 %v1256
        %v1509 = vunpack.c.l.bf16 %v1257
        %v1510 = vunpack.c.h.bf16 %v1256
        %v1511 = vunpack.c.h.bf16 %v1257
        %v1512 = vunpack.c.l.bf16 %v1258
        %v1513 = vunpack.c.l.bf16 %v1259
        %v1514 = vunpack.c.h.bf16 %v1258
        %v1515 = vunpack.c.h.bf16 %v1259
        %v1516 = vmul.f32 %v1452, %v1452
        %v1517 = vmul.f32 %v1453, %v1453
        %v1518 = vmul.f32 %v1454, %v1454
        %v1519 = vmul.f32 %v1455, %v1455
        %v1520 = vmul.f32 %v1456, %v1456
        %v1521 = vmul.f32 %v1457, %v1457
        %v1522 = vmul.f32 %v1458, %v1458
        %v1523 = vmul.f32 %v1459, %v1459
        %v1524 = vmul.f32 %v1460, %v1460
        %v1525 = vmul.f32 %v1461, %v1461
        %v1526 = vmul.f32 %v1462, %v1462
        %v1527 = vmul.f32 %v1463, %v1463
        %v1528 = vmul.f32 %v1464, %v1464
        %v1529 = vmul.f32 %v1465, %v1465
        %v1530 = vmul.f32 %v1466, %v1466
        %v1531 = vmul.f32 %v1467, %v1467
        %v1532 = vmul.f32 %v1468, %v1468
        %v1533 = vmul.f32 %v1469, %v1469
        %v1534 = vmul.f32 %v1470, %v1470
        %v1535 = vmul.f32 %v1471, %v1471
        %v1536 = vmul.f32 %v1472, %v1472
        %v1537 = vmul.f32 %v1473, %v1473
        %v1538 = vmul.f32 %v1474, %v1474
        %v1539 = vmul.f32 %v1475, %v1475
        %v1540 = vmul.f32 %v1476, %v1476
        %v1541 = vmul.f32 %v1477, %v1477
        %v1542 = vmul.f32 %v1478, %v1478
        %v1543 = vmul.f32 %v1479, %v1479
        %v1544 = vmul.f32 %v1480, %v1480
        %v1545 = vmul.f32 %v1481, %v1481
        %v1546 = vmul.f32 %v1482, %v1482
        %v1547 = vmul.f32 %v1483, %v1483
        %v1548 = vmul.f32 %v1484, %v1484
        %v1549 = vmul.f32 %v1485, %v1485
        %v1550 = vmul.f32 %v1486, %v1486
        %v1551 = vmul.f32 %v1487, %v1487
        %v1552 = vmul.f32 %v1488, %v1488
        %v1553 = vmul.f32 %v1489, %v1489
        %v1554 = vmul.f32 %v1490, %v1490
        %v1555 = vmul.f32 %v1491, %v1491
        %v1556 = vmul.f32 %v1492, %v1492
        %v1557 = vmul.f32 %v1493, %v1493
        %v1558 = vmul.f32 %v1494, %v1494
        %v1559 = vmul.f32 %v1495, %v1495
        %v1560 = vmul.f32 %v1496, %v1496
        %v1561 = vmul.f32 %v1497, %v1497
        %v1562 = vmul.f32 %v1498, %v1498
        %v1563 = vmul.f32 %v1499, %v1499
        %v1564 = vmul.f32 %v1500, %v1500
        %v1565 = vmul.f32 %v1501, %v1501
        %v1566 = vmul.f32 %v1502, %v1502
        %v1567 = vmul.f32 %v1503, %v1503
        %v1568 = vmul.f32 %v1504, %v1504
        %v1569 = vmul.f32 %v1505, %v1505
        %v1570 = vmul.f32 %v1506, %v1506
        %v1571 = vmul.f32 %v1507, %v1507
        %v1572 = vmul.f32 %v1508, %v1508
        %v1573 = vmul.f32 %v1509, %v1509
        %v1574 = vmul.f32 %v1510, %v1510
        %v1575 = vmul.f32 %v1511, %v1511
        %v1576 = vmul.f32 %v1512, %v1512
        %v1577 = vmul.f32 %v1513, %v1513
        %v1578 = vmul.f32 %v1514, %v1514
        %v1579 = vmul.f32 %v1515, %v1515
        %v1580 = vadd.f32 %v1516, %v1517
        %1581 = vadd.xlane.f32.xlu0 %v1580
        %v1582 = vpop.xlane.xlu0 %1581
        %v1583 = vadd.f32 %v1518, %v1519
        %1584 = vadd.xlane.f32.xlu0 %v1583
        %v1585 = vpop.xlane.xlu0 %1584
        %v1586 = vadd.f32 %v1520, %v1521
        %1587 = vadd.xlane.f32.xlu0 %v1586
        %v1588 = vpop.xlane.xlu0 %1587
        %v1589 = vadd.f32 %v1522, %v1523
        %1590 = vadd.xlane.f32.xlu0 %v1589
        %v1591 = vpop.xlane.xlu0 %1590
        %v1592 = vadd.f32 %v1524, %v1525
        %1593 = vadd.xlane.f32.xlu0 %v1592
        %v1594 = vpop.xlane.xlu0 %1593
        %v1595 = vadd.f32 %v1526, %v1527
        %1596 = vadd.xlane.f32.xlu0 %v1595
        %v1597 = vpop.xlane.xlu0 %1596
        %v1598 = vadd.f32 %v1528, %v1529
        %1599 = vadd.xlane.f32.xlu0 %v1598
        %v1600 = vpop.xlane.xlu0 %1599
        %v1601 = vadd.f32 %v1530, %v1531
        %1602 = vadd.xlane.f32.xlu0 %v1601
        %v1603 = vpop.xlane.xlu0 %1602
        %v1604 = vadd.f32 %v1532, %v1533
        %1605 = vadd.xlane.f32.xlu0 %v1604
        %v1606 = vpop.xlane.xlu0 %1605
        %v1607 = vadd.f32 %v1534, %v1535
        %1608 = vadd.xlane.f32.xlu0 %v1607
        %v1609 = vpop.xlane.xlu0 %1608
        %v1610 = vadd.f32 %v1536, %v1537
        %1611 = vadd.xlane.f32.xlu0 %v1610
        %v1612 = vpop.xlane.xlu0 %1611
        %v1613 = vadd.f32 %v1538, %v1539
        %1614 = vadd.xlane.f32.xlu0 %v1613
        %v1615 = vpop.xlane.xlu0 %1614
        %v1616 = vadd.f32 %v1540, %v1541
        %1617 = vadd.xlane.f32.xlu0 %v1616
        %v1618 = vpop.xlane.xlu0 %1617
        %v1619 = vadd.f32 %v1542, %v1543
        %1620 = vadd.xlane.f32.xlu0 %v1619
        %v1621 = vpop.xlane.xlu0 %1620
        %v1622 = vadd.f32 %v1544, %v1545
        %1623 = vadd.xlane.f32.xlu0 %v1622
        %v1624 = vpop.xlane.xlu0 %1623
        %v1625 = vadd.f32 %v1546, %v1547
        %1626 = vadd.xlane.f32.xlu0 %v1625
        %v1627 = vpop.xlane.xlu0 %1626
        %v1628 = vadd.f32 %v1548, %v1549
        %1629 = vadd.xlane.f32.xlu0 %v1628
        %v1630 = vpop.xlane.xlu0 %1629
        %v1631 = vadd.f32 %v1550, %v1551
        %1632 = vadd.xlane.f32.xlu0 %v1631
        %v1633 = vpop.xlane.xlu0 %1632
        %v1634 = vadd.f32 %v1552, %v1553
        %1635 = vadd.xlane.f32.xlu0 %v1634
        %v1636 = vpop.xlane.xlu0 %1635
        %v1637 = vadd.f32 %v1554, %v1555
        %1638 = vadd.xlane.f32.xlu0 %v1637
        %v1639 = vpop.xlane.xlu0 %1638
        %v1640 = vadd.f32 %v1556, %v1557
        %1641 = vadd.xlane.f32.xlu0 %v1640
        %v1642 = vpop.xlane.xlu0 %1641
        %v1643 = vadd.f32 %v1558, %v1559
        %1644 = vadd.xlane.f32.xlu0 %v1643
        %v1645 = vpop.xlane.xlu0 %1644
        %v1646 = vadd.f32 %v1560, %v1561
        %1647 = vadd.xlane.f32.xlu0 %v1646
        %v1648 = vpop.xlane.xlu0 %1647
        %v1649 = vadd.f32 %v1562, %v1563
        %1650 = vadd.xlane.f32.xlu0 %v1649
        %v1651 = vpop.xlane.xlu0 %1650
        %v1652 = vadd.f32 %v1564, %v1565
        %1653 = vadd.xlane.f32.xlu0 %v1652
        %v1654 = vpop.xlane.xlu0 %1653
        %v1655 = vadd.f32 %v1566, %v1567
        %1656 = vadd.xlane.f32.xlu0 %v1655
        %v1657 = vpop.xlane.xlu0 %1656
        %v1658 = vadd.f32 %v1568, %v1569
        %1659 = vadd.xlane.f32.xlu0 %v1658
        %v1660 = vpop.xlane.xlu0 %1659
        %v1661 = vadd.f32 %v1570, %v1571
        %1662 = vadd.xlane.f32.xlu0 %v1661
        %v1663 = vpop.xlane.xlu0 %1662
        %v1664 = vadd.f32 %v1572, %v1573
        %1665 = vadd.xlane.f32.xlu0 %v1664
        %v1666 = vpop.xlane.xlu0 %1665
        %v1667 = vadd.f32 %v1574, %v1575
        %1668 = vadd.xlane.f32.xlu0 %v1667
        %v1669 = vpop.xlane.xlu0 %1668
        %v1670 = vadd.f32 %v1576, %v1577
        %1671 = vadd.xlane.f32.xlu0 %v1670
        %v1672 = vpop.xlane.xlu0 %1671
        %v1673 = vadd.f32 %v1578, %v1579
        %1674 = vadd.xlane.f32.xlu0 %v1673
        %v1675 = vpop.xlane.xlu0 %1674
        %1676 = vst.msk [vmem:[%s353] sm:$0xff] %vm1099, %v1582
        %1677 = vst.msk [vmem:[%s353 + $0x8] sm:$0xff] %vm1099, %v1585
        %1678 = vst.msk [vmem:[%s353 + $0x10] sm:$0xff] %vm1099, %v1588
        %1679 = vst.msk [vmem:[%s353 + $0x18] sm:$0xff] %vm1099, %v1591
        %1680 = vst.msk [vmem:[%s353 + $0x20] sm:$0xff] %vm1099, %v1594
        %1681 = vst.msk [vmem:[%s353 + $0x28] sm:$0xff] %vm1099, %v1597
        %1682 = vst.msk [vmem:[%s353 + $0x30] sm:$0xff] %vm1099, %v1600
        %1683 = vst.msk [vmem:[%s353 + $0x38] sm:$0xff] %vm1099, %v1603
        %1684 = vst.msk [vmem:[%s353 + $0x40] sm:$0xff] %vm1099, %v1606
        %1685 = vst.msk [vmem:[%s353 + $0x48] sm:$0xff] %vm1099, %v1609
        %1686 = vst.msk [vmem:[%s353 + $0x50] sm:$0xff] %vm1099, %v1612
        %1687 = vst.msk [vmem:[%s353 + $0x58] sm:$0xff] %vm1099, %v1615
        %1688 = vst.msk [vmem:[%s353 + $0x60] sm:$0xff] %vm1099, %v1618
        %1689 = vst.msk [vmem:[%s353 + $0x68] sm:$0xff] %vm1099, %v1621
        %1690 = vst.msk [vmem:[%s353 + $0x70] sm:$0xff] %vm1099, %v1624
        %1691 = vst.msk [vmem:[%s353 + $0x78] sm:$0xff] %vm1099, %v1627
        %1692 = vst.msk [vmem:[%s353 + $0x80] sm:$0xff] %vm1099, %v1630
        %1693 = vst.msk [vmem:[%s353 + $0x88] sm:$0xff] %vm1099, %v1633
        %1694 = vst.msk [vmem:[%s353 + $0x90] sm:$0xff] %vm1099, %v1636
        %1695 = vst.msk [vmem:[%s353 + $0x98] sm:$0xff] %vm1099, %v1639
        %1696 = vst.msk [vmem:[%s353 + $0xa0] sm:$0xff] %vm1099, %v1642
        %1697 = vst.msk [vmem:[%s353 + $0xa8] sm:$0xff] %vm1099, %v1645
        %1698 = vst.msk [vmem:[%s353 + $0xb0] sm:$0xff] %vm1099, %v1648
        %1699 = vst.msk [vmem:[%s353 + $0xb8] sm:$0xff] %vm1099, %v1651
        %1700 = vst.msk [vmem:[%s353 + $0xc0] sm:$0xff] %vm1099, %v1654
        %1701 = vst.msk [vmem:[%s353 + $0xc8] sm:$0xff] %vm1099, %v1657
        %1702 = vst.msk [vmem:[%s353 + $0xd0] sm:$0xff] %vm1099, %v1660
        %1703 = vst.msk [vmem:[%s353 + $0xd8] sm:$0xff] %vm1099, %v1663
        %1704 = vst.msk [vmem:[%s353 + $0xe0] sm:$0xff] %vm1099, %v1666
        %1705 = vst.msk [vmem:[%s353 + $0xe8] sm:$0xff] %vm1099, %v1669
        %1706 = vst.msk [vmem:[%s353 + $0xf0] sm:$0xff] %vm1099, %v1672
        %1707 = vst.msk [vmem:[%s353 + $0xf8] sm:$0xff] %vm1099, %v1675
        %s1708 = smul.u32 32, %s23
        %p1709 = scmp.lt.s32.totalorder %s22, 1
        %s1710 = scalar_select %p1709, %s22, 1
        %p1711 = scmp.lt.s32.totalorder %s1708, 31
        %s1712 = scalar_select %p1711, %s1708, 31
        %s1713 = smul.addr %s1712, 2
        %s1714 = smul.addr %s1710, 64
        %s1715 = sadd.s32 %s1713, %s1714
        %s1716 = smul.addr %s1715, 8
        %s1717 = scalar_lea.vmem %s2, %s1716
        %s1718 = smul.u32 32, %s23
        %p1719 = scmp.lt.s32.totalorder %s22, 1
        %s1720 = scalar_select %p1719, %s22, 1
        %p1721 = scmp.lt.s32.totalorder %s1718, 31
        %s1722 = scalar_select %p1721, %s1718, 31
        %s1723 = smul.addr %s1722, 2
        %s1724 = smul.addr %s1720, 64
        %s1725 = sadd.s32 %s1723, %s1724
        %s1726 = smul.addr %s1725, 4
        %s1727 = scalar_lea.vmem %s3, %s1726
        %s1728 = smul.u32 32, %s23
        %p1729 = scmp.lt.s32.totalorder %s22, 1
        %s1730 = scalar_select %p1729, %s22, 1
        %p1731 = scmp.lt.s32.totalorder %s1728, 31
        %s1732 = scalar_select %p1731, %s1728, 31
        %s1733 = smul.addr %s1730, 32
        %s1734 = sadd.s32 %s1732, %s1733
        %s1735 = smul.addr %s1734, 8
        %s1736 = scalar_lea.vmem %s4, %s1735
        %s1737 = smul.u32 32, %s23
        %p1738 = scmp.lt.s32.totalorder %s22, 1
        %s1739 = scalar_select %p1738, %s22, 1
        %p1740 = scmp.lt.s32.totalorder %s1737, 31
        %s1741 = scalar_select %p1740, %s1737, 31
        %s1742 = smul.addr %s1739, 32
        %s1743 = sadd.s32 %s1741, %s1742
        %s1744 = smul.addr %s1743, 8
        %s1745 = scalar_lea.vmem %s5, %s1744
        // Predicated region
        $region33: #{tanimoto_forward_hot_path.4} parent=27 // pred_check
          %p1746 = pneg %p99
        $region34: #{tanimoto_forward_hot_path.4} parent=27 // pred_check_branch
          %1748 = sbr.rel (%p1746) target = $region36
        $region35: #{tanimoto_forward_hot_path.4} parent=27 // pred_region
          %s1749 = smul.u32 32, %s23
        $region36: #{tanimoto_forward_hot_path.4} parent=27 // pred_fallthru
          _
        // Predicated region
        $region37: #{tanimoto_forward_hot_path.4} parent=27 // pred_check
          %p1750 = pneg %p127
        $region38: #{tanimoto_forward_hot_path.4} parent=27 // pred_check_branch
          %1752 = sbr.rel (%p1750) target = $region40
        $region39: #{tanimoto_forward_hot_path.4} parent=27 // pred_region
          %s1753 = smul.u32 32, %s23
        $region40: #{tanimoto_forward_hot_path.4} parent=27 // pred_fallthru
          _
        // Predicated region
        $region41: #{tanimoto_forward_hot_path.4} parent=27 // pred_check
          %p1754 = pneg %p155
        $region42: #{tanimoto_forward_hot_path.4} parent=27 // pred_check_branch
          %1756 = sbr.rel (%p1754) target = $region44
        $region43: #{tanimoto_forward_hot_path.4} parent=27 // pred_region
          %s1757 = smul.u32 32, %s23
        $region44: #{tanimoto_forward_hot_path.4} parent=27 // pred_fallthru
          _
        // Predicated region
        $region45: #{tanimoto_forward_hot_path.4} parent=27 // pred_check
          %p1758 = pneg %p183
        $region46: #{tanimoto_forward_hot_path.4} parent=27 // pred_check_branch
          %1760 = sbr.rel (%p1758) target = $region48
        $region47: #{tanimoto_forward_hot_path.4} parent=27 // pred_region
          %s1761 = smul.u32 32, %s23
        $region48: #{tanimoto_forward_hot_path.4} parent=27 // pred_fallthru
          _
      $region28: #{tanimoto_forward_hot_path.4} parent=5 // pred_fallthru
        _
      %p1762 = scmp.le.s32.totalorder 2, %s13
      // Predicated region
      $region49: #{tanimoto_forward_hot_path.4} parent=5 // pred_check
        %p1763 = pneg %p1762
      $region50: #{tanimoto_forward_hot_path.4} parent=5 // pred_check_branch
        %1765 = sbr.rel (%p1763) target = $region52
      $region51: #{tanimoto_forward_hot_path.4} parent=5 // pred_region
        %s1766 = ssub.s32 %s13, 2
        // Predicated region
        $region53: #{tanimoto_forward_hot_path.4} parent=51 // pred_check
          %p1767 = pneg %p105
        $region54: #{tanimoto_forward_hot_path.4} parent=51 // pred_check_branch
          %1769 = sbr.rel (%p1767) target = $region56
        $region55: #{tanimoto_forward_hot_path.4} parent=51 // pred_region
          %s1770 = smul.u32 32, %s25
          %p1771 = scmp.lt.s32.totalorder %s24, 1
          %s1772 = scalar_select %p1771, %s24, 1
          %p1773 = scmp.lt.s32.totalorder %s1770, 31
          %s1774 = scalar_select %p1773, %s1770, 31
          %s1775 = smul.addr %s1774, 2
          %s1776 = smul.addr %s1772, 64
          %s1777 = sadd.s32 %s1775, %s1776
          %s1778 = smul.addr %s1777, 8
          %s1779 = scalar_lea.vmem %s2, %s1778
        $region56: #{tanimoto_forward_hot_path.4} parent=51 // pred_fallthru
          _
        // Predicated region
        $region57: #{tanimoto_forward_hot_path.4} parent=51 // pred_check
          %p1780 = pneg %p133
        $region58: #{tanimoto_forward_hot_path.4} parent=51 // pred_check_branch
          %1782 = sbr.rel (%p1780) target = $region60
        $region59: #{tanimoto_forward_hot_path.4} parent=51 // pred_region
          %s1783 = smul.u32 32, %s25
          %p1784 = scmp.lt.s32.totalorder %s24, 1
          %s1785 = scalar_select %p1784, %s24, 1
          %p1786 = scmp.lt.s32.totalorder %s1783, 31
          %s1787 = scalar_select %p1786, %s1783, 31
          %s1788 = smul.addr %s1787, 2
          %s1789 = smul.addr %s1785, 64
          %s1790 = sadd.s32 %s1788, %s1789
          %s1791 = smul.addr %s1790, 4
          %s1792 = scalar_lea.vmem %s3, %s1791
        $region60: #{tanimoto_forward_hot_path.4} parent=51 // pred_fallthru
          _
        // Predicated region
        $region61: #{tanimoto_forward_hot_path.4} parent=51 // pred_check
          %p1793 = pneg %p161
        $region62: #{tanimoto_forward_hot_path.4} parent=51 // pred_check_branch
          %1795 = sbr.rel (%p1793) target = $region64
        $region63: #{tanimoto_forward_hot_path.4} parent=51 // pred_region
          %s1796 = smul.u32 32, %s25
          %p1797 = scmp.lt.s32.totalorder %s24, 1
          %s1798 = scalar_select %p1797, %s24, 1
          %p1799 = scmp.lt.s32.totalorder %s1796, 31
          %s1800 = scalar_select %p1799, %s1796, 31
          %s1801 = smul.addr %s1798, 32
          %s1802 = sadd.s32 %s1800, %s1801
          %s1803 = smul.addr %s1802, 8
          %s1804 = scalar_lea.vmem %s4, %s1803
        $region64: #{tanimoto_forward_hot_path.4} parent=51 // pred_fallthru
          _
        // Predicated region
        $region65: #{tanimoto_forward_hot_path.4} parent=51 // pred_check
          %p1805 = pneg %p189
        $region66: #{tanimoto_forward_hot_path.4} parent=51 // pred_check_branch
          %1807 = sbr.rel (%p1805) target = $region68
        $region67: #{tanimoto_forward_hot_path.4} parent=51 // pred_region
          %s1808 = smul.u32 32, %s25
          %p1809 = scmp.lt.s32.totalorder %s24, 1
          %s1810 = scalar_select %p1809, %s24, 1
          %p1811 = scmp.lt.s32.totalorder %s1808, 31
          %s1812 = scalar_select %p1811, %s1808, 31
          %s1813 = smul.addr %s1810, 32
          %s1814 = sadd.s32 %s1812, %s1813
          %s1815 = smul.addr %s1814, 8
          %s1816 = scalar_lea.vmem %s5, %s1815
        $region68: #{tanimoto_forward_hot_path.4} parent=51 // pred_fallthru
          _
      $region52: #{tanimoto_forward_hot_path.4} parent=5 // pred_fallthru
        _
    $region6: #{tanimoto_forward_hot_path.4} parent=1 // loop_footer
      %s17 = sadd.s32 1, %s13
    $region7: #{tanimoto_forward_hot_path.4} parent=1 // loop_footer_branch
      %12 = sbr.rel target = $region3
    $region8: #{tanimoto_forward_hot_path.4} parent=1 // loop_exit
      _
    %1817 = vsyncpa [#allocation3], 1
    %s1818 = scalar_lea.sflag [#allocation3], 1
    %1819 = vsyncpa %s1818, 1

// kernel: tanimoto_forward_hot_path.3
$region0: #{tanimoto_forward_hot_path.3}
  #allocation0 [shape = 'u32[]', space=smem, size = 0x4, offset = 0x4, fixed_abs, tag = 'smem constant byte address 0x4 - core index']
  #allocation1 [shape = 'u32[144,128]{1,0:T(1,128)}', space=vmem, size = 0x12000, scoped, tag = 'internal scratch']
  %s0 = inlined_call_operand.vmem [shape: f32[2,256,6], index: 0, kind: input, shape index: {}]
  %s1 = inlined_call_operand.vmem [shape: f32[2,6,256], index: 1, kind: input, shape index: {}]
  %s2 = inlined_call_operand.vmem [shape: f32[1,256], index: 2, kind: input, shape index: {}]
  %s3 = inlined_call_operand.vmem [shape: f32[2,256,256], index: 3, kind: output, shape index: {0}]
  %s4 = inlined_call_operand.vmem [shape: f32[2,256,1], index: 4, kind: output, shape index: {1}]
  %5 = xla_tuple %s3, %s4
  %s6 = sld [smem:[#allocation0]]
  $region53: #{tanimoto_forward_hot_path.3} parent=0
    _
  %s8 = ssub.s32 1, %s6
  %s9 = scalar_select 0, %s8, %s6
  loop: start=0, step=1, limit=4
  $region2: #{tanimoto_forward_hot_path.3} parent=0 // loop_pre_header
    _
  $region3: #{tanimoto_forward_hot_path.3} parent=0 // loop_header
    %s11 = sphi 0, %s15
    %p12 = scmp.ge.s32.totalorder %s11, 4
    %s18 = sphi 0, %s30
    %s19 = sphi 0, %s26
    %s20 = sphi 0, %s18
    %s21 = sphi 0, %s19
    %s22 = sphi 0, %s20
    %s23 = sphi 0, %s21
    %s35 = sphi 0, %s37
    %s38 = sphi 0, %s35
    %s39 = sphi 0, %s38
    %s55 = sphi 0, %s39
    %s61 = sphi 0, %s63
    %s64 = sphi 0, %s61
    %s65 = sphi 0, %s64
    %s81 = sphi 0, %s65
    %s85 = sphi 0, %s85
    %s87 = sphi 0, %s85
    %s88 = sphi 0, %s87
    %s102 = sphi 0, %s88
    %s110 = sphi 0, %s112
    %s113 = sphi 0, %s110
    %s114 = sphi 0, %s113
    %s130 = sphi 0, %s114
    %s138 = sphi 0, %s140
    %s141 = sphi 0, %s138
    %s142 = sphi 0, %s141
    %s158 = sphi 0, %s142
  $region4: #{tanimoto_forward_hot_path.3} parent=0 // loop_header_branch
    %14 = sbr.rel (%p12) target = $region8
  $region5: #{tanimoto_forward_hot_path.3} parent=0 // loop_body
    %s16 = ssub.s32 %s11, 1
    %s17 = ssub.s32 %s11, 2
    %s24 = sadd.s32 1, %s19
    %p25 = scmp.ge.s32.totalorder %s24, 1
    %s26 = scalar_select %p25, 0, %s24
    %s27 = sadd.s32 1, %s18
    %s28 = scalar_select %p25, %s27, %s18
    %p29 = scmp.ge.s32.totalorder %s28, 2
    %s30 = scalar_select %p29, 0, %s28
    %s31 = ssub.s32 %s18, %s30
    %s32 = ssub.s32 %s19, %s26
    %s33 = sor.u32 %s31, %s32
    %p34 = scmp.eq.s32.totalorder %s33, 0
    %s36 = sadd.s32 %s35, 1
    %s37 = scalar_select %p34, %s35, %s36
    %p40 = pneg %p34
    %p41 = scmp.eq.s32.totalorder %s11, 1
    %p42 = por %p40, %p41
    %p43 = scmp.ne.s32.totalorder %s35, %s38
    %p44 = scmp.eq.s32.totalorder %s11, 0
    %p45 = por %p43, %p44
    %p46 = scmp.ne.s32.totalorder %s35, %s38
    %p47 = scmp.eq.s32.totalorder %s16, 1
    %p48 = por %p46, %p47
    %p49 = scmp.ne.s32.totalorder %s38, %s39
    %p50 = scmp.eq.s32.totalorder %s16, 0
    %p51 = por %p49, %p50
    %p52 = scmp.ne.s32.totalorder %s38, %s39
    %p53 = scmp.eq.s32.totalorder %s17, 1
    %p54 = por %p52, %p53
    %p56 = scmp.ne.s32.totalorder %s39, %s55
    %p57 = scmp.eq.s32.totalorder %s17, 0
    %p58 = por %p56, %p57
    %s59 = ssub.s32 %s18, %s30
    %p60 = scmp.eq.s32.totalorder %s59, 0
    %s62 = sadd.s32 %s61, 1
    %s63 = scalar_select %p60, %s61, %s62
    %p66 = pneg %p60
    %p67 = scmp.eq.s32.totalorder %s11, 1
    %p68 = por %p66, %p67
    %p69 = scmp.ne.s32.totalorder %s61, %s64
    %p70 = scmp.eq.s32.totalorder %s11, 0
    %p71 = por %p69, %p70
    %p72 = scmp.ne.s32.totalorder %s61, %s64
    %p73 = scmp.eq.s32.totalorder %s16, 1
    %p74 = por %p72, %p73
    %p75 = scmp.ne.s32.totalorder %s64, %s65
    %p76 = scmp.eq.s32.totalorder %s16, 0
    %p77 = por %p75, %p76
    %p78 = scmp.ne.s32.totalorder %s64, %s65
    %p79 = scmp.eq.s32.totalorder %s17, 1
    %p80 = por %p78, %p79
    %p82 = scmp.ne.s32.totalorder %s65, %s81
    %p83 = scmp.eq.s32.totalorder %s17, 0
    %p84 = por %p82, %p83
    %s86 = sadd.s32 %s85, 1
    %p89 = scmp.eq.s32.totalorder %s11, 1
    %p90 = scmp.ne.s32.totalorder %s85, %s87
    %p91 = scmp.eq.s32.totalorder %s11, 0
    %p92 = por %p90, %p91
    %p93 = scmp.ne.s32.totalorder %s85, %s87
    %p94 = scmp.eq.s32.totalorder %s16, 1
    %p95 = por %p93, %p94
    %p96 = scmp.ne.s32.totalorder %s87, %s88
    %p97 = scmp.eq.s32.totalorder %s16, 0
    %p98 = por %p96, %p97
    %p99 = scmp.ne.s32.totalorder %s87, %s88
    %p100 = scmp.eq.s32.totalorder %s17, 1
    %p101 = por %p99, %p100
    %p103 = scmp.ne.s32.totalorder %s88, %s102
    %p104 = scmp.eq.s32.totalorder %s17, 0
    %p105 = por %p103, %p104
    %s106 = ssub.s32 %s18, %s30
    %s107 = ssub.s32 %s19, %s26
    %s108 = sor.u32 %s106, %s107
    %p109 = scmp.eq.s32.totalorder %s108, 0
    %s111 = sadd.s32 %s110, 1
    %s112 = scalar_select %p109, %s110, %s111
    %p115 = pneg %p109
    %p116 = scmp.eq.s32.totalorder %s11, 1
    %p117 = por %p115, %p116
    %p118 = scmp.ne.s32.totalorder %s110, %s113
    %p119 = scmp.eq.s32.totalorder %s11, 0
    %p120 = por %p118, %p119
    %p121 = scmp.ne.s32.totalorder %s110, %s113
    %p122 = scmp.eq.s32.totalorder %s16, 1
    %p123 = por %p121, %p122
    %p124 = scmp.ne.s32.totalorder %s113, %s114
    %p125 = scmp.eq.s32.totalorder %s16, 0
    %p126 = por %p124, %p125
    %p127 = scmp.ne.s32.totalorder %s113, %s114
    %p128 = scmp.eq.s32.totalorder %s17, 1
    %p129 = por %p127, %p128
    %p131 = scmp.ne.s32.totalorder %s114, %s130
    %p132 = scmp.eq.s32.totalorder %s17, 0
    %p133 = por %p131, %p132
    %s134 = ssub.s32 %s18, %s30
    %s135 = ssub.s32 %s19, %s26
    %s136 = sor.u32 %s134, %s135
    %p137 = scmp.eq.s32.totalorder %s136, 0
    %s139 = sadd.s32 %s138, 1
    %s140 = scalar_select %p137, %s138, %s139
    %p143 = pneg %p137
    %p144 = scmp.eq.s32.totalorder %s11, 1
    %p145 = por %p143, %p144
    %p146 = scmp.ne.s32.totalorder %s138, %s141
    %p147 = scmp.eq.s32.totalorder %s11, 0
    %p148 = por %p146, %p147
    %p149 = scmp.ne.s32.totalorder %s138, %s141
    %p150 = scmp.eq.s32.totalorder %s16, 1
    %p151 = por %p149, %p150
    %p152 = scmp.ne.s32.totalorder %s141, %s142
    %p153 = scmp.eq.s32.totalorder %s16, 0
    %p154 = por %p152, %p153
    %p155 = scmp.ne.s32.totalorder %s141, %s142
    %p156 = scmp.eq.s32.totalorder %s17, 1
    %p157 = por %p155, %p156
    %p159 = scmp.ne.s32.totalorder %s142, %s158
    %p160 = scmp.eq.s32.totalorder %s17, 0
    %p161 = por %p159, %p160
    %p162 = scmp.le.s32.totalorder 1, %s11
    %p163 = scmp.lt.s32.totalorder %s11, 3
    %p164 = pnand %p162, %p163
    %p165 = pneg %p164
    // Predicated region
    $region9: #{tanimoto_forward_hot_path.3} parent=5 // pred_check
      _
    $region10: #{tanimoto_forward_hot_path.3} parent=5 // pred_check_branch
      %167 = sbr.rel (%p164) target = $region12
    $region11: #{tanimoto_forward_hot_path.3} parent=5 // pred_region
      %s168 = ssub.s32 %s11, 1
      // Predicated region
      $region13: #{tanimoto_forward_hot_path.3} parent=11 // pred_check
        %p169 = pneg %p98
      $region14: #{tanimoto_forward_hot_path.3} parent=11 // pred_check_branch
        %171 = sbr.rel (%p169) target = $region16
      $region15: #{tanimoto_forward_hot_path.3} parent=11 // pred_region
        _
      $region16: #{tanimoto_forward_hot_path.3} parent=11 // pred_fallthru
        _
    $region12: #{tanimoto_forward_hot_path.3} parent=5 // pred_fallthru
      _
    %p172 = scmp.lt.s32.totalorder %s11, 2
    // Predicated region
    $region17: #{tanimoto_forward_hot_path.3} parent=5 // pred_check
      %p173 = pneg %p172
    $region18: #{tanimoto_forward_hot_path.3} parent=5 // pred_check_branch
      %175 = sbr.rel (%p173) target = $region20
    $region19: #{tanimoto_forward_hot_path.3} parent=5 // pred_region
      // Predicated region
      $region21: #{tanimoto_forward_hot_path.3} parent=19 // pred_check
        %p176 = pneg %p45
      $region22: #{tanimoto_forward_hot_path.3} parent=19 // pred_check_branch
        %178 = sbr.rel (%p176) target = $region24
      $region23: #{tanimoto_forward_hot_path.3} parent=19 // pred_region
        %s179 = smul.u32 32, %s19
        %p180 = scmp.lt.s32.totalorder %s18, 1
        %s181 = scalar_select %p180, %s18, 1
        %p182 = scmp.lt.s32.totalorder %s179, 31
        %s183 = scalar_select %p182, %s179, 31
        %s184 = smul.addr %s181, 32
        %s185 = sadd.s32 %s183, %s184
        %s186 = smul.addr %s185, 8
        %s187 = scalar_lea.vmem %s0, %s186
        %s188 = smul.u32 32, %s19
      $region24: #{tanimoto_forward_hot_path.3} parent=19 // pred_fallthru
        _
      // Predicated region
      $region25: #{tanimoto_forward_hot_path.3} parent=19 // pred_check
        %p189 = pneg %p71
      $region26: #{tanimoto_forward_hot_path.3} parent=19 // pred_check_branch
        %191 = sbr.rel (%p189) target = $region28
      $region27: #{tanimoto_forward_hot_path.3} parent=19 // pred_region
        %p192 = scmp.lt.s32.totalorder %s18, 1
        %s193 = scalar_select %p192, %s18, 1
        %s194 = smul.addr %s193, 2
        %s195 = smul.addr %s194, 8
        %s196 = scalar_lea.vmem %s1, %s195
      $region28: #{tanimoto_forward_hot_path.3} parent=19 // pred_fallthru
        _
    $region20: #{tanimoto_forward_hot_path.3} parent=5 // pred_fallthru
      _
    %p197 = scmp.le.s32.totalorder 1, %s11
    %p198 = scmp.lt.s32.totalorder %s11, 3
    %p199 = pnand %p197, %p198
    %p200 = pneg %p199
    // Predicated region
    $region29: #{tanimoto_forward_hot_path.3} parent=5 // pred_check
      _
    $region30: #{tanimoto_forward_hot_path.3} parent=5 // pred_check_branch
      %202 = sbr.rel (%p199) target = $region32
    $region31: #{tanimoto_forward_hot_path.3} parent=5 // pred_region
      %s203 = ssub.s32 %s11, 1
      %s204 = smul.u32 32, %s21
      %p205 = scmp.lt.s32.totalorder %s20, 1
      %s206 = scalar_select %p205, %s20, 1
      %p207 = scmp.lt.s32.totalorder %s204, 31
      %s208 = scalar_select %p207, %s204, 31
      %s209 = smul.addr %s206, 32
      %s210 = sadd.s32 %s208, %s209
      %s211 = smul.addr %s210, 8
      %s212 = scalar_lea.vmem %s0, %s211
      %p213 = pneg %p51
      %p214 = pneg %p48
      %p215 = scmp.lt.s32.totalorder %s20, 1
      %s216 = scalar_select %p215, %s20, 1
      %s217 = smul.addr %s216, 2
      %s218 = smul.addr %s217, 8
      %s219 = scalar_lea.vmem %s1, %s218
      %p220 = pneg %p77
      %p221 = pneg %p74
      %p222 = pneg %p98
      %p223 = pneg %p95
      %p224 = pneg %p126
      %p225 = pneg %p123
      %s226 = smul.u32 32, %s21
      %p227 = scmp.lt.s32.totalorder %s20, 1
      %s228 = scalar_select %p227, %s20, 1
      %p229 = scmp.lt.s32.totalorder %s226, 31
      %s230 = scalar_select %p229, %s226, 31
      %s231 = smul.addr %s230, 2
      %s232 = smul.addr %s228, 64
      %s233 = sadd.s32 %s231, %s232
      %s234 = smul.addr %s233, 8
      %s235 = scalar_lea.vmem %s3, %s234
      %p236 = pneg %p154
      %p237 = pneg %p151
      %s238 = smul.u32 32, %s21
      %p239 = scmp.lt.s32.totalorder %s20, 1
      %s240 = scalar_select %p239, %s20, 1
      %p241 = scmp.lt.s32.totalorder %s238, 31
      %s242 = scalar_select %p241, %s238, 31
      %s243 = smul.addr %s240, 32
      %s244 = sadd.s32 %s242, %s243
      %s245 = smul.addr %s244, 8
      %s246 = scalar_lea.vmem %s4, %s245
      %s247 = smul.u32 32, %s21
      %p248 = scmp.lt.s32.totalorder %s20, 1
      %s249 = scalar_select %p248, %s20, 1
      %p250 = scmp.lt.s32.totalorder %s247, 31
      %s251 = scalar_select %p250, %s247, 31
      %s252 = smul.addr %s249, 32
      %s253 = sadd.s32 %s251, %s252
      %s254 = smul.addr %s253, 8
      %s255 = scalar_lea.vmem %s0, %s254
      %s256 = smul.u32 32, %s21
      %p257 = scmp.lt.s32.totalorder %s20, 1
      %s258 = scalar_select %p257, %s20, 1
      %s259 = smul.addr %s258, 2
      %s260 = smul.addr %s259, 8
      %s261 = scalar_lea.vmem %s1, %s260
      %s262 = smul.u32 32, %s21
      %p263 = scmp.lt.s32.totalorder %s20, 1
      %s264 = scalar_select %p263, %s20, 1
      %p265 = scmp.lt.s32.totalorder %s262, 31
      %s266 = scalar_select %p265, %s262, 31
      %s267 = smul.addr %s266, 2
      %s268 = smul.addr %s264, 64
      %s269 = sadd.s32 %s267, %s268
      %s270 = smul.addr %s269, 8
      %s271 = scalar_lea.vmem %s3, %s270
      %s272 = smul.u32 32, %s21
      %s273 = smul.u32 32, %s21
      %p274 = scmp.lt.s32.totalorder %s20, 1
      %s275 = scalar_select %p274, %s20, 1
      %p276 = scmp.lt.s32.totalorder %s273, 31
      %s277 = scalar_select %p276, %s273, 31
      %s278 = smul.addr %s275, 32
      %s279 = sadd.s32 %s277, %s278
      %s280 = smul.addr %s279, 8
      %s281 = scalar_lea.vmem %s4, %s280
      %s282 = smul.u32 32, %s21
      %v283 = vld [vmem:[%s255] sm:$0xff]
      %v284 = vld [vmem:[%s255 + $0x8] sm:$0xff]
      %v285 = vld [vmem:[%s255 + $0x10] sm:$0xff]
      %v286 = vld [vmem:[%s255 + $0x18] sm:$0xff]
      %v287 = vld [vmem:[%s255 + $0x20] sm:$0xff]
      %v288 = vld [vmem:[%s255 + $0x28] sm:$0xff]
      %v289 = vld [vmem:[%s255 + $0x30] sm:$0xff]
      %v290 = vld [vmem:[%s255 + $0x38] sm:$0xff]
      %v291 = vld [vmem:[%s255 + $0x40] sm:$0xff]
      %v292 = vld [vmem:[%s255 + $0x48] sm:$0xff]
      %v293 = vld [vmem:[%s255 + $0x50] sm:$0xff]
      %v294 = vld [vmem:[%s255 + $0x58] sm:$0xff]
      %v295 = vld [vmem:[%s255 + $0x60] sm:$0xff]
      %v296 = vld [vmem:[%s255 + $0x68] sm:$0xff]
      %v297 = vld [vmem:[%s255 + $0x70] sm:$0xff]
      %v298 = vld [vmem:[%s255 + $0x78] sm:$0xff]
      %v299 = vld [vmem:[%s255 + $0x80] sm:$0xff]
      %v300 = vld [vmem:[%s255 + $0x88] sm:$0xff]
      %v301 = vld [vmem:[%s255 + $0x90] sm:$0xff]
      %v302 = vld [vmem:[%s255 + $0x98] sm:$0xff]
      %v303 = vld [vmem:[%s255 + $0xa0] sm:$0xff]
      %v304 = vld [vmem:[%s255 + $0xa8] sm:$0xff]
      %v305 = vld [vmem:[%s255 + $0xb0] sm:$0xff]
      %v306 = vld [vmem:[%s255 + $0xb8] sm:$0xff]
      %v307 = vld [vmem:[%s255 + $0xc0] sm:$0xff]
      %v308 = vld [vmem:[%s255 + $0xc8] sm:$0xff]
      %v309 = vld [vmem:[%s255 + $0xd0] sm:$0xff]
      %v310 = vld [vmem:[%s255 + $0xd8] sm:$0xff]
      %v311 = vld [vmem:[%s255 + $0xe0] sm:$0xff]
      %v312 = vld [vmem:[%s255 + $0xe8] sm:$0xff]
      %v313 = vld [vmem:[%s255 + $0xf0] sm:$0xff]
      %v314 = vld [vmem:[%s255 + $0xf8] sm:$0xff]
      %v315 = vld [vmem:[%s261] sm:$0x3f]
      %v316 = vld [vmem:[%s261 + $0x8] sm:$0x3f]
      %318 = vset.pattern.permute.xlu0 0
      %319 = vperm.xlu0 %318, %v283
      %v320 = vpop.permute.xlu0 %319
      %323 = vset.pattern.permute.xlu0 0
      %324 = vperm.xlu0 %323, %v284
      %v325 = vpop.permute.xlu0 %324
      %328 = vset.pattern.permute.xlu0 0
      %329 = vperm.xlu0 %328, %v285
      %v330 = vpop.permute.xlu0 %329
      %333 = vset.pattern.permute.xlu0 0
      %334 = vperm.xlu0 %333, %v286
      %v335 = vpop.permute.xlu0 %334
      %338 = vset.pattern.permute.xlu0 0
      %339 = vperm.xlu0 %338, %v287
      %v340 = vpop.permute.xlu0 %339
      %343 = vset.pattern.permute.xlu0 0
      %344 = vperm.xlu0 %343, %v288
      %v345 = vpop.permute.xlu0 %344
      %348 = vset.pattern.permute.xlu0 0
      %349 = vperm.xlu0 %348, %v289
      %v350 = vpop.permute.xlu0 %349
      %353 = vset.pattern.permute.xlu0 0
      %354 = vperm.xlu0 %353, %v290
      %v355 = vpop.permute.xlu0 %354
      %358 = vset.pattern.permute.xlu0 0
      %359 = vperm.xlu0 %358, %v291
      %v360 = vpop.permute.xlu0 %359
      %363 = vset.pattern.permute.xlu0 0
      %364 = vperm.xlu0 %363, %v292
      %v365 = vpop.permute.xlu0 %364
      %368 = vset.pattern.permute.xlu0 0
      %369 = vperm.xlu0 %368, %v293
      %v370 = vpop.permute.xlu0 %369
      %373 = vset.pattern.permute.xlu0 0
      %374 = vperm.xlu0 %373, %v294
      %v375 = vpop.permute.xlu0 %374
      %378 = vset.pattern.permute.xlu0 0
      %379 = vperm.xlu0 %378, %v295
      %v380 = vpop.permute.xlu0 %379
      %383 = vset.pattern.permute.xlu0 0
      %384 = vperm.xlu0 %383, %v296
      %v385 = vpop.permute.xlu0 %384
      %388 = vset.pattern.permute.xlu0 0
      %389 = vperm.xlu0 %388, %v297
      %v390 = vpop.permute.xlu0 %389
      %393 = vset.pattern.permute.xlu0 0
      %394 = vperm.xlu0 %393, %v298
      %v395 = vpop.permute.xlu0 %394
      %398 = vset.pattern.permute.xlu0 0
      %399 = vperm.xlu0 %398, %v299
      %v400 = vpop.permute.xlu0 %399
      %403 = vset.pattern.permute.xlu0 0
      %404 = vperm.xlu0 %403, %v300
      %v405 = vpop.permute.xlu0 %404
      %408 = vset.pattern.permute.xlu0 0
      %409 = vperm.xlu0 %408, %v301
      %v410 = vpop.permute.xlu0 %409
      %413 = vset.pattern.permute.xlu0 0
      %414 = vperm.xlu0 %413, %v302
      %v415 = vpop.permute.xlu0 %414
      %418 = vset.pattern.permute.xlu0 0
      %419 = vperm.xlu0 %418, %v303
      %v420 = vpop.permute.xlu0 %419
      %423 = vset.pattern.permute.xlu0 0
      %424 = vperm.xlu0 %423, %v304
      %v425 = vpop.permute.xlu0 %424
      %428 = vset.pattern.permute.xlu0 0
      %429 = vperm.xlu0 %428, %v305
      %v430 = vpop.permute.xlu0 %429
      %433 = vset.pattern.permute.xlu0 0
      %434 = vperm.xlu0 %433, %v306
      %v435 = vpop.permute.xlu0 %434
      %438 = vset.pattern.permute.xlu0 0
      %439 = vperm.xlu0 %438, %v307
      %v440 = vpop.permute.xlu0 %439
      %443 = vset.pattern.permute.xlu0 0
      %444 = vperm.xlu0 %443, %v308
      %v445 = vpop.permute.xlu0 %444
      %448 = vset.pattern.permute.xlu0 0
      %449 = vperm.xlu0 %448, %v309
      %v450 = vpop.permute.xlu0 %449
      %453 = vset.pattern.permute.xlu0 0
      %454 = vperm.xlu0 %453, %v310
      %v455 = vpop.permute.xlu0 %454
      %458 = vset.pattern.permute.xlu0 0
      %459 = vperm.xlu0 %458, %v311
      %v460 = vpop.permute.xlu0 %459
      %463 = vset.pattern.permute.xlu0 0
      %464 = vperm.xlu0 %463, %v312
      %v465 = vpop.permute.xlu0 %464
      %468 = vset.pattern.permute.xlu0 0
      %469 = vperm.xlu0 %468, %v313
      %v470 = vpop.permute.xlu0 %469
      %473 = vset.pattern.permute.xlu0 0
      %474 = vperm.xlu0 %473, %v314
      %v475 = vpop.permute.xlu0 %474
      %v477 = vlaneseq
      %v478 = vshrl.u32 %v477, 7
      %v479 = vsub.s32 0, %v478
      %v480 = vrot.slane %v315, %v479
      %v481 = vlaneseq
      %v482 = vshrl.u32 %v481, 7
      %v483 = vsub.s32 0, %v482
      %v484 = vrot.slane %v316, %v483
      %v485 = vsub.f32 %v320, %v480
      %v486 = vsub.f32 %v320, %v484
      %v487 = vsub.f32 %v325, %v480
      %v488 = vsub.f32 %v325, %v484
      %v489 = vsub.f32 %v330, %v480
      %v490 = vsub.f32 %v330, %v484
      %v491 = vsub.f32 %v335, %v480
      %v492 = vsub.f32 %v335, %v484
      %v493 = vsub.f32 %v340, %v480
      %v494 = vsub.f32 %v340, %v484
      %v495 = vsub.f32 %v345, %v480
      %v496 = vsub.f32 %v345, %v484
      %v497 = vsub.f32 %v350, %v480
      %v498 = vsub.f32 %v350, %v484
      %v499 = vsub.f32 %v355, %v480
      %v500 = vsub.f32 %v355, %v484
      %v501 = vsub.f32 %v360, %v480
      %v502 = vsub.f32 %v360, %v484
      %v503 = vsub.f32 %v365, %v480
      %v504 = vsub.f32 %v365, %v484
      %v505 = vsub.f32 %v370, %v480
      %v506 = vsub.f32 %v370, %v484
      %v507 = vsub.f32 %v375, %v480
      %v508 = vsub.f32 %v375, %v484
      %v509 = vsub.f32 %v380, %v480
      %v510 = vsub.f32 %v380, %v484
      %v511 = vsub.f32 %v385, %v480
      %v512 = vsub.f32 %v385, %v484
      %v513 = vsub.f32 %v390, %v480
      %v514 = vsub.f32 %v390, %v484
      %v515 = vsub.f32 %v395, %v480
      %v516 = vsub.f32 %v395, %v484
      %v517 = vsub.f32 %v400, %v480
      %v518 = vsub.f32 %v400, %v484
      %v519 = vsub.f32 %v405, %v480
      %v520 = vsub.f32 %v405, %v484
      %v521 = vsub.f32 %v410, %v480
      %v522 = vsub.f32 %v410, %v484
      %v523 = vsub.f32 %v415, %v480
      %v524 = vsub.f32 %v415, %v484
      %v525 = vsub.f32 %v420, %v480
      %v526 = vsub.f32 %v420, %v484
      %v527 = vsub.f32 %v425, %v480
      %v528 = vsub.f32 %v425, %v484
      %v529 = vsub.f32 %v430, %v480
      %v530 = vsub.f32 %v430, %v484
      %v531 = vsub.f32 %v435, %v480
      %v532 = vsub.f32 %v435, %v484
      %v533 = vsub.f32 %v440, %v480
      %v534 = vsub.f32 %v440, %v484
      %v535 = vsub.f32 %v445, %v480
      %v536 = vsub.f32 %v445, %v484
      %v537 = vsub.f32 %v450, %v480
      %v538 = vsub.f32 %v450, %v484
      %v539 = vsub.f32 %v455, %v480
      %v540 = vsub.f32 %v455, %v484
      %v541 = vsub.f32 %v460, %v480
      %v542 = vsub.f32 %v460, %v484
      %v543 = vsub.f32 %v465, %v480
      %v544 = vsub.f32 %v465, %v484
      %v545 = vsub.f32 %v470, %v480
      %v546 = vsub.f32 %v470, %v484
      %v547 = vsub.f32 %v475, %v480
      %v548 = vsub.f32 %v475, %v484
      %v549 = vmul.f32 %v485, %v485
      %v550 = vmul.f32 %v486, %v486
      %v551 = vmul.f32 %v487, %v487
      %v552 = vmul.f32 %v488, %v488
      %v553 = vmul.f32 %v489, %v489
      %v554 = vmul.f32 %v490, %v490
      %v555 = vmul.f32 %v491, %v491
      %v556 = vmul.f32 %v492, %v492
      %v557 = vmul.f32 %v493, %v493
      %v558 = vmul.f32 %v494, %v494
      %v559 = vmul.f32 %v495, %v495
      %v560 = vmul.f32 %v496, %v496
      %v561 = vmul.f32 %v497, %v497
      %v562 = vmul.f32 %v498, %v498
      %v563 = vmul.f32 %v499, %v499
      %v564 = vmul.f32 %v500, %v500
      %v565 = vmul.f32 %v501, %v501
      %v566 = vmul.f32 %v502, %v502
      %v567 = vmul.f32 %v503, %v503
      %v568 = vmul.f32 %v504, %v504
      %v569 = vmul.f32 %v505, %v505
      %v570 = vmul.f32 %v506, %v506
      %v571 = vmul.f32 %v507, %v507
      %v572 = vmul.f32 %v508, %v508
      %v573 = vmul.f32 %v509, %v509
      %v574 = vmul.f32 %v510, %v510
      %v575 = vmul.f32 %v511, %v511
      %v576 = vmul.f32 %v512, %v512
      %v577 = vmul.f32 %v513, %v513
      %v578 = vmul.f32 %v514, %v514
      %v579 = vmul.f32 %v515, %v515
      %v580 = vmul.f32 %v516, %v516
      %v581 = vmul.f32 %v517, %v517
      %v582 = vmul.f32 %v518, %v518
      %v583 = vmul.f32 %v519, %v519
      %v584 = vmul.f32 %v520, %v520
      %v585 = vmul.f32 %v521, %v521
      %v586 = vmul.f32 %v522, %v522
      %v587 = vmul.f32 %v523, %v523
      %v588 = vmul.f32 %v524, %v524
      %v589 = vmul.f32 %v525, %v525
      %v590 = vmul.f32 %v526, %v526
      %v591 = vmul.f32 %v527, %v527
      %v592 = vmul.f32 %v528, %v528
      %v593 = vmul.f32 %v529, %v529
      %v594 = vmul.f32 %v530, %v530
      %v595 = vmul.f32 %v531, %v531
      %v596 = vmul.f32 %v532, %v532
      %v597 = vmul.f32 %v533, %v533
      %v598 = vmul.f32 %v534, %v534
      %v599 = vmul.f32 %v535, %v535
      %v600 = vmul.f32 %v536, %v536
      %v601 = vmul.f32 %v537, %v537
      %v602 = vmul.f32 %v538, %v538
      %v603 = vmul.f32 %v539, %v539
      %v604 = vmul.f32 %v540, %v540
      %v605 = vmul.f32 %v541, %v541
      %v606 = vmul.f32 %v542, %v542
      %v607 = vmul.f32 %v543, %v543
      %v608 = vmul.f32 %v544, %v544
      %v609 = vmul.f32 %v545, %v545
      %v610 = vmul.f32 %v546, %v546
      %v611 = vmul.f32 %v547, %v547
      %v612 = vmul.f32 %v548, %v548
      %613 = vset.pattern.permute.xlu0 1
      %614 = vperm.xlu0 %613, %v283
      %v615 = vpop.permute.xlu0 %614
      %617 = vset.pattern.permute.xlu0 1
      %618 = vperm.xlu0 %617, %v284
      %v619 = vpop.permute.xlu0 %618
      %621 = vset.pattern.permute.xlu0 1
      %622 = vperm.xlu0 %621, %v285
      %v623 = vpop.permute.xlu0 %622
      %625 = vset.pattern.permute.xlu0 1
      %626 = vperm.xlu0 %625, %v286
      %v627 = vpop.permute.xlu0 %626
      %629 = vset.pattern.permute.xlu0 1
      %630 = vperm.xlu0 %629, %v287
      %v631 = vpop.permute.xlu0 %630
      %633 = vset.pattern.permute.xlu0 1
      %634 = vperm.xlu0 %633, %v288
      %v635 = vpop.permute.xlu0 %634
      %637 = vset.pattern.permute.xlu0 1
      %638 = vperm.xlu0 %637, %v289
      %v639 = vpop.permute.xlu0 %638
      %641 = vset.pattern.permute.xlu0 1
      %642 = vperm.xlu0 %641, %v290
      %v643 = vpop.permute.xlu0 %642
      %645 = vset.pattern.permute.xlu0 1
      %646 = vperm.xlu0 %645, %v291
      %v647 = vpop.permute.xlu0 %646
      %649 = vset.pattern.permute.xlu0 1
      %650 = vperm.xlu0 %649, %v292
      %v651 = vpop.permute.xlu0 %650
      %653 = vset.pattern.permute.xlu0 1
      %654 = vperm.xlu0 %653, %v293
      %v655 = vpop.permute.xlu0 %654
      %657 = vset.pattern.permute.xlu0 1
      %658 = vperm.xlu0 %657, %v294
      %v659 = vpop.permute.xlu0 %658
      %661 = vset.pattern.permute.xlu0 1
      %662 = vperm.xlu0 %661, %v295
      %v663 = vpop.permute.xlu0 %662
      %665 = vset.pattern.permute.xlu0 1
      %666 = vperm.xlu0 %665, %v296
      %v667 = vpop.permute.xlu0 %666
      %669 = vset.pattern.permute.xlu0 1
      %670 = vperm.xlu0 %669, %v297
      %v671 = vpop.permute.xlu0 %670
      %673 = vset.pattern.permute.xlu0 1
      %674 = vperm.xlu0 %673, %v298
      %v675 = vpop.permute.xlu0 %674
      %677 = vset.pattern.permute.xlu0 1
      %678 = vperm.xlu0 %677, %v299
      %v679 = vpop.permute.xlu0 %678
      %681 = vset.pattern.permute.xlu0 1
      %682 = vperm.xlu0 %681, %v300
      %v683 = vpop.permute.xlu0 %682
      %685 = vset.pattern.permute.xlu0 1
      %686 = vperm.xlu0 %685, %v301
      %v687 = vpop.permute.xlu0 %686
      %689 = vset.pattern.permute.xlu0 1
      %690 = vperm.xlu0 %689, %v302
      %v691 = vpop.permute.xlu0 %690
      %693 = vset.pattern.permute.xlu0 1
      %694 = vperm.xlu0 %693, %v303
      %v695 = vpop.permute.xlu0 %694
      %697 = vset.pattern.permute.xlu0 1
      %698 = vperm.xlu0 %697, %v304
      %v699 = vpop.permute.xlu0 %698
      %701 = vset.pattern.permute.xlu0 1
      %702 = vperm.xlu0 %701, %v305
      %v703 = vpop.permute.xlu0 %702
      %705 = vset.pattern.permute.xlu0 1
      %706 = vperm.xlu0 %705, %v306
      %v707 = vpop.permute.xlu0 %706
      %709 = vset.pattern.permute.xlu0 1
      %710 = vperm.xlu0 %709, %v307
      %v711 = vpop.permute.xlu0 %710
      %713 = vset.pattern.permute.xlu0 1
      %714 = vperm.xlu0 %713, %v308
      %v715 = vpop.permute.xlu0 %714
      %717 = vset.pattern.permute.xlu0 1
      %718 = vperm.xlu0 %717, %v309
      %v719 = vpop.permute.xlu0 %718
      %721 = vset.pattern.permute.xlu0 1
      %722 = vperm.xlu0 %721, %v310
      %v723 = vpop.permute.xlu0 %722
      %725 = vset.pattern.permute.xlu0 1
      %726 = vperm.xlu0 %725, %v311
      %v727 = vpop.permute.xlu0 %726
      %729 = vset.pattern.permute.xlu0 1
      %730 = vperm.xlu0 %729, %v312
      %v731 = vpop.permute.xlu0 %730
      %733 = vset.pattern.permute.xlu0 1
      %734 = vperm.xlu0 %733, %v313
      %v735 = vpop.permute.xlu0 %734
      %737 = vset.pattern.permute.xlu0 1
      %738 = vperm.xlu0 %737, %v314
      %v739 = vpop.permute.xlu0 %738
      %v741 = vlaneseq
      %v742 = vshrl.u32 %v741, 7
      %v743 = vsub.s32 1, %v742
      %v744 = vrot.slane %v315, %v743
      %v745 = vlaneseq
      %v746 = vshrl.u32 %v745, 7
      %v747 = vsub.s32 1, %v746
      %v748 = vrot.slane %v316, %v747
      %v749 = vsub.f32 %v615, %v744
      %v750 = vsub.f32 %v615, %v748
      %v751 = vsub.f32 %v619, %v744
      %v752 = vsub.f32 %v619, %v748
      %v753 = vsub.f32 %v623, %v744
      %v754 = vsub.f32 %v623, %v748
      %v755 = vsub.f32 %v627, %v744
      %v756 = vsub.f32 %v627, %v748
      %v757 = vsub.f32 %v631, %v744
      %v758 = vsub.f32 %v631, %v748
      %v759 = vsub.f32 %v635, %v744
      %v760 = vsub.f32 %v635, %v748
      %v761 = vsub.f32 %v639, %v744
      %v762 = vsub.f32 %v639, %v748
      %v763 = vsub.f32 %v643, %v744
      %v764 = vsub.f32 %v643, %v748
      %v765 = vsub.f32 %v647, %v744
      %v766 = vsub.f32 %v647, %v748
      %v767 = vsub.f32 %v651, %v744
      %v768 = vsub.f32 %v651, %v748
      %v769 = vsub.f32 %v655, %v744
      %v770 = vsub.f32 %v655, %v748
      %v771 = vsub.f32 %v659, %v744
      %v772 = vsub.f32 %v659, %v748
      %v773 = vsub.f32 %v663, %v744
      %v774 = vsub.f32 %v663, %v748
      %v775 = vsub.f32 %v667, %v744
      %v776 = vsub.f32 %v667, %v748
      %v777 = vsub.f32 %v671, %v744
      %v778 = vsub.f32 %v671, %v748
      %v779 = vsub.f32 %v675, %v744
      %v780 = vsub.f32 %v675, %v748
      %v781 = vsub.f32 %v679, %v744
      %v782 = vsub.f32 %v679, %v748
      %v783 = vsub.f32 %v683, %v744
      %v784 = vsub.f32 %v683, %v748
      %v785 = vsub.f32 %v687, %v744
      %v786 = vsub.f32 %v687, %v748
      %v787 = vsub.f32 %v691, %v744
      %v788 = vsub.f32 %v691, %v748
      %v789 = vsub.f32 %v695, %v744
      %v790 = vsub.f32 %v695, %v748
      %v791 = vsub.f32 %v699, %v744
      %v792 = vsub.f32 %v699, %v748
      %v793 = vsub.f32 %v703, %v744
      %v794 = vsub.f32 %v703, %v748
      %v795 = vsub.f32 %v707, %v744
      %v796 = vsub.f32 %v707, %v748
      %v797 = vsub.f32 %v711, %v744
      %v798 = vsub.f32 %v711, %v748
      %v799 = vsub.f32 %v715, %v744
      %v800 = vsub.f32 %v715, %v748
      %v801 = vsub.f32 %v719, %v744
      %v802 = vsub.f32 %v719, %v748
      %v803 = vsub.f32 %v723, %v744
      %v804 = vsub.f32 %v723, %v748
      %v805 = vsub.f32 %v727, %v744
      %v806 = vsub.f32 %v727, %v748
      %v807 = vsub.f32 %v731, %v744
      %v808 = vsub.f32 %v731, %v748
      %v809 = vsub.f32 %v735, %v744
      %v810 = vsub.f32 %v735, %v748
      %v811 = vsub.f32 %v739, %v744
      %v812 = vsub.f32 %v739, %v748
      %v813 = vmul.f32 %v749, %v749
      %v814 = vmul.f32 %v750, %v750
      %v815 = vmul.f32 %v751, %v751
      %v816 = vmul.f32 %v752, %v752
      %v817 = vmul.f32 %v753, %v753
      %v818 = vmul.f32 %v754, %v754
      %v819 = vmul.f32 %v755, %v755
      %v820 = vmul.f32 %v756, %v756
      %v821 = vmul.f32 %v757, %v757
      %v822 = vmul.f32 %v758, %v758
      %v823 = vmul.f32 %v759, %v759
      %v824 = vmul.f32 %v760, %v760
      %v825 = vmul.f32 %v761, %v761
      %v826 = vmul.f32 %v762, %v762
      %v827 = vmul.f32 %v763, %v763
      %v828 = vmul.f32 %v764, %v764
      %v829 = vmul.f32 %v765, %v765
      %v830 = vmul.f32 %v766, %v766
      %v831 = vmul.f32 %v767, %v767
      %v832 = vmul.f32 %v768, %v768
      %v833 = vmul.f32 %v769, %v769
      %v834 = vmul.f32 %v770, %v770
      %v835 = vmul.f32 %v771, %v771
      %v836 = vmul.f32 %v772, %v772
      %v837 = vmul.f32 %v773, %v773
      %v838 = vmul.f32 %v774, %v774
      %v839 = vmul.f32 %v775, %v775
      %v840 = vmul.f32 %v776, %v776
      %v841 = vmul.f32 %v777, %v777
      %v842 = vmul.f32 %v778, %v778
      %v843 = vmul.f32 %v779, %v779
      %v844 = vmul.f32 %v780, %v780
      %v845 = vmul.f32 %v781, %v781
      %v846 = vmul.f32 %v782, %v782
      %v847 = vmul.f32 %v783, %v783
      %v848 = vmul.f32 %v784, %v784
      %v849 = vmul.f32 %v785, %v785
      %v850 = vmul.f32 %v786, %v786
      %v851 = vmul.f32 %v787, %v787
      %v852 = vmul.f32 %v788, %v788
      %v853 = vmul.f32 %v789, %v789
      %v854 = vmul.f32 %v790, %v790
      %v855 = vmul.f32 %v791, %v791
      %v856 = vmul.f32 %v792, %v792
      %v857 = vmul.f32 %v793, %v793
      %v858 = vmul.f32 %v794, %v794
      %v859 = vmul.f32 %v795, %v795
      %v860 = vmul.f32 %v796, %v796
      %v861 = vmul.f32 %v797, %v797
      %v862 = vmul.f32 %v798, %v798
      %v863 = vmul.f32 %v799, %v799
      %v864 = vmul.f32 %v800, %v800
      %v865 = vmul.f32 %v801, %v801
      %v866 = vmul.f32 %v802, %v802
      %v867 = vmul.f32 %v803, %v803
      %v868 = vmul.f32 %v804, %v804
      %v869 = vmul.f32 %v805, %v805
      %v870 = vmul.f32 %v806, %v806
      %v871 = vmul.f32 %v807, %v807
      %v872 = vmul.f32 %v808, %v808
      %v873 = vmul.f32 %v809, %v809
      %v874 = vmul.f32 %v810, %v810
      %v875 = vmul.f32 %v811, %v811
      %v876 = vmul.f32 %v812, %v812
      %v877 = vadd.f32 %v549, %v813
      %v878 = vadd.f32 %v550, %v814
      %v879 = vadd.f32 %v551, %v815
      %v880 = vadd.f32 %v552, %v816
      %v881 = vadd.f32 %v553, %v817
      %v882 = vadd.f32 %v554, %v818
      %v883 = vadd.f32 %v555, %v819
      %v884 = vadd.f32 %v556, %v820
      %v885 = vadd.f32 %v557, %v821
      %v886 = vadd.f32 %v558, %v822
      %v887 = vadd.f32 %v559, %v823
      %v888 = vadd.f32 %v560, %v824
      %v889 = vadd.f32 %v561, %v825
      %v890 = vadd.f32 %v562, %v826
      %v891 = vadd.f32 %v563, %v827
      %v892 = vadd.f32 %v564, %v828
      %v893 = vadd.f32 %v565, %v829
      %v894 = vadd.f32 %v566, %v830
      %v895 = vadd.f32 %v567, %v831
      %v896 = vadd.f32 %v568, %v832
      %v897 = vadd.f32 %v569, %v833
      %v898 = vadd.f32 %v570, %v834
      %v899 = vadd.f32 %v571, %v835
      %v900 = vadd.f32 %v572, %v836
      %v901 = vadd.f32 %v573, %v837
      %v902 = vadd.f32 %v574, %v838
      %v903 = vadd.f32 %v575, %v839
      %v904 = vadd.f32 %v576, %v840
      %v905 = vadd.f32 %v577, %v841
      %v906 = vadd.f32 %v578, %v842
      %v907 = vadd.f32 %v579, %v843
      %v908 = vadd.f32 %v580, %v844
      %v909 = vadd.f32 %v581, %v845
      %v910 = vadd.f32 %v582, %v846
      %v911 = vadd.f32 %v583, %v847
      %v912 = vadd.f32 %v584, %v848
      %v913 = vadd.f32 %v585, %v849
      %v914 = vadd.f32 %v586, %v850
      %v915 = vadd.f32 %v587, %v851
      %v916 = vadd.f32 %v588, %v852
      %v917 = vadd.f32 %v589, %v853
      %v918 = vadd.f32 %v590, %v854
      %v919 = vadd.f32 %v591, %v855
      %v920 = vadd.f32 %v592, %v856
      %v921 = vadd.f32 %v593, %v857
      %v922 = vadd.f32 %v594, %v858
      %v923 = vadd.f32 %v595, %v859
      %v924 = vadd.f32 %v596, %v860
      %v925 = vadd.f32 %v597, %v861
      %v926 = vadd.f32 %v598, %v862
      %v927 = vadd.f32 %v599, %v863
      %v928 = vadd.f32 %v600, %v864
      %v929 = vadd.f32 %v601, %v865
      %v930 = vadd.f32 %v602, %v866
      %v931 = vadd.f32 %v603, %v867
      %v932 = vadd.f32 %v604, %v868
      %v933 = vadd.f32 %v605, %v869
      %v934 = vadd.f32 %v606, %v870
      %v935 = vadd.f32 %v607, %v871
      %v936 = vadd.f32 %v608, %v872
      %v937 = vadd.f32 %v609, %v873
      %v938 = vadd.f32 %v610, %v874
      %v939 = vadd.f32 %v611, %v875
      %v940 = vadd.f32 %v612, %v876
      %941 = vset.pattern.permute.xlu0 2
      %942 = vperm.xlu0 %941, %v283
      %v943 = vpop.permute.xlu0 %942
      %945 = vset.pattern.permute.xlu0 2
      %946 = vperm.xlu0 %945, %v284
      %v947 = vpop.permute.xlu0 %946
      %949 = vset.pattern.permute.xlu0 2
      %950 = vperm.xlu0 %949, %v285
      %v951 = vpop.permute.xlu0 %950
      %953 = vset.pattern.permute.xlu0 2
      %954 = vperm.xlu0 %953, %v286
      %v955 = vpop.permute.xlu0 %954
      %957 = vset.pattern.permute.xlu0 2
      %958 = vperm.xlu0 %957, %v287
      %v959 = vpop.permute.xlu0 %958
      %961 = vset.pattern.permute.xlu0 2
      %962 = vperm.xlu0 %961, %v288
      %v963 = vpop.permute.xlu0 %962
      %965 = vset.pattern.permute.xlu0 2
      %966 = vperm.xlu0 %965, %v289
      %v967 = vpop.permute.xlu0 %966
      %969 = vset.pattern.permute.xlu0 2
      %970 = vperm.xlu0 %969, %v290
      %v971 = vpop.permute.xlu0 %970
      %973 = vset.pattern.permute.xlu0 2
      %974 = vperm.xlu0 %973, %v291
      %v975 = vpop.permute.xlu0 %974
      %977 = vset.pattern.permute.xlu0 2
      %978 = vperm.xlu0 %977, %v292
      %v979 = vpop.permute.xlu0 %978
      %981 = vset.pattern.permute.xlu0 2
      %982 = vperm.xlu0 %981, %v293
      %v983 = vpop.permute.xlu0 %982
      %985 = vset.pattern.permute.xlu0 2
      %986 = vperm.xlu0 %985, %v294
      %v987 = vpop.permute.xlu0 %986
      %989 = vset.pattern.permute.xlu0 2
      %990 = vperm.xlu0 %989, %v295
      %v991 = vpop.permute.xlu0 %990
      %993 = vset.pattern.permute.xlu0 2
      %994 = vperm.xlu0 %993, %v296
      %v995 = vpop.permute.xlu0 %994
      %997 = vset.pattern.permute.xlu0 2
      %998 = vperm.xlu0 %997, %v297
      %v999 = vpop.permute.xlu0 %998
      %1001 = vset.pattern.permute.xlu0 2
      %1002 = vperm.xlu0 %1001, %v298
      %v1003 = vpop.permute.xlu0 %1002
      %1005 = vset.pattern.permute.xlu0 2
      %1006 = vperm.xlu0 %1005, %v299
      %v1007 = vpop.permute.xlu0 %1006
      %1009 = vset.pattern.permute.xlu0 2
      %1010 = vperm.xlu0 %1009, %v300
      %v1011 = vpop.permute.xlu0 %1010
      %1013 = vset.pattern.permute.xlu0 2
      %1014 = vperm.xlu0 %1013, %v301
      %v1015 = vpop.permute.xlu0 %1014
      %1017 = vset.pattern.permute.xlu0 2
      %1018 = vperm.xlu0 %1017, %v302
      %v1019 = vpop.permute.xlu0 %1018
      %1021 = vset.pattern.permute.xlu0 2
      %1022 = vperm.xlu0 %1021, %v303
      %v1023 = vpop.permute.xlu0 %1022
      %1025 = vset.pattern.permute.xlu0 2
      %1026 = vperm.xlu0 %1025, %v304
      %v1027 = vpop.permute.xlu0 %1026
      %1029 = vset.pattern.permute.xlu0 2
      %1030 = vperm.xlu0 %1029, %v305
      %v1031 = vpop.permute.xlu0 %1030
      %1033 = vset.pattern.permute.xlu0 2
      %1034 = vperm.xlu0 %1033, %v306
      %v1035 = vpop.permute.xlu0 %1034
      %1037 = vset.pattern.permute.xlu0 2
      %1038 = vperm.xlu0 %1037, %v307
      %v1039 = vpop.permute.xlu0 %1038
      %1041 = vset.pattern.permute.xlu0 2
      %1042 = vperm.xlu0 %1041, %v308
      %v1043 = vpop.permute.xlu0 %1042
      %1045 = vset.pattern.permute.xlu0 2
      %1046 = vperm.xlu0 %1045, %v309
      %v1047 = vpop.permute.xlu0 %1046
      %1049 = vset.pattern.permute.xlu0 2
      %1050 = vperm.xlu0 %1049, %v310
      %v1051 = vpop.permute.xlu0 %1050
      %1053 = vset.pattern.permute.xlu0 2
      %1054 = vperm.xlu0 %1053, %v311
      %v1055 = vpop.permute.xlu0 %1054
      %1057 = vset.pattern.permute.xlu0 2
      %1058 = vperm.xlu0 %1057, %v312
      %v1059 = vpop.permute.xlu0 %1058
      %1061 = vset.pattern.permute.xlu0 2
      %1062 = vperm.xlu0 %1061, %v313
      %v1063 = vpop.permute.xlu0 %1062
      %1065 = vset.pattern.permute.xlu0 2
      %1066 = vperm.xlu0 %1065, %v314
      %v1067 = vpop.permute.xlu0 %1066
      %v1069 = vlaneseq
      %v1070 = vshrl.u32 %v1069, 7
      %v1071 = vsub.s32 2, %v1070
      %v1072 = vrot.slane %v315, %v1071
      %v1073 = vlaneseq
      %v1074 = vshrl.u32 %v1073, 7
      %v1075 = vsub.s32 2, %v1074
      %v1076 = vrot.slane %v316, %v1075
      %v1077 = vsub.f32 %v943, %v1072
      %v1078 = vsub.f32 %v943, %v1076
      %v1079 = vsub.f32 %v947, %v1072
      %v1080 = vsub.f32 %v947, %v1076
      %v1081 = vsub.f32 %v951, %v1072
      %v1082 = vsub.f32 %v951, %v1076
      %v1083 = vsub.f32 %v955, %v1072
      %v1084 = vsub.f32 %v955, %v1076
      %v1085 = vsub.f32 %v959, %v1072
      %v1086 = vsub.f32 %v959, %v1076
      %v1087 = vsub.f32 %v963, %v1072
      %v1088 = vsub.f32 %v963, %v1076
      %v1089 = vsub.f32 %v967, %v1072
      %v1090 = vsub.f32 %v967, %v1076
      %v1091 = vsub.f32 %v971, %v1072
      %v1092 = vsub.f32 %v971, %v1076
      %v1093 = vsub.f32 %v975, %v1072
      %v1094 = vsub.f32 %v975, %v1076
      %v1095 = vsub.f32 %v979, %v1072
      %v1096 = vsub.f32 %v979, %v1076
      %v1097 = vsub.f32 %v983, %v1072
      %v1098 = vsub.f32 %v983, %v1076
      %v1099 = vsub.f32 %v987, %v1072
      %v1100 = vsub.f32 %v987, %v1076
      %v1101 = vsub.f32 %v991, %v1072
      %v1102 = vsub.f32 %v991, %v1076
      %v1103 = vsub.f32 %v995, %v1072
      %v1104 = vsub.f32 %v995, %v1076
      %v1105 = vsub.f32 %v999, %v1072
      %v1106 = vsub.f32 %v999, %v1076
      %v1107 = vsub.f32 %v1003, %v1072
      %v1108 = vsub.f32 %v1003, %v1076
      %v1109 = vsub.f32 %v1007, %v1072
      %v1110 = vsub.f32 %v1007, %v1076
      %v1111 = vsub.f32 %v1011, %v1072
      %v1112 = vsub.f32 %v1011, %v1076
      %v1113 = vsub.f32 %v1015, %v1072
      %v1114 = vsub.f32 %v1015, %v1076
      %v1115 = vsub.f32 %v1019, %v1072
      %v1116 = vsub.f32 %v1019, %v1076
      %v1117 = vsub.f32 %v1023, %v1072
      %v1118 = vsub.f32 %v1023, %v1076
      %v1119 = vsub.f32 %v1027, %v1072
      %v1120 = vsub.f32 %v1027, %v1076
      %v1121 = vsub.f32 %v1031, %v1072
      %v1122 = vsub.f32 %v1031, %v1076
      %v1123 = vsub.f32 %v1035, %v1072
      %v1124 = vsub.f32 %v1035, %v1076
      %v1125 = vsub.f32 %v1039, %v1072
      %v1126 = vsub.f32 %v1039, %v1076
      %v1127 = vsub.f32 %v1043, %v1072
      %v1128 = vsub.f32 %v1043, %v1076
      %v1129 = vsub.f32 %v1047, %v1072
      %v1130 = vsub.f32 %v1047, %v1076
      %v1131 = vsub.f32 %v1051, %v1072
      %v1132 = vsub.f32 %v1051, %v1076
      %v1133 = vsub.f32 %v1055, %v1072
      %v1134 = vsub.f32 %v1055, %v1076
      %v1135 = vsub.f32 %v1059, %v1072
      %v1136 = vsub.f32 %v1059, %v1076
      %v1137 = vsub.f32 %v1063, %v1072
      %v1138 = vsub.f32 %v1063, %v1076
      %v1139 = vsub.f32 %v1067, %v1072
      %v1140 = vsub.f32 %v1067, %v1076
      %v1141 = vmul.f32 %v1077, %v1077
      %v1142 = vmul.f32 %v1078, %v1078
      %v1143 = vmul.f32 %v1079, %v1079
      %v1144 = vmul.f32 %v1080, %v1080
      %v1145 = vmul.f32 %v1081, %v1081
      %v1146 = vmul.f32 %v1082, %v1082
      %v1147 = vmul.f32 %v1083, %v1083
      %v1148 = vmul.f32 %v1084, %v1084
      %v1149 = vmul.f32 %v1085, %v1085
      %v1150 = vmul.f32 %v1086, %v1086
      %v1151 = vmul.f32 %v1087, %v1087
      %v1152 = vmul.f32 %v1088, %v1088
      %v1153 = vmul.f32 %v1089, %v1089
      %v1154 = vmul.f32 %v1090, %v1090
      %v1155 = vmul.f32 %v1091, %v1091
      %v1156 = vmul.f32 %v1092, %v1092
      %v1157 = vmul.f32 %v1093, %v1093
      %v1158 = vmul.f32 %v1094, %v1094
      %v1159 = vmul.f32 %v1095, %v1095
      %v1160 = vmul.f32 %v1096, %v1096
      %v1161 = vmul.f32 %v1097, %v1097
      %v1162 = vmul.f32 %v1098, %v1098
      %v1163 = vmul.f32 %v1099, %v1099
      %v1164 = vmul.f32 %v1100, %v1100
      %v1165 = vmul.f32 %v1101, %v1101
      %v1166 = vmul.f32 %v1102, %v1102
      %v1167 = vmul.f32 %v1103, %v1103
      %v1168 = vmul.f32 %v1104, %v1104
      %v1169 = vmul.f32 %v1105, %v1105
      %v1170 = vmul.f32 %v1106, %v1106
      %v1171 = vmul.f32 %v1107, %v1107
      %v1172 = vmul.f32 %v1108, %v1108
      %v1173 = vmul.f32 %v1109, %v1109
      %v1174 = vmul.f32 %v1110, %v1110
      %v1175 = vmul.f32 %v1111, %v1111
      %v1176 = vmul.f32 %v1112, %v1112
      %v1177 = vmul.f32 %v1113, %v1113
      %v1178 = vmul.f32 %v1114, %v1114
      %v1179 = vmul.f32 %v1115, %v1115
      %v1180 = vmul.f32 %v1116, %v1116
      %v1181 = vmul.f32 %v1117, %v1117
      %v1182 = vmul.f32 %v1118, %v1118
      %v1183 = vmul.f32 %v1119, %v1119
      %v1184 = vmul.f32 %v1120, %v1120
      %v1185 = vmul.f32 %v1121, %v1121
      %v1186 = vmul.f32 %v1122, %v1122
      %v1187 = vmul.f32 %v1123, %v1123
      %v1188 = vmul.f32 %v1124, %v1124
      %v1189 = vmul.f32 %v1125, %v1125
      %v1190 = vmul.f32 %v1126, %v1126
      %v1191 = vmul.f32 %v1127, %v1127
      %v1192 = vmul.f32 %v1128, %v1128
      %v1193 = vmul.f32 %v1129, %v1129
      %v1194 = vmul.f32 %v1130, %v1130
      %v1195 = vmul.f32 %v1131, %v1131
      %v1196 = vmul.f32 %v1132, %v1132
      %v1197 = vmul.f32 %v1133, %v1133
      %v1198 = vmul.f32 %v1134, %v1134
      %v1199 = vmul.f32 %v1135, %v1135
      %v1200 = vmul.f32 %v1136, %v1136
      %v1201 = vmul.f32 %v1137, %v1137
      %v1202 = vmul.f32 %v1138, %v1138
      %v1203 = vmul.f32 %v1139, %v1139
      %v1204 = vmul.f32 %v1140, %v1140
      %v1205 = vadd.f32 %v877, %v1141
      %v1206 = vadd.f32 %v878, %v1142
      %v1207 = vadd.f32 %v879, %v1143
      %v1208 = vadd.f32 %v880, %v1144
      %v1209 = vadd.f32 %v881, %v1145
      %v1210 = vadd.f32 %v882, %v1146
      %v1211 = vadd.f32 %v883, %v1147
      %v1212 = vadd.f32 %v884, %v1148
      %v1213 = vadd.f32 %v885, %v1149
      %v1214 = vadd.f32 %v886, %v1150
      %v1215 = vadd.f32 %v887, %v1151
      %v1216 = vadd.f32 %v888, %v1152
      %v1217 = vadd.f32 %v889, %v1153
      %v1218 = vadd.f32 %v890, %v1154
      %v1219 = vadd.f32 %v891, %v1155
      %v1220 = vadd.f32 %v892, %v1156
      %v1221 = vadd.f32 %v893, %v1157
      %v1222 = vadd.f32 %v894, %v1158
      %v1223 = vadd.f32 %v895, %v1159
      %v1224 = vadd.f32 %v896, %v1160
      %v1225 = vadd.f32 %v897, %v1161
      %v1226 = vadd.f32 %v898, %v1162
      %v1227 = vadd.f32 %v899, %v1163
      %v1228 = vadd.f32 %v900, %v1164
      %v1229 = vadd.f32 %v901, %v1165
      %v1230 = vadd.f32 %v902, %v1166
      %v1231 = vadd.f32 %v903, %v1167
      %v1232 = vadd.f32 %v904, %v1168
      %v1233 = vadd.f32 %v905, %v1169
      %v1234 = vadd.f32 %v906, %v1170
      %v1235 = vadd.f32 %v907, %v1171
      %v1236 = vadd.f32 %v908, %v1172
      %v1237 = vadd.f32 %v909, %v1173
      %v1238 = vadd.f32 %v910, %v1174
      %v1239 = vadd.f32 %v911, %v1175
      %v1240 = vadd.f32 %v912, %v1176
      %v1241 = vadd.f32 %v913, %v1177
      %v1242 = vadd.f32 %v914, %v1178
      %v1243 = vadd.f32 %v915, %v1179
      %v1244 = vadd.f32 %v916, %v1180
      %v1245 = vadd.f32 %v917, %v1181
      %v1246 = vadd.f32 %v918, %v1182
      %v1247 = vadd.f32 %v919, %v1183
      %v1248 = vadd.f32 %v920, %v1184
      %v1249 = vadd.f32 %v921, %v1185
      %v1250 = vadd.f32 %v922, %v1186
      %v1251 = vadd.f32 %v923, %v1187
      %v1252 = vadd.f32 %v924, %v1188
      %v1253 = vadd.f32 %v925, %v1189
      %v1254 = vadd.f32 %v926, %v1190
      %v1255 = vadd.f32 %v927, %v1191
      %v1256 = vadd.f32 %v928, %v1192
      %v1257 = vadd.f32 %v929, %v1193
      %v1258 = vadd.f32 %v930, %v1194
      %v1259 = vadd.f32 %v931, %v1195
      %v1260 = vadd.f32 %v932, %v1196
      %v1261 = vadd.f32 %v933, %v1197
      %v1262 = vadd.f32 %v934, %v1198
      %v1263 = vadd.f32 %v935, %v1199
      %v1264 = vadd.f32 %v936, %v1200
      %v1265 = vadd.f32 %v937, %v1201
      %v1266 = vadd.f32 %v938, %v1202
      %v1267 = vadd.f32 %v939, %v1203
      %v1268 = vadd.f32 %v940, %v1204
      %1269 = vset.pattern.permute.xlu0 3
      %1270 = vperm.xlu0 %1269, %v283
      %v1271 = vpop.permute.xlu0 %1270
      %1273 = vset.pattern.permute.xlu0 3
      %1274 = vperm.xlu0 %1273, %v284
      %v1275 = vpop.permute.xlu0 %1274
      %1277 = vset.pattern.permute.xlu0 3
      %1278 = vperm.xlu0 %1277, %v285
      %v1279 = vpop.permute.xlu0 %1278
      %1281 = vset.pattern.permute.xlu0 3
      %1282 = vperm.xlu0 %1281, %v286
      %v1283 = vpop.permute.xlu0 %1282
      %1285 = vset.pattern.permute.xlu0 3
      %1286 = vperm.xlu0 %1285, %v287
      %v1287 = vpop.permute.xlu0 %1286
      %1289 = vset.pattern.permute.xlu0 3
      %1290 = vperm.xlu0 %1289, %v288
      %v1291 = vpop.permute.xlu0 %1290
      %1293 = vset.pattern.permute.xlu0 3
      %1294 = vperm.xlu0 %1293, %v289
      %v1295 = vpop.permute.xlu0 %1294
      %1297 = vset.pattern.permute.xlu0 3
      %1298 = vperm.xlu0 %1297, %v290
      %v1299 = vpop.permute.xlu0 %1298
      %1301 = vset.pattern.permute.xlu0 3
      %1302 = vperm.xlu0 %1301, %v291
      %v1303 = vpop.permute.xlu0 %1302
      %1305 = vset.pattern.permute.xlu0 3
      %1306 = vperm.xlu0 %1305, %v292
      %v1307 = vpop.permute.xlu0 %1306
      %1309 = vset.pattern.permute.xlu0 3
      %1310 = vperm.xlu0 %1309, %v293
      %v1311 = vpop.permute.xlu0 %1310
      %1313 = vset.pattern.permute.xlu0 3
      %1314 = vperm.xlu0 %1313, %v294
      %v1315 = vpop.permute.xlu0 %1314
      %1317 = vset.pattern.permute.xlu0 3
      %1318 = vperm.xlu0 %1317, %v295
      %v1319 = vpop.permute.xlu0 %1318
      %1321 = vset.pattern.permute.xlu0 3
      %1322 = vperm.xlu0 %1321, %v296
      %v1323 = vpop.permute.xlu0 %1322
      %1325 = vset.pattern.permute.xlu0 3
      %1326 = vperm.xlu0 %1325, %v297
      %v1327 = vpop.permute.xlu0 %1326
      %1329 = vset.pattern.permute.xlu0 3
      %1330 = vperm.xlu0 %1329, %v298
      %v1331 = vpop.permute.xlu0 %1330
      %1333 = vset.pattern.permute.xlu0 3
      %1334 = vperm.xlu0 %1333, %v299
      %v1335 = vpop.permute.xlu0 %1334
      %1337 = vset.pattern.permute.xlu0 3
      %1338 = vperm.xlu0 %1337, %v300
      %v1339 = vpop.permute.xlu0 %1338
      %1341 = vset.pattern.permute.xlu0 3
      %1342 = vperm.xlu0 %1341, %v301
      %v1343 = vpop.permute.xlu0 %1342
      %1345 = vset.pattern.permute.xlu0 3
      %1346 = vperm.xlu0 %1345, %v302
      %v1347 = vpop.permute.xlu0 %1346
      %1349 = vset.pattern.permute.xlu0 3
      %1350 = vperm.xlu0 %1349, %v303
      %v1351 = vpop.permute.xlu0 %1350
      %1353 = vset.pattern.permute.xlu0 3
      %1354 = vperm.xlu0 %1353, %v304
      %v1355 = vpop.permute.xlu0 %1354
      %1357 = vset.pattern.permute.xlu0 3
      %1358 = vperm.xlu0 %1357, %v305
      %v1359 = vpop.permute.xlu0 %1358
      %1361 = vset.pattern.permute.xlu0 3
      %1362 = vperm.xlu0 %1361, %v306
      %v1363 = vpop.permute.xlu0 %1362
      %1365 = vset.pattern.permute.xlu0 3
      %1366 = vperm.xlu0 %1365, %v307
      %v1367 = vpop.permute.xlu0 %1366
      %1369 = vset.pattern.permute.xlu0 3
      %1370 = vperm.xlu0 %1369, %v308
      %v1371 = vpop.permute.xlu0 %1370
      %1373 = vset.pattern.permute.xlu0 3
      %1374 = vperm.xlu0 %1373, %v309
      %v1375 = vpop.permute.xlu0 %1374
      %1377 = vset.pattern.permute.xlu0 3
      %1378 = vperm.xlu0 %1377, %v310
      %v1379 = vpop.permute.xlu0 %1378
      %1381 = vset.pattern.permute.xlu0 3
      %1382 = vperm.xlu0 %1381, %v311
      %v1383 = vpop.permute.xlu0 %1382
      %1385 = vset.pattern.permute.xlu0 3
      %1386 = vperm.xlu0 %1385, %v312
      %v1387 = vpop.permute.xlu0 %1386
      %1389 = vset.pattern.permute.xlu0 3
      %1390 = vperm.xlu0 %1389, %v313
      %v1391 = vpop.permute.xlu0 %1390
      %1393 = vset.pattern.permute.xlu0 3
      %1394 = vperm.xlu0 %1393, %v314
      %v1395 = vpop.permute.xlu0 %1394
      %v1397 = vlaneseq
      %v1398 = vshrl.u32 %v1397, 7
      %v1399 = vsub.s32 3, %v1398
      %v1400 = vrot.slane %v315, %v1399
      %v1401 = vlaneseq
      %v1402 = vshrl.u32 %v1401, 7
      %v1403 = vsub.s32 3, %v1402
      %v1404 = vrot.slane %v316, %v1403
      %v1405 = vsub.f32 %v1271, %v1400
      %v1406 = vsub.f32 %v1271, %v1404
      %v1407 = vsub.f32 %v1275, %v1400
      %v1408 = vsub.f32 %v1275, %v1404
      %v1409 = vsub.f32 %v1279, %v1400
      %v1410 = vsub.f32 %v1279, %v1404
      %v1411 = vsub.f32 %v1283, %v1400
      %v1412 = vsub.f32 %v1283, %v1404
      %v1413 = vsub.f32 %v1287, %v1400
      %v1414 = vsub.f32 %v1287, %v1404
      %v1415 = vsub.f32 %v1291, %v1400
      %v1416 = vsub.f32 %v1291, %v1404
      %v1417 = vsub.f32 %v1295, %v1400
      %v1418 = vsub.f32 %v1295, %v1404
      %v1419 = vsub.f32 %v1299, %v1400
      %v1420 = vsub.f32 %v1299, %v1404
      %v1421 = vsub.f32 %v1303, %v1400
      %v1422 = vsub.f32 %v1303, %v1404
      %v1423 = vsub.f32 %v1307, %v1400
      %v1424 = vsub.f32 %v1307, %v1404
      %v1425 = vsub.f32 %v1311, %v1400
      %v1426 = vsub.f32 %v1311, %v1404
      %v1427 = vsub.f32 %v1315, %v1400
      %v1428 = vsub.f32 %v1315, %v1404
      %v1429 = vsub.f32 %v1319, %v1400
      %v1430 = vsub.f32 %v1319, %v1404
      %v1431 = vsub.f32 %v1323, %v1400
      %v1432 = vsub.f32 %v1323, %v1404
      %v1433 = vsub.f32 %v1327, %v1400
      %v1434 = vsub.f32 %v1327, %v1404
      %v1435 = vsub.f32 %v1331, %v1400
      %v1436 = vsub.f32 %v1331, %v1404
      %v1437 = vsub.f32 %v1335, %v1400
      %v1438 = vsub.f32 %v1335, %v1404
      %v1439 = vsub.f32 %v1339, %v1400
      %v1440 = vsub.f32 %v1339, %v1404
      %v1441 = vsub.f32 %v1343, %v1400
      %v1442 = vsub.f32 %v1343, %v1404
      %v1443 = vsub.f32 %v1347, %v1400
      %v1444 = vsub.f32 %v1347, %v1404
      %v1445 = vsub.f32 %v1351, %v1400
      %v1446 = vsub.f32 %v1351, %v1404
      %v1447 = vsub.f32 %v1355, %v1400
      %v1448 = vsub.f32 %v1355, %v1404
      %v1449 = vsub.f32 %v1359, %v1400
      %v1450 = vsub.f32 %v1359, %v1404
      %v1451 = vsub.f32 %v1363, %v1400
      %v1452 = vsub.f32 %v1363, %v1404
      %v1453 = vsub.f32 %v1367, %v1400
      %v1454 = vsub.f32 %v1367, %v1404
      %v1455 = vsub.f32 %v1371, %v1400
      %v1456 = vsub.f32 %v1371, %v1404
      %v1457 = vsub.f32 %v1375, %v1400
      %v1458 = vsub.f32 %v1375, %v1404
      %v1459 = vsub.f32 %v1379, %v1400
      %v1460 = vsub.f32 %v1379, %v1404
      %v1461 = vsub.f32 %v1383, %v1400
      %v1462 = vsub.f32 %v1383, %v1404
      %v1463 = vsub.f32 %v1387, %v1400
      %v1464 = vsub.f32 %v1387, %v1404
      %v1465 = vsub.f32 %v1391, %v1400
      %v1466 = vsub.f32 %v1391, %v1404
      %v1467 = vsub.f32 %v1395, %v1400
      %v1468 = vsub.f32 %v1395, %v1404
      %v1469 = vmul.f32 %v1405, %v1405
      %v1470 = vmul.f32 %v1406, %v1406
      %v1471 = vmul.f32 %v1407, %v1407
      %v1472 = vmul.f32 %v1408, %v1408
      %v1473 = vmul.f32 %v1409, %v1409
      %v1474 = vmul.f32 %v1410, %v1410
      %v1475 = vmul.f32 %v1411, %v1411
      %v1476 = vmul.f32 %v1412, %v1412
      %v1477 = vmul.f32 %v1413, %v1413
      %v1478 = vmul.f32 %v1414, %v1414
      %v1479 = vmul.f32 %v1415, %v1415
      %v1480 = vmul.f32 %v1416, %v1416
      %v1481 = vmul.f32 %v1417, %v1417
      %v1482 = vmul.f32 %v1418, %v1418
      %v1483 = vmul.f32 %v1419, %v1419
      %v1484 = vmul.f32 %v1420, %v1420
      %v1485 = vmul.f32 %v1421, %v1421
      %v1486 = vmul.f32 %v1422, %v1422
      %v1487 = vmul.f32 %v1423, %v1423
      %v1488 = vmul.f32 %v1424, %v1424
      %v1489 = vmul.f32 %v1425, %v1425
      %v1490 = vmul.f32 %v1426, %v1426
      %v1491 = vmul.f32 %v1427, %v1427
      %v1492 = vmul.f32 %v1428, %v1428
      %v1493 = vmul.f32 %v1429, %v1429
      %v1494 = vmul.f32 %v1430, %v1430
      %v1495 = vmul.f32 %v1431, %v1431
      %v1496 = vmul.f32 %v1432, %v1432
      %v1497 = vmul.f32 %v1433, %v1433
      %v1498 = vmul.f32 %v1434, %v1434
      %v1499 = vmul.f32 %v1435, %v1435
      %v1500 = vmul.f32 %v1436, %v1436
      %v1501 = vmul.f32 %v1437, %v1437
      %v1502 = vmul.f32 %v1438, %v1438
      %v1503 = vmul.f32 %v1439, %v1439
      %v1504 = vmul.f32 %v1440, %v1440
      %v1505 = vmul.f32 %v1441, %v1441
      %v1506 = vmul.f32 %v1442, %v1442
      %v1507 = vmul.f32 %v1443, %v1443
      %v1508 = vmul.f32 %v1444, %v1444
      %v1509 = vmul.f32 %v1445, %v1445
      %v1510 = vmul.f32 %v1446, %v1446
      %v1511 = vmul.f32 %v1447, %v1447
      %v1512 = vmul.f32 %v1448, %v1448
      %v1513 = vmul.f32 %v1449, %v1449
      %v1514 = vmul.f32 %v1450, %v1450
      %v1515 = vmul.f32 %v1451, %v1451
      %v1516 = vmul.f32 %v1452, %v1452
      %v1517 = vmul.f32 %v1453, %v1453
      %v1518 = vmul.f32 %v1454, %v1454
      %v1519 = vmul.f32 %v1455, %v1455
      %v1520 = vmul.f32 %v1456, %v1456
      %v1521 = vmul.f32 %v1457, %v1457
      %v1522 = vmul.f32 %v1458, %v1458
      %v1523 = vmul.f32 %v1459, %v1459
      %v1524 = vmul.f32 %v1460, %v1460
      %v1525 = vmul.f32 %v1461, %v1461
      %v1526 = vmul.f32 %v1462, %v1462
      %v1527 = vmul.f32 %v1463, %v1463
      %v1528 = vmul.f32 %v1464, %v1464
      %v1529 = vmul.f32 %v1465, %v1465
      %v1530 = vmul.f32 %v1466, %v1466
      %v1531 = vmul.f32 %v1467, %v1467
      %v1532 = vmul.f32 %v1468, %v1468
      %1533 = vset.pattern.permute.xlu0 4
      %1534 = vperm.xlu0 %1533, %v283
      %v1535 = vpop.permute.xlu0 %1534
      %1537 = vset.pattern.permute.xlu0 4
      %1538 = vperm.xlu0 %1537, %v284
      %v1539 = vpop.permute.xlu0 %1538
      %1541 = vset.pattern.permute.xlu0 4
      %1542 = vperm.xlu0 %1541, %v285
      %v1543 = vpop.permute.xlu0 %1542
      %1545 = vset.pattern.permute.xlu0 4
      %1546 = vperm.xlu0 %1545, %v286
      %v1547 = vpop.permute.xlu0 %1546
      %1549 = vset.pattern.permute.xlu0 4
      %1550 = vperm.xlu0 %1549, %v287
      %v1551 = vpop.permute.xlu0 %1550
      %1553 = vset.pattern.permute.xlu0 4
      %1554 = vperm.xlu0 %1553, %v288
      %v1555 = vpop.permute.xlu0 %1554
      %1557 = vset.pattern.permute.xlu0 4
      %1558 = vperm.xlu0 %1557, %v289
      %v1559 = vpop.permute.xlu0 %1558
      %1561 = vset.pattern.permute.xlu0 4
      %1562 = vperm.xlu0 %1561, %v290
      %v1563 = vpop.permute.xlu0 %1562
      %1565 = vset.pattern.permute.xlu0 4
      %1566 = vperm.xlu0 %1565, %v291
      %v1567 = vpop.permute.xlu0 %1566
      %1569 = vset.pattern.permute.xlu0 4
      %1570 = vperm.xlu0 %1569, %v292
      %v1571 = vpop.permute.xlu0 %1570
      %1573 = vset.pattern.permute.xlu0 4
      %1574 = vperm.xlu0 %1573, %v293
      %v1575 = vpop.permute.xlu0 %1574
      %1577 = vset.pattern.permute.xlu0 4
      %1578 = vperm.xlu0 %1577, %v294
      %v1579 = vpop.permute.xlu0 %1578
      %1581 = vset.pattern.permute.xlu0 4
      %1582 = vperm.xlu0 %1581, %v295
      %v1583 = vpop.permute.xlu0 %1582
      %1585 = vset.pattern.permute.xlu0 4
      %1586 = vperm.xlu0 %1585, %v296
      %v1587 = vpop.permute.xlu0 %1586
      %1589 = vset.pattern.permute.xlu0 4
      %1590 = vperm.xlu0 %1589, %v297
      %v1591 = vpop.permute.xlu0 %1590
      %1593 = vset.pattern.permute.xlu0 4
      %1594 = vperm.xlu0 %1593, %v298
      %v1595 = vpop.permute.xlu0 %1594
      %1597 = vset.pattern.permute.xlu0 4
      %1598 = vperm.xlu0 %1597, %v299
      %v1599 = vpop.permute.xlu0 %1598
      %1601 = vset.pattern.permute.xlu0 4
      %1602 = vperm.xlu0 %1601, %v300
      %v1603 = vpop.permute.xlu0 %1602
      %1605 = vset.pattern.permute.xlu0 4
      %1606 = vperm.xlu0 %1605, %v301
      %v1607 = vpop.permute.xlu0 %1606
      %1609 = vset.pattern.permute.xlu0 4
      %1610 = vperm.xlu0 %1609, %v302
      %v1611 = vpop.permute.xlu0 %1610
      %1613 = vset.pattern.permute.xlu0 4
      %1614 = vperm.xlu0 %1613, %v303
      %v1615 = vpop.permute.xlu0 %1614
      %1617 = vset.pattern.permute.xlu0 4
      %1618 = vperm.xlu0 %1617, %v304
      %v1619 = vpop.permute.xlu0 %1618
      %1621 = vset.pattern.permute.xlu0 4
      %1622 = vperm.xlu0 %1621, %v305
      %v1623 = vpop.permute.xlu0 %1622
      %1625 = vset.pattern.permute.xlu0 4
      %1626 = vperm.xlu0 %1625, %v306
      %v1627 = vpop.permute.xlu0 %1626
      %1629 = vset.pattern.permute.xlu0 4
      %1630 = vperm.xlu0 %1629, %v307
      %v1631 = vpop.permute.xlu0 %1630
      %1633 = vset.pattern.permute.xlu0 4
      %1634 = vperm.xlu0 %1633, %v308
      %v1635 = vpop.permute.xlu0 %1634
      %1637 = vset.pattern.permute.xlu0 4
      %1638 = vperm.xlu0 %1637, %v309
      %v1639 = vpop.permute.xlu0 %1638
      %1641 = vset.pattern.permute.xlu0 4
      %1642 = vperm.xlu0 %1641, %v310
      %v1643 = vpop.permute.xlu0 %1642
      %1645 = vset.pattern.permute.xlu0 4
      %1646 = vperm.xlu0 %1645, %v311
      %v1647 = vpop.permute.xlu0 %1646
      %1649 = vset.pattern.permute.xlu0 4
      %1650 = vperm.xlu0 %1649, %v312
      %v1651 = vpop.permute.xlu0 %1650
      %1653 = vset.pattern.permute.xlu0 4
      %1654 = vperm.xlu0 %1653, %v313
      %v1655 = vpop.permute.xlu0 %1654
      %1657 = vset.pattern.permute.xlu0 4
      %1658 = vperm.xlu0 %1657, %v314
      %v1659 = vpop.permute.xlu0 %1658
      %v1661 = vlaneseq
      %v1662 = vshrl.u32 %v1661, 7
      %v1663 = vsub.s32 4, %v1662
      %v1664 = vrot.slane %v315, %v1663
      %v1665 = vlaneseq
      %v1666 = vshrl.u32 %v1665, 7
      %v1667 = vsub.s32 4, %v1666
      %v1668 = vrot.slane %v316, %v1667
      %v1669 = vsub.f32 %v1535, %v1664
      %v1670 = vsub.f32 %v1535, %v1668
      %v1671 = vsub.f32 %v1539, %v1664
      %v1672 = vsub.f32 %v1539, %v1668
      %v1673 = vsub.f32 %v1543, %v1664
      %v1674 = vsub.f32 %v1543, %v1668
      %v1675 = vsub.f32 %v1547, %v1664
      %v1676 = vsub.f32 %v1547, %v1668
      %v1677 = vsub.f32 %v1551, %v1664
      %v1678 = vsub.f32 %v1551, %v1668
      %v1679 = vsub.f32 %v1555, %v1664
      %v1680 = vsub.f32 %v1555, %v1668
      %v1681 = vsub.f32 %v1559, %v1664
      %v1682 = vsub.f32 %v1559, %v1668
      %v1683 = vsub.f32 %v1563, %v1664
      %v1684 = vsub.f32 %v1563, %v1668
      %v1685 = vsub.f32 %v1567, %v1664
      %v1686 = vsub.f32 %v1567, %v1668
      %v1687 = vsub.f32 %v1571, %v1664
      %v1688 = vsub.f32 %v1571, %v1668
      %v1689 = vsub.f32 %v1575, %v1664
      %v1690 = vsub.f32 %v1575, %v1668
      %v1691 = vsub.f32 %v1579, %v1664
      %v1692 = vsub.f32 %v1579, %v1668
      %v1693 = vsub.f32 %v1583, %v1664
      %v1694 = vsub.f32 %v1583, %v1668
      %v1695 = vsub.f32 %v1587, %v1664
      %v1696 = vsub.f32 %v1587, %v1668
      %v1697 = vsub.f32 %v1591, %v1664
      %v1698 = vsub.f32 %v1591, %v1668
      %v1699 = vsub.f32 %v1595, %v1664
      %v1700 = vsub.f32 %v1595, %v1668
      %v1701 = vsub.f32 %v1599, %v1664
      %v1702 = vsub.f32 %v1599, %v1668
      %v1703 = vsub.f32 %v1603, %v1664
      %v1704 = vsub.f32 %v1603, %v1668
      %v1705 = vsub.f32 %v1607, %v1664
      %v1706 = vsub.f32 %v1607, %v1668
      %v1707 = vsub.f32 %v1611, %v1664
      %v1708 = vsub.f32 %v1611, %v1668
      %v1709 = vsub.f32 %v1615, %v1664
      %v1710 = vsub.f32 %v1615, %v1668
      %v1711 = vsub.f32 %v1619, %v1664
      %v1712 = vsub.f32 %v1619, %v1668
      %v1713 = vsub.f32 %v1623, %v1664
      %v1714 = vsub.f32 %v1623, %v1668
      %v1715 = vsub.f32 %v1627, %v1664
      %v1716 = vsub.f32 %v1627, %v1668
      %v1717 = vsub.f32 %v1631, %v1664
      %v1718 = vsub.f32 %v1631, %v1668
      %v1719 = vsub.f32 %v1635, %v1664
      %v1720 = vsub.f32 %v1635, %v1668
      %v1721 = vsub.f32 %v1639, %v1664
      %v1722 = vsub.f32 %v1639, %v1668
      %v1723 = vsub.f32 %v1643, %v1664
      %v1724 = vsub.f32 %v1643, %v1668
      %v1725 = vsub.f32 %v1647, %v1664
      %v1726 = vsub.f32 %v1647, %v1668
      %v1727 = vsub.f32 %v1651, %v1664
      %v1728 = vsub.f32 %v1651, %v1668
      %v1729 = vsub.f32 %v1655, %v1664
      %v1730 = vsub.f32 %v1655, %v1668
      %v1731 = vsub.f32 %v1659, %v1664
      %v1732 = vsub.f32 %v1659, %v1668
      %v1733 = vmul.f32 %v1669, %v1669
      %v1734 = vmul.f32 %v1670, %v1670
      %v1735 = vmul.f32 %v1671, %v1671
      %v1736 = vmul.f32 %v1672, %v1672
      %v1737 = vmul.f32 %v1673, %v1673
      %v1738 = vmul.f32 %v1674, %v1674
      %v1739 = vmul.f32 %v1675, %v1675
      %v1740 = vmul.f32 %v1676, %v1676
      %v1741 = vmul.f32 %v1677, %v1677
      %v1742 = vmul.f32 %v1678, %v1678
      %v1743 = vmul.f32 %v1679, %v1679
      %v1744 = vmul.f32 %v1680, %v1680
      %v1745 = vmul.f32 %v1681, %v1681
      %v1746 = vmul.f32 %v1682, %v1682
      %v1747 = vmul.f32 %v1683, %v1683
      %v1748 = vmul.f32 %v1684, %v1684
      %v1749 = vmul.f32 %v1685, %v1685
      %v1750 = vmul.f32 %v1686, %v1686
      %v1751 = vmul.f32 %v1687, %v1687
      %v1752 = vmul.f32 %v1688, %v1688
      %v1753 = vmul.f32 %v1689, %v1689
      %v1754 = vmul.f32 %v1690, %v1690
      %v1755 = vmul.f32 %v1691, %v1691
      %v1756 = vmul.f32 %v1692, %v1692
      %v1757 = vmul.f32 %v1693, %v1693
      %v1758 = vmul.f32 %v1694, %v1694
      %v1759 = vmul.f32 %v1695, %v1695
      %v1760 = vmul.f32 %v1696, %v1696
      %v1761 = vmul.f32 %v1697, %v1697
      %v1762 = vmul.f32 %v1698, %v1698
      %v1763 = vmul.f32 %v1699, %v1699
      %v1764 = vmul.f32 %v1700, %v1700
      %v1765 = vmul.f32 %v1701, %v1701
      %v1766 = vmul.f32 %v1702, %v1702
      %v1767 = vmul.f32 %v1703, %v1703
      %v1768 = vmul.f32 %v1704, %v1704
      %v1769 = vmul.f32 %v1705, %v1705
      %v1770 = vmul.f32 %v1706, %v1706
      %v1771 = vmul.f32 %v1707, %v1707
      %v1772 = vmul.f32 %v1708, %v1708
      %v1773 = vmul.f32 %v1709, %v1709
      %v1774 = vmul.f32 %v1710, %v1710
      %v1775 = vmul.f32 %v1711, %v1711
      %v1776 = vmul.f32 %v1712, %v1712
      %v1777 = vmul.f32 %v1713, %v1713
      %v1778 = vmul.f32 %v1714, %v1714
      %v1779 = vmul.f32 %v1715, %v1715
      %v1780 = vmul.f32 %v1716, %v1716
      %v1781 = vmul.f32 %v1717, %v1717
      %v1782 = vmul.f32 %v1718, %v1718
      %v1783 = vmul.f32 %v1719, %v1719
      %v1784 = vmul.f32 %v1720, %v1720
      %v1785 = vmul.f32 %v1721, %v1721
      %v1786 = vmul.f32 %v1722, %v1722
      %v1787 = vmul.f32 %v1723, %v1723
      %v1788 = vmul.f32 %v1724, %v1724
      %v1789 = vmul.f32 %v1725, %v1725
      %v1790 = vmul.f32 %v1726, %v1726
      %v1791 = vmul.f32 %v1727, %v1727
      %v1792 = vmul.f32 %v1728, %v1728
      %v1793 = vmul.f32 %v1729, %v1729
      %v1794 = vmul.f32 %v1730, %v1730
      %v1795 = vmul.f32 %v1731, %v1731
      %v1796 = vmul.f32 %v1732, %v1732
      %v1797 = vadd.f32 %v1469, %v1733
      %v1798 = vadd.f32 %v1470, %v1734
      %v1799 = vadd.f32 %v1471, %v1735
      %v1800 = vadd.f32 %v1472, %v1736
      %v1801 = vadd.f32 %v1473, %v1737
      %v1802 = vadd.f32 %v1474, %v1738
      %v1803 = vadd.f32 %v1475, %v1739
      %v1804 = vadd.f32 %v1476, %v1740
      %v1805 = vadd.f32 %v1477, %v1741
      %v1806 = vadd.f32 %v1478, %v1742
      %v1807 = vadd.f32 %v1479, %v1743
      %v1808 = vadd.f32 %v1480, %v1744
      %v1809 = vadd.f32 %v1481, %v1745
      %v1810 = vadd.f32 %v1482, %v1746
      %v1811 = vadd.f32 %v1483, %v1747
      %v1812 = vadd.f32 %v1484, %v1748
      %v1813 = vadd.f32 %v1485, %v1749
      %v1814 = vadd.f32 %v1486, %v1750
      %v1815 = vadd.f32 %v1487, %v1751
      %v1816 = vadd.f32 %v1488, %v1752
      %v1817 = vadd.f32 %v1489, %v1753
      %v1818 = vadd.f32 %v1490, %v1754
      %v1819 = vadd.f32 %v1491, %v1755
      %v1820 = vadd.f32 %v1492, %v1756
      %v1821 = vadd.f32 %v1493, %v1757
      %v1822 = vadd.f32 %v1494, %v1758
      %v1823 = vadd.f32 %v1495, %v1759
      %v1824 = vadd.f32 %v1496, %v1760
      %v1825 = vadd.f32 %v1497, %v1761
      %v1826 = vadd.f32 %v1498, %v1762
      %v1827 = vadd.f32 %v1499, %v1763
      %v1828 = vadd.f32 %v1500, %v1764
      %v1829 = vadd.f32 %v1501, %v1765
      %v1830 = vadd.f32 %v1502, %v1766
      %v1831 = vadd.f32 %v1503, %v1767
      %v1832 = vadd.f32 %v1504, %v1768
      %v1833 = vadd.f32 %v1505, %v1769
      %v1834 = vadd.f32 %v1506, %v1770
      %v1835 = vadd.f32 %v1507, %v1771
      %v1836 = vadd.f32 %v1508, %v1772
      %v1837 = vadd.f32 %v1509, %v1773
      %v1838 = vadd.f32 %v1510, %v1774
      %v1839 = vadd.f32 %v1511, %v1775
      %v1840 = vadd.f32 %v1512, %v1776
      %v1841 = vadd.f32 %v1513, %v1777
      %v1842 = vadd.f32 %v1514, %v1778
      %v1843 = vadd.f32 %v1515, %v1779
      %v1844 = vadd.f32 %v1516, %v1780
      %v1845 = vadd.f32 %v1517, %v1781
      %v1846 = vadd.f32 %v1518, %v1782
      %v1847 = vadd.f32 %v1519, %v1783
      %v1848 = vadd.f32 %v1520, %v1784
      %v1849 = vadd.f32 %v1521, %v1785
      %v1850 = vadd.f32 %v1522, %v1786
      %v1851 = vadd.f32 %v1523, %v1787
      %v1852 = vadd.f32 %v1524, %v1788
      %v1853 = vadd.f32 %v1525, %v1789
      %v1854 = vadd.f32 %v1526, %v1790
      %v1855 = vadd.f32 %v1527, %v1791
      %v1856 = vadd.f32 %v1528, %v1792
      %v1857 = vadd.f32 %v1529, %v1793
      %v1858 = vadd.f32 %v1530, %v1794
      %v1859 = vadd.f32 %v1531, %v1795
      %v1860 = vadd.f32 %v1532, %v1796
      %1861 = vset.pattern.permute.xlu0 5
      %1862 = vperm.xlu0 %1861, %v283
      %v1863 = vpop.permute.xlu0 %1862
      %1865 = vset.pattern.permute.xlu0 5
      %1866 = vperm.xlu0 %1865, %v284
      %v1867 = vpop.permute.xlu0 %1866
      %1869 = vset.pattern.permute.xlu0 5
      %1870 = vperm.xlu0 %1869, %v285
      %v1871 = vpop.permute.xlu0 %1870
      %1873 = vset.pattern.permute.xlu0 5
      %1874 = vperm.xlu0 %1873, %v286
      %v1875 = vpop.permute.xlu0 %1874
      %1877 = vset.pattern.permute.xlu0 5
      %1878 = vperm.xlu0 %1877, %v287
      %v1879 = vpop.permute.xlu0 %1878
      %1881 = vset.pattern.permute.xlu0 5
      %1882 = vperm.xlu0 %1881, %v288
      %v1883 = vpop.permute.xlu0 %1882
      %1885 = vset.pattern.permute.xlu0 5
      %1886 = vperm.xlu0 %1885, %v289
      %v1887 = vpop.permute.xlu0 %1886
      %1889 = vset.pattern.permute.xlu0 5
      %1890 = vperm.xlu0 %1889, %v290
      %v1891 = vpop.permute.xlu0 %1890
      %1893 = vset.pattern.permute.xlu0 5
      %1894 = vperm.xlu0 %1893, %v291
      %v1895 = vpop.permute.xlu0 %1894
      %1897 = vset.pattern.permute.xlu0 5
      %1898 = vperm.xlu0 %1897, %v292
      %v1899 = vpop.permute.xlu0 %1898
      %1901 = vset.pattern.permute.xlu0 5
      %1902 = vperm.xlu0 %1901, %v293
      %v1903 = vpop.permute.xlu0 %1902
      %1905 = vset.pattern.permute.xlu0 5
      %1906 = vperm.xlu0 %1905, %v294
      %v1907 = vpop.permute.xlu0 %1906
      %1909 = vset.pattern.permute.xlu0 5
      %1910 = vperm.xlu0 %1909, %v295
      %v1911 = vpop.permute.xlu0 %1910
      %1913 = vset.pattern.permute.xlu0 5
      %1914 = vperm.xlu0 %1913, %v296
      %v1915 = vpop.permute.xlu0 %1914
      %1917 = vset.pattern.permute.xlu0 5
      %1918 = vperm.xlu0 %1917, %v297
      %v1919 = vpop.permute.xlu0 %1918
      %1921 = vset.pattern.permute.xlu0 5
      %1922 = vperm.xlu0 %1921, %v298
      %v1923 = vpop.permute.xlu0 %1922
      %1925 = vset.pattern.permute.xlu0 5
      %1926 = vperm.xlu0 %1925, %v299
      %v1927 = vpop.permute.xlu0 %1926
      %1929 = vset.pattern.permute.xlu0 5
      %1930 = vperm.xlu0 %1929, %v300
      %v1931 = vpop.permute.xlu0 %1930
      %1933 = vset.pattern.permute.xlu0 5
      %1934 = vperm.xlu0 %1933, %v301
      %v1935 = vpop.permute.xlu0 %1934
      %1937 = vset.pattern.permute.xlu0 5
      %1938 = vperm.xlu0 %1937, %v302
      %v1939 = vpop.permute.xlu0 %1938
      %1941 = vset.pattern.permute.xlu0 5
      %1942 = vperm.xlu0 %1941, %v303
      %v1943 = vpop.permute.xlu0 %1942
      %1945 = vset.pattern.permute.xlu0 5
      %1946 = vperm.xlu0 %1945, %v304
      %v1947 = vpop.permute.xlu0 %1946
      %1949 = vset.pattern.permute.xlu0 5
      %1950 = vperm.xlu0 %1949, %v305
      %v1951 = vpop.permute.xlu0 %1950
      %1953 = vset.pattern.permute.xlu0 5
      %1954 = vperm.xlu0 %1953, %v306
      %v1955 = vpop.permute.xlu0 %1954
      %1957 = vset.pattern.permute.xlu0 5
      %1958 = vperm.xlu0 %1957, %v307
      %v1959 = vpop.permute.xlu0 %1958
      %1961 = vset.pattern.permute.xlu0 5
      %1962 = vperm.xlu0 %1961, %v308
      %v1963 = vpop.permute.xlu0 %1962
      %1965 = vset.pattern.permute.xlu0 5
      %1966 = vperm.xlu0 %1965, %v309
      %v1967 = vpop.permute.xlu0 %1966
      %1969 = vset.pattern.permute.xlu0 5
      %1970 = vperm.xlu0 %1969, %v310
      %v1971 = vpop.permute.xlu0 %1970
      %1973 = vset.pattern.permute.xlu0 5
      %1974 = vperm.xlu0 %1973, %v311
      %v1975 = vpop.permute.xlu0 %1974
      %1977 = vset.pattern.permute.xlu0 5
      %1978 = vperm.xlu0 %1977, %v312
      %v1979 = vpop.permute.xlu0 %1978
      %1981 = vset.pattern.permute.xlu0 5
      %1982 = vperm.xlu0 %1981, %v313
      %v1983 = vpop.permute.xlu0 %1982
      %1985 = vset.pattern.permute.xlu0 5
      %1986 = vperm.xlu0 %1985, %v314
      %v1987 = vpop.permute.xlu0 %1986
      %v1989 = vlaneseq
      %v1990 = vshrl.u32 %v1989, 7
      %v1991 = vsub.s32 5, %v1990
      %v1992 = vrot.slane %v315, %v1991
      %v1993 = vlaneseq
      %v1994 = vshrl.u32 %v1993, 7
      %v1995 = vsub.s32 5, %v1994
      %v1996 = vrot.slane %v316, %v1995
      %v1997 = vsub.f32 %v1863, %v1992
      %v1998 = vsub.f32 %v1863, %v1996
      %v1999 = vsub.f32 %v1867, %v1992
      %v2000 = vsub.f32 %v1867, %v1996
      %v2001 = vsub.f32 %v1871, %v1992
      %v2002 = vsub.f32 %v1871, %v1996
      %v2003 = vsub.f32 %v1875, %v1992
      %v2004 = vsub.f32 %v1875, %v1996
      %v2005 = vsub.f32 %v1879, %v1992
      %v2006 = vsub.f32 %v1879, %v1996
      %v2007 = vsub.f32 %v1883, %v1992
      %v2008 = vsub.f32 %v1883, %v1996
      %v2009 = vsub.f32 %v1887, %v1992
      %v2010 = vsub.f32 %v1887, %v1996
      %v2011 = vsub.f32 %v1891, %v1992
      %v2012 = vsub.f32 %v1891, %v1996
      %v2013 = vsub.f32 %v1895, %v1992
      %v2014 = vsub.f32 %v1895, %v1996
      %v2015 = vsub.f32 %v1899, %v1992
      %v2016 = vsub.f32 %v1899, %v1996
      %v2017 = vsub.f32 %v1903, %v1992
      %v2018 = vsub.f32 %v1903, %v1996
      %v2019 = vsub.f32 %v1907, %v1992
      %v2020 = vsub.f32 %v1907, %v1996
      %v2021 = vsub.f32 %v1911, %v1992
      %v2022 = vsub.f32 %v1911, %v1996
      %v2023 = vsub.f32 %v1915, %v1992
      %v2024 = vsub.f32 %v1915, %v1996
      %v2025 = vsub.f32 %v1919, %v1992
      %v2026 = vsub.f32 %v1919, %v1996
      %v2027 = vsub.f32 %v1923, %v1992
      %v2028 = vsub.f32 %v1923, %v1996
      %v2029 = vsub.f32 %v1927, %v1992
      %v2030 = vsub.f32 %v1927, %v1996
      %v2031 = vsub.f32 %v1931, %v1992
      %v2032 = vsub.f32 %v1931, %v1996
      %v2033 = vsub.f32 %v1935, %v1992
      %v2034 = vsub.f32 %v1935, %v1996
      %v2035 = vsub.f32 %v1939, %v1992
      %v2036 = vsub.f32 %v1939, %v1996
      %v2037 = vsub.f32 %v1943, %v1992
      %v2038 = vsub.f32 %v1943, %v1996
      %v2039 = vsub.f32 %v1947, %v1992
      %v2040 = vsub.f32 %v1947, %v1996
      %v2041 = vsub.f32 %v1951, %v1992
      %v2042 = vsub.f32 %v1951, %v1996
      %v2043 = vsub.f32 %v1955, %v1992
      %v2044 = vsub.f32 %v1955, %v1996
      %v2045 = vsub.f32 %v1959, %v1992
      %v2046 = vsub.f32 %v1959, %v1996
      %v2047 = vsub.f32 %v1963, %v1992
      %v2048 = vsub.f32 %v1963, %v1996
      %v2049 = vsub.f32 %v1967, %v1992
      %v2050 = vsub.f32 %v1967, %v1996
      %v2051 = vsub.f32 %v1971, %v1992
      %v2052 = vsub.f32 %v1971, %v1996
      %v2053 = vsub.f32 %v1975, %v1992
      %v2054 = vsub.f32 %v1975, %v1996
      %v2055 = vsub.f32 %v1979, %v1992
      %v2056 = vsub.f32 %v1979, %v1996
      %v2057 = vsub.f32 %v1983, %v1992
      %v2058 = vsub.f32 %v1983, %v1996
      %v2059 = vsub.f32 %v1987, %v1992
      %v2060 = vsub.f32 %v1987, %v1996
      %v2061 = vmul.f32 %v1997, %v1997
      %v2062 = vmul.f32 %v1998, %v1998
      %v2063 = vmul.f32 %v1999, %v1999
      %v2064 = vmul.f32 %v2000, %v2000
      %v2065 = vmul.f32 %v2001, %v2001
      %v2066 = vmul.f32 %v2002, %v2002
      %v2067 = vmul.f32 %v2003, %v2003
      %v2068 = vmul.f32 %v2004, %v2004
      %v2069 = vmul.f32 %v2005, %v2005
      %v2070 = vmul.f32 %v2006, %v2006
      %v2071 = vmul.f32 %v2007, %v2007
      %v2072 = vmul.f32 %v2008, %v2008
      %v2073 = vmul.f32 %v2009, %v2009
      %v2074 = vmul.f32 %v2010, %v2010
      %v2075 = vmul.f32 %v2011, %v2011
      %v2076 = vmul.f32 %v2012, %v2012
      %v2077 = vmul.f32 %v2013, %v2013
      %v2078 = vmul.f32 %v2014, %v2014
      %v2079 = vmul.f32 %v2015, %v2015
      %v2080 = vmul.f32 %v2016, %v2016
      %v2081 = vmul.f32 %v2017, %v2017
      %v2082 = vmul.f32 %v2018, %v2018
      %v2083 = vmul.f32 %v2019, %v2019
      %v2084 = vmul.f32 %v2020, %v2020
      %v2085 = vmul.f32 %v2021, %v2021
      %v2086 = vmul.f32 %v2022, %v2022
      %v2087 = vmul.f32 %v2023, %v2023
      %v2088 = vmul.f32 %v2024, %v2024
      %v2089 = vmul.f32 %v2025, %v2025
      %v2090 = vmul.f32 %v2026, %v2026
      %v2091 = vmul.f32 %v2027, %v2027
      %v2092 = vmul.f32 %v2028, %v2028
      %v2093 = vmul.f32 %v2029, %v2029
      %v2094 = vmul.f32 %v2030, %v2030
      %v2095 = vmul.f32 %v2031, %v2031
      %v2096 = vmul.f32 %v2032, %v2032
      %v2097 = vmul.f32 %v2033, %v2033
      %v2098 = vmul.f32 %v2034, %v2034
      %v2099 = vmul.f32 %v2035, %v2035
      %v2100 = vmul.f32 %v2036, %v2036
      %v2101 = vmul.f32 %v2037, %v2037
      %v2102 = vmul.f32 %v2038, %v2038
      %v2103 = vmul.f32 %v2039, %v2039
      %v2104 = vmul.f32 %v2040, %v2040
      %v2105 = vmul.f32 %v2041, %v2041
      %v2106 = vmul.f32 %v2042, %v2042
      %v2107 = vmul.f32 %v2043, %v2043
      %v2108 = vmul.f32 %v2044, %v2044
      %v2109 = vmul.f32 %v2045, %v2045
      %v2110 = vmul.f32 %v2046, %v2046
      %v2111 = vmul.f32 %v2047, %v2047
      %v2112 = vmul.f32 %v2048, %v2048
      %v2113 = vmul.f32 %v2049, %v2049
      %v2114 = vmul.f32 %v2050, %v2050
      %v2115 = vmul.f32 %v2051, %v2051
      %v2116 = vmul.f32 %v2052, %v2052
      %v2117 = vmul.f32 %v2053, %v2053
      %v2118 = vmul.f32 %v2054, %v2054
      %v2119 = vmul.f32 %v2055, %v2055
      %v2120 = vmul.f32 %v2056, %v2056
      %v2121 = vmul.f32 %v2057, %v2057
      %v2122 = vmul.f32 %v2058, %v2058
      %v2123 = vmul.f32 %v2059, %v2059
      %v2124 = vmul.f32 %v2060, %v2060
      %v2125 = vadd.f32 %v1797, %v2061
      %v2126 = vadd.f32 %v1798, %v2062
      %v2127 = vadd.f32 %v1799, %v2063
      %v2128 = vadd.f32 %v1800, %v2064
      %v2129 = vadd.f32 %v1801, %v2065
      %v2130 = vadd.f32 %v1802, %v2066
      %v2131 = vadd.f32 %v1803, %v2067
      %v2132 = vadd.f32 %v1804, %v2068
      %v2133 = vadd.f32 %v1805, %v2069
      %v2134 = vadd.f32 %v1806, %v2070
      %v2135 = vadd.f32 %v1807, %v2071
      %v2136 = vadd.f32 %v1808, %v2072
      %v2137 = vadd.f32 %v1809, %v2073
      %v2138 = vadd.f32 %v1810, %v2074
      %v2139 = vadd.f32 %v1811, %v2075
      %v2140 = vadd.f32 %v1812, %v2076
      %v2141 = vadd.f32 %v1813, %v2077
      %v2142 = vadd.f32 %v1814, %v2078
      %v2143 = vadd.f32 %v1815, %v2079
      %v2144 = vadd.f32 %v1816, %v2080
      %v2145 = vadd.f32 %v1817, %v2081
      %v2146 = vadd.f32 %v1818, %v2082
      %v2147 = vadd.f32 %v1819, %v2083
      %v2148 = vadd.f32 %v1820, %v2084
      %v2149 = vadd.f32 %v1821, %v2085
      %v2150 = vadd.f32 %v1822, %v2086
      %v2151 = vadd.f32 %v1823, %v2087
      %v2152 = vadd.f32 %v1824, %v2088
      %v2153 = vadd.f32 %v1825, %v2089
      %v2154 = vadd.f32 %v1826, %v2090
      %v2155 = vadd.f32 %v1827, %v2091
      %v2156 = vadd.f32 %v1828, %v2092
      %v2157 = vadd.f32 %v1829, %v2093
      %v2158 = vadd.f32 %v1830, %v2094
      %v2159 = vadd.f32 %v1831, %v2095
      %v2160 = vadd.f32 %v1832, %v2096
      %v2161 = vadd.f32 %v1833, %v2097
      %v2162 = vadd.f32 %v1834, %v2098
      %v2163 = vadd.f32 %v1835, %v2099
      %v2164 = vadd.f32 %v1836, %v2100
      %v2165 = vadd.f32 %v1837, %v2101
      %v2166 = vadd.f32 %v1838, %v2102
      %v2167 = vadd.f32 %v1839, %v2103
      %v2168 = vadd.f32 %v1840, %v2104
      %v2169 = vadd.f32 %v1841, %v2105
      %v2170 = vadd.f32 %v1842, %v2106
      %v2171 = vadd.f32 %v1843, %v2107
      %v2172 = vadd.f32 %v1844, %v2108
      %v2173 = vadd.f32 %v1845, %v2109
      %v2174 = vadd.f32 %v1846, %v2110
      %v2175 = vadd.f32 %v1847, %v2111
      %v2176 = vadd.f32 %v1848, %v2112
      %v2177 = vadd.f32 %v1849, %v2113
      %v2178 = vadd.f32 %v1850, %v2114
      %v2179 = vadd.f32 %v1851, %v2115
      %v2180 = vadd.f32 %v1852, %v2116
      %v2181 = vadd.f32 %v1853, %v2117
      %v2182 = vadd.f32 %v1854, %v2118
      %v2183 = vadd.f32 %v1855, %v2119
      %v2184 = vadd.f32 %v1856, %v2120
      %v2185 = vadd.f32 %v1857, %v2121
      %v2186 = vadd.f32 %v1858, %v2122
      %v2187 = vadd.f32 %v1859, %v2123
      %v2188 = vadd.f32 %v1860, %v2124
      %v2189 = vlaneseq
      %v2190 = vshrl.u32 %v2189, 7
      %v2191 = vadd.s32 %v2190, 8
      %v2192 = vadd.s32 %v2190, 16
      %v2193 = vadd.s32 %v2190, 24
      %v2194 = vadd.s32 %v2190, 32
      %v2195 = vadd.s32 %v2190, 40
      %v2196 = vadd.s32 %v2190, 48
      %v2197 = vadd.s32 %v2190, 56
      %v2198 = vadd.s32 %v2190, 64
      %v2199 = vadd.s32 %v2190, 72
      %v2200 = vadd.s32 %v2190, 80
      %v2201 = vadd.s32 %v2190, 88
      %v2202 = vadd.s32 %v2190, 96
      %v2203 = vadd.s32 %v2190, 104
      %v2204 = vadd.s32 %v2190, 112
      %v2205 = vadd.s32 %v2190, 120
      %v2206 = vadd.s32 %v2190, 128
      %v2207 = vadd.s32 %v2190, 136
      %v2208 = vadd.s32 %v2190, 144
      %v2209 = vadd.s32 %v2190, 152
      %v2210 = vadd.s32 %v2190, 160
      %v2211 = vadd.s32 %v2190, 168
      %v2212 = vadd.s32 %v2190, 176
      %v2213 = vadd.s32 %v2190, 184
      %v2214 = vadd.s32 %v2190, 192
      %v2215 = vadd.s32 %v2190, 200
      %v2216 = vadd.s32 %v2190, 208
      %v2217 = vadd.s32 %v2190, 216
      %v2218 = vadd.s32 %v2190, 224
      %v2219 = vadd.s32 %v2190, 232
      %v2220 = vadd.s32 %v2190, 240
      %v2221 = vadd.s32 %v2190, 248
      %s2222 = smul.u32 %s21, 256
      %v2223 = vstv %s2222
      %v2224 = vadd.s32 %v2190, %v2223
      %v2225 = vadd.s32 %v2191, %v2223
      %v2226 = vadd.s32 %v2192, %v2223
      %v2227 = vadd.s32 %v2193, %v2223
      %v2228 = vadd.s32 %v2194, %v2223
      %v2229 = vadd.s32 %v2195, %v2223
      %v2230 = vadd.s32 %v2196, %v2223
      %v2231 = vadd.s32 %v2197, %v2223
      %v2232 = vadd.s32 %v2198, %v2223
      %v2233 = vadd.s32 %v2199, %v2223
      %v2234 = vadd.s32 %v2200, %v2223
      %v2235 = vadd.s32 %v2201, %v2223
      %v2236 = vadd.s32 %v2202, %v2223
      %v2237 = vadd.s32 %v2203, %v2223
      %v2238 = vadd.s32 %v2204, %v2223
      %v2239 = vadd.s32 %v2205, %v2223
      %v2240 = vadd.s32 %v2206, %v2223
      %v2241 = vadd.s32 %v2207, %v2223
      %v2242 = vadd.s32 %v2208, %v2223
      %v2243 = vadd.s32 %v2209, %v2223
      %v2244 = vadd.s32 %v2210, %v2223
      %v2245 = vadd.s32 %v2211, %v2223
      %v2246 = vadd.s32 %v2212, %v2223
      %v2247 = vadd.s32 %v2213, %v2223
      %v2248 = vadd.s32 %v2214, %v2223
      %v2249 = vadd.s32 %v2215, %v2223
      %v2250 = vadd.s32 %v2216, %v2223
      %v2251 = vadd.s32 %v2217, %v2223
      %v2252 = vadd.s32 %v2218, %v2223
      %v2253 = vadd.s32 %v2219, %v2223
      %v2254 = vadd.s32 %v2220, %v2223
      %v2255 = vadd.s32 %v2221, %v2223
      %v2256 = vlaneseq
      %v2257 = vand.u32 %v2256, 127
      %v2258 = vadd.s32 %v2257, 128
      %vm2259 = vcmp.eq.s32.totalorder %v2224, %v2257
      %vm2260 = vcmp.eq.s32.totalorder %v2224, %v2258
      %vm2261 = vcmp.eq.s32.totalorder %v2225, %v2257
      %vm2262 = vcmp.eq.s32.totalorder %v2225, %v2258
      %vm2263 = vcmp.eq.s32.totalorder %v2226, %v2257
      %vm2264 = vcmp.eq.s32.totalorder %v2226, %v2258
      %vm2265 = vcmp.eq.s32.totalorder %v2227, %v2257
      %vm2266 = vcmp.eq.s32.totalorder %v2227, %v2258
      %vm2267 = vcmp.eq.s32.totalorder %v2228, %v2257
      %vm2268 = vcmp.eq.s32.totalorder %v2228, %v2258
      %vm2269 = vcmp.eq.s32.totalorder %v2229, %v2257
      %vm2270 = vcmp.eq.s32.totalorder %v2229, %v2258
      %vm2271 = vcmp.eq.s32.totalorder %v2230, %v2257
      %vm2272 = vcmp.eq.s32.totalorder %v2230, %v2258
      %vm2273 = vcmp.eq.s32.totalorder %v2231, %v2257
      %vm2274 = vcmp.eq.s32.totalorder %v2231, %v2258
      %vm2275 = vcmp.eq.s32.totalorder %v2232, %v2257
      %vm2276 = vcmp.eq.s32.totalorder %v2232, %v2258
      %vm2277 = vcmp.eq.s32.totalorder %v2233, %v2257
      %vm2278 = vcmp.eq.s32.totalorder %v2233, %v2258
      %vm2279 = vcmp.eq.s32.totalorder %v2234, %v2257
      %vm2280 = vcmp.eq.s32.totalorder %v2234, %v2258
      %vm2281 = vcmp.eq.s32.totalorder %v2235, %v2257
      %vm2282 = vcmp.eq.s32.totalorder %v2235, %v2258
      %vm2283 = vcmp.eq.s32.totalorder %v2236, %v2257
      %vm2284 = vcmp.eq.s32.totalorder %v2236, %v2258
      %vm2285 = vcmp.eq.s32.totalorder %v2237, %v2257
      %vm2286 = vcmp.eq.s32.totalorder %v2237, %v2258
      %vm2287 = vcmp.eq.s32.totalorder %v2238, %v2257
      %vm2288 = vcmp.eq.s32.totalorder %v2238, %v2258
      %vm2289 = vcmp.eq.s32.totalorder %v2239, %v2257
      %vm2290 = vcmp.eq.s32.totalorder %v2239, %v2258
      %vm2291 = vcmp.eq.s32.totalorder %v2240, %v2257
      %vm2292 = vcmp.eq.s32.totalorder %v2240, %v2258
      %vm2293 = vcmp.eq.s32.totalorder %v2241, %v2257
      %vm2294 = vcmp.eq.s32.totalorder %v2241, %v2258
      %vm2295 = vcmp.eq.s32.totalorder %v2242, %v2257
      %vm2296 = vcmp.eq.s32.totalorder %v2242, %v2258
      %vm2297 = vcmp.eq.s32.totalorder %v2243, %v2257
      %vm2298 = vcmp.eq.s32.totalorder %v2243, %v2258
      %vm2299 = vcmp.eq.s32.totalorder %v2244, %v2257
      %vm2300 = vcmp.eq.s32.totalorder %v2244, %v2258
      %vm2301 = vcmp.eq.s32.totalorder %v2245, %v2257
      %vm2302 = vcmp.eq.s32.totalorder %v2245, %v2258
      %vm2303 = vcmp.eq.s32.totalorder %v2246, %v2257
      %vm2304 = vcmp.eq.s32.totalorder %v2246, %v2258
      %vm2305 = vcmp.eq.s32.totalorder %v2247, %v2257
      %vm2306 = vcmp.eq.s32.totalorder %v2247, %v2258
      %vm2307 = vcmp.eq.s32.totalorder %v2248, %v2257
      %vm2308 = vcmp.eq.s32.totalorder %v2248, %v2258
      %vm2309 = vcmp.eq.s32.totalorder %v2249, %v2257
      %vm2310 = vcmp.eq.s32.totalorder %v2249, %v2258
      %vm2311 = vcmp.eq.s32.totalorder %v2250, %v2257
      %vm2312 = vcmp.eq.s32.totalorder %v2250, %v2258
      %vm2313 = vcmp.eq.s32.totalorder %v2251, %v2257
      %vm2314 = vcmp.eq.s32.totalorder %v2251, %v2258
      %vm2315 = vcmp.eq.s32.totalorder %v2252, %v2257
      %vm2316 = vcmp.eq.s32.totalorder %v2252, %v2258
      %vm2317 = vcmp.eq.s32.totalorder %v2253, %v2257
      %vm2318 = vcmp.eq.s32.totalorder %v2253, %v2258
      %vm2319 = vcmp.eq.s32.totalorder %v2254, %v2257
      %vm2320 = vcmp.eq.s32.totalorder %v2254, %v2258
      %vm2321 = vcmp.eq.s32.totalorder %v2255, %v2257
      %vm2322 = vcmp.eq.s32.totalorder %v2255, %v2258
      %v2323 = vsel %vm2259, 1, 0
      %v2324 = vsel %vm2260, 1, 0
      %v2325 = vsel %vm2261, 1, 0
      %v2326 = vsel %vm2262, 1, 0
      %v2327 = vsel %vm2263, 1, 0
      %v2328 = vsel %vm2264, 1, 0
      %v2329 = vsel %vm2265, 1, 0
      %v2330 = vsel %vm2266, 1, 0
      %v2331 = vsel %vm2267, 1, 0
      %v2332 = vsel %vm2268, 1, 0
      %v2333 = vsel %vm2269, 1, 0
      %v2334 = vsel %vm2270, 1, 0
      %v2335 = vsel %vm2271, 1, 0
      %v2336 = vsel %vm2272, 1, 0
      %v2337 = vsel %vm2273, 1, 0
      %v2338 = vsel %vm2274, 1, 0
      %v2339 = vsel %vm2275, 1, 0
      %v2340 = vsel %vm2276, 1, 0
      %v2341 = vsel %vm2277, 1, 0
      %v2342 = vsel %vm2278, 1, 0
      %v2343 = vsel %vm2279, 1, 0
      %v2344 = vsel %vm2280, 1, 0
      %v2345 = vsel %vm2281, 1, 0
      %v2346 = vsel %vm2282, 1, 0
      %v2347 = vsel %vm2283, 1, 0
      %v2348 = vsel %vm2284, 1, 0
      %v2349 = vsel %vm2285, 1, 0
      %v2350 = vsel %vm2286, 1, 0
      %v2351 = vsel %vm2287, 1, 0
      %v2352 = vsel %vm2288, 1, 0
      %v2353 = vsel %vm2289, 1, 0
      %v2354 = vsel %vm2290, 1, 0
      %v2355 = vsel %vm2291, 1, 0
      %v2356 = vsel %vm2292, 1, 0
      %v2357 = vsel %vm2293, 1, 0
      %v2358 = vsel %vm2294, 1, 0
      %v2359 = vsel %vm2295, 1, 0
      %v2360 = vsel %vm2296, 1, 0
      %v2361 = vsel %vm2297, 1, 0
      %v2362 = vsel %vm2298, 1, 0
      %v2363 = vsel %vm2299, 1, 0
      %v2364 = vsel %vm2300, 1, 0
      %v2365 = vsel %vm2301, 1, 0
      %v2366 = vsel %vm2302, 1, 0
      %v2367 = vsel %vm2303, 1, 0
      %v2368 = vsel %vm2304, 1, 0
      %v2369 = vsel %vm2305, 1, 0
      %v2370 = vsel %vm2306, 1, 0
      %v2371 = vsel %vm2307, 1, 0
      %v2372 = vsel %vm2308, 1, 0
      %v2373 = vsel %vm2309, 1, 0
      %v2374 = vsel %vm2310, 1, 0
      %v2375 = vsel %vm2311, 1, 0
      %v2376 = vsel %vm2312, 1, 0
      %v2377 = vsel %vm2313, 1, 0
      %v2378 = vsel %vm2314, 1, 0
      %v2379 = vsel %vm2315, 1, 0
      %v2380 = vsel %vm2316, 1, 0
      %v2381 = vsel %vm2317, 1, 0
      %v2382 = vsel %vm2318, 1, 0
      %v2383 = vsel %vm2319, 1, 0
      %v2384 = vsel %vm2320, 1, 0
      %v2385 = vsel %vm2321, 1, 0
      %v2386 = vsel %vm2322, 1, 0
      %v2387 = vcvt.s32.f32 %v2323
      %v2388 = vcvt.s32.f32 %v2324
      %v2389 = vcvt.s32.f32 %v2325
      %v2390 = vcvt.s32.f32 %v2326
      %v2391 = vcvt.s32.f32 %v2327
      %v2392 = vcvt.s32.f32 %v2328
      %v2393 = vcvt.s32.f32 %v2329
      %v2394 = vcvt.s32.f32 %v2330
      %v2395 = vcvt.s32.f32 %v2331
      %v2396 = vcvt.s32.f32 %v2332
      %v2397 = vcvt.s32.f32 %v2333
      %v2398 = vcvt.s32.f32 %v2334
      %v2399 = vcvt.s32.f32 %v2335
      %v2400 = vcvt.s32.f32 %v2336
      %v2401 = vcvt.s32.f32 %v2337
      %v2402 = vcvt.s32.f32 %v2338
      %v2403 = vcvt.s32.f32 %v2339
      %v2404 = vcvt.s32.f32 %v2340
      %v2405 = vcvt.s32.f32 %v2341
      %v2406 = vcvt.s32.f32 %v2342
      %v2407 = vcvt.s32.f32 %v2343
      %v2408 = vcvt.s32.f32 %v2344
      %v2409 = vcvt.s32.f32 %v2345
      %v2410 = vcvt.s32.f32 %v2346
      %v2411 = vcvt.s32.f32 %v2347
      %v2412 = vcvt.s32.f32 %v2348
      %v2413 = vcvt.s32.f32 %v2349
      %v2414 = vcvt.s32.f32 %v2350
      %v2415 = vcvt.s32.f32 %v2351
      %v2416 = vcvt.s32.f32 %v2352
      %v2417 = vcvt.s32.f32 %v2353
      %v2418 = vcvt.s32.f32 %v2354
      %v2419 = vcvt.s32.f32 %v2355
      %v2420 = vcvt.s32.f32 %v2356
      %v2421 = vcvt.s32.f32 %v2357
      %v2422 = vcvt.s32.f32 %v2358
      %v2423 = vcvt.s32.f32 %v2359
      %v2424 = vcvt.s32.f32 %v2360
      %v2425 = vcvt.s32.f32 %v2361
      %v2426 = vcvt.s32.f32 %v2362
      %v2427 = vcvt.s32.f32 %v2363
      %v2428 = vcvt.s32.f32 %v2364
      %v2429 = vcvt.s32.f32 %v2365
      %v2430 = vcvt.s32.f32 %v2366
      %v2431 = vcvt.s32.f32 %v2367
      %v2432 = vcvt.s32.f32 %v2368
      %v2433 = vcvt.s32.f32 %v2369
      %v2434 = vcvt.s32.f32 %v2370
      %v2435 = vcvt.s32.f32 %v2371
      %v2436 = vcvt.s32.f32 %v2372
      %v2437 = vcvt.s32.f32 %v2373
      %v2438 = vcvt.s32.f32 %v2374
      %v2439 = vcvt.s32.f32 %v2375
      %v2440 = vcvt.s32.f32 %v2376
      %v2441 = vcvt.s32.f32 %v2377
      %v2442 = vcvt.s32.f32 %v2378
      %v2443 = vcvt.s32.f32 %v2379
      %v2444 = vcvt.s32.f32 %v2380
      %v2445 = vcvt.s32.f32 %v2381
      %v2446 = vcvt.s32.f32 %v2382
      %v2447 = vcvt.s32.f32 %v2383
      %v2448 = vcvt.s32.f32 %v2384
      %v2449 = vcvt.s32.f32 %v2385
      %v2450 = vcvt.s32.f32 %v2386
      %v2451 = vmin.f32 %v1205, %v2125
      %v2452 = vmin.f32 %v1206, %v2126
      %v2453 = vmin.f32 %v1207, %v2127
      %v2454 = vmin.f32 %v1208, %v2128
      %v2455 = vmin.f32 %v1209, %v2129
      %v2456 = vmin.f32 %v1210, %v2130
      %v2457 = vmin.f32 %v1211, %v2131
      %v2458 = vmin.f32 %v1212, %v2132
      %v2459 = vmin.f32 %v1213, %v2133
      %v2460 = vmin.f32 %v1214, %v2134
      %v2461 = vmin.f32 %v1215, %v2135
      %v2462 = vmin.f32 %v1216, %v2136
      %v2463 = vmin.f32 %v1217, %v2137
      %v2464 = vmin.f32 %v1218, %v2138
      %v2465 = vmin.f32 %v1219, %v2139
      %v2466 = vmin.f32 %v1220, %v2140
      %v2467 = vmin.f32 %v1221, %v2141
      %v2468 = vmin.f32 %v1222, %v2142
      %v2469 = vmin.f32 %v1223, %v2143
      %v2470 = vmin.f32 %v1224, %v2144
      %v2471 = vmin.f32 %v1225, %v2145
      %v2472 = vmin.f32 %v1226, %v2146
      %v2473 = vmin.f32 %v1227, %v2147
      %v2474 = vmin.f32 %v1228, %v2148
      %v2475 = vmin.f32 %v1229, %v2149
      %v2476 = vmin.f32 %v1230, %v2150
      %v2477 = vmin.f32 %v1231, %v2151
      %v2478 = vmin.f32 %v1232, %v2152
      %v2479 = vmin.f32 %v1233, %v2153
      %v2480 = vmin.f32 %v1234, %v2154
      %v2481 = vmin.f32 %v1235, %v2155
      %v2482 = vmin.f32 %v1236, %v2156
      %v2483 = vmin.f32 %v1237, %v2157
      %v2484 = vmin.f32 %v1238, %v2158
      %v2485 = vmin.f32 %v1239, %v2159
      %v2486 = vmin.f32 %v1240, %v2160
      %v2487 = vmin.f32 %v1241, %v2161
      %v2488 = vmin.f32 %v1242, %v2162
      %v2489 = vmin.f32 %v1243, %v2163
      %v2490 = vmin.f32 %v1244, %v2164
      %v2491 = vmin.f32 %v1245, %v2165
      %v2492 = vmin.f32 %v1246, %v2166
      %v2493 = vmin.f32 %v1247, %v2167
      %v2494 = vmin.f32 %v1248, %v2168
      %v2495 = vmin.f32 %v1249, %v2169
      %v2496 = vmin.f32 %v1250, %v2170
      %v2497 = vmin.f32 %v1251, %v2171
      %v2498 = vmin.f32 %v1252, %v2172
      %v2499 = vmin.f32 %v1253, %v2173
      %v2500 = vmin.f32 %v1254, %v2174
      %v2501 = vmin.f32 %v1255, %v2175
      %v2502 = vmin.f32 %v1256, %v2176
      %v2503 = vmin.f32 %v1257, %v2177
      %v2504 = vmin.f32 %v1258, %v2178
      %v2505 = vmin.f32 %v1259, %v2179
      %v2506 = vmin.f32 %v1260, %v2180
      %v2507 = vmin.f32 %v1261, %v2181
      %v2508 = vmin.f32 %v1262, %v2182
      %v2509 = vmin.f32 %v1263, %v2183
      %v2510 = vmin.f32 %v1264, %v2184
      %v2511 = vmin.f32 %v1265, %v2185
      %v2512 = vmin.f32 %v1266, %v2186
      %v2513 = vmin.f32 %v1267, %v2187
      %v2514 = vmin.f32 %v1268, %v2188
      %v2515 = vmax.f32 %v1205, %v2125
      %v2516 = vmax.f32 %v1206, %v2126
      %v2517 = vmax.f32 %v1207, %v2127
      %v2518 = vmax.f32 %v1208, %v2128
      %v2519 = vmax.f32 %v1209, %v2129
      %v2520 = vmax.f32 %v1210, %v2130
      %v2521 = vmax.f32 %v1211, %v2131
      %v2522 = vmax.f32 %v1212, %v2132
      %v2523 = vmax.f32 %v1213, %v2133
      %v2524 = vmax.f32 %v1214, %v2134
      %v2525 = vmax.f32 %v1215, %v2135
      %v2526 = vmax.f32 %v1216, %v2136
      %v2527 = vmax.f32 %v1217, %v2137
      %v2528 = vmax.f32 %v1218, %v2138
      %v2529 = vmax.f32 %v1219, %v2139
      %v2530 = vmax.f32 %v1220, %v2140
      %v2531 = vmax.f32 %v1221, %v2141
      %v2532 = vmax.f32 %v1222, %v2142
      %v2533 = vmax.f32 %v1223, %v2143
      %v2534 = vmax.f32 %v1224, %v2144
      %v2535 = vmax.f32 %v1225, %v2145
      %v2536 = vmax.f32 %v1226, %v2146
      %v2537 = vmax.f32 %v1227, %v2147
      %v2538 = vmax.f32 %v1228, %v2148
      %v2539 = vmax.f32 %v1229, %v2149
      %v2540 = vmax.f32 %v1230, %v2150
      %v2541 = vmax.f32 %v1231, %v2151
      %v2542 = vmax.f32 %v1232, %v2152
      %v2543 = vmax.f32 %v1233, %v2153
      %v2544 = vmax.f32 %v1234, %v2154
      %v2545 = vmax.f32 %v1235, %v2155
      %v2546 = vmax.f32 %v1236, %v2156
      %v2547 = vmax.f32 %v1237, %v2157
      %v2548 = vmax.f32 %v1238, %v2158
      %v2549 = vmax.f32 %v1239, %v2159
      %v2550 = vmax.f32 %v1240, %v2160
      %v2551 = vmax.f32 %v1241, %v2161
      %v2552 = vmax.f32 %v1242, %v2162
      %v2553 = vmax.f32 %v1243, %v2163
      %v2554 = vmax.f32 %v1244, %v2164
      %v2555 = vmax.f32 %v1245, %v2165
      %v2556 = vmax.f32 %v1246, %v2166
      %v2557 = vmax.f32 %v1247, %v2167
      %v2558 = vmax.f32 %v1248, %v2168
      %v2559 = vmax.f32 %v1249, %v2169
      %v2560 = vmax.f32 %v1250, %v2170
      %v2561 = vmax.f32 %v1251, %v2171
      %v2562 = vmax.f32 %v1252, %v2172
      %v2563 = vmax.f32 %v1253, %v2173
      %v2564 = vmax.f32 %v1254, %v2174
      %v2565 = vmax.f32 %v1255, %v2175
      %v2566 = vmax.f32 %v1256, %v2176
      %v2567 = vmax.f32 %v1257, %v2177
      %v2568 = vmax.f32 %v1258, %v2178
      %v2569 = vmax.f32 %v1259, %v2179
      %v2570 = vmax.f32 %v1260, %v2180
      %v2571 = vmax.f32 %v1261, %v2181
      %v2572 = vmax.f32 %v1262, %v2182
      %v2573 = vmax.f32 %v1263, %v2183
      %v2574 = vmax.f32 %v1264, %v2184
      %v2575 = vmax.f32 %v1265, %v2185
      %v2576 = vmax.f32 %v1266, %v2186
      %v2577 = vmax.f32 %v1267, %v2187
      %v2578 = vmax.f32 %v1268, %v2188
      %v2579 = vadd.f32 %v2515, 1e-12
      %v2580 = vadd.f32 %v2516, 1e-12
      %v2581 = vadd.f32 %v2517, 1e-12
      %v2582 = vadd.f32 %v2518, 1e-12
      %v2583 = vadd.f32 %v2519, 1e-12
      %v2584 = vadd.f32 %v2520, 1e-12
      %v2585 = vadd.f32 %v2521, 1e-12
      %v2586 = vadd.f32 %v2522, 1e-12
      %v2587 = vadd.f32 %v2523, 1e-12
      %v2588 = vadd.f32 %v2524, 1e-12
      %v2589 = vadd.f32 %v2525, 1e-12
      %v2590 = vadd.f32 %v2526, 1e-12
      %v2591 = vadd.f32 %v2527, 1e-12
      %v2592 = vadd.f32 %v2528, 1e-12
      %v2593 = vadd.f32 %v2529, 1e-12
      %v2594 = vadd.f32 %v2530, 1e-12
      %v2595 = vadd.f32 %v2531, 1e-12
      %v2596 = vadd.f32 %v2532, 1e-12
      %v2597 = vadd.f32 %v2533, 1e-12
      %v2598 = vadd.f32 %v2534, 1e-12
      %v2599 = vadd.f32 %v2535, 1e-12
      %v2600 = vadd.f32 %v2536, 1e-12
      %v2601 = vadd.f32 %v2537, 1e-12
      %v2602 = vadd.f32 %v2538, 1e-12
      %v2603 = vadd.f32 %v2539, 1e-12
      %v2604 = vadd.f32 %v2540, 1e-12
      %v2605 = vadd.f32 %v2541, 1e-12
      %v2606 = vadd.f32 %v2542, 1e-12
      %v2607 = vadd.f32 %v2543, 1e-12
      %v2608 = vadd.f32 %v2544, 1e-12
      %v2609 = vadd.f32 %v2545, 1e-12
      %v2610 = vadd.f32 %v2546, 1e-12
      %v2611 = vadd.f32 %v2547, 1e-12
      %v2612 = vadd.f32 %v2548, 1e-12
      %v2613 = vadd.f32 %v2549, 1e-12
      %v2614 = vadd.f32 %v2550, 1e-12
      %v2615 = vadd.f32 %v2551, 1e-12
      %v2616 = vadd.f32 %v2552, 1e-12
      %v2617 = vadd.f32 %v2553, 1e-12
      %v2618 = vadd.f32 %v2554, 1e-12
      %v2619 = vadd.f32 %v2555, 1e-12
      %v2620 = vadd.f32 %v2556, 1e-12
      %v2621 = vadd.f32 %v2557, 1e-12
      %v2622 = vadd.f32 %v2558, 1e-12
      %v2623 = vadd.f32 %v2559, 1e-12
      %v2624 = vadd.f32 %v2560, 1e-12
      %v2625 = vadd.f32 %v2561, 1e-12
      %v2626 = vadd.f32 %v2562, 1e-12
      %v2627 = vadd.f32 %v2563, 1e-12
      %v2628 = vadd.f32 %v2564, 1e-12
      %v2629 = vadd.f32 %v2565, 1e-12
      %v2630 = vadd.f32 %v2566, 1e-12
      %v2631 = vadd.f32 %v2567, 1e-12
      %v2632 = vadd.f32 %v2568, 1e-12
      %v2633 = vadd.f32 %v2569, 1e-12
      %v2634 = vadd.f32 %v2570, 1e-12
      %v2635 = vadd.f32 %v2571, 1e-12
      %v2636 = vadd.f32 %v2572, 1e-12
      %v2637 = vadd.f32 %v2573, 1e-12
      %v2638 = vadd.f32 %v2574, 1e-12
      %v2639 = vadd.f32 %v2575, 1e-12
      %v2640 = vadd.f32 %v2576, 1e-12
      %v2641 = vadd.f32 %v2577, 1e-12
      %v2642 = vadd.f32 %v2578, 1e-12
      %v2643 = vrcp.pop %v2579
      %v2644 = vrcp.pop %v2580
      %v2645 = vrcp.pop %v2581
      %v2646 = vrcp.pop %v2582
      %v2647 = vrcp.pop %v2583
      %v2648 = vrcp.pop %v2584
      %v2649 = vrcp.pop %v2585
      %v2650 = vrcp.pop %v2586
      %v2651 = vrcp.pop %v2587
      %v2652 = vrcp.pop %v2588
      %v2653 = vrcp.pop %v2589
      %v2654 = vrcp.pop %v2590
      %v2655 = vrcp.pop %v2591
      %v2656 = vrcp.pop %v2592
      %v2657 = vrcp.pop %v2593
      %v2658 = vrcp.pop %v2594
      %v2659 = vrcp.pop %v2595
      %v2660 = vrcp.pop %v2596
      %v2661 = vrcp.pop %v2597
      %v2662 = vrcp.pop %v2598
      %v2663 = vrcp.pop %v2599
      %v2664 = vrcp.pop %v2600
      %v2665 = vrcp.pop %v2601
      %v2666 = vrcp.pop %v2602
      %v2667 = vrcp.pop %v2603
      %v2668 = vrcp.pop %v2604
      %v2669 = vrcp.pop %v2605
      %v2670 = vrcp.pop %v2606
      %v2671 = vrcp.pop %v2607
      %v2672 = vrcp.pop %v2608
      %v2673 = vrcp.pop %v2609
      %v2674 = vrcp.pop %v2610
      %v2675 = vrcp.pop %v2611
      %v2676 = vrcp.pop %v2612
      %v2677 = vrcp.pop %v2613
      %v2678 = vrcp.pop %v2614
      %v2679 = vrcp.pop %v2615
      %v2680 = vrcp.pop %v2616
      %v2681 = vrcp.pop %v2617
      %v2682 = vrcp.pop %v2618
      %v2683 = vrcp.pop %v2619
      %v2684 = vrcp.pop %v2620
      %v2685 = vrcp.pop %v2621
      %v2686 = vrcp.pop %v2622
      %v2687 = vrcp.pop %v2623
      %v2688 = vrcp.pop %v2624
      %v2689 = vrcp.pop %v2625
      %v2690 = vrcp.pop %v2626
      %v2691 = vrcp.pop %v2627
      %v2692 = vrcp.pop %v2628
      %v2693 = vrcp.pop %v2629
      %v2694 = vrcp.pop %v2630
      %v2695 = vrcp.pop %v2631
      %v2696 = vrcp.pop %v2632
      %v2697 = vrcp.pop %v2633
      %v2698 = vrcp.pop %v2634
      %v2699 = vrcp.pop %v2635
      %v2700 = vrcp.pop %v2636
      %v2701 = vrcp.pop %v2637
      %v2702 = vrcp.pop %v2638
      %v2703 = vrcp.pop %v2639
      %v2704 = vrcp.pop %v2640
      %v2705 = vrcp.pop %v2641
      %v2706 = vrcp.pop %v2642
      %v2707 = vmul.f32 %v2451, %v2643
      %v2708 = vmul.f32 %v2452, %v2644
      %v2709 = vmul.f32 %v2453, %v2645
      %v2710 = vmul.f32 %v2454, %v2646
      %v2711 = vmul.f32 %v2455, %v2647
      %v2712 = vmul.f32 %v2456, %v2648
      %v2713 = vmul.f32 %v2457, %v2649
      %v2714 = vmul.f32 %v2458, %v2650
      %v2715 = vmul.f32 %v2459, %v2651
      %v2716 = vmul.f32 %v2460, %v2652
      %v2717 = vmul.f32 %v2461, %v2653
      %v2718 = vmul.f32 %v2462, %v2654
      %v2719 = vmul.f32 %v2463, %v2655
      %v2720 = vmul.f32 %v2464, %v2656
      %v2721 = vmul.f32 %v2465, %v2657
      %v2722 = vmul.f32 %v2466, %v2658
      %v2723 = vmul.f32 %v2467, %v2659
      %v2724 = vmul.f32 %v2468, %v2660
      %v2725 = vmul.f32 %v2469, %v2661
      %v2726 = vmul.f32 %v2470, %v2662
      %v2727 = vmul.f32 %v2471, %v2663
      %v2728 = vmul.f32 %v2472, %v2664
      %v2729 = vmul.f32 %v2473, %v2665
      %v2730 = vmul.f32 %v2474, %v2666
      %v2731 = vmul.f32 %v2475, %v2667
      %v2732 = vmul.f32 %v2476, %v2668
      %v2733 = vmul.f32 %v2477, %v2669
      %v2734 = vmul.f32 %v2478, %v2670
      %v2735 = vmul.f32 %v2479, %v2671
      %v2736 = vmul.f32 %v2480, %v2672
      %v2737 = vmul.f32 %v2481, %v2673
      %v2738 = vmul.f32 %v2482, %v2674
      %v2739 = vmul.f32 %v2483, %v2675
      %v2740 = vmul.f32 %v2484, %v2676
      %v2741 = vmul.f32 %v2485, %v2677
      %v2742 = vmul.f32 %v2486, %v2678
      %v2743 = vmul.f32 %v2487, %v2679
      %v2744 = vmul.f32 %v2488, %v2680
      %v2745 = vmul.f32 %v2489, %v2681
      %v2746 = vmul.f32 %v2490, %v2682
      %v2747 = vmul.f32 %v2491, %v2683
      %v2748 = vmul.f32 %v2492, %v2684
      %v2749 = vmul.f32 %v2493, %v2685
      %v2750 = vmul.f32 %v2494, %v2686
      %v2751 = vmul.f32 %v2495, %v2687
      %v2752 = vmul.f32 %v2496, %v2688
      %v2753 = vmul.f32 %v2497, %v2689
      %v2754 = vmul.f32 %v2498, %v2690
      %v2755 = vmul.f32 %v2499, %v2691
      %v2756 = vmul.f32 %v2500, %v2692
      %v2757 = vmul.f32 %v2501, %v2693
      %v2758 = vmul.f32 %v2502, %v2694
      %v2759 = vmul.f32 %v2503, %v2695
      %v2760 = vmul.f32 %v2504, %v2696
      %v2761 = vmul.f32 %v2505, %v2697
      %v2762 = vmul.f32 %v2506, %v2698
      %v2763 = vmul.f32 %v2507, %v2699
      %v2764 = vmul.f32 %v2508, %v2700
      %v2765 = vmul.f32 %v2509, %v2701
      %v2766 = vmul.f32 %v2510, %v2702
      %v2767 = vmul.f32 %v2511, %v2703
      %v2768 = vmul.f32 %v2512, %v2704
      %v2769 = vmul.f32 %v2513, %v2705
      %v2770 = vmul.f32 %v2514, %v2706
      %v2771 = vadd.f32 %v2707, %v2387
      %v2772 = vadd.f32 %v2708, %v2388
      %v2773 = vadd.f32 %v2709, %v2389
      %v2774 = vadd.f32 %v2710, %v2390
      %v2775 = vadd.f32 %v2711, %v2391
      %v2776 = vadd.f32 %v2712, %v2392
      %v2777 = vadd.f32 %v2713, %v2393
      %v2778 = vadd.f32 %v2714, %v2394
      %v2779 = vadd.f32 %v2715, %v2395
      %v2780 = vadd.f32 %v2716, %v2396
      %v2781 = vadd.f32 %v2717, %v2397
      %v2782 = vadd.f32 %v2718, %v2398
      %v2783 = vadd.f32 %v2719, %v2399
      %v2784 = vadd.f32 %v2720, %v2400
      %v2785 = vadd.f32 %v2721, %v2401
      %v2786 = vadd.f32 %v2722, %v2402
      %v2787 = vadd.f32 %v2723, %v2403
      %v2788 = vadd.f32 %v2724, %v2404
      %v2789 = vadd.f32 %v2725, %v2405
      %v2790 = vadd.f32 %v2726, %v2406
      %v2791 = vadd.f32 %v2727, %v2407
      %v2792 = vadd.f32 %v2728, %v2408
      %v2793 = vadd.f32 %v2729, %v2409
      %v2794 = vadd.f32 %v2730, %v2410
      %v2795 = vadd.f32 %v2731, %v2411
      %v2796 = vadd.f32 %v2732, %v2412
      %v2797 = vadd.f32 %v2733, %v2413
      %v2798 = vadd.f32 %v2734, %v2414
      %v2799 = vadd.f32 %v2735, %v2415
      %v2800 = vadd.f32 %v2736, %v2416
      %v2801 = vadd.f32 %v2737, %v2417
      %v2802 = vadd.f32 %v2738, %v2418
      %v2803 = vadd.f32 %v2739, %v2419
      %v2804 = vadd.f32 %v2740, %v2420
      %v2805 = vadd.f32 %v2741, %v2421
      %v2806 = vadd.f32 %v2742, %v2422
      %v2807 = vadd.f32 %v2743, %v2423
      %v2808 = vadd.f32 %v2744, %v2424
      %v2809 = vadd.f32 %v2745, %v2425
      %v2810 = vadd.f32 %v2746, %v2426
      %v2811 = vadd.f32 %v2747, %v2427
      %v2812 = vadd.f32 %v2748, %v2428
      %v2813 = vadd.f32 %v2749, %v2429
      %v2814 = vadd.f32 %v2750, %v2430
      %v2815 = vadd.f32 %v2751, %v2431
      %v2816 = vadd.f32 %v2752, %v2432
      %v2817 = vadd.f32 %v2753, %v2433
      %v2818 = vadd.f32 %v2754, %v2434
      %v2819 = vadd.f32 %v2755, %v2435
      %v2820 = vadd.f32 %v2756, %v2436
      %v2821 = vadd.f32 %v2757, %v2437
      %v2822 = vadd.f32 %v2758, %v2438
      %v2823 = vadd.f32 %v2759, %v2439
      %v2824 = vadd.f32 %v2760, %v2440
      %v2825 = vadd.f32 %v2761, %v2441
      %v2826 = vadd.f32 %v2762, %v2442
      %v2827 = vadd.f32 %v2763, %v2443
      %v2828 = vadd.f32 %v2764, %v2444
      %v2829 = vadd.f32 %v2765, %v2445
      %v2830 = vadd.f32 %v2766, %v2446
      %v2831 = vadd.f32 %v2767, %v2447
      %v2832 = vadd.f32 %v2768, %v2448
      %v2833 = vadd.f32 %v2769, %v2449
      %v2834 = vadd.f32 %v2770, %v2450
      %v2835 = vmul.f32 %v2771, 1.2345679
      %v2836 = vmul.f32 %v2772, 1.2345679
      %v2837 = vmul.f32 %v2773, 1.2345679
      %v2838 = vmul.f32 %v2774, 1.2345679
      %v2839 = vmul.f32 %v2775, 1.2345679
      %v2840 = vmul.f32 %v2776, 1.2345679
      %v2841 = vmul.f32 %v2777, 1.2345679
      %v2842 = vmul.f32 %v2778, 1.2345679
      %v2843 = vmul.f32 %v2779, 1.2345679
      %v2844 = vmul.f32 %v2780, 1.2345679
      %v2845 = vmul.f32 %v2781, 1.2345679
      %v2846 = vmul.f32 %v2782, 1.2345679
      %v2847 = vmul.f32 %v2783, 1.2345679
      %v2848 = vmul.f32 %v2784, 1.2345679
      %v2849 = vmul.f32 %v2785, 1.2345679
      %v2850 = vmul.f32 %v2786, 1.2345679
      %v2851 = vmul.f32 %v2787, 1.2345679
      %v2852 = vmul.f32 %v2788, 1.2345679
      %v2853 = vmul.f32 %v2789, 1.2345679
      %v2854 = vmul.f32 %v2790, 1.2345679
      %v2855 = vmul.f32 %v2791, 1.2345679
      %v2856 = vmul.f32 %v2792, 1.2345679
      %v2857 = vmul.f32 %v2793, 1.2345679
      %v2858 = vmul.f32 %v2794, 1.2345679
      %v2859 = vmul.f32 %v2795, 1.2345679
      %v2860 = vmul.f32 %v2796, 1.2345679
      %v2861 = vmul.f32 %v2797, 1.2345679
      %v2862 = vmul.f32 %v2798, 1.2345679
      %v2863 = vmul.f32 %v2799, 1.2345679
      %v2864 = vmul.f32 %v2800, 1.2345679
      %v2865 = vmul.f32 %v2801, 1.2345679
      %v2866 = vmul.f32 %v2802, 1.2345679
      %v2867 = vmul.f32 %v2803, 1.2345679
      %v2868 = vmul.f32 %v2804, 1.2345679
      %v2869 = vmul.f32 %v2805, 1.2345679
      %v2870 = vmul.f32 %v2806, 1.2345679
      %v2871 = vmul.f32 %v2807, 1.2345679
      %v2872 = vmul.f32 %v2808, 1.2345679
      %v2873 = vmul.f32 %v2809, 1.2345679
      %v2874 = vmul.f32 %v2810, 1.2345679
      %v2875 = vmul.f32 %v2811, 1.2345679
      %v2876 = vmul.f32 %v2812, 1.2345679
      %v2877 = vmul.f32 %v2813, 1.2345679
      %v2878 = vmul.f32 %v2814, 1.2345679
      %v2879 = vmul.f32 %v2815, 1.2345679
      %v2880 = vmul.f32 %v2816, 1.2345679
      %v2881 = vmul.f32 %v2817, 1.2345679
      %v2882 = vmul.f32 %v2818, 1.2345679
      %v2883 = vmul.f32 %v2819, 1.2345679
      %v2884 = vmul.f32 %v2820, 1.2345679
      %v2885 = vmul.f32 %v2821, 1.2345679
      %v2886 = vmul.f32 %v2822, 1.2345679
      %v2887 = vmul.f32 %v2823, 1.2345679
      %v2888 = vmul.f32 %v2824, 1.2345679
      %v2889 = vmul.f32 %v2825, 1.2345679
      %v2890 = vmul.f32 %v2826, 1.2345679
      %v2891 = vmul.f32 %v2827, 1.2345679
      %v2892 = vmul.f32 %v2828, 1.2345679
      %v2893 = vmul.f32 %v2829, 1.2345679
      %v2894 = vmul.f32 %v2830, 1.2345679
      %v2895 = vmul.f32 %v2831, 1.2345679
      %v2896 = vmul.f32 %v2832, 1.2345679
      %v2897 = vmul.f32 %v2833, 1.2345679
      %v2898 = vmul.f32 %v2834, 1.2345679
      %v2899 = vadd.f32 %v1205, %v2125
      %v2900 = vadd.f32 %v1206, %v2126
      %v2901 = vadd.f32 %v1207, %v2127
      %v2902 = vadd.f32 %v1208, %v2128
      %v2903 = vadd.f32 %v1209, %v2129
      %v2904 = vadd.f32 %v1210, %v2130
      %v2905 = vadd.f32 %v1211, %v2131
      %v2906 = vadd.f32 %v1212, %v2132
      %v2907 = vadd.f32 %v1213, %v2133
      %v2908 = vadd.f32 %v1214, %v2134
      %v2909 = vadd.f32 %v1215, %v2135
      %v2910 = vadd.f32 %v1216, %v2136
      %v2911 = vadd.f32 %v1217, %v2137
      %v2912 = vadd.f32 %v1218, %v2138
      %v2913 = vadd.f32 %v1219, %v2139
      %v2914 = vadd.f32 %v1220, %v2140
      %v2915 = vadd.f32 %v1221, %v2141
      %v2916 = vadd.f32 %v1222, %v2142
      %v2917 = vadd.f32 %v1223, %v2143
      %v2918 = vadd.f32 %v1224, %v2144
      %v2919 = vadd.f32 %v1225, %v2145
      %v2920 = vadd.f32 %v1226, %v2146
      %v2921 = vadd.f32 %v1227, %v2147
      %v2922 = vadd.f32 %v1228, %v2148
      %v2923 = vadd.f32 %v1229, %v2149
      %v2924 = vadd.f32 %v1230, %v2150
      %v2925 = vadd.f32 %v1231, %v2151
      %v2926 = vadd.f32 %v1232, %v2152
      %v2927 = vadd.f32 %v1233, %v2153
      %v2928 = vadd.f32 %v1234, %v2154
      %v2929 = vadd.f32 %v1235, %v2155
      %v2930 = vadd.f32 %v1236, %v2156
      %v2931 = vadd.f32 %v1237, %v2157
      %v2932 = vadd.f32 %v1238, %v2158
      %v2933 = vadd.f32 %v1239, %v2159
      %v2934 = vadd.f32 %v1240, %v2160
      %v2935 = vadd.f32 %v1241, %v2161
      %v2936 = vadd.f32 %v1242, %v2162
      %v2937 = vadd.f32 %v1243, %v2163
      %v2938 = vadd.f32 %v1244, %v2164
      %v2939 = vadd.f32 %v1245, %v2165
      %v2940 = vadd.f32 %v1246, %v2166
      %v2941 = vadd.f32 %v1247, %v2167
      %v2942 = vadd.f32 %v1248, %v2168
      %v2943 = vadd.f32 %v1249, %v2169
      %v2944 = vadd.f32 %v1250, %v2170
      %v2945 = vadd.f32 %v1251, %v2171
      %v2946 = vadd.f32 %v1252, %v2172
      %v2947 = vadd.f32 %v1253, %v2173
      %v2948 = vadd.f32 %v1254, %v2174
      %v2949 = vadd.f32 %v1255, %v2175
      %v2950 = vadd.f32 %v1256, %v2176
      %v2951 = vadd.f32 %v1257, %v2177
      %v2952 = vadd.f32 %v1258, %v2178
      %v2953 = vadd.f32 %v1259, %v2179
      %v2954 = vadd.f32 %v1260, %v2180
      %v2955 = vadd.f32 %v1261, %v2181
      %v2956 = vadd.f32 %v1262, %v2182
      %v2957 = vadd.f32 %v1263, %v2183
      %v2958 = vadd.f32 %v1264, %v2184
      %v2959 = vadd.f32 %v1265, %v2185
      %v2960 = vadd.f32 %v1266, %v2186
      %v2961 = vadd.f32 %v1267, %v2187
      %v2962 = vadd.f32 %v1268, %v2188
      %v2963 = vmul.f32 %v1205, %v2125
      %v2964 = vmul.f32 %v1206, %v2126
      %v2965 = vmul.f32 %v1207, %v2127
      %v2966 = vmul.f32 %v1208, %v2128
      %v2967 = vmul.f32 %v1209, %v2129
      %v2968 = vmul.f32 %v1210, %v2130
      %v2969 = vmul.f32 %v1211, %v2131
      %v2970 = vmul.f32 %v1212, %v2132
      %v2971 = vmul.f32 %v1213, %v2133
      %v2972 = vmul.f32 %v1214, %v2134
      %v2973 = vmul.f32 %v1215, %v2135
      %v2974 = vmul.f32 %v1216, %v2136
      %v2975 = vmul.f32 %v1217, %v2137
      %v2976 = vmul.f32 %v1218, %v2138
      %v2977 = vmul.f32 %v1219, %v2139
      %v2978 = vmul.f32 %v1220, %v2140
      %v2979 = vmul.f32 %v1221, %v2141
      %v2980 = vmul.f32 %v1222, %v2142
      %v2981 = vmul.f32 %v1223, %v2143
      %v2982 = vmul.f32 %v1224, %v2144
      %v2983 = vmul.f32 %v1225, %v2145
      %v2984 = vmul.f32 %v1226, %v2146
      %v2985 = vmul.f32 %v1227, %v2147
      %v2986 = vmul.f32 %v1228, %v2148
      %v2987 = vmul.f32 %v1229, %v2149
      %v2988 = vmul.f32 %v1230, %v2150
      %v2989 = vmul.f32 %v1231, %v2151
      %v2990 = vmul.f32 %v1232, %v2152
      %v2991 = vmul.f32 %v1233, %v2153
      %v2992 = vmul.f32 %v1234, %v2154
      %v2993 = vmul.f32 %v1235, %v2155
      %v2994 = vmul.f32 %v1236, %v2156
      %v2995 = vmul.f32 %v1237, %v2157
      %v2996 = vmul.f32 %v1238, %v2158
      %v2997 = vmul.f32 %v1239, %v2159
      %v2998 = vmul.f32 %v1240, %v2160
      %v2999 = vmul.f32 %v1241, %v2161
      %v3000 = vmul.f32 %v1242, %v2162
      %v3001 = vmul.f32 %v1243, %v2163
      %v3002 = vmul.f32 %v1244, %v2164
      %v3003 = vmul.f32 %v1245, %v2165
      %v3004 = vmul.f32 %v1246, %v2166
      %v3005 = vmul.f32 %v1247, %v2167
      %v3006 = vmul.f32 %v1248, %v2168
      %v3007 = vmul.f32 %v1249, %v2169
      %v3008 = vmul.f32 %v1250, %v2170
      %v3009 = vmul.f32 %v1251, %v2171
      %v3010 = vmul.f32 %v1252, %v2172
      %v3011 = vmul.f32 %v1253, %v2173
      %v3012 = vmul.f32 %v1254, %v2174
      %v3013 = vmul.f32 %v1255, %v2175
      %v3014 = vmul.f32 %v1256, %v2176
      %v3015 = vmul.f32 %v1257, %v2177
      %v3016 = vmul.f32 %v1258, %v2178
      %v3017 = vmul.f32 %v1259, %v2179
      %v3018 = vmul.f32 %v1260, %v2180
      %v3019 = vmul.f32 %v1261, %v2181
      %v3020 = vmul.f32 %v1262, %v2182
      %v3021 = vmul.f32 %v1263, %v2183
      %v3022 = vmul.f32 %v1264, %v2184
      %v3023 = vmul.f32 %v1265, %v2185
      %v3024 = vmul.f32 %v1266, %v2186
      %v3025 = vmul.f32 %v1267, %v2187
      %v3026 = vmul.f32 %v1268, %v2188
      %v3027 = vrsqrt.pop %v2963
      %v3028 = vmul.f32 %v2963, %v3027
      %vm3029 = vcmp.eq.f32.partialorder %v2963, inf
      %v3030 = vsel %vm3029, %v2963, %v3028
      %vm3031 = vcmp.eq.f32.partialorder %v2963, 0.0
      %v3032 = vand.u32 %v2963, 2147483648
      %v3033 = vsel %vm3031, %v3032, %v3030
      %v3034 = vrsqrt.pop %v2964
      %v3035 = vmul.f32 %v2964, %v3034
      %vm3036 = vcmp.eq.f32.partialorder %v2964, inf
      %v3037 = vsel %vm3036, %v2964, %v3035
      %vm3038 = vcmp.eq.f32.partialorder %v2964, 0.0
      %v3039 = vand.u32 %v2964, 2147483648
      %v3040 = vsel %vm3038, %v3039, %v3037
      %v3041 = vrsqrt.pop %v2965
      %v3042 = vmul.f32 %v2965, %v3041
      %vm3043 = vcmp.eq.f32.partialorder %v2965, inf
      %v3044 = vsel %vm3043, %v2965, %v3042
      %vm3045 = vcmp.eq.f32.partialorder %v2965, 0.0
      %v3046 = vand.u32 %v2965, 2147483648
      %v3047 = vsel %vm3045, %v3046, %v3044
      %v3048 = vrsqrt.pop %v2966
      %v3049 = vmul.f32 %v2966, %v3048
      %vm3050 = vcmp.eq.f32.partialorder %v2966, inf
      %v3051 = vsel %vm3050, %v2966, %v3049
      %vm3052 = vcmp.eq.f32.partialorder %v2966, 0.0
      %v3053 = vand.u32 %v2966, 2147483648
      %v3054 = vsel %vm3052, %v3053, %v3051
      %v3055 = vrsqrt.pop %v2967
      %v3056 = vmul.f32 %v2967, %v3055
      %vm3057 = vcmp.eq.f32.partialorder %v2967, inf
      %v3058 = vsel %vm3057, %v2967, %v3056
      %vm3059 = vcmp.eq.f32.partialorder %v2967, 0.0
      %v3060 = vand.u32 %v2967, 2147483648
      %v3061 = vsel %vm3059, %v3060, %v3058
      %v3062 = vrsqrt.pop %v2968
      %v3063 = vmul.f32 %v2968, %v3062
      %vm3064 = vcmp.eq.f32.partialorder %v2968, inf
      %v3065 = vsel %vm3064, %v2968, %v3063
      %vm3066 = vcmp.eq.f32.partialorder %v2968, 0.0
      %v3067 = vand.u32 %v2968, 2147483648
      %v3068 = vsel %vm3066, %v3067, %v3065
      %v3069 = vrsqrt.pop %v2969
      %v3070 = vmul.f32 %v2969, %v3069
      %vm3071 = vcmp.eq.f32.partialorder %v2969, inf
      %v3072 = vsel %vm3071, %v2969, %v3070
      %vm3073 = vcmp.eq.f32.partialorder %v2969, 0.0
      %v3074 = vand.u32 %v2969, 2147483648
      %v3075 = vsel %vm3073, %v3074, %v3072
      %v3076 = vrsqrt.pop %v2970
      %v3077 = vmul.f32 %v2970, %v3076
      %vm3078 = vcmp.eq.f32.partialorder %v2970, inf
      %v3079 = vsel %vm3078, %v2970, %v3077
      %vm3080 = vcmp.eq.f32.partialorder %v2970, 0.0
      %v3081 = vand.u32 %v2970, 2147483648
      %v3082 = vsel %vm3080, %v3081, %v3079
      %v3083 = vrsqrt.pop %v2971
      %v3084 = vmul.f32 %v2971, %v3083
      %vm3085 = vcmp.eq.f32.partialorder %v2971, inf
      %v3086 = vsel %vm3085, %v2971, %v3084
      %vm3087 = vcmp.eq.f32.partialorder %v2971, 0.0
      %v3088 = vand.u32 %v2971, 2147483648
      %v3089 = vsel %vm3087, %v3088, %v3086
      %v3090 = vrsqrt.pop %v2972
      %v3091 = vmul.f32 %v2972, %v3090
      %vm3092 = vcmp.eq.f32.partialorder %v2972, inf
      %v3093 = vsel %vm3092, %v2972, %v3091
      %vm3094 = vcmp.eq.f32.partialorder %v2972, 0.0
      %v3095 = vand.u32 %v2972, 2147483648
      %v3096 = vsel %vm3094, %v3095, %v3093
      %v3097 = vrsqrt.pop %v2973
      %v3098 = vmul.f32 %v2973, %v3097
      %vm3099 = vcmp.eq.f32.partialorder %v2973, inf
      %v3100 = vsel %vm3099, %v2973, %v3098
      %vm3101 = vcmp.eq.f32.partialorder %v2973, 0.0
      %v3102 = vand.u32 %v2973, 2147483648
      %v3103 = vsel %vm3101, %v3102, %v3100
      %v3104 = vrsqrt.pop %v2974
      %v3105 = vmul.f32 %v2974, %v3104
      %vm3106 = vcmp.eq.f32.partialorder %v2974, inf
      %v3107 = vsel %vm3106, %v2974, %v3105
      %vm3108 = vcmp.eq.f32.partialorder %v2974, 0.0
      %v3109 = vand.u32 %v2974, 2147483648
      %v3110 = vsel %vm3108, %v3109, %v3107
      %v3111 = vrsqrt.pop %v2975
      %v3112 = vmul.f32 %v2975, %v3111
      %vm3113 = vcmp.eq.f32.partialorder %v2975, inf
      %v3114 = vsel %vm3113, %v2975, %v3112
      %vm3115 = vcmp.eq.f32.partialorder %v2975, 0.0
      %v3116 = vand.u32 %v2975, 2147483648
      %v3117 = vsel %vm3115, %v3116, %v3114
      %v3118 = vrsqrt.pop %v2976
      %v3119 = vmul.f32 %v2976, %v3118
      %vm3120 = vcmp.eq.f32.partialorder %v2976, inf
      %v3121 = vsel %vm3120, %v2976, %v3119
      %vm3122 = vcmp.eq.f32.partialorder %v2976, 0.0
      %v3123 = vand.u32 %v2976, 2147483648
      %v3124 = vsel %vm3122, %v3123, %v3121
      %v3125 = vrsqrt.pop %v2977
      %v3126 = vmul.f32 %v2977, %v3125
      %vm3127 = vcmp.eq.f32.partialorder %v2977, inf
      %v3128 = vsel %vm3127, %v2977, %v3126
      %vm3129 = vcmp.eq.f32.partialorder %v2977, 0.0
      %v3130 = vand.u32 %v2977, 2147483648
      %v3131 = vsel %vm3129, %v3130, %v3128
      %v3132 = vrsqrt.pop %v2978
      %v3133 = vmul.f32 %v2978, %v3132
      %vm3134 = vcmp.eq.f32.partialorder %v2978, inf
      %v3135 = vsel %vm3134, %v2978, %v3133
      %vm3136 = vcmp.eq.f32.partialorder %v2978, 0.0
      %v3137 = vand.u32 %v2978, 2147483648
      %v3138 = vsel %vm3136, %v3137, %v3135
      %v3139 = vrsqrt.pop %v2979
      %v3140 = vmul.f32 %v2979, %v3139
      %vm3141 = vcmp.eq.f32.partialorder %v2979, inf
      %v3142 = vsel %vm3141, %v2979, %v3140
      %vm3143 = vcmp.eq.f32.partialorder %v2979, 0.0
      %v3144 = vand.u32 %v2979, 2147483648
      %v3145 = vsel %vm3143, %v3144, %v3142
      %v3146 = vrsqrt.pop %v2980
      %v3147 = vmul.f32 %v2980, %v3146
      %vm3148 = vcmp.eq.f32.partialorder %v2980, inf
      %v3149 = vsel %vm3148, %v2980, %v3147
      %vm3150 = vcmp.eq.f32.partialorder %v2980, 0.0
      %v3151 = vand.u32 %v2980, 2147483648
      %v3152 = vsel %vm3150, %v3151, %v3149
      %v3153 = vrsqrt.pop %v2981
      %v3154 = vmul.f32 %v2981, %v3153
      %vm3155 = vcmp.eq.f32.partialorder %v2981, inf
      %v3156 = vsel %vm3155, %v2981, %v3154
      %vm3157 = vcmp.eq.f32.partialorder %v2981, 0.0
      %v3158 = vand.u32 %v2981, 2147483648
      %v3159 = vsel %vm3157, %v3158, %v3156
      %v3160 = vrsqrt.pop %v2982
      %v3161 = vmul.f32 %v2982, %v3160
      %vm3162 = vcmp.eq.f32.partialorder %v2982, inf
      %v3163 = vsel %vm3162, %v2982, %v3161
      %vm3164 = vcmp.eq.f32.partialorder %v2982, 0.0
      %v3165 = vand.u32 %v2982, 2147483648
      %v3166 = vsel %vm3164, %v3165, %v3163
      %v3167 = vrsqrt.pop %v2983
      %v3168 = vmul.f32 %v2983, %v3167
      %vm3169 = vcmp.eq.f32.partialorder %v2983, inf
      %v3170 = vsel %vm3169, %v2983, %v3168
      %vm3171 = vcmp.eq.f32.partialorder %v2983, 0.0
      %v3172 = vand.u32 %v2983, 2147483648
      %v3173 = vsel %vm3171, %v3172, %v3170
      %v3174 = vrsqrt.pop %v2984
      %v3175 = vmul.f32 %v2984, %v3174
      %vm3176 = vcmp.eq.f32.partialorder %v2984, inf
      %v3177 = vsel %vm3176, %v2984, %v3175
      %vm3178 = vcmp.eq.f32.partialorder %v2984, 0.0
      %v3179 = vand.u32 %v2984, 2147483648
      %v3180 = vsel %vm3178, %v3179, %v3177
      %v3181 = vrsqrt.pop %v2985
      %v3182 = vmul.f32 %v2985, %v3181
      %vm3183 = vcmp.eq.f32.partialorder %v2985, inf
      %v3184 = vsel %vm3183, %v2985, %v3182
      %vm3185 = vcmp.eq.f32.partialorder %v2985, 0.0
      %v3186 = vand.u32 %v2985, 2147483648
      %v3187 = vsel %vm3185, %v3186, %v3184
      %v3188 = vrsqrt.pop %v2986
      %v3189 = vmul.f32 %v2986, %v3188
      %vm3190 = vcmp.eq.f32.partialorder %v2986, inf
      %v3191 = vsel %vm3190, %v2986, %v3189
      %vm3192 = vcmp.eq.f32.partialorder %v2986, 0.0
      %v3193 = vand.u32 %v2986, 2147483648
      %v3194 = vsel %vm3192, %v3193, %v3191
      %v3195 = vrsqrt.pop %v2987
      %v3196 = vmul.f32 %v2987, %v3195
      %vm3197 = vcmp.eq.f32.partialorder %v2987, inf
      %v3198 = vsel %vm3197, %v2987, %v3196
      %vm3199 = vcmp.eq.f32.partialorder %v2987, 0.0
      %v3200 = vand.u32 %v2987, 2147483648
      %v3201 = vsel %vm3199, %v3200, %v3198
      %v3202 = vrsqrt.pop %v2988
      %v3203 = vmul.f32 %v2988, %v3202
      %vm3204 = vcmp.eq.f32.partialorder %v2988, inf
      %v3205 = vsel %vm3204, %v2988, %v3203
      %vm3206 = vcmp.eq.f32.partialorder %v2988, 0.0
      %v3207 = vand.u32 %v2988, 2147483648
      %v3208 = vsel %vm3206, %v3207, %v3205
      %v3209 = vrsqrt.pop %v2989
      %v3210 = vmul.f32 %v2989, %v3209
      %vm3211 = vcmp.eq.f32.partialorder %v2989, inf
      %v3212 = vsel %vm3211, %v2989, %v3210
      %vm3213 = vcmp.eq.f32.partialorder %v2989, 0.0
      %v3214 = vand.u32 %v2989, 2147483648
      %v3215 = vsel %vm3213, %v3214, %v3212
      %v3216 = vrsqrt.pop %v2990
      %v3217 = vmul.f32 %v2990, %v3216
      %vm3218 = vcmp.eq.f32.partialorder %v2990, inf
      %v3219 = vsel %vm3218, %v2990, %v3217
      %vm3220 = vcmp.eq.f32.partialorder %v2990, 0.0
      %v3221 = vand.u32 %v2990, 2147483648
      %v3222 = vsel %vm3220, %v3221, %v3219
      %v3223 = vrsqrt.pop %v2991
      %v3224 = vmul.f32 %v2991, %v3223
      %vm3225 = vcmp.eq.f32.partialorder %v2991, inf
      %v3226 = vsel %vm3225, %v2991, %v3224
      %vm3227 = vcmp.eq.f32.partialorder %v2991, 0.0
      %v3228 = vand.u32 %v2991, 2147483648
      %v3229 = vsel %vm3227, %v3228, %v3226
      %v3230 = vrsqrt.pop %v2992
      %v3231 = vmul.f32 %v2992, %v3230
      %vm3232 = vcmp.eq.f32.partialorder %v2992, inf
      %v3233 = vsel %vm3232, %v2992, %v3231
      %vm3234 = vcmp.eq.f32.partialorder %v2992, 0.0
      %v3235 = vand.u32 %v2992, 2147483648
      %v3236 = vsel %vm3234, %v3235, %v3233
      %v3237 = vrsqrt.pop %v2993
      %v3238 = vmul.f32 %v2993, %v3237
      %vm3239 = vcmp.eq.f32.partialorder %v2993, inf
      %v3240 = vsel %vm3239, %v2993, %v3238
      %vm3241 = vcmp.eq.f32.partialorder %v2993, 0.0
      %v3242 = vand.u32 %v2993, 2147483648
      %v3243 = vsel %vm3241, %v3242, %v3240
      %v3244 = vrsqrt.pop %v2994
      %v3245 = vmul.f32 %v2994, %v3244
      %vm3246 = vcmp.eq.f32.partialorder %v2994, inf
      %v3247 = vsel %vm3246, %v2994, %v3245
      %vm3248 = vcmp.eq.f32.partialorder %v2994, 0.0
      %v3249 = vand.u32 %v2994, 2147483648
      %v3250 = vsel %vm3248, %v3249, %v3247
      %v3251 = vrsqrt.pop %v2995
      %v3252 = vmul.f32 %v2995, %v3251
      %vm3253 = vcmp.eq.f32.partialorder %v2995, inf
      %v3254 = vsel %vm3253, %v2995, %v3252
      %vm3255 = vcmp.eq.f32.partialorder %v2995, 0.0
      %v3256 = vand.u32 %v2995, 2147483648
      %v3257 = vsel %vm3255, %v3256, %v3254
      %v3258 = vrsqrt.pop %v2996
      %v3259 = vmul.f32 %v2996, %v3258
      %vm3260 = vcmp.eq.f32.partialorder %v2996, inf
      %v3261 = vsel %vm3260, %v2996, %v3259
      %vm3262 = vcmp.eq.f32.partialorder %v2996, 0.0
      %v3263 = vand.u32 %v2996, 2147483648
      %v3264 = vsel %vm3262, %v3263, %v3261
      %v3265 = vrsqrt.pop %v2997
      %v3266 = vmul.f32 %v2997, %v3265
      %vm3267 = vcmp.eq.f32.partialorder %v2997, inf
      %v3268 = vsel %vm3267, %v2997, %v3266
      %vm3269 = vcmp.eq.f32.partialorder %v2997, 0.0
      %v3270 = vand.u32 %v2997, 2147483648
      %v3271 = vsel %vm3269, %v3270, %v3268
      %v3272 = vrsqrt.pop %v2998
      %v3273 = vmul.f32 %v2998, %v3272
      %vm3274 = vcmp.eq.f32.partialorder %v2998, inf
      %v3275 = vsel %vm3274, %v2998, %v3273
      %vm3276 = vcmp.eq.f32.partialorder %v2998, 0.0
      %v3277 = vand.u32 %v2998, 2147483648
      %v3278 = vsel %vm3276, %v3277, %v3275
      %v3279 = vrsqrt.pop %v2999
      %v3280 = vmul.f32 %v2999, %v3279
      %vm3281 = vcmp.eq.f32.partialorder %v2999, inf
      %v3282 = vsel %vm3281, %v2999, %v3280
      %vm3283 = vcmp.eq.f32.partialorder %v2999, 0.0
      %v3284 = vand.u32 %v2999, 2147483648
      %v3285 = vsel %vm3283, %v3284, %v3282
      %v3286 = vrsqrt.pop %v3000
      %v3287 = vmul.f32 %v3000, %v3286
      %vm3288 = vcmp.eq.f32.partialorder %v3000, inf
      %v3289 = vsel %vm3288, %v3000, %v3287
      %vm3290 = vcmp.eq.f32.partialorder %v3000, 0.0
      %v3291 = vand.u32 %v3000, 2147483648
      %v3292 = vsel %vm3290, %v3291, %v3289
      %v3293 = vrsqrt.pop %v3001
      %v3294 = vmul.f32 %v3001, %v3293
      %vm3295 = vcmp.eq.f32.partialorder %v3001, inf
      %v3296 = vsel %vm3295, %v3001, %v3294
      %vm3297 = vcmp.eq.f32.partialorder %v3001, 0.0
      %v3298 = vand.u32 %v3001, 2147483648
      %v3299 = vsel %vm3297, %v3298, %v3296
      %v3300 = vrsqrt.pop %v3002
      %v3301 = vmul.f32 %v3002, %v3300
      %vm3302 = vcmp.eq.f32.partialorder %v3002, inf
      %v3303 = vsel %vm3302, %v3002, %v3301
      %vm3304 = vcmp.eq.f32.partialorder %v3002, 0.0
      %v3305 = vand.u32 %v3002, 2147483648
      %v3306 = vsel %vm3304, %v3305, %v3303
      %v3307 = vrsqrt.pop %v3003
      %v3308 = vmul.f32 %v3003, %v3307
      %vm3309 = vcmp.eq.f32.partialorder %v3003, inf
      %v3310 = vsel %vm3309, %v3003, %v3308
      %vm3311 = vcmp.eq.f32.partialorder %v3003, 0.0
      %v3312 = vand.u32 %v3003, 2147483648
      %v3313 = vsel %vm3311, %v3312, %v3310
      %v3314 = vrsqrt.pop %v3004
      %v3315 = vmul.f32 %v3004, %v3314
      %vm3316 = vcmp.eq.f32.partialorder %v3004, inf
      %v3317 = vsel %vm3316, %v3004, %v3315
      %vm3318 = vcmp.eq.f32.partialorder %v3004, 0.0
      %v3319 = vand.u32 %v3004, 2147483648
      %v3320 = vsel %vm3318, %v3319, %v3317
      %v3321 = vrsqrt.pop %v3005
      %v3322 = vmul.f32 %v3005, %v3321
      %vm3323 = vcmp.eq.f32.partialorder %v3005, inf
      %v3324 = vsel %vm3323, %v3005, %v3322
      %vm3325 = vcmp.eq.f32.partialorder %v3005, 0.0
      %v3326 = vand.u32 %v3005, 2147483648
      %v3327 = vsel %vm3325, %v3326, %v3324
      %v3328 = vrsqrt.pop %v3006
      %v3329 = vmul.f32 %v3006, %v3328
      %vm3330 = vcmp.eq.f32.partialorder %v3006, inf
      %v3331 = vsel %vm3330, %v3006, %v3329
      %vm3332 = vcmp.eq.f32.partialorder %v3006, 0.0
      %v3333 = vand.u32 %v3006, 2147483648
      %v3334 = vsel %vm3332, %v3333, %v3331
      %v3335 = vrsqrt.pop %v3007
      %v3336 = vmul.f32 %v3007, %v3335
      %vm3337 = vcmp.eq.f32.partialorder %v3007, inf
      %v3338 = vsel %vm3337, %v3007, %v3336
      %vm3339 = vcmp.eq.f32.partialorder %v3007, 0.0
      %v3340 = vand.u32 %v3007, 2147483648
      %v3341 = vsel %vm3339, %v3340, %v3338
      %v3342 = vrsqrt.pop %v3008
      %v3343 = vmul.f32 %v3008, %v3342
      %vm3344 = vcmp.eq.f32.partialorder %v3008, inf
      %v3345 = vsel %vm3344, %v3008, %v3343
      %vm3346 = vcmp.eq.f32.partialorder %v3008, 0.0
      %v3347 = vand.u32 %v3008, 2147483648
      %v3348 = vsel %vm3346, %v3347, %v3345
      %v3349 = vrsqrt.pop %v3009
      %v3350 = vmul.f32 %v3009, %v3349
      %vm3351 = vcmp.eq.f32.partialorder %v3009, inf
      %v3352 = vsel %vm3351, %v3009, %v3350
      %vm3353 = vcmp.eq.f32.partialorder %v3009, 0.0
      %v3354 = vand.u32 %v3009, 2147483648
      %v3355 = vsel %vm3353, %v3354, %v3352
      %v3356 = vrsqrt.pop %v3010
      %v3357 = vmul.f32 %v3010, %v3356
      %vm3358 = vcmp.eq.f32.partialorder %v3010, inf
      %v3359 = vsel %vm3358, %v3010, %v3357
      %vm3360 = vcmp.eq.f32.partialorder %v3010, 0.0
      %v3361 = vand.u32 %v3010, 2147483648
      %v3362 = vsel %vm3360, %v3361, %v3359
      %v3363 = vrsqrt.pop %v3011
      %v3364 = vmul.f32 %v3011, %v3363
      %vm3365 = vcmp.eq.f32.partialorder %v3011, inf
      %v3366 = vsel %vm3365, %v3011, %v3364
      %vm3367 = vcmp.eq.f32.partialorder %v3011, 0.0
      %v3368 = vand.u32 %v3011, 2147483648
      %v3369 = vsel %vm3367, %v3368, %v3366
      %v3370 = vrsqrt.pop %v3012
      %v3371 = vmul.f32 %v3012, %v3370
      %vm3372 = vcmp.eq.f32.partialorder %v3012, inf
      %v3373 = vsel %vm3372, %v3012, %v3371
      %vm3374 = vcmp.eq.f32.partialorder %v3012, 0.0
      %v3375 = vand.u32 %v3012, 2147483648
      %v3376 = vsel %vm3374, %v3375, %v3373
      %v3377 = vrsqrt.pop %v3013
      %v3378 = vmul.f32 %v3013, %v3377
      %vm3379 = vcmp.eq.f32.partialorder %v3013, inf
      %v3380 = vsel %vm3379, %v3013, %v3378
      %vm3381 = vcmp.eq.f32.partialorder %v3013, 0.0
      %v3382 = vand.u32 %v3013, 2147483648
      %v3383 = vsel %vm3381, %v3382, %v3380
      %v3384 = vrsqrt.pop %v3014
      %v3385 = vmul.f32 %v3014, %v3384
      %vm3386 = vcmp.eq.f32.partialorder %v3014, inf
      %v3387 = vsel %vm3386, %v3014, %v3385
      %vm3388 = vcmp.eq.f32.partialorder %v3014, 0.0
      %v3389 = vand.u32 %v3014, 2147483648
      %v3390 = vsel %vm3388, %v3389, %v3387
      %v3391 = vrsqrt.pop %v3015
      %v3392 = vmul.f32 %v3015, %v3391
      %vm3393 = vcmp.eq.f32.partialorder %v3015, inf
      %v3394 = vsel %vm3393, %v3015, %v3392
      %vm3395 = vcmp.eq.f32.partialorder %v3015, 0.0
      %v3396 = vand.u32 %v3015, 2147483648
      %v3397 = vsel %vm3395, %v3396, %v3394
      %v3398 = vrsqrt.pop %v3016
      %v3399 = vmul.f32 %v3016, %v3398
      %vm3400 = vcmp.eq.f32.partialorder %v3016, inf
      %v3401 = vsel %vm3400, %v3016, %v3399
      %vm3402 = vcmp.eq.f32.partialorder %v3016, 0.0
      %v3403 = vand.u32 %v3016, 2147483648
      %v3404 = vsel %vm3402, %v3403, %v3401
      %v3405 = vrsqrt.pop %v3017
      %v3406 = vmul.f32 %v3017, %v3405
      %vm3407 = vcmp.eq.f32.partialorder %v3017, inf
      %v3408 = vsel %vm3407, %v3017, %v3406
      %vm3409 = vcmp.eq.f32.partialorder %v3017, 0.0
      %v3410 = vand.u32 %v3017, 2147483648
      %v3411 = vsel %vm3409, %v3410, %v3408
      %v3412 = vrsqrt.pop %v3018
      %v3413 = vmul.f32 %v3018, %v3412
      %vm3414 = vcmp.eq.f32.partialorder %v3018, inf
      %v3415 = vsel %vm3414, %v3018, %v3413
      %vm3416 = vcmp.eq.f32.partialorder %v3018, 0.0
      %v3417 = vand.u32 %v3018, 2147483648
      %v3418 = vsel %vm3416, %v3417, %v3415
      %v3419 = vrsqrt.pop %v3019
      %v3420 = vmul.f32 %v3019, %v3419
      %vm3421 = vcmp.eq.f32.partialorder %v3019, inf
      %v3422 = vsel %vm3421, %v3019, %v3420
      %vm3423 = vcmp.eq.f32.partialorder %v3019, 0.0
      %v3424 = vand.u32 %v3019, 2147483648
      %v3425 = vsel %vm3423, %v3424, %v3422
      %v3426 = vrsqrt.pop %v3020
      %v3427 = vmul.f32 %v3020, %v3426
      %vm3428 = vcmp.eq.f32.partialorder %v3020, inf
      %v3429 = vsel %vm3428, %v3020, %v3427
      %vm3430 = vcmp.eq.f32.partialorder %v3020, 0.0
      %v3431 = vand.u32 %v3020, 2147483648
      %v3432 = vsel %vm3430, %v3431, %v3429
      %v3433 = vrsqrt.pop %v3021
      %v3434 = vmul.f32 %v3021, %v3433
      %vm3435 = vcmp.eq.f32.partialorder %v3021, inf
      %v3436 = vsel %vm3435, %v3021, %v3434
      %vm3437 = vcmp.eq.f32.partialorder %v3021, 0.0
      %v3438 = vand.u32 %v3021, 2147483648
      %v3439 = vsel %vm3437, %v3438, %v3436
      %v3440 = vrsqrt.pop %v3022
      %v3441 = vmul.f32 %v3022, %v3440
      %vm3442 = vcmp.eq.f32.partialorder %v3022, inf
      %v3443 = vsel %vm3442, %v3022, %v3441
      %vm3444 = vcmp.eq.f32.partialorder %v3022, 0.0
      %v3445 = vand.u32 %v3022, 2147483648
      %v3446 = vsel %vm3444, %v3445, %v3443
      %v3447 = vrsqrt.pop %v3023
      %v3448 = vmul.f32 %v3023, %v3447
      %vm3449 = vcmp.eq.f32.partialorder %v3023, inf
      %v3450 = vsel %vm3449, %v3023, %v3448
      %vm3451 = vcmp.eq.f32.partialorder %v3023, 0.0
      %v3452 = vand.u32 %v3023, 2147483648
      %v3453 = vsel %vm3451, %v3452, %v3450
      %v3454 = vrsqrt.pop %v3024
      %v3455 = vmul.f32 %v3024, %v3454
      %vm3456 = vcmp.eq.f32.partialorder %v3024, inf
      %v3457 = vsel %vm3456, %v3024, %v3455
      %vm3458 = vcmp.eq.f32.partialorder %v3024, 0.0
      %v3459 = vand.u32 %v3024, 2147483648
      %v3460 = vsel %vm3458, %v3459, %v3457
      %v3461 = vrsqrt.pop %v3025
      %v3462 = vmul.f32 %v3025, %v3461
      %vm3463 = vcmp.eq.f32.partialorder %v3025, inf
      %v3464 = vsel %vm3463, %v3025, %v3462
      %vm3465 = vcmp.eq.f32.partialorder %v3025, 0.0
      %v3466 = vand.u32 %v3025, 2147483648
      %v3467 = vsel %vm3465, %v3466, %v3464
      %v3468 = vrsqrt.pop %v3026
      %v3469 = vmul.f32 %v3026, %v3468
      %vm3470 = vcmp.eq.f32.partialorder %v3026, inf
      %v3471 = vsel %vm3470, %v3026, %v3469
      %vm3472 = vcmp.eq.f32.partialorder %v3026, 0.0
      %v3473 = vand.u32 %v3026, 2147483648
      %v3474 = vsel %vm3472, %v3473, %v3471
      %v3475 = vmul.f32 %v3033, 2.0
      %v3476 = vmul.f32 %v3040, 2.0
      %v3477 = vmul.f32 %v3047, 2.0
      %v3478 = vmul.f32 %v3054, 2.0
      %v3479 = vmul.f32 %v3061, 2.0
      %v3480 = vmul.f32 %v3068, 2.0
      %v3481 = vmul.f32 %v3075, 2.0
      %v3482 = vmul.f32 %v3082, 2.0
      %v3483 = vmul.f32 %v3089, 2.0
      %v3484 = vmul.f32 %v3096, 2.0
      %v3485 = vmul.f32 %v3103, 2.0
      %v3486 = vmul.f32 %v3110, 2.0
      %v3487 = vmul.f32 %v3117, 2.0
      %v3488 = vmul.f32 %v3124, 2.0
      %v3489 = vmul.f32 %v3131, 2.0
      %v3490 = vmul.f32 %v3138, 2.0
      %v3491 = vmul.f32 %v3145, 2.0
      %v3492 = vmul.f32 %v3152, 2.0
      %v3493 = vmul.f32 %v3159, 2.0
      %v3494 = vmul.f32 %v3166, 2.0
      %v3495 = vmul.f32 %v3173, 2.0
      %v3496 = vmul.f32 %v3180, 2.0
      %v3497 = vmul.f32 %v3187, 2.0
      %v3498 = vmul.f32 %v3194, 2.0
      %v3499 = vmul.f32 %v3201, 2.0
      %v3500 = vmul.f32 %v3208, 2.0
      %v3501 = vmul.f32 %v3215, 2.0
      %v3502 = vmul.f32 %v3222, 2.0
      %v3503 = vmul.f32 %v3229, 2.0
      %v3504 = vmul.f32 %v3236, 2.0
      %v3505 = vmul.f32 %v3243, 2.0
      %v3506 = vmul.f32 %v3250, 2.0
      %v3507 = vmul.f32 %v3257, 2.0
      %v3508 = vmul.f32 %v3264, 2.0
      %v3509 = vmul.f32 %v3271, 2.0
      %v3510 = vmul.f32 %v3278, 2.0
      %v3511 = vmul.f32 %v3285, 2.0
      %v3512 = vmul.f32 %v3292, 2.0
      %v3513 = vmul.f32 %v3299, 2.0
      %v3514 = vmul.f32 %v3306, 2.0
      %v3515 = vmul.f32 %v3313, 2.0
      %v3516 = vmul.f32 %v3320, 2.0
      %v3517 = vmul.f32 %v3327, 2.0
      %v3518 = vmul.f32 %v3334, 2.0
      %v3519 = vmul.f32 %v3341, 2.0
      %v3520 = vmul.f32 %v3348, 2.0
      %v3521 = vmul.f32 %v3355, 2.0
      %v3522 = vmul.f32 %v3362, 2.0
      %v3523 = vmul.f32 %v3369, 2.0
      %v3524 = vmul.f32 %v3376, 2.0
      %v3525 = vmul.f32 %v3383, 2.0
      %v3526 = vmul.f32 %v3390, 2.0
      %v3527 = vmul.f32 %v3397, 2.0
      %v3528 = vmul.f32 %v3404, 2.0
      %v3529 = vmul.f32 %v3411, 2.0
      %v3530 = vmul.f32 %v3418, 2.0
      %v3531 = vmul.f32 %v3425, 2.0
      %v3532 = vmul.f32 %v3432, 2.0
      %v3533 = vmul.f32 %v3439, 2.0
      %v3534 = vmul.f32 %v3446, 2.0
      %v3535 = vmul.f32 %v3453, 2.0
      %v3536 = vmul.f32 %v3460, 2.0
      %v3537 = vmul.f32 %v3467, 2.0
      %v3538 = vmul.f32 %v3474, 2.0
      %v3539 = vadd.f32 %v2899, %v3475
      %v3540 = vadd.f32 %v2900, %v3476
      %v3541 = vadd.f32 %v2901, %v3477
      %v3542 = vadd.f32 %v2902, %v3478
      %v3543 = vadd.f32 %v2903, %v3479
      %v3544 = vadd.f32 %v2904, %v3480
      %v3545 = vadd.f32 %v2905, %v3481
      %v3546 = vadd.f32 %v2906, %v3482
      %v3547 = vadd.f32 %v2907, %v3483
      %v3548 = vadd.f32 %v2908, %v3484
      %v3549 = vadd.f32 %v2909, %v3485
      %v3550 = vadd.f32 %v2910, %v3486
      %v3551 = vadd.f32 %v2911, %v3487
      %v3552 = vadd.f32 %v2912, %v3488
      %v3553 = vadd.f32 %v2913, %v3489
      %v3554 = vadd.f32 %v2914, %v3490
      %v3555 = vadd.f32 %v2915, %v3491
      %v3556 = vadd.f32 %v2916, %v3492
      %v3557 = vadd.f32 %v2917, %v3493
      %v3558 = vadd.f32 %v2918, %v3494
      %v3559 = vadd.f32 %v2919, %v3495
      %v3560 = vadd.f32 %v2920, %v3496
      %v3561 = vadd.f32 %v2921, %v3497
      %v3562 = vadd.f32 %v2922, %v3498
      %v3563 = vadd.f32 %v2923, %v3499
      %v3564 = vadd.f32 %v2924, %v3500
      %v3565 = vadd.f32 %v2925, %v3501
      %v3566 = vadd.f32 %v2926, %v3502
      %v3567 = vadd.f32 %v2927, %v3503
      %v3568 = vadd.f32 %v2928, %v3504
      %v3569 = vadd.f32 %v2929, %v3505
      %v3570 = vadd.f32 %v2930, %v3506
      %v3571 = vadd.f32 %v2931, %v3507
      %v3572 = vadd.f32 %v2932, %v3508
      %v3573 = vadd.f32 %v2933, %v3509
      %v3574 = vadd.f32 %v2934, %v3510
      %v3575 = vadd.f32 %v2935, %v3511
      %v3576 = vadd.f32 %v2936, %v3512
      %v3577 = vadd.f32 %v2937, %v3513
      %v3578 = vadd.f32 %v2938, %v3514
      %v3579 = vadd.f32 %v2939, %v3515
      %v3580 = vadd.f32 %v2940, %v3516
      %v3581 = vadd.f32 %v2941, %v3517
      %v3582 = vadd.f32 %v2942, %v3518
      %v3583 = vadd.f32 %v2943, %v3519
      %v3584 = vadd.f32 %v2944, %v3520
      %v3585 = vadd.f32 %v2945, %v3521
      %v3586 = vadd.f32 %v2946, %v3522
      %v3587 = vadd.f32 %v2947, %v3523
      %v3588 = vadd.f32 %v2948, %v3524
      %v3589 = vadd.f32 %v2949, %v3525
      %v3590 = vadd.f32 %v2950, %v3526
      %v3591 = vadd.f32 %v2951, %v3527
      %v3592 = vadd.f32 %v2952, %v3528
      %v3593 = vadd.f32 %v2953, %v3529
      %v3594 = vadd.f32 %v2954, %v3530
      %v3595 = vadd.f32 %v2955, %v3531
      %v3596 = vadd.f32 %v2956, %v3532
      %v3597 = vadd.f32 %v2957, %v3533
      %v3598 = vadd.f32 %v2958, %v3534
      %v3599 = vadd.f32 %v2959, %v3535
      %v3600 = vadd.f32 %v2960, %v3536
      %v3601 = vadd.f32 %v2961, %v3537
      %v3602 = vadd.f32 %v2962, %v3538
      %v3603 = vmul.f32 %v3539, 0.25
      %v3604 = vmul.f32 %v3540, 0.25
      %v3605 = vmul.f32 %v3541, 0.25
      %v3606 = vmul.f32 %v3542, 0.25
      %v3607 = vmul.f32 %v3543, 0.25
      %v3608 = vmul.f32 %v3544, 0.25
      %v3609 = vmul.f32 %v3545, 0.25
      %v3610 = vmul.f32 %v3546, 0.25
      %v3611 = vmul.f32 %v3547, 0.25
      %v3612 = vmul.f32 %v3548, 0.25
      %v3613 = vmul.f32 %v3549, 0.25
      %v3614 = vmul.f32 %v3550, 0.25
      %v3615 = vmul.f32 %v3551, 0.25
      %v3616 = vmul.f32 %v3552, 0.25
      %v3617 = vmul.f32 %v3553, 0.25
      %v3618 = vmul.f32 %v3554, 0.25
      %v3619 = vmul.f32 %v3555, 0.25
      %v3620 = vmul.f32 %v3556, 0.25
      %v3621 = vmul.f32 %v3557, 0.25
      %v3622 = vmul.f32 %v3558, 0.25
      %v3623 = vmul.f32 %v3559, 0.25
      %v3624 = vmul.f32 %v3560, 0.25
      %v3625 = vmul.f32 %v3561, 0.25
      %v3626 = vmul.f32 %v3562, 0.25
      %v3627 = vmul.f32 %v3563, 0.25
      %v3628 = vmul.f32 %v3564, 0.25
      %v3629 = vmul.f32 %v3565, 0.25
      %v3630 = vmul.f32 %v3566, 0.25
      %v3631 = vmul.f32 %v3567, 0.25
      %v3632 = vmul.f32 %v3568, 0.25
      %v3633 = vmul.f32 %v3569, 0.25
      %v3634 = vmul.f32 %v3570, 0.25
      %v3635 = vmul.f32 %v3571, 0.25
      %v3636 = vmul.f32 %v3572, 0.25
      %v3637 = vmul.f32 %v3573, 0.25
      %v3638 = vmul.f32 %v3574, 0.25
      %v3639 = vmul.f32 %v3575, 0.25
      %v3640 = vmul.f32 %v3576, 0.25
      %v3641 = vmul.f32 %v3577, 0.25
      %v3642 = vmul.f32 %v3578, 0.25
      %v3643 = vmul.f32 %v3579, 0.25
      %v3644 = vmul.f32 %v3580, 0.25
      %v3645 = vmul.f32 %v3581, 0.25
      %v3646 = vmul.f32 %v3582, 0.25
      %v3647 = vmul.f32 %v3583, 0.25
      %v3648 = vmul.f32 %v3584, 0.25
      %v3649 = vmul.f32 %v3585, 0.25
      %v3650 = vmul.f32 %v3586, 0.25
      %v3651 = vmul.f32 %v3587, 0.25
      %v3652 = vmul.f32 %v3588, 0.25
      %v3653 = vmul.f32 %v3589, 0.25
      %v3654 = vmul.f32 %v3590, 0.25
      %v3655 = vmul.f32 %v3591, 0.25
      %v3656 = vmul.f32 %v3592, 0.25
      %v3657 = vmul.f32 %v3593, 0.25
      %v3658 = vmul.f32 %v3594, 0.25
      %v3659 = vmul.f32 %v3595, 0.25
      %v3660 = vmul.f32 %v3596, 0.25
      %v3661 = vmul.f32 %v3597, 0.25
      %v3662 = vmul.f32 %v3598, 0.25
      %v3663 = vmul.f32 %v3599, 0.25
      %v3664 = vmul.f32 %v3600, 0.25
      %v3665 = vmul.f32 %v3601, 0.25
      %v3666 = vmul.f32 %v3602, 0.25
      %v3667 = vmul.f32 %v3603, 0.6944444
      %v3668 = vmul.f32 %v3604, 0.6944444
      %v3669 = vmul.f32 %v3605, 0.6944444
      %v3670 = vmul.f32 %v3606, 0.6944444
      %v3671 = vmul.f32 %v3607, 0.6944444
      %v3672 = vmul.f32 %v3608, 0.6944444
      %v3673 = vmul.f32 %v3609, 0.6944444
      %v3674 = vmul.f32 %v3610, 0.6944444
      %v3675 = vmul.f32 %v3611, 0.6944444
      %v3676 = vmul.f32 %v3612, 0.6944444
      %v3677 = vmul.f32 %v3613, 0.6944444
      %v3678 = vmul.f32 %v3614, 0.6944444
      %v3679 = vmul.f32 %v3615, 0.6944444
      %v3680 = vmul.f32 %v3616, 0.6944444
      %v3681 = vmul.f32 %v3617, 0.6944444
      %v3682 = vmul.f32 %v3618, 0.6944444
      %v3683 = vmul.f32 %v3619, 0.6944444
      %v3684 = vmul.f32 %v3620, 0.6944444
      %v3685 = vmul.f32 %v3621, 0.6944444
      %v3686 = vmul.f32 %v3622, 0.6944444
      %v3687 = vmul.f32 %v3623, 0.6944444
      %v3688 = vmul.f32 %v3624, 0.6944444
      %v3689 = vmul.f32 %v3625, 0.6944444
      %v3690 = vmul.f32 %v3626, 0.6944444
      %v3691 = vmul.f32 %v3627, 0.6944444
      %v3692 = vmul.f32 %v3628, 0.6944444
      %v3693 = vmul.f32 %v3629, 0.6944444
      %v3694 = vmul.f32 %v3630, 0.6944444
      %v3695 = vmul.f32 %v3631, 0.6944444
      %v3696 = vmul.f32 %v3632, 0.6944444
      %v3697 = vmul.f32 %v3633, 0.6944444
      %v3698 = vmul.f32 %v3634, 0.6944444
      %v3699 = vmul.f32 %v3635, 0.6944444
      %v3700 = vmul.f32 %v3636, 0.6944444
      %v3701 = vmul.f32 %v3637, 0.6944444
      %v3702 = vmul.f32 %v3638, 0.6944444
      %v3703 = vmul.f32 %v3639, 0.6944444
      %v3704 = vmul.f32 %v3640, 0.6944444
      %v3705 = vmul.f32 %v3641, 0.6944444
      %v3706 = vmul.f32 %v3642, 0.6944444
      %v3707 = vmul.f32 %v3643, 0.6944444
      %v3708 = vmul.f32 %v3644, 0.6944444
      %v3709 = vmul.f32 %v3645, 0.6944444
      %v3710 = vmul.f32 %v3646, 0.6944444
      %v3711 = vmul.f32 %v3647, 0.6944444
      %v3712 = vmul.f32 %v3648, 0.6944444
      %v3713 = vmul.f32 %v3649, 0.6944444
      %v3714 = vmul.f32 %v3650, 0.6944444
      %v3715 = vmul.f32 %v3651, 0.6944444
      %v3716 = vmul.f32 %v3652, 0.6944444
      %v3717 = vmul.f32 %v3653, 0.6944444
      %v3718 = vmul.f32 %v3654, 0.6944444
      %v3719 = vmul.f32 %v3655, 0.6944444
      %v3720 = vmul.f32 %v3656, 0.6944444
      %v3721 = vmul.f32 %v3657, 0.6944444
      %v3722 = vmul.f32 %v3658, 0.6944444
      %v3723 = vmul.f32 %v3659, 0.6944444
      %v3724 = vmul.f32 %v3660, 0.6944444
      %v3725 = vmul.f32 %v3661, 0.6944444
      %v3726 = vmul.f32 %v3662, 0.6944444
      %v3727 = vmul.f32 %v3663, 0.6944444
      %v3728 = vmul.f32 %v3664, 0.6944444
      %v3729 = vmul.f32 %v3665, 0.6944444
      %v3730 = vmul.f32 %v3666, 0.6944444
      %v3731 = vsub.f32 1.0, %v3667
      %v3732 = vsub.f32 1.0, %v3668
      %v3733 = vsub.f32 1.0, %v3669
      %v3734 = vsub.f32 1.0, %v3670
      %v3735 = vsub.f32 1.0, %v3671
      %v3736 = vsub.f32 1.0, %v3672
      %v3737 = vsub.f32 1.0, %v3673
      %v3738 = vsub.f32 1.0, %v3674
      %v3739 = vsub.f32 1.0, %v3675
      %v3740 = vsub.f32 1.0, %v3676
      %v3741 = vsub.f32 1.0, %v3677
      %v3742 = vsub.f32 1.0, %v3678
      %v3743 = vsub.f32 1.0, %v3679
      %v3744 = vsub.f32 1.0, %v3680
      %v3745 = vsub.f32 1.0, %v3681
      %v3746 = vsub.f32 1.0, %v3682
      %v3747 = vsub.f32 1.0, %v3683
      %v3748 = vsub.f32 1.0, %v3684
      %v3749 = vsub.f32 1.0, %v3685
      %v3750 = vsub.f32 1.0, %v3686
      %v3751 = vsub.f32 1.0, %v3687
      %v3752 = vsub.f32 1.0, %v3688
      %v3753 = vsub.f32 1.0, %v3689
      %v3754 = vsub.f32 1.0, %v3690
      %v3755 = vsub.f32 1.0, %v3691
      %v3756 = vsub.f32 1.0, %v3692
      %v3757 = vsub.f32 1.0, %v3693
      %v3758 = vsub.f32 1.0, %v3694
      %v3759 = vsub.f32 1.0, %v3695
      %v3760 = vsub.f32 1.0, %v3696
      %v3761 = vsub.f32 1.0, %v3697
      %v3762 = vsub.f32 1.0, %v3698
      %v3763 = vsub.f32 1.0, %v3699
      %v3764 = vsub.f32 1.0, %v3700
      %v3765 = vsub.f32 1.0, %v3701
      %v3766 = vsub.f32 1.0, %v3702
      %v3767 = vsub.f32 1.0, %v3703
      %v3768 = vsub.f32 1.0, %v3704
      %v3769 = vsub.f32 1.0, %v3705
      %v3770 = vsub.f32 1.0, %v3706
      %v3771 = vsub.f32 1.0, %v3707
      %v3772 = vsub.f32 1.0, %v3708
      %v3773 = vsub.f32 1.0, %v3709
      %v3774 = vsub.f32 1.0, %v3710
      %v3775 = vsub.f32 1.0, %v3711
      %v3776 = vsub.f32 1.0, %v3712
      %v3777 = vsub.f32 1.0, %v3713
      %v3778 = vsub.f32 1.0, %v3714
      %v3779 = vsub.f32 1.0, %v3715
      %v3780 = vsub.f32 1.0, %v3716
      %v3781 = vsub.f32 1.0, %v3717
      %v3782 = vsub.f32 1.0, %v3718
      %v3783 = vsub.f32 1.0, %v3719
      %v3784 = vsub.f32 1.0, %v3720
      %v3785 = vsub.f32 1.0, %v3721
      %v3786 = vsub.f32 1.0, %v3722
      %v3787 = vsub.f32 1.0, %v3723
      %v3788 = vsub.f32 1.0, %v3724
      %v3789 = vsub.f32 1.0, %v3725
      %v3790 = vsub.f32 1.0, %v3726
      %v3791 = vsub.f32 1.0, %v3727
      %v3792 = vsub.f32 1.0, %v3728
      %v3793 = vsub.f32 1.0, %v3729
      %v3794 = vsub.f32 1.0, %v3730
      %v3795 = vmax.f32 %v3731, 0.0
      %v3796 = vmax.f32 %v3732, 0.0
      %v3797 = vmax.f32 %v3733, 0.0
      %v3798 = vmax.f32 %v3734, 0.0
      %v3799 = vmax.f32 %v3735, 0.0
      %v3800 = vmax.f32 %v3736, 0.0
      %v3801 = vmax.f32 %v3737, 0.0
      %v3802 = vmax.f32 %v3738, 0.0
      %v3803 = vmax.f32 %v3739, 0.0
      %v3804 = vmax.f32 %v3740, 0.0
      %v3805 = vmax.f32 %v3741, 0.0
      %v3806 = vmax.f32 %v3742, 0.0
      %v3807 = vmax.f32 %v3743, 0.0
      %v3808 = vmax.f32 %v3744, 0.0
      %v3809 = vmax.f32 %v3745, 0.0
      %v3810 = vmax.f32 %v3746, 0.0
      %v3811 = vmax.f32 %v3747, 0.0
      %v3812 = vmax.f32 %v3748, 0.0
      %v3813 = vmax.f32 %v3749, 0.0
      %v3814 = vmax.f32 %v3750, 0.0
      %v3815 = vmax.f32 %v3751, 0.0
      %v3816 = vmax.f32 %v3752, 0.0
      %v3817 = vmax.f32 %v3753, 0.0
      %v3818 = vmax.f32 %v3754, 0.0
      %v3819 = vmax.f32 %v3755, 0.0
      %v3820 = vmax.f32 %v3756, 0.0
      %v3821 = vmax.f32 %v3757, 0.0
      %v3822 = vmax.f32 %v3758, 0.0
      %v3823 = vmax.f32 %v3759, 0.0
      %v3824 = vmax.f32 %v3760, 0.0
      %v3825 = vmax.f32 %v3761, 0.0
      %v3826 = vmax.f32 %v3762, 0.0
      %v3827 = vmax.f32 %v3763, 0.0
      %v3828 = vmax.f32 %v3764, 0.0
      %v3829 = vmax.f32 %v3765, 0.0
      %v3830 = vmax.f32 %v3766, 0.0
      %v3831 = vmax.f32 %v3767, 0.0
      %v3832 = vmax.f32 %v3768, 0.0
      %v3833 = vmax.f32 %v3769, 0.0
      %v3834 = vmax.f32 %v3770, 0.0
      %v3835 = vmax.f32 %v3771, 0.0
      %v3836 = vmax.f32 %v3772, 0.0
      %v3837 = vmax.f32 %v3773, 0.0
      %v3838 = vmax.f32 %v3774, 0.0
      %v3839 = vmax.f32 %v3775, 0.0
      %v3840 = vmax.f32 %v3776, 0.0
      %v3841 = vmax.f32 %v3777, 0.0
      %v3842 = vmax.f32 %v3778, 0.0
      %v3843 = vmax.f32 %v3779, 0.0
      %v3844 = vmax.f32 %v3780, 0.0
      %v3845 = vmax.f32 %v3781, 0.0
      %v3846 = vmax.f32 %v3782, 0.0
      %v3847 = vmax.f32 %v3783, 0.0
      %v3848 = vmax.f32 %v3784, 0.0
      %v3849 = vmax.f32 %v3785, 0.0
      %v3850 = vmax.f32 %v3786, 0.0
      %v3851 = vmax.f32 %v3787, 0.0
      %v3852 = vmax.f32 %v3788, 0.0
      %v3853 = vmax.f32 %v3789, 0.0
      %v3854 = vmax.f32 %v3790, 0.0
      %v3855 = vmax.f32 %v3791, 0.0
      %v3856 = vmax.f32 %v3792, 0.0
      %v3857 = vmax.f32 %v3793, 0.0
      %v3858 = vmax.f32 %v3794, 0.0
      %v3859 = vmul.f32 %v2835, %v3795
      %v3860 = vmul.f32 %v2836, %v3796
      %v3861 = vmul.f32 %v2837, %v3797
      %v3862 = vmul.f32 %v2838, %v3798
      %v3863 = vmul.f32 %v2839, %v3799
      %v3864 = vmul.f32 %v2840, %v3800
      %v3865 = vmul.f32 %v2841, %v3801
      %v3866 = vmul.f32 %v2842, %v3802
      %v3867 = vmul.f32 %v2843, %v3803
      %v3868 = vmul.f32 %v2844, %v3804
      %v3869 = vmul.f32 %v2845, %v3805
      %v3870 = vmul.f32 %v2846, %v3806
      %v3871 = vmul.f32 %v2847, %v3807
      %v3872 = vmul.f32 %v2848, %v3808
      %v3873 = vmul.f32 %v2849, %v3809
      %v3874 = vmul.f32 %v2850, %v3810
      %v3875 = vmul.f32 %v2851, %v3811
      %v3876 = vmul.f32 %v2852, %v3812
      %v3877 = vmul.f32 %v2853, %v3813
      %v3878 = vmul.f32 %v2854, %v3814
      %v3879 = vmul.f32 %v2855, %v3815
      %v3880 = vmul.f32 %v2856, %v3816
      %v3881 = vmul.f32 %v2857, %v3817
      %v3882 = vmul.f32 %v2858, %v3818
      %v3883 = vmul.f32 %v2859, %v3819
      %v3884 = vmul.f32 %v2860, %v3820
      %v3885 = vmul.f32 %v2861, %v3821
      %v3886 = vmul.f32 %v2862, %v3822
      %v3887 = vmul.f32 %v2863, %v3823
      %v3888 = vmul.f32 %v2864, %v3824
      %v3889 = vmul.f32 %v2865, %v3825
      %v3890 = vmul.f32 %v2866, %v3826
      %v3891 = vmul.f32 %v2867, %v3827
      %v3892 = vmul.f32 %v2868, %v3828
      %v3893 = vmul.f32 %v2869, %v3829
      %v3894 = vmul.f32 %v2870, %v3830
      %v3895 = vmul.f32 %v2871, %v3831
      %v3896 = vmul.f32 %v2872, %v3832
      %v3897 = vmul.f32 %v2873, %v3833
      %v3898 = vmul.f32 %v2874, %v3834
      %v3899 = vmul.f32 %v2875, %v3835
      %v3900 = vmul.f32 %v2876, %v3836
      %v3901 = vmul.f32 %v2877, %v3837
      %v3902 = vmul.f32 %v2878, %v3838
      %v3903 = vmul.f32 %v2879, %v3839
      %v3904 = vmul.f32 %v2880, %v3840
      %v3905 = vmul.f32 %v2881, %v3841
      %v3906 = vmul.f32 %v2882, %v3842
      %v3907 = vmul.f32 %v2883, %v3843
      %v3908 = vmul.f32 %v2884, %v3844
      %v3909 = vmul.f32 %v2885, %v3845
      %v3910 = vmul.f32 %v2886, %v3846
      %v3911 = vmul.f32 %v2887, %v3847
      %v3912 = vmul.f32 %v2888, %v3848
      %v3913 = vmul.f32 %v2889, %v3849
      %v3914 = vmul.f32 %v2890, %v3850
      %v3915 = vmul.f32 %v2891, %v3851
      %v3916 = vmul.f32 %v2892, %v3852
      %v3917 = vmul.f32 %v2893, %v3853
      %v3918 = vmul.f32 %v2894, %v3854
      %v3919 = vmul.f32 %v2895, %v3855
      %v3920 = vmul.f32 %v2896, %v3856
      %v3921 = vmul.f32 %v2897, %v3857
      %v3922 = vmul.f32 %v2898, %v3858
      %v3923 = vld [vmem:[%s2] sm:$0x3]
      %v3925 = vlaneseq
      %v3926 = vshrl.u32 %v3925, 7
      %v3927 = vsub.s32 0, %v3926
      %v3928 = vrot.slane %v3923, %v3927
      %v3929 = vlaneseq
      %v3930 = vshrl.u32 %v3929, 7
      %v3931 = vsub.s32 1, %v3930
      %v3932 = vrot.slane %v3923, %v3931
      %v3935 = vmul.f32 %v3859, %v3928
      %v3936 = vmul.f32 %v3860, %v3932
      %v3937 = vmul.f32 %v3861, %v3928
      %v3938 = vmul.f32 %v3862, %v3932
      %v3939 = vmul.f32 %v3863, %v3928
      %v3940 = vmul.f32 %v3864, %v3932
      %v3941 = vmul.f32 %v3865, %v3928
      %v3942 = vmul.f32 %v3866, %v3932
      %v3943 = vmul.f32 %v3867, %v3928
      %v3944 = vmul.f32 %v3868, %v3932
      %v3945 = vmul.f32 %v3869, %v3928
      %v3946 = vmul.f32 %v3870, %v3932
      %v3947 = vmul.f32 %v3871, %v3928
      %v3948 = vmul.f32 %v3872, %v3932
      %v3949 = vmul.f32 %v3873, %v3928
      %v3950 = vmul.f32 %v3874, %v3932
      %v3951 = vmul.f32 %v3875, %v3928
      %v3952 = vmul.f32 %v3876, %v3932
      %v3953 = vmul.f32 %v3877, %v3928
      %v3954 = vmul.f32 %v3878, %v3932
      %v3955 = vmul.f32 %v3879, %v3928
      %v3956 = vmul.f32 %v3880, %v3932
      %v3957 = vmul.f32 %v3881, %v3928
      %v3958 = vmul.f32 %v3882, %v3932
      %v3959 = vmul.f32 %v3883, %v3928
      %v3960 = vmul.f32 %v3884, %v3932
      %v3961 = vmul.f32 %v3885, %v3928
      %v3962 = vmul.f32 %v3886, %v3932
      %v3963 = vmul.f32 %v3887, %v3928
      %v3964 = vmul.f32 %v3888, %v3932
      %v3965 = vmul.f32 %v3889, %v3928
      %v3966 = vmul.f32 %v3890, %v3932
      %v3967 = vmul.f32 %v3891, %v3928
      %v3968 = vmul.f32 %v3892, %v3932
      %v3969 = vmul.f32 %v3893, %v3928
      %v3970 = vmul.f32 %v3894, %v3932
      %v3971 = vmul.f32 %v3895, %v3928
      %v3972 = vmul.f32 %v3896, %v3932
      %v3973 = vmul.f32 %v3897, %v3928
      %v3974 = vmul.f32 %v3898, %v3932
      %v3975 = vmul.f32 %v3899, %v3928
      %v3976 = vmul.f32 %v3900, %v3932
      %v3977 = vmul.f32 %v3901, %v3928
      %v3978 = vmul.f32 %v3902, %v3932
      %v3979 = vmul.f32 %v3903, %v3928
      %v3980 = vmul.f32 %v3904, %v3932
      %v3981 = vmul.f32 %v3905, %v3928
      %v3982 = vmul.f32 %v3906, %v3932
      %v3983 = vmul.f32 %v3907, %v3928
      %v3984 = vmul.f32 %v3908, %v3932
      %v3985 = vmul.f32 %v3909, %v3928
      %v3986 = vmul.f32 %v3910, %v3932
      %v3987 = vmul.f32 %v3911, %v3928
      %v3988 = vmul.f32 %v3912, %v3932
      %v3989 = vmul.f32 %v3913, %v3928
      %v3990 = vmul.f32 %v3914, %v3932
      %v3991 = vmul.f32 %v3915, %v3928
      %v3992 = vmul.f32 %v3916, %v3932
      %v3993 = vmul.f32 %v3917, %v3928
      %v3994 = vmul.f32 %v3918, %v3932
      %v3995 = vmul.f32 %v3919, %v3928
      %v3996 = vmul.f32 %v3920, %v3932
      %v3997 = vmul.f32 %v3921, %v3928
      %v3998 = vmul.f32 %v3922, %v3932
      %3999 = vst [vmem:[%s271] sm:$0xff] %v3935
      %4000 = vst [vmem:[%s271 + $0x8] sm:$0xff] %v3936
      %4001 = vst [vmem:[%s271 + $0x10] sm:$0xff] %v3937
      %4002 = vst [vmem:[%s271 + $0x18] sm:$0xff] %v3938
      %4003 = vst [vmem:[%s271 + $0x20] sm:$0xff] %v3939
      %4004 = vst [vmem:[%s271 + $0x28] sm:$0xff] %v3940
      %4005 = vst [vmem:[%s271 + $0x30] sm:$0xff] %v3941
      %4006 = vst [vmem:[%s271 + $0x38] sm:$0xff] %v3942
      %4007 = vst [vmem:[%s271 + $0x40] sm:$0xff] %v3943
      %4008 = vst [vmem:[%s271 + $0x48] sm:$0xff] %v3944
      %4009 = vst [vmem:[%s271 + $0x50] sm:$0xff] %v3945
      %4010 = vst [vmem:[%s271 + $0x58] sm:$0xff] %v3946
      %4011 = vst [vmem:[%s271 + $0x60] sm:$0xff] %v3947
      %4012 = vst [vmem:[%s271 + $0x68] sm:$0xff] %v3948
      %4013 = vst [vmem:[%s271 + $0x70] sm:$0xff] %v3949
      %4014 = vst [vmem:[%s271 + $0x78] sm:$0xff] %v3950
      %4015 = vst [vmem:[%s271 + $0x80] sm:$0xff] %v3951
      %4016 = vst [vmem:[%s271 + $0x88] sm:$0xff] %v3952
      %4017 = vst [vmem:[%s271 + $0x90] sm:$0xff] %v3953
      %4018 = vst [vmem:[%s271 + $0x98] sm:$0xff] %v3954
      %4019 = vst [vmem:[%s271 + $0xa0] sm:$0xff] %v3955
      %4020 = vst [vmem:[%s271 + $0xa8] sm:$0xff] %v3956
      %4021 = vst [vmem:[%s271 + $0xb0] sm:$0xff] %v3957
      %4022 = vst [vmem:[%s271 + $0xb8] sm:$0xff] %v3958
      %4023 = vst [vmem:[%s271 + $0xc0] sm:$0xff] %v3959
      %4024 = vst [vmem:[%s271 + $0xc8] sm:$0xff] %v3960
      %4025 = vst [vmem:[%s271 + $0xd0] sm:$0xff] %v3961
      %4026 = vst [vmem:[%s271 + $0xd8] sm:$0xff] %v3962
      %4027 = vst [vmem:[%s271 + $0xe0] sm:$0xff] %v3963
      %4028 = vst [vmem:[%s271 + $0xe8] sm:$0xff] %v3964
      %4029 = vst [vmem:[%s271 + $0xf0] sm:$0xff] %v3965
      %4030 = vst [vmem:[%s271 + $0xf8] sm:$0xff] %v3966
      %4031 = vst [vmem:[%s271 + $0x100] sm:$0xff] %v3967
      %4032 = vst [vmem:[%s271 + $0x108] sm:$0xff] %v3968
      %4033 = vst [vmem:[%s271 + $0x110] sm:$0xff] %v3969
      %4034 = vst [vmem:[%s271 + $0x118] sm:$0xff] %v3970
      %4035 = vst [vmem:[%s271 + $0x120] sm:$0xff] %v3971
      %4036 = vst [vmem:[%s271 + $0x128] sm:$0xff] %v3972
      %4037 = vst [vmem:[%s271 + $0x130] sm:$0xff] %v3973
      %4038 = vst [vmem:[%s271 + $0x138] sm:$0xff] %v3974
      %4039 = vst [vmem:[%s271 + $0x140] sm:$0xff] %v3975
      %4040 = vst [vmem:[%s271 + $0x148] sm:$0xff] %v3976
      %4041 = vst [vmem:[%s271 + $0x150] sm:$0xff] %v3977
      %4042 = vst [vmem:[%s271 + $0x158] sm:$0xff] %v3978
      %4043 = vst [vmem:[%s271 + $0x160] sm:$0xff] %v3979
      %4044 = vst [vmem:[%s271 + $0x168] sm:$0xff] %v3980
      %4045 = vst [vmem:[%s271 + $0x170] sm:$0xff] %v3981
      %4046 = vst [vmem:[%s271 + $0x178] sm:$0xff] %v3982
      %4047 = vst [vmem:[%s271 + $0x180] sm:$0xff] %v3983
      %4048 = vst [vmem:[%s271 + $0x188] sm:$0xff] %v3984
      %4049 = vst [vmem:[%s271 + $0x190] sm:$0xff] %v3985
      %4050 = vst [vmem:[%s271 + $0x198] sm:$0xff] %v3986
      %4051 = vst [vmem:[%s271 + $0x1a0] sm:$0xff] %v3987
      %4052 = vst [vmem:[%s271 + $0x1a8] sm:$0xff] %v3988
      %4053 = vst [vmem:[%s271 + $0x1b0] sm:$0xff] %v3989
      %4054 = vst [vmem:[%s271 + $0x1b8] sm:$0xff] %v3990
      %4055 = vst [vmem:[%s271 + $0x1c0] sm:$0xff] %v3991
      %4056 = vst [vmem:[%s271 + $0x1c8] sm:$0xff] %v3992
      %4057 = vst [vmem:[%s271 + $0x1d0] sm:$0xff] %v3993
      %4058 = vst [vmem:[%s271 + $0x1d8] sm:$0xff] %v3994
      %4059 = vst [vmem:[%s271 + $0x1e0] sm:$0xff] %v3995
      %4060 = vst [vmem:[%s271 + $0x1e8] sm:$0xff] %v3996
      %4061 = vst [vmem:[%s271 + $0x1f0] sm:$0xff] %v3997
      %4062 = vst [vmem:[%s271 + $0x1f8] sm:$0xff] %v3998
      %v4063 = vmax.f32 %v3935, %v3936
      %4064 = vmax.xlane.f32.xlu0 %v4063
      %v4065 = vpop.xlane.xlu0 %4064
      %v4066 = vmax.f32 %v3937, %v3938
      %4067 = vmax.xlane.f32.xlu0 %v4066
      %v4068 = vpop.xlane.xlu0 %4067
      %v4069 = vmax.f32 %v3939, %v3940
      %4070 = vmax.xlane.f32.xlu0 %v4069
      %v4071 = vpop.xlane.xlu0 %4070
      %v4072 = vmax.f32 %v3941, %v3942
      %4073 = vmax.xlane.f32.xlu0 %v4072
      %v4074 = vpop.xlane.xlu0 %4073
      %v4075 = vmax.f32 %v3943, %v3944
      %4076 = vmax.xlane.f32.xlu0 %v4075
      %v4077 = vpop.xlane.xlu0 %4076
      %v4078 = vmax.f32 %v3945, %v3946
      %4079 = vmax.xlane.f32.xlu0 %v4078
      %v4080 = vpop.xlane.xlu0 %4079
      %v4081 = vmax.f32 %v3947, %v3948
      %4082 = vmax.xlane.f32.xlu0 %v4081
      %v4083 = vpop.xlane.xlu0 %4082
      %v4084 = vmax.f32 %v3949, %v3950
      %4085 = vmax.xlane.f32.xlu0 %v4084
      %v4086 = vpop.xlane.xlu0 %4085
      %v4087 = vmax.f32 %v3951, %v3952
      %4088 = vmax.xlane.f32.xlu0 %v4087
      %v4089 = vpop.xlane.xlu0 %4088
      %v4090 = vmax.f32 %v3953, %v3954
      %4091 = vmax.xlane.f32.xlu0 %v4090
      %v4092 = vpop.xlane.xlu0 %4091
      %v4093 = vmax.f32 %v3955, %v3956
      %4094 = vmax.xlane.f32.xlu0 %v4093
      %v4095 = vpop.xlane.xlu0 %4094
      %v4096 = vmax.f32 %v3957, %v3958
      %4097 = vmax.xlane.f32.xlu0 %v4096
      %v4098 = vpop.xlane.xlu0 %4097
      %v4099 = vmax.f32 %v3959, %v3960
      %4100 = vmax.xlane.f32.xlu0 %v4099
      %v4101 = vpop.xlane.xlu0 %4100
      %v4102 = vmax.f32 %v3961, %v3962
      %4103 = vmax.xlane.f32.xlu0 %v4102
      %v4104 = vpop.xlane.xlu0 %4103
      %v4105 = vmax.f32 %v3963, %v3964
      %4106 = vmax.xlane.f32.xlu0 %v4105
      %v4107 = vpop.xlane.xlu0 %4106
      %v4108 = vmax.f32 %v3965, %v3966
      %4109 = vmax.xlane.f32.xlu0 %v4108
      %v4110 = vpop.xlane.xlu0 %4109
      %v4111 = vmax.f32 %v3967, %v3968
      %4112 = vmax.xlane.f32.xlu0 %v4111
      %v4113 = vpop.xlane.xlu0 %4112
      %v4114 = vmax.f32 %v3969, %v3970
      %4115 = vmax.xlane.f32.xlu0 %v4114
      %v4116 = vpop.xlane.xlu0 %4115
      %v4117 = vmax.f32 %v3971, %v3972
      %4118 = vmax.xlane.f32.xlu0 %v4117
      %v4119 = vpop.xlane.xlu0 %4118
      %v4120 = vmax.f32 %v3973, %v3974
      %4121 = vmax.xlane.f32.xlu0 %v4120
      %v4122 = vpop.xlane.xlu0 %4121
      %v4123 = vmax.f32 %v3975, %v3976
      %4124 = vmax.xlane.f32.xlu0 %v4123
      %v4125 = vpop.xlane.xlu0 %4124
      %v4126 = vmax.f32 %v3977, %v3978
      %4127 = vmax.xlane.f32.xlu0 %v4126
      %v4128 = vpop.xlane.xlu0 %4127
      %v4129 = vmax.f32 %v3979, %v3980
      %4130 = vmax.xlane.f32.xlu0 %v4129
      %v4131 = vpop.xlane.xlu0 %4130
      %v4132 = vmax.f32 %v3981, %v3982
      %4133 = vmax.xlane.f32.xlu0 %v4132
      %v4134 = vpop.xlane.xlu0 %4133
      %v4135 = vmax.f32 %v3983, %v3984
      %4136 = vmax.xlane.f32.xlu0 %v4135
      %v4137 = vpop.xlane.xlu0 %4136
      %v4138 = vmax.f32 %v3985, %v3986
      %4139 = vmax.xlane.f32.xlu0 %v4138
      %v4140 = vpop.xlane.xlu0 %4139
      %v4141 = vmax.f32 %v3987, %v3988
      %4142 = vmax.xlane.f32.xlu0 %v4141
      %v4143 = vpop.xlane.xlu0 %4142
      %v4144 = vmax.f32 %v3989, %v3990
      %4145 = vmax.xlane.f32.xlu0 %v4144
      %v4146 = vpop.xlane.xlu0 %4145
      %v4147 = vmax.f32 %v3991, %v3992
      %4148 = vmax.xlane.f32.xlu0 %v4147
      %v4149 = vpop.xlane.xlu0 %4148
      %v4150 = vmax.f32 %v3993, %v3994
      %4151 = vmax.xlane.f32.xlu0 %v4150
      %v4152 = vpop.xlane.xlu0 %4151
      %v4153 = vmax.f32 %v3995, %v3996
      %4154 = vmax.xlane.f32.xlu0 %v4153
      %v4155 = vpop.xlane.xlu0 %4154
      %v4156 = vmax.f32 %v3997, %v3998
      %4157 = vmax.xlane.f32.xlu0 %v4156
      %v4158 = vpop.xlane.xlu0 %4157
      %vm4159 = vcmask 7168
      %4160 = vst.msk [vmem:[%s281] sm:$0xff] %vm4159, %v4065
      %4161 = vst.msk [vmem:[%s281 + $0x8] sm:$0xff] %vm4159, %v4068
      %4162 = vst.msk [vmem:[%s281 + $0x10] sm:$0xff] %vm4159, %v4071
      %4163 = vst.msk [vmem:[%s281 + $0x18] sm:$0xff] %vm4159, %v4074
      %4164 = vst.msk [vmem:[%s281 + $0x20] sm:$0xff] %vm4159, %v4077
      %4165 = vst.msk [vmem:[%s281 + $0x28] sm:$0xff] %vm4159, %v4080
      %4166 = vst.msk [vmem:[%s281 + $0x30] sm:$0xff] %vm4159, %v4083
      %4167 = vst.msk [vmem:[%s281 + $0x38] sm:$0xff] %vm4159, %v4086
      %4168 = vst.msk [vmem:[%s281 + $0x40] sm:$0xff] %vm4159, %v4089
      %4169 = vst.msk [vmem:[%s281 + $0x48] sm:$0xff] %vm4159, %v4092
      %4170 = vst.msk [vmem:[%s281 + $0x50] sm:$0xff] %vm4159, %v4095
      %4171 = vst.msk [vmem:[%s281 + $0x58] sm:$0xff] %vm4159, %v4098
      %4172 = vst.msk [vmem:[%s281 + $0x60] sm:$0xff] %vm4159, %v4101
      %4173 = vst.msk [vmem:[%s281 + $0x68] sm:$0xff] %vm4159, %v4104
      %4174 = vst.msk [vmem:[%s281 + $0x70] sm:$0xff] %vm4159, %v4107
      %4175 = vst.msk [vmem:[%s281 + $0x78] sm:$0xff] %vm4159, %v4110
      %4176 = vst.msk [vmem:[%s281 + $0x80] sm:$0xff] %vm4159, %v4113
      %4177 = vst.msk [vmem:[%s281 + $0x88] sm:$0xff] %vm4159, %v4116
      %4178 = vst.msk [vmem:[%s281 + $0x90] sm:$0xff] %vm4159, %v4119
      %4179 = vst.msk [vmem:[%s281 + $0x98] sm:$0xff] %vm4159, %v4122
      %4180 = vst.msk [vmem:[%s281 + $0xa0] sm:$0xff] %vm4159, %v4125
      %4181 = vst.msk [vmem:[%s281 + $0xa8] sm:$0xff] %vm4159, %v4128
      %4182 = vst.msk [vmem:[%s281 + $0xb0] sm:$0xff] %vm4159, %v4131
      %4183 = vst.msk [vmem:[%s281 + $0xb8] sm:$0xff] %vm4159, %v4134
      %4184 = vst.msk [vmem:[%s281 + $0xc0] sm:$0xff] %vm4159, %v4137
      %4185 = vst.msk [vmem:[%s281 + $0xc8] sm:$0xff] %vm4159, %v4140
      %4186 = vst.msk [vmem:[%s281 + $0xd0] sm:$0xff] %vm4159, %v4143
      %4187 = vst.msk [vmem:[%s281 + $0xd8] sm:$0xff] %vm4159, %v4146
      %4188 = vst.msk [vmem:[%s281 + $0xe0] sm:$0xff] %vm4159, %v4149
      %4189 = vst.msk [vmem:[%s281 + $0xe8] sm:$0xff] %vm4159, %v4152
      %4190 = vst.msk [vmem:[%s281 + $0xf0] sm:$0xff] %vm4159, %v4155
      %4191 = vst.msk [vmem:[%s281 + $0xf8] sm:$0xff] %vm4159, %v4158
      %s4192 = smul.u32 32, %s21
      %p4193 = scmp.lt.s32.totalorder %s20, 1
      %s4194 = scalar_select %p4193, %s20, 1
      %p4195 = scmp.lt.s32.totalorder %s4192, 31
      %s4196 = scalar_select %p4195, %s4192, 31
      %s4197 = smul.addr %s4196, 2
      %s4198 = smul.addr %s4194, 64
      %s4199 = sadd.s32 %s4197, %s4198
      %s4200 = smul.addr %s4199, 8
      %s4201 = scalar_lea.vmem %s3, %s4200
      %s4202 = smul.u32 32, %s21
      %p4203 = scmp.lt.s32.totalorder %s20, 1
      %s4204 = scalar_select %p4203, %s20, 1
      %p4205 = scmp.lt.s32.totalorder %s4202, 31
      %s4206 = scalar_select %p4205, %s4202, 31
      %s4207 = smul.addr %s4204, 32
      %s4208 = sadd.s32 %s4206, %s4207
      %s4209 = smul.addr %s4208, 8
      %s4210 = scalar_lea.vmem %s4, %s4209
      // Predicated region
      $region33: #{tanimoto_forward_hot_path.3} parent=31 // pred_check
        %p4211 = pneg %p123
      $region34: #{tanimoto_forward_hot_path.3} parent=31 // pred_check_branch
        %4213 = sbr.rel (%p4211) target = $region36
      $region35: #{tanimoto_forward_hot_path.3} parent=31 // pred_region
        %s4214 = smul.u32 32, %s21
      $region36: #{tanimoto_forward_hot_path.3} parent=31 // pred_fallthru
        _
      // Predicated region
      $region37: #{tanimoto_forward_hot_path.3} parent=31 // pred_check
        %p4215 = pneg %p151
      $region38: #{tanimoto_forward_hot_path.3} parent=31 // pred_check_branch
        %4217 = sbr.rel (%p4215) target = $region40
      $region39: #{tanimoto_forward_hot_path.3} parent=31 // pred_region
        %s4218 = smul.u32 32, %s21
      $region40: #{tanimoto_forward_hot_path.3} parent=31 // pred_fallthru
        _
    $region32: #{tanimoto_forward_hot_path.3} parent=5 // pred_fallthru
      _
    %p4219 = scmp.le.s32.totalorder 2, %s11
    // Predicated region
    $region41: #{tanimoto_forward_hot_path.3} parent=5 // pred_check
      %p4220 = pneg %p4219
    $region42: #{tanimoto_forward_hot_path.3} parent=5 // pred_check_branch
      %4222 = sbr.rel (%p4220) target = $region44
    $region43: #{tanimoto_forward_hot_path.3} parent=5 // pred_region
      %s4223 = ssub.s32 %s11, 2
      // Predicated region
      $region45: #{tanimoto_forward_hot_path.3} parent=43 // pred_check
        %p4224 = pneg %p129
      $region46: #{tanimoto_forward_hot_path.3} parent=43 // pred_check_branch
        %4226 = sbr.rel (%p4224) target = $region48
      $region47: #{tanimoto_forward_hot_path.3} parent=43 // pred_region
        %s4227 = smul.u32 32, %s23
        %p4228 = scmp.lt.s32.totalorder %s22, 1
        %s4229 = scalar_select %p4228, %s22, 1
        %p4230 = scmp.lt.s32.totalorder %s4227, 31
        %s4231 = scalar_select %p4230, %s4227, 31
        %s4232 = smul.addr %s4231, 2
        %s4233 = smul.addr %s4229, 64
        %s4234 = sadd.s32 %s4232, %s4233
        %s4235 = smul.addr %s4234, 8
        %s4236 = scalar_lea.vmem %s3, %s4235
      $region48: #{tanimoto_forward_hot_path.3} parent=43 // pred_fallthru
        _
      // Predicated region
      $region49: #{tanimoto_forward_hot_path.3} parent=43 // pred_check
        %p4237 = pneg %p157
      $region50: #{tanimoto_forward_hot_path.3} parent=43 // pred_check_branch
        %4239 = sbr.rel (%p4237) target = $region52
      $region51: #{tanimoto_forward_hot_path.3} parent=43 // pred_region
        %s4240 = smul.u32 32, %s23
        %p4241 = scmp.lt.s32.totalorder %s22, 1
        %s4242 = scalar_select %p4241, %s22, 1
        %p4243 = scmp.lt.s32.totalorder %s4240, 31
        %s4244 = scalar_select %p4243, %s4240, 31
        %s4245 = smul.addr %s4242, 32
        %s4246 = sadd.s32 %s4244, %s4245
        %s4247 = smul.addr %s4246, 8
        %s4248 = scalar_lea.vmem %s4, %s4247
      $region52: #{tanimoto_forward_hot_path.3} parent=43 // pred_fallthru
        _
    $region44: #{tanimoto_forward_hot_path.3} parent=5 // pred_fallthru
      _
  $region6: #{tanimoto_forward_hot_path.3} parent=0 // loop_footer
    %s15 = sadd.s32 1, %s11
  $region7: #{tanimoto_forward_hot_path.3} parent=0 // loop_footer_branch
    %10 = sbr.rel target = $region3
  $region8: #{tanimoto_forward_hot_path.3} parent=0 // loop_exit
    _

</llo_original>
